<compile_context>
chip_gen: v6e
topology: v6e:2x2x1
jax: 0.10.0
libtpu: 0.0.40
codegen_flags: <defaults>
</compile_context>

<pallas_src>
import jax
import jax.numpy as jnp
from jax.experimental import pallas as pl
from jax.experimental.pallas import tpu as pltpu

# ----------------------- synthetic CLIP text config -----------------------
VOCAB = 64                         # vocab size
B = 2                              # batch
S = 8                              # context length
D = 128                            # transformer width
H = 4                              # attention heads
HD = D // H                        # head dim
LAYERS = 2                         # transformer layers
E = 64                             # text_projection output dim (image_feat_size)
E_PAD = ((E + 127) // 128) * 128   # lane-dense padded projection width
EPS = 1e-5                         # LayerNorm eps (PyTorch default, used by CLIP)


def _layer_norm(x, g, b):
    mean = jnp.mean(x, axis=-1, keepdims=True)
    var = jnp.mean((x - mean) ** 2, axis=-1, keepdims=True)
    return (x - mean) * jax.lax.rsqrt(var + EPS) * g + b


# ------------- Pallas kernel: fused CLIP text tower (single call) ----------
def clip_text_tower_kernel(x_ref, ln1g_ref, ln1b_ref, wqkv_ref, bqkv_ref,
                           wo_ref, bo_ref, ln2g_ref, ln2b_ref,
                           wfc_ref, bfc_ref, wproj_ref, bproj_ref,
                           lnfg_ref, lnfb_ref, sel_ref, tproj_ref,
                           enc_ref, clf_ref):
    scale = 1.0 / (HD ** 0.5)
    x = x_ref[...]                                    # (B*S, D), VMEM-resident

    # Causal mask: built once, shared across layers / heads / batch elements.
    row = jax.lax.broadcasted_iota(jnp.int32, (S, S), 0)
    col = jax.lax.broadcasted_iota(jnp.int32, (S, S), 1)
    causal = jnp.where(col > row, -1e30, 0.0).astype(jnp.float32)   # (S, S)

    for li in range(LAYERS):                          # static unrolled layer loop
        # --- x = x + attn(ln_1(x)) (causal multi-head attention) ---
        h = _layer_norm(x, ln1g_ref[li], ln1b_ref[li])
        # one lane-dense QKV matmul over the whole batch: (B*S, D) @ (D, 3D)
        qkv = jnp.dot(h, wqkv_ref[li],
                      preferred_element_type=jnp.float32) + bqkv_ref[li]
        qkv3 = qkv.reshape(B, S, 3 * D)               # split batch out of sublanes
        wo_l = wo_ref[li]                             # (H, HD, D) per-head out-proj slabs
        attn = jnp.zeros((B * S, D), jnp.float32)
        for hh in range(H):                           # static head loop: score/softmax only
            lo = hh * HD
            qh = qkv3[:, :, lo:lo + HD]               # (B, S, HD)
            kh = qkv3[:, :, D + lo:D + lo + HD]
            vh = qkv3[:, :, 2 * D + lo:2 * D + lo + HD]
            sc = jnp.einsum('bqe,bke->bqk', qh, kh,
                            preferred_element_type=jnp.float32) * scale + causal
            sc = sc - jnp.max(sc, axis=-1, keepdims=True)
            p = jnp.exp(sc)
            p = p * pl.reciprocal(jnp.sum(p, axis=-1, keepdims=True), approx=True)
            oh = jnp.einsum('bqk,bke->bqe', p, vh,
                            preferred_element_type=jnp.float32)     # (B, S, HD)
            # Accumulate through this head's slab of the output projection
            # (== concat(heads) @ w_o, without the lane-width concatenate).
            attn = attn + jnp.dot(oh.reshape(B * S, HD), wo_l[hh],
                                  preferred_element_type=jnp.float32)
        x = x + attn + bo_ref[li]

        # --- x = x + mlp(ln_2(x)) with QuickGELU (CLIP's activation) ---
        h2 = _layer_norm(x, ln2g_ref[li], ln2b_ref[li])
        h2 = jnp.dot(h2, wfc_ref[li],
                     preferred_element_type=jnp.float32) + bfc_ref[li]
        h2 = h2 * jax.nn.sigmoid(1.702 * h2)          # QuickGELU
        h2 = jnp.dot(h2, wproj_ref[li],
                     preferred_element_type=jnp.float32) + bproj_ref[li]
        x = x + h2

    # --- ln_final (== encode_text output) ---
    ln = _layer_norm(x, lnfg_ref[...], lnfb_ref[...])
    enc_ref[...] = ln
    # --- classify_text: EOS gather (one-hot matmul) + text_projection ---
    eos = jnp.dot(sel_ref[...], ln, preferred_element_type=jnp.float32)     # (B, D)
    clf_ref[...] = jnp.dot(eos, tproj_ref[...], preferred_element_type=jnp.float32)


def online_clip_text_forward(text, params):
    """Pallas path: encode_text(text) and classify_text(text, encoded)."""
    b, s = text.shape
    # Glue (embedding gather + positional add); the hot path is in the fused kernel.
    x = params['token_emb'][text].astype(jnp.float32) + params['pos_emb'][None]
    x = x.reshape(b * s, D)                           # collapse batch into matmul M
    # EOS selector rows: one-hot over the flattened (B*S) token axis.
    eos_idx = jnp.arange(b) * s + jnp.argmax(text, axis=-1)
    sel = jax.nn.one_hot(eos_idx, b * s, dtype=jnp.float32)                 # (B, B*S)
    # Layout-only wrapper transforms (free in XLA):
    wo_heads = params['w_o'].reshape(LAYERS, H, HD, D)        # per-head out-proj slabs
    tproj_pad = jnp.pad(params['text_proj'], ((0, 0), (0, E_PAD - E)))      # lane-dense

    vmem = pl.BlockSpec(memory_space=pltpu.MemorySpace.VMEM)
    enc_flat, clf_pad = pl.pallas_call(
        clip_text_tower_kernel,
        out_shape=(jax.ShapeDtypeStruct((b * s, D), jnp.float32),
                   jax.ShapeDtypeStruct((b, E_PAD), jnp.float32)),
        in_specs=[vmem] * 17,
        out_specs=(vmem, vmem),
    )(x, params['ln1_g'], params['ln1_b'], params['w_qkv'], params['b_qkv'],
      wo_heads, params['b_o'], params['ln2_g'], params['ln2_b'],
      params['w_fc'], params['b_fc'], params['w_proj'], params['b_proj'],
      params['ln_f_g'], params['ln_f_b'], sel, tproj_pad)
    return enc_flat.reshape(b, s, D), clf_pad[:, :E]


# --------------------------- parameter creation ----------------------------
def init_params(key):
    ks = jax.random.split(key, 17)
    n = lambda k, shape, sc: jax.random.normal(k, shape, jnp.float32) * sc
    return {
        'token_emb': n(ks[0], (VOCAB, D), 0.02),
        'pos_emb':   n(ks[1], (S, D), 0.01),
        'text_proj': n(ks[2], (D, E), D ** -0.5),
        'ln_f_g': 1.0 + n(ks[3], (1, D), 0.02),
        'ln_f_b': n(ks[4], (1, D), 0.02),
        # transformer layers, stacked on a leading LAYERS axis
        'ln1_g': 1.0 + n(ks[5], (LAYERS, 1, D), 0.02),
        'ln1_b': n(ks[6], (LAYERS, 1, D), 0.02),
        'w_qkv': n(ks[7], (LAYERS, D, 3 * D), 0.02),
        'b_qkv': n(ks[8], (LAYERS, 1, 3 * D), 0.01),
        'w_o':   n(ks[9], (LAYERS, D, D), 0.02),
        'b_o':   n(ks[10], (LAYERS, 1, D), 0.01),
        'ln2_g': 1.0 + n(ks[11], (LAYERS, 1, D), 0.02),
        'ln2_b': n(ks[12], (LAYERS, 1, D), 0.02),
        'w_fc':  n(ks[13], (LAYERS, D, 4 * D), 0.02),
        'b_fc':  n(ks[14], (LAYERS, 1, 4 * D), 0.01),
        'w_proj': n(ks[15], (LAYERS, 4 * D, D), 0.02),
        'b_proj': n(ks[16], (LAYERS, 1, D), 0.01),
    }


# ------------------------- pure-JAX reference check ------------------------
def _ref_forward(text, params):
    b, s = text.shape
    x = params['token_emb'][text] + params['pos_emb'][None]
    mask = jnp.where(jnp.triu(jnp.ones((s, s)), 1) > 0, -1e30, 0.0)

    def block(xb, li):                                # xb: (S, D), one batch element
        h = _layer_norm(xb, params['ln1_g'][li], params['ln1_b'][li])
        qkv = h @ params['w_qkv'][li] + params['b_qkv'][li]
        q, k, v = jnp.split(qkv, 3, axis=-1)
        outs = []
        for hh in range(H):
            qh = q[:, hh * HD:(hh + 1) * HD]
            kh = k[:, hh * HD:(hh + 1) * HD]
            vh = v[:, hh * HD:(hh + 1) * HD]
            sc = qh @ kh.T / jnp.sqrt(jnp.float32(HD)) + mask
            outs.append(jax.nn.softmax(sc, axis=-1) @ vh)
        xb = xb + jnp.concatenate(outs, -1) @ params['w_o'][li] + params['b_o'][li]
        h2 = _layer_norm(xb, params['ln2_g'][li], params['ln2_b'][li])
        h2 = h2 @ params['w_fc'][li] + params['b_fc'][li]
        h2 = h2 * jax.nn.sigmoid(1.702 * h2)
        return xb + h2 @ params['w_proj'][li] + params['b_proj'][li]

    for li in range(LAYERS):
        x = jax.vmap(lambda xb: block(xb, li))(x)
    ln = _layer_norm(x, params['ln_f_g'], params['ln_f_b'])
    eos = ln[jnp.arange(b), jnp.argmax(text, axis=-1)]
    return ln, eos @ params['text_proj']


# TODO(synk): the visual branch (model.encode_image, a full ViT/ResNet) is not
# part of this text-path kernel; OnlineCLIP.forward itself only raises.

if __name__ == "__main__":
    key = jax.random.PRNGKey(0)
    pkey, tkey = jax.random.split(key)
    params = init_params(pkey)
    text = jax.random.randint(tkey, (B, S), 0, VOCAB, dtype=jnp.int32)

    encoded, clf = online_clip_text_forward(text, params)
    encoded, clf = jax.block_until_ready(encoded), jax.block_until_ready(clf)

    ref_encoded, ref_clf = _ref_forward(text, params)
    assert encoded.shape == (B, S, D) and clf.shape == (B, E)
    # Tolerance covers the EUP approximate reciprocal used in the softmax
    # denominator (the only deliberate approximation; matmuls stay f32).
    assert jnp.allclose(encoded, ref_encoded, atol=1e-2, rtol=1e-2)
    assert jnp.allclose(clf, ref_clf, atol=1e-2, rtol=1e-2)
    print("KERNEL_OK")
</pallas_src>

<mosaic_0001>
module attributes {stable_mosaic.version = 11 : i64} {
  func.func @clip_text_tower_kernel(%arg0: memref<16x128xf32, #tpu.memory_space<vmem>>, %arg1: memref<2x1x128xf32, #tpu.memory_space<vmem>>, %arg2: memref<2x1x128xf32, #tpu.memory_space<vmem>>, %arg3: memref<2x128x384xf32, #tpu.memory_space<vmem>>, %arg4: memref<2x1x384xf32, #tpu.memory_space<vmem>>, %arg5: memref<2x4x32x128xf32, #tpu.memory_space<vmem>>, %arg6: memref<2x1x128xf32, #tpu.memory_space<vmem>>, %arg7: memref<2x1x128xf32, #tpu.memory_space<vmem>>, %arg8: memref<2x1x128xf32, #tpu.memory_space<vmem>>, %arg9: memref<2x128x512xf32, #tpu.memory_space<vmem>>, %arg10: memref<2x1x512xf32, #tpu.memory_space<vmem>>, %arg11: memref<2x512x128xf32, #tpu.memory_space<vmem>>, %arg12: memref<2x1x128xf32, #tpu.memory_space<vmem>>, %arg13: memref<1x128xf32, #tpu.memory_space<vmem>>, %arg14: memref<1x128xf32, #tpu.memory_space<vmem>>, %arg15: memref<2x16xf32, #tpu.memory_space<vmem>>, %arg16: memref<128x128xf32, #tpu.memory_space<vmem>>, %arg17: memref<16x128xf32, #tpu.memory_space<vmem>>, %arg18: memref<2x128xf32, #tpu.memory_space<vmem>>) attributes {dimension_semantics = [], scalar_prefetch = 0 : i64, scratch_operands = 0 : i64, tpu.core_type = #tpu.core_type<tc>} {
    %c0 = arith.constant 0 : index
    %c0_0 = arith.constant 0 : index
    %0 = vector.load %arg0[%c0, %c0_0] : memref<16x128xf32, #tpu.memory_space<vmem>>, vector<16x128xf32>
    %1 = tpu.iota {dimensions = array<i32: 0>} : vector<8x8xi32>
    %2 = tpu.iota {dimensions = array<i32: 1>} : vector<8x8xi32>
    %3 = arith.cmpi sgt, %2, %1 : vector<8x8xi32>
    %cst = arith.constant -1.000000e+30 : f32
    %cst_1 = arith.constant 0.000000e+00 : f32
    %4 = vector.broadcast %cst : f32 to vector<8x8xf32>
    %5 = vector.broadcast %cst_1 : f32 to vector<8x8xf32>
    %6 = arith.select %3, %4, %5 : vector<8x8xi1>, vector<8x8xf32>
    %c0_2 = arith.constant 0 : index
    %c0_3 = arith.constant 0 : index
    %c0_4 = arith.constant 0 : index
    %7 = vector.load %arg1[%c0_2, %c0_3, %c0_4] : memref<2x1x128xf32, #tpu.memory_space<vmem>>, vector<1x1x128xf32>
    %8 = vector.shape_cast %7 : vector<1x1x128xf32> to vector<1x128xf32>
    %c0_5 = arith.constant 0 : index
    %c0_6 = arith.constant 0 : index
    %c0_7 = arith.constant 0 : index
    %9 = vector.load %arg2[%c0_5, %c0_6, %c0_7] : memref<2x1x128xf32, #tpu.memory_space<vmem>>, vector<1x1x128xf32>
    %10 = vector.shape_cast %9 : vector<1x1x128xf32> to vector<1x128xf32>
    %cst_8 = arith.constant dense<0.000000e+00> : vector<16xf32>
    %11 = vector.multi_reduction <add>, %0, %cst_8 [1] : vector<16x128xf32> to vector<16xf32>
    %12 = vector.shape_cast %11 : vector<16xf32> to vector<16x1xf32>
    %cst_9 = arith.constant 1.280000e+02 : f32
    %13 = vector.broadcast %cst_9 : f32 to vector<16x1xf32>
    %14 = arith.divf %12, %13 : vector<16x1xf32>
    %15 = vector.broadcast %14 : vector<16x1xf32> to vector<16x128xf32>
    %16 = arith.subf %0, %15 : vector<16x128xf32>
    %17 = arith.mulf %16, %16 : vector<16x128xf32>
    %cst_10 = arith.constant dense<0.000000e+00> : vector<16xf32>
    %18 = vector.multi_reduction <add>, %17, %cst_10 [1] : vector<16x128xf32> to vector<16xf32>
    %19 = vector.shape_cast %18 : vector<16xf32> to vector<16x1xf32>
    %cst_11 = arith.constant 1.280000e+02 : f32
    %20 = vector.broadcast %cst_11 : f32 to vector<16x1xf32>
    %21 = arith.divf %19, %20 : vector<16x1xf32>
    %22 = vector.broadcast %14 : vector<16x1xf32> to vector<16x128xf32>
    %23 = arith.subf %0, %22 : vector<16x128xf32>
    %cst_12 = arith.constant 9.99999974E-6 : f32
    %24 = vector.broadcast %cst_12 : f32 to vector<16x1xf32>
    %25 = arith.addf %21, %24 : vector<16x1xf32>
    %26 = math.rsqrt %25 : vector<16x1xf32>
    %27 = vector.broadcast %26 : vector<16x1xf32> to vector<16x128xf32>
    %28 = arith.mulf %23, %27 : vector<16x128xf32>
    %29 = vector.broadcast %8 : vector<1x128xf32> to vector<16x128xf32>
    %30 = arith.mulf %28, %29 : vector<16x128xf32>
    %31 = vector.broadcast %10 : vector<1x128xf32> to vector<16x128xf32>
    %32 = arith.addf %30, %31 : vector<16x128xf32>
    %c0_13 = arith.constant 0 : index
    %c0_14 = arith.constant 0 : index
    %c0_15 = arith.constant 0 : index
    %33 = vector.load %arg3[%c0_13, %c0_14, %c0_15] : memref<2x128x384xf32, #tpu.memory_space<vmem>>, vector<1x128x384xf32>
    %34 = vector.shape_cast %33 : vector<1x128x384xf32> to vector<128x384xf32>
    %cst_16 = arith.constant dense<0.000000e+00> : vector<16x384xf32>
    %35 = tpu.matmul %32, %34, %cst_16 {dimension_numbers = #tpu.dot_dimension_numbers<[1], [0], [0], [1], [0, 0, 1, 1], [], []>} : vector<16x128xf32>, vector<128x384xf32>, vector<16x384xf32> -> vector<16x384xf32>
    %c0_17 = arith.constant 0 : index
    %c0_18 = arith.constant 0 : index
    %c0_19 = arith.constant 0 : index
    %36 = vector.load %arg4[%c0_17, %c0_18, %c0_19] : memref<2x1x384xf32, #tpu.memory_space<vmem>>, vector<1x1x384xf32>
    %37 = vector.shape_cast %36 : vector<1x1x384xf32> to vector<1x384xf32>
    %38 = vector.broadcast %37 : vector<1x384xf32> to vector<16x384xf32>
    %39 = arith.addf %35, %38 : vector<16x384xf32>
    %40 = vector.shape_cast %39 : vector<16x384xf32> to vector<2x8x384xf32>
    %c0_20 = arith.constant 0 : index
    %c0_21 = arith.constant 0 : index
    %c0_22 = arith.constant 0 : index
    %c0_23 = arith.constant 0 : index
    %41 = vector.load %arg5[%c0_20, %c0_21, %c0_22, %c0_23] : memref<2x4x32x128xf32, #tpu.memory_space<vmem>>, vector<1x4x32x128xf32>
    %42 = vector.shape_cast %41 : vector<1x4x32x128xf32> to vector<4x32x128xf32>
    %cst_24 = arith.constant 0.000000e+00 : f32
    %43 = vector.broadcast %cst_24 : f32 to vector<16x128xf32>
    %44 = vector.extract_strided_slice %40 {offsets = [0, 0, 0], sizes = [2, 8, 32], strides = [1, 1, 1]} : vector<2x8x384xf32> to vector<2x8x32xf32>
    %45 = vector.extract_strided_slice %40 {offsets = [0, 0, 128], sizes = [2, 8, 32], strides = [1, 1, 1]} : vector<2x8x384xf32> to vector<2x8x32xf32>
    %46 = vector.extract_strided_slice %40 {offsets = [0, 0, 256], sizes = [2, 8, 32], strides = [1, 1, 1]} : vector<2x8x384xf32> to vector<2x8x32xf32>
    "tpu.trace_start"() <{level = 10 : i32, message = "bqe,bke->bqk"}> : () -> ()
    %cst_25 = arith.constant dense<0.000000e+00> : vector<2x8x8xf32>
    %47 = tpu.matmul %44, %45, %cst_25 {dimension_numbers = #tpu.dot_dimension_numbers<[2], [2], [1], [1], [0, 0, 0, 1, 1, 1], [0], [0]>} : vector<2x8x32xf32>, vector<2x8x32xf32>, vector<2x8x8xf32> -> vector<2x8x8xf32>
    "tpu.trace_stop"() : () -> ()
    %cst_26 = arith.constant 0.176776692 : f32
    %48 = vector.broadcast %cst_26 : f32 to vector<2x8x8xf32>
    %49 = arith.mulf %47, %48 : vector<2x8x8xf32>
    %50 = vector.shape_cast %6 : vector<8x8xf32> to vector<1x8x8xf32>
    %51 = vector.broadcast %50 : vector<1x8x8xf32> to vector<2x8x8xf32>
    %52 = arith.addf %49, %51 : vector<2x8x8xf32>
    %cst_27 = arith.constant dense<0xFF800000> : vector<2x8xf32>
    %53 = vector.multi_reduction <maximumf>, %52, %cst_27 [2] : vector<2x8x8xf32> to vector<2x8xf32>
    %54 = vector.shape_cast %53 : vector<2x8xf32> to vector<2x8x1xf32>
    %55 = vector.broadcast %54 : vector<2x8x1xf32> to vector<2x8x8xf32>
    %56 = arith.subf %52, %55 : vector<2x8x8xf32>
    %57 = math.exp %56 : vector<2x8x8xf32>
    %cst_28 = arith.constant dense<0.000000e+00> : vector<2x8xf32>
    %58 = vector.multi_reduction <add>, %57, %cst_28 [2] : vector<2x8x8xf32> to vector<2x8xf32>
    %59 = vector.shape_cast %58 : vector<2x8xf32> to vector<2x8x1xf32>
    %60 = tpu.reciprocal %59 {approx = true} : vector<2x8x1xf32> -> vector<2x8x1xf32>
    %61 = vector.broadcast %60 : vector<2x8x1xf32> to vector<2x8x8xf32>
    %62 = arith.mulf %57, %61 : vector<2x8x8xf32>
    "tpu.trace_start"() <{level = 10 : i32, message = "bqk,bke->bqe"}> : () -> ()
    %cst_29 = arith.constant dense<0.000000e+00> : vector<2x8x32xf32>
    %63 = tpu.matmul %62, %46, %cst_29 {dimension_numbers = #tpu.dot_dimension_numbers<[2], [1], [1], [2], [0, 0, 0, 1, 1, 2], [0], [0]>} : vector<2x8x8xf32>, vector<2x8x32xf32>, vector<2x8x32xf32> -> vector<2x8x32xf32>
    "tpu.trace_stop"() : () -> ()
    %64 = vector.shape_cast %63 : vector<2x8x32xf32> to vector<16x32xf32>
    %65 = vector.extract_strided_slice %42 {offsets = [0, 0, 0], sizes = [1, 32, 128], strides = [1, 1, 1]} : vector<4x32x128xf32> to vector<1x32x128xf32>
    %66 = vector.shape_cast %65 : vector<1x32x128xf32> to vector<32x128xf32>
    %cst_30 = arith.constant dense<0.000000e+00> : vector<16x128xf32>
    %67 = tpu.matmul %64, %66, %cst_30 {dimension_numbers = #tpu.dot_dimension_numbers<[1], [0], [0], [1], [0, 0, 1, 1], [], []>} : vector<16x32xf32>, vector<32x128xf32>, vector<16x128xf32> -> vector<16x128xf32>
    %68 = arith.addf %43, %67 : vector<16x128xf32>
    %69 = vector.extract_strided_slice %40 {offsets = [0, 0, 32], sizes = [2, 8, 32], strides = [1, 1, 1]} : vector<2x8x384xf32> to vector<2x8x32xf32>
    %70 = vector.extract_strided_slice %40 {offsets = [0, 0, 160], sizes = [2, 8, 32], strides = [1, 1, 1]} : vector<2x8x384xf32> to vector<2x8x32xf32>
    %71 = vector.extract_strided_slice %40 {offsets = [0, 0, 288], sizes = [2, 8, 32], strides = [1, 1, 1]} : vector<2x8x384xf32> to vector<2x8x32xf32>
    "tpu.trace_start"() <{level = 10 : i32, message = "bqe,bke->bqk"}> : () -> ()
    %cst_31 = arith.constant dense<0.000000e+00> : vector<2x8x8xf32>
    %72 = tpu.matmul %69, %70, %cst_31 {dimension_numbers = #tpu.dot_dimension_numbers<[2], [2], [1], [1], [0, 0, 0, 1, 1, 1], [0], [0]>} : vector<2x8x32xf32>, vector<2x8x32xf32>, vector<2x8x8xf32> -> vector<2x8x8xf32>
    "tpu.trace_stop"() : () -> ()
    %cst_32 = arith.constant 0.176776692 : f32
    %73 = vector.broadcast %cst_32 : f32 to vector<2x8x8xf32>
    %74 = arith.mulf %72, %73 : vector<2x8x8xf32>
    %75 = vector.shape_cast %6 : vector<8x8xf32> to vector<1x8x8xf32>
    %76 = vector.broadcast %75 : vector<1x8x8xf32> to vector<2x8x8xf32>
    %77 = arith.addf %74, %76 : vector<2x8x8xf32>
    %cst_33 = arith.constant dense<0xFF800000> : vector<2x8xf32>
    %78 = vector.multi_reduction <maximumf>, %77, %cst_33 [2] : vector<2x8x8xf32> to vector<2x8xf32>
    %79 = vector.shape_cast %78 : vector<2x8xf32> to vector<2x8x1xf32>
    %80 = vector.broadcast %79 : vector<2x8x1xf32> to vector<2x8x8xf32>
    %81 = arith.subf %77, %80 : vector<2x8x8xf32>
    %82 = math.exp %81 : vector<2x8x8xf32>
    %cst_34 = arith.constant dense<0.000000e+00> : vector<2x8xf32>
    %83 = vector.multi_reduction <add>, %82, %cst_34 [2] : vector<2x8x8xf32> to vector<2x8xf32>
    %84 = vector.shape_cast %83 : vector<2x8xf32> to vector<2x8x1xf32>
    %85 = tpu.reciprocal %84 {approx = true} : vector<2x8x1xf32> -> vector<2x8x1xf32>
    %86 = vector.broadcast %85 : vector<2x8x1xf32> to vector<2x8x8xf32>
    %87 = arith.mulf %82, %86 : vector<2x8x8xf32>
    "tpu.trace_start"() <{level = 10 : i32, message = "bqk,bke->bqe"}> : () -> ()
    %cst_35 = arith.constant dense<0.000000e+00> : vector<2x8x32xf32>
    %88 = tpu.matmul %87, %71, %cst_35 {dimension_numbers = #tpu.dot_dimension_numbers<[2], [1], [1], [2], [0, 0, 0, 1, 1, 2], [0], [0]>} : vector<2x8x8xf32>, vector<2x8x32xf32>, vector<2x8x32xf32> -> vector<2x8x32xf32>
    "tpu.trace_stop"() : () -> ()
    %89 = vector.shape_cast %88 : vector<2x8x32xf32> to vector<16x32xf32>
    %90 = vector.extract_strided_slice %42 {offsets = [1, 0, 0], sizes = [1, 32, 128], strides = [1, 1, 1]} : vector<4x32x128xf32> to vector<1x32x128xf32>
    %91 = vector.shape_cast %90 : vector<1x32x128xf32> to vector<32x128xf32>
    %cst_36 = arith.constant dense<0.000000e+00> : vector<16x128xf32>
    %92 = tpu.matmul %89, %91, %cst_36 {dimension_numbers = #tpu.dot_dimension_numbers<[1], [0], [0], [1], [0, 0, 1, 1], [], []>} : vector<16x32xf32>, vector<32x128xf32>, vector<16x128xf32> -> vector<16x128xf32>
    %93 = arith.addf %68, %92 : vector<16x128xf32>
    %94 = vector.extract_strided_slice %40 {offsets = [0, 0, 64], sizes = [2, 8, 32], strides = [1, 1, 1]} : vector<2x8x384xf32> to vector<2x8x32xf32>
    %95 = vector.extract_strided_slice %40 {offsets = [0, 0, 192], sizes = [2, 8, 32], strides = [1, 1, 1]} : vector<2x8x384xf32> to vector<2x8x32xf32>
    %96 = vector.extract_strided_slice %40 {offsets = [0, 0, 320], sizes = [2, 8, 32], strides = [1, 1, 1]} : vector<2x8x384xf32> to vector<2x8x32xf32>
    "tpu.trace_start"() <{level = 10 : i32, message = "bqe,bke->bqk"}> : () -> ()
    %cst_37 = arith.constant dense<0.000000e+00> : vector<2x8x8xf32>
    %97 = tpu.matmul %94, %95, %cst_37 {dimension_numbers = #tpu.dot_dimension_numbers<[2], [2], [1], [1], [0, 0, 0, 1, 1, 1], [0], [0]>} : vector<2x8x32xf32>, vector<2x8x32xf32>, vector<2x8x8xf32> -> vector<2x8x8xf32>
    "tpu.trace_stop"() : () -> ()
    %cst_38 = arith.constant 0.176776692 : f32
    %98 = vector.broadcast %cst_38 : f32 to vector<2x8x8xf32>
    %99 = arith.mulf %97, %98 : vector<2x8x8xf32>
    %100 = vector.shape_cast %6 : vector<8x8xf32> to vector<1x8x8xf32>
    %101 = vector.broadcast %100 : vector<1x8x8xf32> to vector<2x8x8xf32>
    %102 = arith.addf %99, %101 : vector<2x8x8xf32>
    %cst_39 = arith.constant dense<0xFF800000> : vector<2x8xf32>
    %103 = vector.multi_reduction <maximumf>, %102, %cst_39 [2] : vector<2x8x8xf32> to vector<2x8xf32>
    %104 = vector.shape_cast %103 : vector<2x8xf32> to vector<2x8x1xf32>
    %105 = vector.broadcast %104 : vector<2x8x1xf32> to vector<2x8x8xf32>
    %106 = arith.subf %102, %105 : vector<2x8x8xf32>
    %107 = math.exp %106 : vector<2x8x8xf32>
    %cst_40 = arith.constant dense<0.000000e+00> : vector<2x8xf32>
    %108 = vector.multi_reduction <add>, %107, %cst_40 [2] : vector<2x8x8xf32> to vector<2x8xf32>
    %109 = vector.shape_cast %108 : vector<2x8xf32> to vector<2x8x1xf32>
    %110 = tpu.reciprocal %109 {approx = true} : vector<2x8x1xf32> -> vector<2x8x1xf32>
    %111 = vector.broadcast %110 : vector<2x8x1xf32> to vector<2x8x8xf32>
    %112 = arith.mulf %107, %111 : vector<2x8x8xf32>
    "tpu.trace_start"() <{level = 10 : i32, message = "bqk,bke->bqe"}> : () -> ()
    %cst_41 = arith.constant dense<0.000000e+00> : vector<2x8x32xf32>
    %113 = tpu.matmul %112, %96, %cst_41 {dimension_numbers = #tpu.dot_dimension_numbers<[2], [1], [1], [2], [0, 0, 0, 1, 1, 2], [0], [0]>} : vector<2x8x8xf32>, vector<2x8x32xf32>, vector<2x8x32xf32> -> vector<2x8x32xf32>
    "tpu.trace_stop"() : () -> ()
    %114 = vector.shape_cast %113 : vector<2x8x32xf32> to vector<16x32xf32>
    %115 = vector.extract_strided_slice %42 {offsets = [2, 0, 0], sizes = [1, 32, 128], strides = [1, 1, 1]} : vector<4x32x128xf32> to vector<1x32x128xf32>
    %116 = vector.shape_cast %115 : vector<1x32x128xf32> to vector<32x128xf32>
    %cst_42 = arith.constant dense<0.000000e+00> : vector<16x128xf32>
    %117 = tpu.matmul %114, %116, %cst_42 {dimension_numbers = #tpu.dot_dimension_numbers<[1], [0], [0], [1], [0, 0, 1, 1], [], []>} : vector<16x32xf32>, vector<32x128xf32>, vector<16x128xf32> -> vector<16x128xf32>
    %118 = arith.addf %93, %117 : vector<16x128xf32>
    %119 = vector.extract_strided_slice %40 {offsets = [0, 0, 96], sizes = [2, 8, 32], strides = [1, 1, 1]} : vector<2x8x384xf32> to vector<2x8x32xf32>
    %120 = vector.extract_strided_slice %40 {offsets = [0, 0, 224], sizes = [2, 8, 32], strides = [1, 1, 1]} : vector<2x8x384xf32> to vector<2x8x32xf32>
    %121 = vector.extract_strided_slice %40 {offsets = [0, 0, 352], sizes = [2, 8, 32], strides = [1, 1, 1]} : vector<2x8x384xf32> to vector<2x8x32xf32>
    "tpu.trace_start"() <{level = 10 : i32, message = "bqe,bke->bqk"}> : () -> ()
    %cst_43 = arith.constant dense<0.000000e+00> : vector<2x8x8xf32>
    %122 = tpu.matmul %119, %120, %cst_43 {dimension_numbers = #tpu.dot_dimension_numbers<[2], [2], [1], [1], [0, 0, 0, 1, 1, 1], [0], [0]>} : vector<2x8x32xf32>, vector<2x8x32xf32>, vector<2x8x8xf32> -> vector<2x8x8xf32>
    "tpu.trace_stop"() : () -> ()
    %cst_44 = arith.constant 0.176776692 : f32
    %123 = vector.broadcast %cst_44 : f32 to vector<2x8x8xf32>
    %124 = arith.mulf %122, %123 : vector<2x8x8xf32>
    %125 = vector.shape_cast %6 : vector<8x8xf32> to vector<1x8x8xf32>
    %126 = vector.broadcast %125 : vector<1x8x8xf32> to vector<2x8x8xf32>
    %127 = arith.addf %124, %126 : vector<2x8x8xf32>
    %cst_45 = arith.constant dense<0xFF800000> : vector<2x8xf32>
    %128 = vector.multi_reduction <maximumf>, %127, %cst_45 [2] : vector<2x8x8xf32> to vector<2x8xf32>
    %129 = vector.shape_cast %128 : vector<2x8xf32> to vector<2x8x1xf32>
    %130 = vector.broadcast %129 : vector<2x8x1xf32> to vector<2x8x8xf32>
    %131 = arith.subf %127, %130 : vector<2x8x8xf32>
    %132 = math.exp %131 : vector<2x8x8xf32>
    %cst_46 = arith.constant dense<0.000000e+00> : vector<2x8xf32>
    %133 = vector.multi_reduction <add>, %132, %cst_46 [2] : vector<2x8x8xf32> to vector<2x8xf32>
    %134 = vector.shape_cast %133 : vector<2x8xf32> to vector<2x8x1xf32>
    %135 = tpu.reciprocal %134 {approx = true} : vector<2x8x1xf32> -> vector<2x8x1xf32>
    %136 = vector.broadcast %135 : vector<2x8x1xf32> to vector<2x8x8xf32>
    %137 = arith.mulf %132, %136 : vector<2x8x8xf32>
    "tpu.trace_start"() <{level = 10 : i32, message = "bqk,bke->bqe"}> : () -> ()
    %cst_47 = arith.constant dense<0.000000e+00> : vector<2x8x32xf32>
    %138 = tpu.matmul %137, %121, %cst_47 {dimension_numbers = #tpu.dot_dimension_numbers<[2], [1], [1], [2], [0, 0, 0, 1, 1, 2], [0], [0]>} : vector<2x8x8xf32>, vector<2x8x32xf32>, vector<2x8x32xf32> -> vector<2x8x32xf32>
    "tpu.trace_stop"() : () -> ()
    %139 = vector.shape_cast %138 : vector<2x8x32xf32> to vector<16x32xf32>
    %140 = vector.extract_strided_slice %42 {offsets = [3, 0, 0], sizes = [1, 32, 128], strides = [1, 1, 1]} : vector<4x32x128xf32> to vector<1x32x128xf32>
    %141 = vector.shape_cast %140 : vector<1x32x128xf32> to vector<32x128xf32>
    %cst_48 = arith.constant dense<0.000000e+00> : vector<16x128xf32>
    %142 = tpu.matmul %139, %141, %cst_48 {dimension_numbers = #tpu.dot_dimension_numbers<[1], [0], [0], [1], [0, 0, 1, 1], [], []>} : vector<16x32xf32>, vector<32x128xf32>, vector<16x128xf32> -> vector<16x128xf32>
    %143 = arith.addf %118, %142 : vector<16x128xf32>
    %144 = arith.addf %0, %143 : vector<16x128xf32>
    %c0_49 = arith.constant 0 : index
    %c0_50 = arith.constant 0 : index
    %c0_51 = arith.constant 0 : index
    %145 = vector.load %arg6[%c0_49, %c0_50, %c0_51] : memref<2x1x128xf32, #tpu.memory_space<vmem>>, vector<1x1x128xf32>
    %146 = vector.shape_cast %145 : vector<1x1x128xf32> to vector<1x128xf32>
    %147 = vector.broadcast %146 : vector<1x128xf32> to vector<16x128xf32>
    %148 = arith.addf %144, %147 : vector<16x128xf32>
    %c0_52 = arith.constant 0 : index
    %c0_53 = arith.constant 0 : index
    %c0_54 = arith.constant 0 : index
    %149 = vector.load %arg7[%c0_52, %c0_53, %c0_54] : memref<2x1x128xf32, #tpu.memory_space<vmem>>, vector<1x1x128xf32>
    %150 = vector.shape_cast %149 : vector<1x1x128xf32> to vector<1x128xf32>
    %c0_55 = arith.constant 0 : index
    %c0_56 = arith.constant 0 : index
    %c0_57 = arith.constant 0 : index
    %151 = vector.load %arg8[%c0_55, %c0_56, %c0_57] : memref<2x1x128xf32, #tpu.memory_space<vmem>>, vector<1x1x128xf32>
    %152 = vector.shape_cast %151 : vector<1x1x128xf32> to vector<1x128xf32>
    %cst_58 = arith.constant dense<0.000000e+00> : vector<16xf32>
    %153 = vector.multi_reduction <add>, %148, %cst_58 [1] : vector<16x128xf32> to vector<16xf32>
    %154 = vector.shape_cast %153 : vector<16xf32> to vector<16x1xf32>
    %cst_59 = arith.constant 1.280000e+02 : f32
    %155 = vector.broadcast %cst_59 : f32 to vector<16x1xf32>
    %156 = arith.divf %154, %155 : vector<16x1xf32>
    %157 = vector.broadcast %156 : vector<16x1xf32> to vector<16x128xf32>
    %158 = arith.subf %148, %157 : vector<16x128xf32>
    %159 = arith.mulf %158, %158 : vector<16x128xf32>
    %cst_60 = arith.constant dense<0.000000e+00> : vector<16xf32>
    %160 = vector.multi_reduction <add>, %159, %cst_60 [1] : vector<16x128xf32> to vector<16xf32>
    %161 = vector.shape_cast %160 : vector<16xf32> to vector<16x1xf32>
    %cst_61 = arith.constant 1.280000e+02 : f32
    %162 = vector.broadcast %cst_61 : f32 to vector<16x1xf32>
    %163 = arith.divf %161, %162 : vector<16x1xf32>
    %164 = vector.broadcast %156 : vector<16x1xf32> to vector<16x128xf32>
    %165 = arith.subf %148, %164 : vector<16x128xf32>
    %cst_62 = arith.constant 9.99999974E-6 : f32
    %166 = vector.broadcast %cst_62 : f32 to vector<16x1xf32>
    %167 = arith.addf %163, %166 : vector<16x1xf32>
    %168 = math.rsqrt %167 : vector<16x1xf32>
    %169 = vector.broadcast %168 : vector<16x1xf32> to vector<16x128xf32>
    %170 = arith.mulf %165, %169 : vector<16x128xf32>
    %171 = vector.broadcast %150 : vector<1x128xf32> to vector<16x128xf32>
    %172 = arith.mulf %170, %171 : vector<16x128xf32>
    %173 = vector.broadcast %152 : vector<1x128xf32> to vector<16x128xf32>
    %174 = arith.addf %172, %173 : vector<16x128xf32>
    %c0_63 = arith.constant 0 : index
    %c0_64 = arith.constant 0 : index
    %c0_65 = arith.constant 0 : index
    %175 = vector.load %arg9[%c0_63, %c0_64, %c0_65] : memref<2x128x512xf32, #tpu.memory_space<vmem>>, vector<1x128x512xf32>
    %176 = vector.shape_cast %175 : vector<1x128x512xf32> to vector<128x512xf32>
    %cst_66 = arith.constant dense<0.000000e+00> : vector<16x512xf32>
    %177 = tpu.matmul %174, %176, %cst_66 {dimension_numbers = #tpu.dot_dimension_numbers<[1], [0], [0], [1], [0, 0, 1, 1], [], []>} : vector<16x128xf32>, vector<128x512xf32>, vector<16x512xf32> -> vector<16x512xf32>
    %c0_67 = arith.constant 0 : index
    %c0_68 = arith.constant 0 : index
    %c0_69 = arith.constant 0 : index
    %178 = vector.load %arg10[%c0_67, %c0_68, %c0_69] : memref<2x1x512xf32, #tpu.memory_space<vmem>>, vector<1x1x512xf32>
    %179 = vector.shape_cast %178 : vector<1x1x512xf32> to vector<1x512xf32>
    %180 = vector.broadcast %179 : vector<1x512xf32> to vector<16x512xf32>
    %181 = arith.addf %177, %180 : vector<16x512xf32>
    %cst_70 = arith.constant 1.702000e+00 : f32
    %182 = vector.broadcast %cst_70 : f32 to vector<16x512xf32>
    %183 = arith.mulf %182, %181 : vector<16x512xf32>
    %184 = arith.negf %183 : vector<16x512xf32>
    %185 = math.exp %184 : vector<16x512xf32>
    %cst_71 = arith.constant 1.000000e+00 : f32
    %186 = vector.broadcast %cst_71 : f32 to vector<16x512xf32>
    %187 = arith.addf %186, %185 : vector<16x512xf32>
    %188 = arith.divf %186, %187 : vector<16x512xf32>
    %189 = arith.mulf %181, %188 : vector<16x512xf32>
    %c0_72 = arith.constant 0 : index
    %c0_73 = arith.constant 0 : index
    %c0_74 = arith.constant 0 : index
    %190 = vector.load %arg11[%c0_72, %c0_73, %c0_74] : memref<2x512x128xf32, #tpu.memory_space<vmem>>, vector<1x512x128xf32>
    %191 = vector.shape_cast %190 : vector<1x512x128xf32> to vector<512x128xf32>
    %cst_75 = arith.constant dense<0.000000e+00> : vector<16x128xf32>
    %192 = tpu.matmul %189, %191, %cst_75 {dimension_numbers = #tpu.dot_dimension_numbers<[1], [0], [0], [1], [0, 0, 1, 1], [], []>} : vector<16x512xf32>, vector<512x128xf32>, vector<16x128xf32> -> vector<16x128xf32>
    %c0_76 = arith.constant 0 : index
    %c0_77 = arith.constant 0 : index
    %c0_78 = arith.constant 0 : index
    %193 = vector.load %arg12[%c0_76, %c0_77, %c0_78] : memref<2x1x128xf32, #tpu.memory_space<vmem>>, vector<1x1x128xf32>
    %194 = vector.shape_cast %193 : vector<1x1x128xf32> to vector<1x128xf32>
    %195 = vector.broadcast %194 : vector<1x128xf32> to vector<16x128xf32>
    %196 = arith.addf %192, %195 : vector<16x128xf32>
    %197 = arith.addf %148, %196 : vector<16x128xf32>
    %c1 = arith.constant 1 : index
    %c0_79 = arith.constant 0 : index
    %c0_80 = arith.constant 0 : index
    %198 = vector.load %arg1[%c1, %c0_79, %c0_80] : memref<2x1x128xf32, #tpu.memory_space<vmem>>, vector<1x1x128xf32>
    %199 = vector.shape_cast %198 : vector<1x1x128xf32> to vector<1x128xf32>
    %c1_81 = arith.constant 1 : index
    %c0_82 = arith.constant 0 : index
    %c0_83 = arith.constant 0 : index
    %200 = vector.load %arg2[%c1_81, %c0_82, %c0_83] : memref<2x1x128xf32, #tpu.memory_space<vmem>>, vector<1x1x128xf32>
    %201 = vector.shape_cast %200 : vector<1x1x128xf32> to vector<1x128xf32>
    %cst_84 = arith.constant dense<0.000000e+00> : vector<16xf32>
    %202 = vector.multi_reduction <add>, %197, %cst_84 [1] : vector<16x128xf32> to vector<16xf32>
    %203 = vector.shape_cast %202 : vector<16xf32> to vector<16x1xf32>
    %cst_85 = arith.constant 1.280000e+02 : f32
    %204 = vector.broadcast %cst_85 : f32 to vector<16x1xf32>
    %205 = arith.divf %203, %204 : vector<16x1xf32>
    %206 = vector.broadcast %205 : vector<16x1xf32> to vector<16x128xf32>
    %207 = arith.subf %197, %206 : vector<16x128xf32>
    %208 = arith.mulf %207, %207 : vector<16x128xf32>
    %cst_86 = arith.constant dense<0.000000e+00> : vector<16xf32>
    %209 = vector.multi_reduction <add>, %208, %cst_86 [1] : vector<16x128xf32> to vector<16xf32>
    %210 = vector.shape_cast %209 : vector<16xf32> to vector<16x1xf32>
    %cst_87 = arith.constant 1.280000e+02 : f32
    %211 = vector.broadcast %cst_87 : f32 to vector<16x1xf32>
    %212 = arith.divf %210, %211 : vector<16x1xf32>
    %213 = vector.broadcast %205 : vector<16x1xf32> to vector<16x128xf32>
    %214 = arith.subf %197, %213 : vector<16x128xf32>
    %cst_88 = arith.constant 9.99999974E-6 : f32
    %215 = vector.broadcast %cst_88 : f32 to vector<16x1xf32>
    %216 = arith.addf %212, %215 : vector<16x1xf32>
    %217 = math.rsqrt %216 : vector<16x1xf32>
    %218 = vector.broadcast %217 : vector<16x1xf32> to vector<16x128xf32>
    %219 = arith.mulf %214, %218 : vector<16x128xf32>
    %220 = vector.broadcast %199 : vector<1x128xf32> to vector<16x128xf32>
    %221 = arith.mulf %219, %220 : vector<16x128xf32>
    %222 = vector.broadcast %201 : vector<1x128xf32> to vector<16x128xf32>
    %223 = arith.addf %221, %222 : vector<16x128xf32>
    %c1_89 = arith.constant 1 : index
    %c0_90 = arith.constant 0 : index
    %c0_91 = arith.constant 0 : index
    %224 = vector.load %arg3[%c1_89, %c0_90, %c0_91] : memref<2x128x384xf32, #tpu.memory_space<vmem>>, vector<1x128x384xf32>
    %225 = vector.shape_cast %224 : vector<1x128x384xf32> to vector<128x384xf32>
    %cst_92 = arith.constant dense<0.000000e+00> : vector<16x384xf32>
    %226 = tpu.matmul %223, %225, %cst_92 {dimension_numbers = #tpu.dot_dimension_numbers<[1], [0], [0], [1], [0, 0, 1, 1], [], []>} : vector<16x128xf32>, vector<128x384xf32>, vector<16x384xf32> -> vector<16x384xf32>
    %c1_93 = arith.constant 1 : index
    %c0_94 = arith.constant 0 : index
    %c0_95 = arith.constant 0 : index
    %227 = vector.load %arg4[%c1_93, %c0_94, %c0_95] : memref<2x1x384xf32, #tpu.memory_space<vmem>>, vector<1x1x384xf32>
    %228 = vector.shape_cast %227 : vector<1x1x384xf32> to vector<1x384xf32>
    %229 = vector.broadcast %228 : vector<1x384xf32> to vector<16x384xf32>
    %230 = arith.addf %226, %229 : vector<16x384xf32>
    %231 = vector.shape_cast %230 : vector<16x384xf32> to vector<2x8x384xf32>
    %c1_96 = arith.constant 1 : index
    %c0_97 = arith.constant 0 : index
    %c0_98 = arith.constant 0 : index
    %c0_99 = arith.constant 0 : index
    %232 = vector.load %arg5[%c1_96, %c0_97, %c0_98, %c0_99] : memref<2x4x32x128xf32, #tpu.memory_space<vmem>>, vector<1x4x32x128xf32>
    %233 = vector.shape_cast %232 : vector<1x4x32x128xf32> to vector<4x32x128xf32>
    %cst_100 = arith.constant 0.000000e+00 : f32
    %234 = vector.broadcast %cst_100 : f32 to vector<16x128xf32>
    %235 = vector.extract_strided_slice %231 {offsets = [0, 0, 0], sizes = [2, 8, 32], strides = [1, 1, 1]} : vector<2x8x384xf32> to vector<2x8x32xf32>
    %236 = vector.extract_strided_slice %231 {offsets = [0, 0, 128], sizes = [2, 8, 32], strides = [1, 1, 1]} : vector<2x8x384xf32> to vector<2x8x32xf32>
    %237 = vector.extract_strided_slice %231 {offsets = [0, 0, 256], sizes = [2, 8, 32], strides = [1, 1, 1]} : vector<2x8x384xf32> to vector<2x8x32xf32>
    "tpu.trace_start"() <{level = 10 : i32, message = "bqe,bke->bqk"}> : () -> ()
    %cst_101 = arith.constant dense<0.000000e+00> : vector<2x8x8xf32>
    %238 = tpu.matmul %235, %236, %cst_101 {dimension_numbers = #tpu.dot_dimension_numbers<[2], [2], [1], [1], [0, 0, 0, 1, 1, 1], [0], [0]>} : vector<2x8x32xf32>, vector<2x8x32xf32>, vector<2x8x8xf32> -> vector<2x8x8xf32>
    "tpu.trace_stop"() : () -> ()
    %cst_102 = arith.constant 0.176776692 : f32
    %239 = vector.broadcast %cst_102 : f32 to vector<2x8x8xf32>
    %240 = arith.mulf %238, %239 : vector<2x8x8xf32>
    %241 = vector.shape_cast %6 : vector<8x8xf32> to vector<1x8x8xf32>
    %242 = vector.broadcast %241 : vector<1x8x8xf32> to vector<2x8x8xf32>
    %243 = arith.addf %240, %242 : vector<2x8x8xf32>
    %cst_103 = arith.constant dense<0xFF800000> : vector<2x8xf32>
    %244 = vector.multi_reduction <maximumf>, %243, %cst_103 [2] : vector<2x8x8xf32> to vector<2x8xf32>
    %245 = vector.shape_cast %244 : vector<2x8xf32> to vector<2x8x1xf32>
    %246 = vector.broadcast %245 : vector<2x8x1xf32> to vector<2x8x8xf32>
    %247 = arith.subf %243, %246 : vector<2x8x8xf32>
    %248 = math.exp %247 : vector<2x8x8xf32>
    %cst_104 = arith.constant dense<0.000000e+00> : vector<2x8xf32>
    %249 = vector.multi_reduction <add>, %248, %cst_104 [2] : vector<2x8x8xf32> to vector<2x8xf32>
    %250 = vector.shape_cast %249 : vector<2x8xf32> to vector<2x8x1xf32>
    %251 = tpu.reciprocal %250 {approx = true} : vector<2x8x1xf32> -> vector<2x8x1xf32>
    %252 = vector.broadcast %251 : vector<2x8x1xf32> to vector<2x8x8xf32>
    %253 = arith.mulf %248, %252 : vector<2x8x8xf32>
    "tpu.trace_start"() <{level = 10 : i32, message = "bqk,bke->bqe"}> : () -> ()
    %cst_105 = arith.constant dense<0.000000e+00> : vector<2x8x32xf32>
    %254 = tpu.matmul %253, %237, %cst_105 {dimension_numbers = #tpu.dot_dimension_numbers<[2], [1], [1], [2], [0, 0, 0, 1, 1, 2], [0], [0]>} : vector<2x8x8xf32>, vector<2x8x32xf32>, vector<2x8x32xf32> -> vector<2x8x32xf32>
    "tpu.trace_stop"() : () -> ()
    %255 = vector.shape_cast %254 : vector<2x8x32xf32> to vector<16x32xf32>
    %256 = vector.extract_strided_slice %233 {offsets = [0, 0, 0], sizes = [1, 32, 128], strides = [1, 1, 1]} : vector<4x32x128xf32> to vector<1x32x128xf32>
    %257 = vector.shape_cast %256 : vector<1x32x128xf32> to vector<32x128xf32>
    %cst_106 = arith.constant dense<0.000000e+00> : vector<16x128xf32>
    %258 = tpu.matmul %255, %257, %cst_106 {dimension_numbers = #tpu.dot_dimension_numbers<[1], [0], [0], [1], [0, 0, 1, 1], [], []>} : vector<16x32xf32>, vector<32x128xf32>, vector<16x128xf32> -> vector<16x128xf32>
    %259 = arith.addf %234, %258 : vector<16x128xf32>
    %260 = vector.extract_strided_slice %231 {offsets = [0, 0, 32], sizes = [2, 8, 32], strides = [1, 1, 1]} : vector<2x8x384xf32> to vector<2x8x32xf32>
    %261 = vector.extract_strided_slice %231 {offsets = [0, 0, 160], sizes = [2, 8, 32], strides = [1, 1, 1]} : vector<2x8x384xf32> to vector<2x8x32xf32>
    %262 = vector.extract_strided_slice %231 {offsets = [0, 0, 288], sizes = [2, 8, 32], strides = [1, 1, 1]} : vector<2x8x384xf32> to vector<2x8x32xf32>
    "tpu.trace_start"() <{level = 10 : i32, message = "bqe,bke->bqk"}> : () -> ()
    %cst_107 = arith.constant dense<0.000000e+00> : vector<2x8x8xf32>
    %263 = tpu.matmul %260, %261, %cst_107 {dimension_numbers = #tpu.dot_dimension_numbers<[2], [2], [1], [1], [0, 0, 0, 1, 1, 1], [0], [0]>} : vector<2x8x32xf32>, vector<2x8x32xf32>, vector<2x8x8xf32> -> vector<2x8x8xf32>
    "tpu.trace_stop"() : () -> ()
    %cst_108 = arith.constant 0.176776692 : f32
    %264 = vector.broadcast %cst_108 : f32 to vector<2x8x8xf32>
    %265 = arith.mulf %263, %264 : vector<2x8x8xf32>
    %266 = vector.shape_cast %6 : vector<8x8xf32> to vector<1x8x8xf32>
    %267 = vector.broadcast %266 : vector<1x8x8xf32> to vector<2x8x8xf32>
    %268 = arith.addf %265, %267 : vector<2x8x8xf32>
    %cst_109 = arith.constant dense<0xFF800000> : vector<2x8xf32>
    %269 = vector.multi_reduction <maximumf>, %268, %cst_109 [2] : vector<2x8x8xf32> to vector<2x8xf32>
    %270 = vector.shape_cast %269 : vector<2x8xf32> to vector<2x8x1xf32>
    %271 = vector.broadcast %270 : vector<2x8x1xf32> to vector<2x8x8xf32>
    %272 = arith.subf %268, %271 : vector<2x8x8xf32>
    %273 = math.exp %272 : vector<2x8x8xf32>
    %cst_110 = arith.constant dense<0.000000e+00> : vector<2x8xf32>
    %274 = vector.multi_reduction <add>, %273, %cst_110 [2] : vector<2x8x8xf32> to vector<2x8xf32>
    %275 = vector.shape_cast %274 : vector<2x8xf32> to vector<2x8x1xf32>
    %276 = tpu.reciprocal %275 {approx = true} : vector<2x8x1xf32> -> vector<2x8x1xf32>
    %277 = vector.broadcast %276 : vector<2x8x1xf32> to vector<2x8x8xf32>
    %278 = arith.mulf %273, %277 : vector<2x8x8xf32>
    "tpu.trace_start"() <{level = 10 : i32, message = "bqk,bke->bqe"}> : () -> ()
    %cst_111 = arith.constant dense<0.000000e+00> : vector<2x8x32xf32>
    %279 = tpu.matmul %278, %262, %cst_111 {dimension_numbers = #tpu.dot_dimension_numbers<[2], [1], [1], [2], [0, 0, 0, 1, 1, 2], [0], [0]>} : vector<2x8x8xf32>, vector<2x8x32xf32>, vector<2x8x32xf32> -> vector<2x8x32xf32>
    "tpu.trace_stop"() : () -> ()
    %280 = vector.shape_cast %279 : vector<2x8x32xf32> to vector<16x32xf32>
    %281 = vector.extract_strided_slice %233 {offsets = [1, 0, 0], sizes = [1, 32, 128], strides = [1, 1, 1]} : vector<4x32x128xf32> to vector<1x32x128xf32>
    %282 = vector.shape_cast %281 : vector<1x32x128xf32> to vector<32x128xf32>
    %cst_112 = arith.constant dense<0.000000e+00> : vector<16x128xf32>
    %283 = tpu.matmul %280, %282, %cst_112 {dimension_numbers = #tpu.dot_dimension_numbers<[1], [0], [0], [1], [0, 0, 1, 1], [], []>} : vector<16x32xf32>, vector<32x128xf32>, vector<16x128xf32> -> vector<16x128xf32>
    %284 = arith.addf %259, %283 : vector<16x128xf32>
    %285 = vector.extract_strided_slice %231 {offsets = [0, 0, 64], sizes = [2, 8, 32], strides = [1, 1, 1]} : vector<2x8x384xf32> to vector<2x8x32xf32>
    %286 = vector.extract_strided_slice %231 {offsets = [0, 0, 192], sizes = [2, 8, 32], strides = [1, 1, 1]} : vector<2x8x384xf32> to vector<2x8x32xf32>
    %287 = vector.extract_strided_slice %231 {offsets = [0, 0, 320], sizes = [2, 8, 32], strides = [1, 1, 1]} : vector<2x8x384xf32> to vector<2x8x32xf32>
    "tpu.trace_start"() <{level = 10 : i32, message = "bqe,bke->bqk"}> : () -> ()
    %cst_113 = arith.constant dense<0.000000e+00> : vector<2x8x8xf32>
    %288 = tpu.matmul %285, %286, %cst_113 {dimension_numbers = #tpu.dot_dimension_numbers<[2], [2], [1], [1], [0, 0, 0, 1, 1, 1], [0], [0]>} : vector<2x8x32xf32>, vector<2x8x32xf32>, vector<2x8x8xf32> -> vector<2x8x8xf32>
    "tpu.trace_stop"() : () -> ()
    %cst_114 = arith.constant 0.176776692 : f32
    %289 = vector.broadcast %cst_114 : f32 to vector<2x8x8xf32>
    %290 = arith.mulf %288, %289 : vector<2x8x8xf32>
    %291 = vector.shape_cast %6 : vector<8x8xf32> to vector<1x8x8xf32>
    %292 = vector.broadcast %291 : vector<1x8x8xf32> to vector<2x8x8xf32>
    %293 = arith.addf %290, %292 : vector<2x8x8xf32>
    %cst_115 = arith.constant dense<0xFF800000> : vector<2x8xf32>
    %294 = vector.multi_reduction <maximumf>, %293, %cst_115 [2] : vector<2x8x8xf32> to vector<2x8xf32>
    %295 = vector.shape_cast %294 : vector<2x8xf32> to vector<2x8x1xf32>
    %296 = vector.broadcast %295 : vector<2x8x1xf32> to vector<2x8x8xf32>
    %297 = arith.subf %293, %296 : vector<2x8x8xf32>
    %298 = math.exp %297 : vector<2x8x8xf32>
    %cst_116 = arith.constant dense<0.000000e+00> : vector<2x8xf32>
    %299 = vector.multi_reduction <add>, %298, %cst_116 [2] : vector<2x8x8xf32> to vector<2x8xf32>
    %300 = vector.shape_cast %299 : vector<2x8xf32> to vector<2x8x1xf32>
    %301 = tpu.reciprocal %300 {approx = true} : vector<2x8x1xf32> -> vector<2x8x1xf32>
    %302 = vector.broadcast %301 : vector<2x8x1xf32> to vector<2x8x8xf32>
    %303 = arith.mulf %298, %302 : vector<2x8x8xf32>
    "tpu.trace_start"() <{level = 10 : i32, message = "bqk,bke->bqe"}> : () -> ()
    %cst_117 = arith.constant dense<0.000000e+00> : vector<2x8x32xf32>
    %304 = tpu.matmul %303, %287, %cst_117 {dimension_numbers = #tpu.dot_dimension_numbers<[2], [1], [1], [2], [0, 0, 0, 1, 1, 2], [0], [0]>} : vector<2x8x8xf32>, vector<2x8x32xf32>, vector<2x8x32xf32> -> vector<2x8x32xf32>
    "tpu.trace_stop"() : () -> ()
    %305 = vector.shape_cast %304 : vector<2x8x32xf32> to vector<16x32xf32>
    %306 = vector.extract_strided_slice %233 {offsets = [2, 0, 0], sizes = [1, 32, 128], strides = [1, 1, 1]} : vector<4x32x128xf32> to vector<1x32x128xf32>
    %307 = vector.shape_cast %306 : vector<1x32x128xf32> to vector<32x128xf32>
    %cst_118 = arith.constant dense<0.000000e+00> : vector<16x128xf32>
    %308 = tpu.matmul %305, %307, %cst_118 {dimension_numbers = #tpu.dot_dimension_numbers<[1], [0], [0], [1], [0, 0, 1, 1], [], []>} : vector<16x32xf32>, vector<32x128xf32>, vector<16x128xf32> -> vector<16x128xf32>
    %309 = arith.addf %284, %308 : vector<16x128xf32>
    %310 = vector.extract_strided_slice %231 {offsets = [0, 0, 96], sizes = [2, 8, 32], strides = [1, 1, 1]} : vector<2x8x384xf32> to vector<2x8x32xf32>
    %311 = vector.extract_strided_slice %231 {offsets = [0, 0, 224], sizes = [2, 8, 32], strides = [1, 1, 1]} : vector<2x8x384xf32> to vector<2x8x32xf32>
    %312 = vector.extract_strided_slice %231 {offsets = [0, 0, 352], sizes = [2, 8, 32], strides = [1, 1, 1]} : vector<2x8x384xf32> to vector<2x8x32xf32>
    "tpu.trace_start"() <{level = 10 : i32, message = "bqe,bke->bqk"}> : () -> ()
    %cst_119 = arith.constant dense<0.000000e+00> : vector<2x8x8xf32>
    %313 = tpu.matmul %310, %311, %cst_119 {dimension_numbers = #tpu.dot_dimension_numbers<[2], [2], [1], [1], [0, 0, 0, 1, 1, 1], [0], [0]>} : vector<2x8x32xf32>, vector<2x8x32xf32>, vector<2x8x8xf32> -> vector<2x8x8xf32>
    "tpu.trace_stop"() : () -> ()
    %cst_120 = arith.constant 0.176776692 : f32
    %314 = vector.broadcast %cst_120 : f32 to vector<2x8x8xf32>
    %315 = arith.mulf %313, %314 : vector<2x8x8xf32>
    %316 = vector.shape_cast %6 : vector<8x8xf32> to vector<1x8x8xf32>
    %317 = vector.broadcast %316 : vector<1x8x8xf32> to vector<2x8x8xf32>
    %318 = arith.addf %315, %317 : vector<2x8x8xf32>
    %cst_121 = arith.constant dense<0xFF800000> : vector<2x8xf32>
    %319 = vector.multi_reduction <maximumf>, %318, %cst_121 [2] : vector<2x8x8xf32> to vector<2x8xf32>
    %320 = vector.shape_cast %319 : vector<2x8xf32> to vector<2x8x1xf32>
    %321 = vector.broadcast %320 : vector<2x8x1xf32> to vector<2x8x8xf32>
    %322 = arith.subf %318, %321 : vector<2x8x8xf32>
    %323 = math.exp %322 : vector<2x8x8xf32>
    %cst_122 = arith.constant dense<0.000000e+00> : vector<2x8xf32>
    %324 = vector.multi_reduction <add>, %323, %cst_122 [2] : vector<2x8x8xf32> to vector<2x8xf32>
    %325 = vector.shape_cast %324 : vector<2x8xf32> to vector<2x8x1xf32>
    %326 = tpu.reciprocal %325 {approx = true} : vector<2x8x1xf32> -> vector<2x8x1xf32>
    %327 = vector.broadcast %326 : vector<2x8x1xf32> to vector<2x8x8xf32>
    %328 = arith.mulf %323, %327 : vector<2x8x8xf32>
    "tpu.trace_start"() <{level = 10 : i32, message = "bqk,bke->bqe"}> : () -> ()
    %cst_123 = arith.constant dense<0.000000e+00> : vector<2x8x32xf32>
    %329 = tpu.matmul %328, %312, %cst_123 {dimension_numbers = #tpu.dot_dimension_numbers<[2], [1], [1], [2], [0, 0, 0, 1, 1, 2], [0], [0]>} : vector<2x8x8xf32>, vector<2x8x32xf32>, vector<2x8x32xf32> -> vector<2x8x32xf32>
    "tpu.trace_stop"() : () -> ()
    %330 = vector.shape_cast %329 : vector<2x8x32xf32> to vector<16x32xf32>
    %331 = vector.extract_strided_slice %233 {offsets = [3, 0, 0], sizes = [1, 32, 128], strides = [1, 1, 1]} : vector<4x32x128xf32> to vector<1x32x128xf32>
    %332 = vector.shape_cast %331 : vector<1x32x128xf32> to vector<32x128xf32>
    %cst_124 = arith.constant dense<0.000000e+00> : vector<16x128xf32>
    %333 = tpu.matmul %330, %332, %cst_124 {dimension_numbers = #tpu.dot_dimension_numbers<[1], [0], [0], [1], [0, 0, 1, 1], [], []>} : vector<16x32xf32>, vector<32x128xf32>, vector<16x128xf32> -> vector<16x128xf32>
    %334 = arith.addf %309, %333 : vector<16x128xf32>
    %335 = arith.addf %197, %334 : vector<16x128xf32>
    %c1_125 = arith.constant 1 : index
    %c0_126 = arith.constant 0 : index
    %c0_127 = arith.constant 0 : index
    %336 = vector.load %arg6[%c1_125, %c0_126, %c0_127] : memref<2x1x128xf32, #tpu.memory_space<vmem>>, vector<1x1x128xf32>
    %337 = vector.shape_cast %336 : vector<1x1x128xf32> to vector<1x128xf32>
    %338 = vector.broadcast %337 : vector<1x128xf32> to vector<16x128xf32>
    %339 = arith.addf %335, %338 : vector<16x128xf32>
    %c1_128 = arith.constant 1 : index
    %c0_129 = arith.constant 0 : index
    %c0_130 = arith.constant 0 : index
    %340 = vector.load %arg7[%c1_128, %c0_129, %c0_130] : memref<2x1x128xf32, #tpu.memory_space<vmem>>, vector<1x1x128xf32>
    %341 = vector.shape_cast %340 : vector<1x1x128xf32> to vector<1x128xf32>
    %c1_131 = arith.constant 1 : index
    %c0_132 = arith.constant 0 : index
    %c0_133 = arith.constant 0 : index
    %342 = vector.load %arg8[%c1_131, %c0_132, %c0_133] : memref<2x1x128xf32, #tpu.memory_space<vmem>>, vector<1x1x128xf32>
    %343 = vector.shape_cast %342 : vector<1x1x128xf32> to vector<1x128xf32>
    %cst_134 = arith.constant dense<0.000000e+00> : vector<16xf32>
    %344 = vector.multi_reduction <add>, %339, %cst_134 [1] : vector<16x128xf32> to vector<16xf32>
    %345 = vector.shape_cast %344 : vector<16xf32> to vector<16x1xf32>
    %cst_135 = arith.constant 1.280000e+02 : f32
    %346 = vector.broadcast %cst_135 : f32 to vector<16x1xf32>
    %347 = arith.divf %345, %346 : vector<16x1xf32>
    %348 = vector.broadcast %347 : vector<16x1xf32> to vector<16x128xf32>
    %349 = arith.subf %339, %348 : vector<16x128xf32>
    %350 = arith.mulf %349, %349 : vector<16x128xf32>
    %cst_136 = arith.constant dense<0.000000e+00> : vector<16xf32>
    %351 = vector.multi_reduction <add>, %350, %cst_136 [1] : vector<16x128xf32> to vector<16xf32>
    %352 = vector.shape_cast %351 : vector<16xf32> to vector<16x1xf32>
    %cst_137 = arith.constant 1.280000e+02 : f32
    %353 = vector.broadcast %cst_137 : f32 to vector<16x1xf32>
    %354 = arith.divf %352, %353 : vector<16x1xf32>
    %355 = vector.broadcast %347 : vector<16x1xf32> to vector<16x128xf32>
    %356 = arith.subf %339, %355 : vector<16x128xf32>
    %cst_138 = arith.constant 9.99999974E-6 : f32
    %357 = vector.broadcast %cst_138 : f32 to vector<16x1xf32>
    %358 = arith.addf %354, %357 : vector<16x1xf32>
    %359 = math.rsqrt %358 : vector<16x1xf32>
    %360 = vector.broadcast %359 : vector<16x1xf32> to vector<16x128xf32>
    %361 = arith.mulf %356, %360 : vector<16x128xf32>
    %362 = vector.broadcast %341 : vector<1x128xf32> to vector<16x128xf32>
    %363 = arith.mulf %361, %362 : vector<16x128xf32>
    %364 = vector.broadcast %343 : vector<1x128xf32> to vector<16x128xf32>
    %365 = arith.addf %363, %364 : vector<16x128xf32>
    %c1_139 = arith.constant 1 : index
    %c0_140 = arith.constant 0 : index
    %c0_141 = arith.constant 0 : index
    %366 = vector.load %arg9[%c1_139, %c0_140, %c0_141] : memref<2x128x512xf32, #tpu.memory_space<vmem>>, vector<1x128x512xf32>
    %367 = vector.shape_cast %366 : vector<1x128x512xf32> to vector<128x512xf32>
    %cst_142 = arith.constant dense<0.000000e+00> : vector<16x512xf32>
    %368 = tpu.matmul %365, %367, %cst_142 {dimension_numbers = #tpu.dot_dimension_numbers<[1], [0], [0], [1], [0, 0, 1, 1], [], []>} : vector<16x128xf32>, vector<128x512xf32>, vector<16x512xf32> -> vector<16x512xf32>
    %c1_143 = arith.constant 1 : index
    %c0_144 = arith.constant 0 : index
    %c0_145 = arith.constant 0 : index
    %369 = vector.load %arg10[%c1_143, %c0_144, %c0_145] : memref<2x1x512xf32, #tpu.memory_space<vmem>>, vector<1x1x512xf32>
    %370 = vector.shape_cast %369 : vector<1x1x512xf32> to vector<1x512xf32>
    %371 = vector.broadcast %370 : vector<1x512xf32> to vector<16x512xf32>
    %372 = arith.addf %368, %371 : vector<16x512xf32>
    %cst_146 = arith.constant 1.702000e+00 : f32
    %373 = vector.broadcast %cst_146 : f32 to vector<16x512xf32>
    %374 = arith.mulf %373, %372 : vector<16x512xf32>
    %375 = arith.negf %374 : vector<16x512xf32>
    %376 = math.exp %375 : vector<16x512xf32>
    %cst_147 = arith.constant 1.000000e+00 : f32
    %377 = vector.broadcast %cst_147 : f32 to vector<16x512xf32>
    %378 = arith.addf %377, %376 : vector<16x512xf32>
    %379 = arith.divf %377, %378 : vector<16x512xf32>
    %380 = arith.mulf %372, %379 : vector<16x512xf32>
    %c1_148 = arith.constant 1 : index
    %c0_149 = arith.constant 0 : index
    %c0_150 = arith.constant 0 : index
    %381 = vector.load %arg11[%c1_148, %c0_149, %c0_150] : memref<2x512x128xf32, #tpu.memory_space<vmem>>, vector<1x512x128xf32>
    %382 = vector.shape_cast %381 : vector<1x512x128xf32> to vector<512x128xf32>
    %cst_151 = arith.constant dense<0.000000e+00> : vector<16x128xf32>
    %383 = tpu.matmul %380, %382, %cst_151 {dimension_numbers = #tpu.dot_dimension_numbers<[1], [0], [0], [1], [0, 0, 1, 1], [], []>} : vector<16x512xf32>, vector<512x128xf32>, vector<16x128xf32> -> vector<16x128xf32>
    %c1_152 = arith.constant 1 : index
    %c0_153 = arith.constant 0 : index
    %c0_154 = arith.constant 0 : index
    %384 = vector.load %arg12[%c1_152, %c0_153, %c0_154] : memref<2x1x128xf32, #tpu.memory_space<vmem>>, vector<1x1x128xf32>
    %385 = vector.shape_cast %384 : vector<1x1x128xf32> to vector<1x128xf32>
    %386 = vector.broadcast %385 : vector<1x128xf32> to vector<16x128xf32>
    %387 = arith.addf %383, %386 : vector<16x128xf32>
    %388 = arith.addf %339, %387 : vector<16x128xf32>
    %c0_155 = arith.constant 0 : index
    %c0_156 = arith.constant 0 : index
    %389 = vector.load %arg13[%c0_155, %c0_156] : memref<1x128xf32, #tpu.memory_space<vmem>>, vector<1x128xf32>
    %c0_157 = arith.constant 0 : index
    %c0_158 = arith.constant 0 : index
    %390 = vector.load %arg14[%c0_157, %c0_158] : memref<1x128xf32, #tpu.memory_space<vmem>>, vector<1x128xf32>
    %cst_159 = arith.constant dense<0.000000e+00> : vector<16xf32>
    %391 = vector.multi_reduction <add>, %388, %cst_159 [1] : vector<16x128xf32> to vector<16xf32>
    %392 = vector.shape_cast %391 : vector<16xf32> to vector<16x1xf32>
    %cst_160 = arith.constant 1.280000e+02 : f32
    %393 = vector.broadcast %cst_160 : f32 to vector<16x1xf32>
    %394 = arith.divf %392, %393 : vector<16x1xf32>
    %395 = vector.broadcast %394 : vector<16x1xf32> to vector<16x128xf32>
    %396 = arith.subf %388, %395 : vector<16x128xf32>
    %397 = arith.mulf %396, %396 : vector<16x128xf32>
    %cst_161 = arith.constant dense<0.000000e+00> : vector<16xf32>
    %398 = vector.multi_reduction <add>, %397, %cst_161 [1] : vector<16x128xf32> to vector<16xf32>
    %399 = vector.shape_cast %398 : vector<16xf32> to vector<16x1xf32>
    %cst_162 = arith.constant 1.280000e+02 : f32
    %400 = vector.broadcast %cst_162 : f32 to vector<16x1xf32>
    %401 = arith.divf %399, %400 : vector<16x1xf32>
    %402 = vector.broadcast %394 : vector<16x1xf32> to vector<16x128xf32>
    %403 = arith.subf %388, %402 : vector<16x128xf32>
    %cst_163 = arith.constant 9.99999974E-6 : f32
    %404 = vector.broadcast %cst_163 : f32 to vector<16x1xf32>
    %405 = arith.addf %401, %404 : vector<16x1xf32>
    %406 = math.rsqrt %405 : vector<16x1xf32>
    %407 = vector.broadcast %406 : vector<16x1xf32> to vector<16x128xf32>
    %408 = arith.mulf %403, %407 : vector<16x128xf32>
    %409 = vector.broadcast %389 : vector<1x128xf32> to vector<16x128xf32>
    %410 = arith.mulf %408, %409 : vector<16x128xf32>
    %411 = vector.broadcast %390 : vector<1x128xf32> to vector<16x128xf32>
    %412 = arith.addf %410, %411 : vector<16x128xf32>
    %c0_164 = arith.constant 0 : index
    %c0_165 = arith.constant 0 : index
    %413 = vector.load %arg17[%c0_164, %c0_165] : memref<16x128xf32, #tpu.memory_space<vmem>>, vector<16x128xf32>
    tpu.vector_store %arg17[%c0_164, %c0_165], %412 {strides = array<i32>} : memref<16x128xf32, #tpu.memory_space<vmem>>, vector<16x128xf32>,
    %c0_166 = arith.constant 0 : index
    %c0_167 = arith.constant 0 : index
    %414 = vector.load %arg15[%c0_166, %c0_167] : memref<2x16xf32, #tpu.memory_space<vmem>>, vector<2x16xf32>
    %cst_168 = arith.constant dense<0.000000e+00> : vector<2x128xf32>
    %415 = tpu.matmul %414, %412, %cst_168 {dimension_numbers = #tpu.dot_dimension_numbers<[1], [0], [0], [1], [0, 0, 1, 1], [], []>} : vector<2x16xf32>, vector<16x128xf32>, vector<2x128xf32> -> vector<2x128xf32>
    %c0_169 = arith.constant 0 : index
    %c0_170 = arith.constant 0 : index
    %416 = vector.load %arg16[%c0_169, %c0_170] : memref<128x128xf32, #tpu.memory_space<vmem>>, vector<128x128xf32>
    %cst_171 = arith.constant dense<0.000000e+00> : vector<2x128xf32>
    %417 = tpu.matmul %415, %416, %cst_171 {dimension_numbers = #tpu.dot_dimension_numbers<[1], [0], [0], [1], [0, 0, 1, 1], [], []>} : vector<2x128xf32>, vector<128x128xf32>, vector<2x128xf32> -> vector<2x128xf32>
    %c0_172 = arith.constant 0 : index
    %c0_173 = arith.constant 0 : index
    %418 = vector.load %arg18[%c0_172, %c0_173] : memref<2x128xf32, #tpu.memory_space<vmem>>, vector<2x128xf32>
    tpu.vector_store %arg18[%c0_172, %c0_173], %417 {strides = array<i32>} : memref<2x128xf32, #tpu.memory_space<vmem>>, vector<2x128xf32>,
    return
  }
}

</mosaic_0001>

<llo_original>
// kernel: tpu_custom_call.1
$region0: #{tpu_custom_call.1}
  #allocation0 [shape = 'u32[]', space=smem, size = 0x4, offset = 0x4, fixed_abs, tag = 'smem constant byte address 0x4 - core index']
  #allocation1 [shape = 'u32[144,128]{1,0:T(1,128)}', space=vmem, size = 0x12000, scoped, tag = 'internal scratch']
  %s0 = inlined_call_operand.hbm [shape: f32[16,128], index: 0, kind: input, shape index: {}]
  %s1 = inlined_call_operand.hbm [shape: f32[2,1,128], index: 1, kind: input, shape index: {}]
  %s2 = inlined_call_operand.hbm [shape: f32[2,1,128], index: 2, kind: input, shape index: {}]
  %s3 = inlined_call_operand.hbm [shape: f32[2,128,384], index: 3, kind: input, shape index: {}]
  %s4 = inlined_call_operand.vmem [shape: f32[2,1,384], index: 4, kind: input, shape index: {}]
  %s5 = inlined_call_operand.hbm [shape: f32[2,4,32,128], index: 5, kind: input, shape index: {}]
  %s6 = inlined_call_operand.vmem [shape: f32[2,1,128], index: 6, kind: input, shape index: {}]
  %s7 = inlined_call_operand.hbm [shape: f32[2,1,128], index: 7, kind: input, shape index: {}]
  %s8 = inlined_call_operand.hbm [shape: f32[2,1,128], index: 8, kind: input, shape index: {}]
  %s9 = inlined_call_operand.hbm [shape: f32[2,128,512], index: 9, kind: input, shape index: {}]
  %s10 = inlined_call_operand.vmem [shape: f32[2,1,512], index: 10, kind: input, shape index: {}]
  %s11 = inlined_call_operand.hbm [shape: f32[2,512,128], index: 11, kind: input, shape index: {}]
  %s12 = inlined_call_operand.vmem [shape: f32[2,1,128], index: 12, kind: input, shape index: {}]
  %s13 = inlined_call_operand.vmem [shape: f32[1,128], index: 13, kind: input, shape index: {}]
  %s14 = inlined_call_operand.vmem [shape: f32[1,128], index: 14, kind: input, shape index: {}]
  %s15 = inlined_call_operand.vmem [shape: f32[2,16], index: 15, kind: input, shape index: {}]
  %s16 = inlined_call_operand.hbm [shape: f32[128,128], index: 16, kind: input, shape index: {}]
  %s17 = inlined_call_operand.hbm [shape: f32[16,128], index: 17, kind: output, shape index: {0}]
  %s18 = inlined_call_operand.hbm [shape: f32[2,128], index: 18, kind: output, shape index: {1}]
  %19 = xla_tuple %s17, %s18
  %s20 = sld [smem:[#allocation0]]
  $region126: #{tpu_custom_call.1} parent=0
    _
  %s22 = ssub.s32 1, %s20
  %s23 = scalar_select 0, %s22, %s20
  $region1: #{tpu_custom_call.1} parent=0
    #allocation2 [shape = 'u8[8192]{0}', space=vmem, size = 0x2000, scoped, tag = 'input window, operand 0, single buffered']
    #allocation3 [shape = 's32[1]{0}', space=sflag, size = 0x4, scoped, tag = 'scoped memory for tpu_custom_call.1']
    #allocation4 [shape = 's32[1]{0}', space=sflag, size = 0x4, scoped, tag = 'scoped memory for tpu_custom_call.1']
    #allocation5 [shape = 'u8[1024]{0}', space=vmem, size = 0x400, scoped, tag = 'input window, operand 1, single buffered']
    #allocation6 [shape = 's32[1]{0}', space=sflag, size = 0x4, scoped, tag = 'scoped memory for tpu_custom_call.1']
    #allocation7 [shape = 'u8[1024]{0}', space=vmem, size = 0x400, scoped, tag = 'input window, operand 2, single buffered']
    #allocation8 [shape = 'u8[393216]{0}', space=vmem, size = 0x60000, scoped, tag = 'input window, operand 3, single buffered']
    #allocation9 [shape = 's32[1]{0}', space=sflag, size = 0x4, scoped, tag = 'scoped memory for tpu_custom_call.1']
    #allocation10 [shape = 'u8[131072]{0}', space=vmem, size = 0x20000, scoped, tag = 'input window, operand 5, single buffered']
    #allocation11 [shape = 'u8[1024]{0}', space=vmem, size = 0x400, scoped, tag = 'input window, operand 7, single buffered']
    #allocation12 [shape = 's32[1]{0}', space=sflag, size = 0x4, scoped, tag = 'scoped memory for tpu_custom_call.1']
    #allocation13 [shape = 'u8[1024]{0}', space=vmem, size = 0x400, scoped, tag = 'input window, operand 8, single buffered']
    #allocation14 [shape = 'u8[524288]{0}', space=vmem, size = 0x80000, scoped, tag = 'input window, operand 9, single buffered']
    #allocation15 [shape = 's32[1]{0}', space=sflag, size = 0x4, scoped, tag = 'scoped memory for tpu_custom_call.1']
    #allocation16 [shape = 'u8[524288]{0}', space=vmem, size = 0x80000, scoped, tag = 'input window, operand 11, single buffered']
    #allocation17 [shape = 'u8[65536]{0}', space=vmem, size = 0x10000, scoped, tag = 'input window, operand 16, single buffered']
    #allocation18 [shape = 's32[1]{0}', space=sflag, size = 0x4, scoped, tag = 'scoped memory for tpu_custom_call.1']
    #allocation19 [shape = 'u8[8192]{0}', space=vmem, size = 0x2000, scoped, tag = 'output window, operand 0, single buffered']
    #allocation20 [shape = 'u8[1024]{0}', space=vmem, size = 0x400, scoped, tag = 'output window, operand 1, single buffered']
    #allocation21 [shape = 's32[1]{0}', space=sflag, size = 0x4, scoped, tag = 'scoped memory for tpu_custom_call.1']
    %24 = vsyncpa [#allocation3], 0
    %25 = vsyncpa [#allocation6], 0
    %26 = vsyncpa [#allocation9], 0
    %27 = vsyncpa [#allocation12], 0
    %28 = vsyncpa [#allocation15], 0
    %29 = vsyncpa [#allocation18], 0
    %30 = vsyncpa [#allocation4], 0
    %31 = vsyncpa [#allocation21], 0
    // Predicated region
    $region2: #{tpu_custom_call.1} parent=1 // pred_check
      _
    $region3: #{tpu_custom_call.1} parent=1 // pred_check_branch
      %33 = sbr.rel (0) target = $region5
    $region4: #{tpu_custom_call.1} parent=1 // pred_region
      %s35 = ssub.s32 256, 256
      %36 = vsyncadd [#allocation3], %s35
      %s37 = sshll.u32 [#allocation2], 4
      %s38 = int_to_ptr.vmem [resolvable:$true] %s37
      %43 = dma.hbm_to_vmem [thread:$0]  %s0, 256, %s38, [#allocation3], 128, 128, 8
    $region5: #{tpu_custom_call.1} parent=1 // pred_fallthru
      _
    // Predicated region
    $region6: #{tpu_custom_call.1} parent=1 // pred_check
      _
    $region7: #{tpu_custom_call.1} parent=1 // pred_check_branch
      %45 = sbr.rel (0) target = $region9
    $region8: #{tpu_custom_call.1} parent=1 // pred_region
      %s47 = ssub.s32 32, 32
      %48 = vsyncadd [#allocation6], %s47
      %s49 = sshll.u32 [#allocation5], 4
      %s50 = int_to_ptr.vmem [resolvable:$true] %s49
      %55 = dma.hbm_to_vmem [thread:$0]  %s1, 32, %s50, [#allocation6], 16, 16, 1
    $region9: #{tpu_custom_call.1} parent=1 // pred_fallthru
      _
    // Predicated region
    $region10: #{tpu_custom_call.1} parent=1 // pred_check
      _
    $region11: #{tpu_custom_call.1} parent=1 // pred_check_branch
      %57 = sbr.rel (0) target = $region13
    $region12: #{tpu_custom_call.1} parent=1 // pred_region
      %s59 = ssub.s32 32, 32
      %60 = vsyncadd [#allocation6], %s59
      %s61 = sshll.u32 [#allocation7], 4
      %s62 = int_to_ptr.vmem [resolvable:$true] %s61
      %67 = dma.hbm_to_vmem [thread:$0]  %s2, 32, %s62, [#allocation6], 16, 16, 1
    $region13: #{tpu_custom_call.1} parent=1 // pred_fallthru
      _
    // Predicated region
    $region14: #{tpu_custom_call.1} parent=1 // pred_check
      _
    $region15: #{tpu_custom_call.1} parent=1 // pred_check_branch
      %69 = sbr.rel (0) target = $region17
    $region16: #{tpu_custom_call.1} parent=1 // pred_region
      %s71 = ssub.s32 12288, 12288
      %72 = vsyncadd [#allocation9], %s71
      %s73 = sshll.u32 [#allocation8], 4
      %s74 = int_to_ptr.vmem [resolvable:$true] %s73
      %79 = dma.hbm_to_vmem [thread:$0]  %s3, 12288, %s74, [#allocation9], 384, 384, 24
    $region17: #{tpu_custom_call.1} parent=1 // pred_fallthru
      _
    // Predicated region
    $region18: #{tpu_custom_call.1} parent=1 // pred_check
      _
    $region19: #{tpu_custom_call.1} parent=1 // pred_check_branch
      %81 = sbr.rel (0) target = $region21
    $region20: #{tpu_custom_call.1} parent=1 // pred_region
      _
    $region21: #{tpu_custom_call.1} parent=1 // pred_fallthru
      _
    // Predicated region
    $region22: #{tpu_custom_call.1} parent=1 // pred_check
      _
    $region23: #{tpu_custom_call.1} parent=1 // pred_check_branch
      %83 = sbr.rel (0) target = $region25
    $region24: #{tpu_custom_call.1} parent=1 // pred_region
      %s85 = ssub.s32 4096, 4096
      %86 = vsyncadd [#allocation9], %s85
      %s87 = sshll.u32 [#allocation10], 4
      %s88 = int_to_ptr.vmem [resolvable:$true] %s87
      %93 = dma.hbm_to_vmem [thread:$0]  %s5, 4096, %s88, [#allocation9], 128, 128, 8
    $region25: #{tpu_custom_call.1} parent=1 // pred_fallthru
      _
    // Predicated region
    $region26: #{tpu_custom_call.1} parent=1 // pred_check
      _
    $region27: #{tpu_custom_call.1} parent=1 // pred_check_branch
      %95 = sbr.rel (0) target = $region29
    $region28: #{tpu_custom_call.1} parent=1 // pred_region
      _
    $region29: #{tpu_custom_call.1} parent=1 // pred_fallthru
      _
    // Predicated region
    $region30: #{tpu_custom_call.1} parent=1 // pred_check
      _
    $region31: #{tpu_custom_call.1} parent=1 // pred_check_branch
      %97 = sbr.rel (0) target = $region33
    $region32: #{tpu_custom_call.1} parent=1 // pred_region
      %s99 = ssub.s32 32, 32
      %100 = vsyncadd [#allocation12], %s99
      %s101 = sshll.u32 [#allocation11], 4
      %s102 = int_to_ptr.vmem [resolvable:$true] %s101
      %107 = dma.hbm_to_vmem [thread:$0]  %s7, 32, %s102, [#allocation12], 16, 16, 1
    $region33: #{tpu_custom_call.1} parent=1 // pred_fallthru
      _
    // Predicated region
    $region34: #{tpu_custom_call.1} parent=1 // pred_check
      _
    $region35: #{tpu_custom_call.1} parent=1 // pred_check_branch
      %109 = sbr.rel (0) target = $region37
    $region36: #{tpu_custom_call.1} parent=1 // pred_region
      %s111 = ssub.s32 32, 32
      %112 = vsyncadd [#allocation12], %s111
      %s113 = sshll.u32 [#allocation13], 4
      %s114 = int_to_ptr.vmem [resolvable:$true] %s113
      %119 = dma.hbm_to_vmem [thread:$0]  %s8, 32, %s114, [#allocation12], 16, 16, 1
    $region37: #{tpu_custom_call.1} parent=1 // pred_fallthru
      _
    // Predicated region
    $region38: #{tpu_custom_call.1} parent=1 // pred_check
      _
    $region39: #{tpu_custom_call.1} parent=1 // pred_check_branch
      %121 = sbr.rel (0) target = $region41
    $region40: #{tpu_custom_call.1} parent=1 // pred_region
      %s123 = ssub.s32 16384, 16384
      %124 = vsyncadd [#allocation15], %s123
      %s125 = sshll.u32 [#allocation14], 4
      %s126 = int_to_ptr.vmem [resolvable:$true] %s125
      %131 = dma.hbm_to_vmem [thread:$0]  %s9, 16384, %s126, [#allocation15], 512, 512, 32
    $region41: #{tpu_custom_call.1} parent=1 // pred_fallthru
      _
    // Predicated region
    $region42: #{tpu_custom_call.1} parent=1 // pred_check
      _
    $region43: #{tpu_custom_call.1} parent=1 // pred_check_branch
      %133 = sbr.rel (0) target = $region45
    $region44: #{tpu_custom_call.1} parent=1 // pred_region
      _
    $region45: #{tpu_custom_call.1} parent=1 // pred_fallthru
      _
    // Predicated region
    $region46: #{tpu_custom_call.1} parent=1 // pred_check
      _
    $region47: #{tpu_custom_call.1} parent=1 // pred_check_branch
      %135 = sbr.rel (0) target = $region49
    $region48: #{tpu_custom_call.1} parent=1 // pred_region
      %s137 = ssub.s32 16384, 16384
      %138 = vsyncadd [#allocation15], %s137
      %s139 = sshll.u32 [#allocation16], 4
      %s140 = int_to_ptr.vmem [resolvable:$true] %s139
      %145 = dma.hbm_to_vmem [thread:$0]  %s11, 16384, %s140, [#allocation15], 128, 128, 8
    $region49: #{tpu_custom_call.1} parent=1 // pred_fallthru
      _
    // Predicated region
    $region50: #{tpu_custom_call.1} parent=1 // pred_check
      _
    $region51: #{tpu_custom_call.1} parent=1 // pred_check_branch
      %147 = sbr.rel (0) target = $region53
    $region52: #{tpu_custom_call.1} parent=1 // pred_region
      _
    $region53: #{tpu_custom_call.1} parent=1 // pred_fallthru
      _
    // Predicated region
    $region54: #{tpu_custom_call.1} parent=1 // pred_check
      _
    $region55: #{tpu_custom_call.1} parent=1 // pred_check_branch
      %149 = sbr.rel (0) target = $region57
    $region56: #{tpu_custom_call.1} parent=1 // pred_region
      _
    $region57: #{tpu_custom_call.1} parent=1 // pred_fallthru
      _
    // Predicated region
    $region58: #{tpu_custom_call.1} parent=1 // pred_check
      _
    $region59: #{tpu_custom_call.1} parent=1 // pred_check_branch
      %151 = sbr.rel (0) target = $region61
    $region60: #{tpu_custom_call.1} parent=1 // pred_region
      _
    $region61: #{tpu_custom_call.1} parent=1 // pred_fallthru
      _
    // Predicated region
    $region62: #{tpu_custom_call.1} parent=1 // pred_check
      _
    $region63: #{tpu_custom_call.1} parent=1 // pred_check_branch
      %153 = sbr.rel (0) target = $region65
    $region64: #{tpu_custom_call.1} parent=1 // pred_region
      _
    $region65: #{tpu_custom_call.1} parent=1 // pred_fallthru
      _
    // Predicated region
    $region66: #{tpu_custom_call.1} parent=1 // pred_check
      _
    $region67: #{tpu_custom_call.1} parent=1 // pred_check_branch
      %155 = sbr.rel (0) target = $region69
    $region68: #{tpu_custom_call.1} parent=1 // pred_region
      %s157 = ssub.s32 2048, 2048
      %158 = vsyncadd [#allocation18], %s157
      %s159 = sshll.u32 [#allocation17], 4
      %s160 = int_to_ptr.vmem [resolvable:$true] %s159
      %165 = dma.hbm_to_vmem [thread:$0]  %s16, 2048, %s160, [#allocation18], 128, 128, 8
    $region69: #{tpu_custom_call.1} parent=1 // pred_fallthru
      _
    // Predicated region
    $region70: #{tpu_custom_call.1} parent=1 // pred_check
      _
    $region71: #{tpu_custom_call.1} parent=1 // pred_check_branch
      %167 = sbr.rel (0) target = $region73
    $region72: #{tpu_custom_call.1} parent=1 // pred_region
      %168 = dma.done [#allocation3], 256
    $region73: #{tpu_custom_call.1} parent=1 // pred_fallthru
      _
    // Predicated region
    $region74: #{tpu_custom_call.1} parent=1 // pred_check
      _
    $region75: #{tpu_custom_call.1} parent=1 // pred_check_branch
      %170 = sbr.rel (0) target = $region77
    $region76: #{tpu_custom_call.1} parent=1 // pred_region
      %171 = dma.done [#allocation6], 32
    $region77: #{tpu_custom_call.1} parent=1 // pred_fallthru
      _
    // Predicated region
    $region78: #{tpu_custom_call.1} parent=1 // pred_check
      _
    $region79: #{tpu_custom_call.1} parent=1 // pred_check_branch
      %173 = sbr.rel (0) target = $region81
    $region80: #{tpu_custom_call.1} parent=1 // pred_region
      %174 = dma.done [#allocation6], 32
    $region81: #{tpu_custom_call.1} parent=1 // pred_fallthru
      _
    // Predicated region
    $region82: #{tpu_custom_call.1} parent=1 // pred_check
      _
    $region83: #{tpu_custom_call.1} parent=1 // pred_check_branch
      %176 = sbr.rel (0) target = $region85
    $region84: #{tpu_custom_call.1} parent=1 // pred_region
      %177 = dma.done [#allocation9], 12288
    $region85: #{tpu_custom_call.1} parent=1 // pred_fallthru
      _
    // Predicated region
    $region86: #{tpu_custom_call.1} parent=1 // pred_check
      _
    $region87: #{tpu_custom_call.1} parent=1 // pred_check_branch
      %179 = sbr.rel (0) target = $region89
    $region88: #{tpu_custom_call.1} parent=1 // pred_region
      %180 = dma.done [#allocation9], 4096
    $region89: #{tpu_custom_call.1} parent=1 // pred_fallthru
      _
    // Predicated region
    $region90: #{tpu_custom_call.1} parent=1 // pred_check
      _
    $region91: #{tpu_custom_call.1} parent=1 // pred_check_branch
      %182 = sbr.rel (0) target = $region93
    $region92: #{tpu_custom_call.1} parent=1 // pred_region
      %183 = dma.done [#allocation12], 32
    $region93: #{tpu_custom_call.1} parent=1 // pred_fallthru
      _
    // Predicated region
    $region94: #{tpu_custom_call.1} parent=1 // pred_check
      _
    $region95: #{tpu_custom_call.1} parent=1 // pred_check_branch
      %185 = sbr.rel (0) target = $region97
    $region96: #{tpu_custom_call.1} parent=1 // pred_region
      %186 = dma.done [#allocation12], 32
    $region97: #{tpu_custom_call.1} parent=1 // pred_fallthru
      _
    // Predicated region
    $region98: #{tpu_custom_call.1} parent=1 // pred_check
      _
    $region99: #{tpu_custom_call.1} parent=1 // pred_check_branch
      %188 = sbr.rel (0) target = $region101
    $region100: #{tpu_custom_call.1} parent=1 // pred_region
      %189 = dma.done [#allocation15], 16384
    $region101: #{tpu_custom_call.1} parent=1 // pred_fallthru
      _
    // Predicated region
    $region102: #{tpu_custom_call.1} parent=1 // pred_check
      _
    $region103: #{tpu_custom_call.1} parent=1 // pred_check_branch
      %191 = sbr.rel (0) target = $region105
    $region104: #{tpu_custom_call.1} parent=1 // pred_region
      %192 = dma.done [#allocation15], 16384
    $region105: #{tpu_custom_call.1} parent=1 // pred_fallthru
      _
    // Predicated region
    $region106: #{tpu_custom_call.1} parent=1 // pred_check
      _
    $region107: #{tpu_custom_call.1} parent=1 // pred_check_branch
      %194 = sbr.rel (0) target = $region109
    $region108: #{tpu_custom_call.1} parent=1 // pred_region
      %195 = dma.done [#allocation18], 2048
    $region109: #{tpu_custom_call.1} parent=1 // pred_fallthru
      _
    %v196 = vld [vmem:[#allocation2] sm:$0xff]
    %v197 = vld [vmem:[#allocation2 + $0x8] sm:$0xff]
    %v198 = vlaneseq
    %v199 = vshrl.u32 %v198, 7
    %v200 = vlaneseq
    %v201 = vand.u32 %v200, 127
    %vm202 = vcmp.gt.s32.totalorder %v201, %v199
    %v203 = vsel %vm202, -1e+30, 0.0
    %v204 = vld [vmem:[#allocation5] sm:$0x1]
    %v205 = vld [vmem:[#allocation7] sm:$0x1]
    %206 = vadd.xlane.f32.xlu0 %v196
    %v207 = vpop.xlane.xlu0 %206
    %208 = vadd.xlane.f32.xlu0 %v197
    %v209 = vpop.xlane.xlu0 %208
    %v210 = vrcp.pop 128.0
    %v211 = vmul.f32 %v207, %v210
    %v212 = vmul.f32 %v209, %v210
    %v213 = vsub.f32 %v196, %v211
    %v214 = vsub.f32 %v197, %v212
    %v215 = vmul.f32 %v213, %v213
    %v216 = vmul.f32 %v214, %v214
    %217 = vadd.xlane.f32.xlu0 %v215
    %v218 = vpop.xlane.xlu0 %217
    %219 = vadd.xlane.f32.xlu0 %v216
    %v220 = vpop.xlane.xlu0 %219
    %v221 = vmul.f32 %v218, %v210
    %v222 = vmul.f32 %v220, %v210
    %v223 = vadd.f32 %v221, 1e-05
    %v224 = vadd.f32 %v222, 1e-05
    %v225 = vrsqrt.pop %v223
    %v226 = vrsqrt.pop %v224
    %v227 = vmul.f32 %v213, %v225
    %v228 = vmul.f32 %v214, %v226
    %v230 = vlaneseq
    %v231 = vshrl.u32 %v230, 7
    %v232 = vsub.s32 0, %v231
    %v233 = vrot.slane %v204, %v232
    %v235 = vmul.f32 %v227, %v233
    %v236 = vmul.f32 %v228, %v233
    %v238 = vlaneseq
    %v239 = vshrl.u32 %v238, 7
    %v240 = vsub.s32 0, %v239
    %v241 = vrot.slane %v205, %v240
    %v243 = vadd.f32 %v235, %v241
    %v244 = vadd.f32 %v236, %v241
    %v245 = vld [vmem:[#allocation8] sm:$0xff]
    %v246 = vld [vmem:[#allocation8 + $0x8] sm:$0xff]
    %v247 = vld [vmem:[#allocation8 + $0x10] sm:$0xff]
    %v248 = vld [vmem:[#allocation8 + $0x18] sm:$0xff]
    %v249 = vld [vmem:[#allocation8 + $0x20] sm:$0xff]
    %v250 = vld [vmem:[#allocation8 + $0x28] sm:$0xff]
    %v251 = vld [vmem:[#allocation8 + $0x30] sm:$0xff]
    %v252 = vld [vmem:[#allocation8 + $0x38] sm:$0xff]
    %v253 = vld [vmem:[#allocation8 + $0x40] sm:$0xff]
    %v254 = vld [vmem:[#allocation8 + $0x48] sm:$0xff]
    %v255 = vld [vmem:[#allocation8 + $0x50] sm:$0xff]
    %v256 = vld [vmem:[#allocation8 + $0x58] sm:$0xff]
    %v257 = vld [vmem:[#allocation8 + $0x60] sm:$0xff]
    %v258 = vld [vmem:[#allocation8 + $0x68] sm:$0xff]
    %v259 = vld [vmem:[#allocation8 + $0x70] sm:$0xff]
    %v260 = vld [vmem:[#allocation8 + $0x78] sm:$0xff]
    %v261 = vld [vmem:[#allocation8 + $0x80] sm:$0xff]
    %v262 = vld [vmem:[#allocation8 + $0x88] sm:$0xff]
    %v263 = vld [vmem:[#allocation8 + $0x90] sm:$0xff]
    %v264 = vld [vmem:[#allocation8 + $0x98] sm:$0xff]
    %v265 = vld [vmem:[#allocation8 + $0xa0] sm:$0xff]
    %v266 = vld [vmem:[#allocation8 + $0xa8] sm:$0xff]
    %v267 = vld [vmem:[#allocation8 + $0xb0] sm:$0xff]
    %v268 = vld [vmem:[#allocation8 + $0xb8] sm:$0xff]
    %v269 = vld [vmem:[#allocation8 + $0xc0] sm:$0xff]
    %v270 = vld [vmem:[#allocation8 + $0xc8] sm:$0xff]
    %v271 = vld [vmem:[#allocation8 + $0xd0] sm:$0xff]
    %v272 = vld [vmem:[#allocation8 + $0xd8] sm:$0xff]
    %v273 = vld [vmem:[#allocation8 + $0xe0] sm:$0xff]
    %v274 = vld [vmem:[#allocation8 + $0xe8] sm:$0xff]
    %v275 = vld [vmem:[#allocation8 + $0xf0] sm:$0xff]
    %v276 = vld [vmem:[#allocation8 + $0xf8] sm:$0xff]
    %v277 = vld [vmem:[#allocation8 + $0x100] sm:$0xff]
    %v278 = vld [vmem:[#allocation8 + $0x108] sm:$0xff]
    %v279 = vld [vmem:[#allocation8 + $0x110] sm:$0xff]
    %v280 = vld [vmem:[#allocation8 + $0x118] sm:$0xff]
    %v281 = vld [vmem:[#allocation8 + $0x120] sm:$0xff]
    %v282 = vld [vmem:[#allocation8 + $0x128] sm:$0xff]
    %v283 = vld [vmem:[#allocation8 + $0x130] sm:$0xff]
    %v284 = vld [vmem:[#allocation8 + $0x138] sm:$0xff]
    %v285 = vld [vmem:[#allocation8 + $0x140] sm:$0xff]
    %v286 = vld [vmem:[#allocation8 + $0x148] sm:$0xff]
    %v287 = vld [vmem:[#allocation8 + $0x150] sm:$0xff]
    %v288 = vld [vmem:[#allocation8 + $0x158] sm:$0xff]
    %v289 = vld [vmem:[#allocation8 + $0x160] sm:$0xff]
    %v290 = vld [vmem:[#allocation8 + $0x168] sm:$0xff]
    %v291 = vld [vmem:[#allocation8 + $0x170] sm:$0xff]
    %v292 = vld [vmem:[#allocation8 + $0x178] sm:$0xff]
    %v293 = vld [vmem:[%s4] sm:$0x7]
    %v295 = vlaneseq
    %v296 = vshrl.u32 %v295, 7
    %v297 = vsub.s32 0, %v296
    %v298 = vrot.slane %v293, %v297
    %v299 = vlaneseq
    %v300 = vshrl.u32 %v299, 7
    %v301 = vsub.s32 1, %v300
    %v302 = vrot.slane %v293, %v301
    %v303 = vlaneseq
    %v304 = vshrl.u32 %v303, 7
    %v305 = vsub.s32 2, %v304
    %v306 = vrot.slane %v293, %v305
    %310 = vmatprep.subr.mxu0 %v291
    %311 = vmatpush1.msra.mxu0 %v290
    %312 = vmatprep.subr.mxu0 %v288
    %313 = vmatpush1.msra.mxu0 %v287
    %314 = vmatprep.subr.mxu0 %v285
    %315 = vmatpush1.msra.mxu0 %v284
    %316 = vmatprep.subr.mxu0 %v282
    %317 = vmatpush1.msra.mxu0 %v281
    %318 = vmatprep.subr.mxu0 %v279
    %319 = vmatpush1.msra.mxu0 %v278
    %320 = vmatprep.subr.mxu0 %v276
    %321 = vmatpush1.msra.mxu0 %v275
    %322 = vmatprep.subr.mxu0 %v273
    %323 = vmatpush1.msra.mxu0 %v272
    %324 = vmatprep.subr.mxu0 %v270
    %325 = vmatpush1.msra.mxu0 %v269
    %326 = vmatprep.subr.mxu0 %v267
    %327 = vmatpush1.msra.mxu0 %v266
    %328 = vmatprep.subr.mxu0 %v264
    %329 = vmatpush1.msra.mxu0 %v263
    %330 = vmatprep.subr.mxu0 %v261
    %331 = vmatpush1.msra.mxu0 %v260
    %332 = vmatprep.subr.mxu0 %v258
    %333 = vmatpush1.msra.mxu0 %v257
    %334 = vmatprep.subr.mxu0 %v255
    %335 = vmatpush1.msra.mxu0 %v254
    %336 = vmatprep.subr.mxu0 %v252
    %337 = vmatpush1.msra.mxu0 %v251
    %338 = vmatprep.subr.mxu0 %v249
    %339 = vmatpush1.msra.mxu0 %v248
    %340 = vmatprep.subr.mxu0 %v246
    %341 = vmatpush1.msra.mxu0 %v245
    %342 = vmatprep.subr.mxu0 0.0
    %343 = vmatpush2.msra.mxu0 0.0
    %344 = vmatprep.subr.mxu0 0.0
    %345 = vmatpush2.msra.mxu0 0.0
    %346 = vmatprep.subr.mxu0 0.0
    %347 = vmatpush2.msra.mxu0 0.0
    %348 = vmatprep.subr.mxu0 0.0
    %349 = vmatpush2.msra.mxu0 0.0
    %350 = vmatprep.subr.mxu0 0.0
    %351 = vmatpush2.msra.mxu0 0.0
    %352 = vmatprep.subr.mxu0 0.0
    %353 = vmatpush2.msra.mxu0 0.0
    %354 = vmatprep.subr.mxu0 0.0
    %355 = vmatpush2.msra.mxu0 0.0
    %356 = vmatprep.subr.mxu0 0.0
    %357 = vmatpush2.msra.mxu0 0.0
    %358 = vmatprep.subr.mxu0 0.0
    %359 = vmatpush2.msra.mxu0 0.0
    %360 = vmatprep.subr.mxu0 0.0
    %361 = vmatpush2.msra.mxu0 0.0
    %362 = vmatprep.subr.mxu0 0.0
    %363 = vmatpush2.msra.mxu0 0.0
    %364 = vmatprep.subr.mxu0 0.0
    %365 = vmatpush2.msra.mxu0 0.0
    %366 = vmatprep.subr.mxu0 0.0
    %367 = vmatpush2.msra.mxu0 0.0
    %368 = vmatprep.subr.mxu0 0.0
    %369 = vmatpush2.msra.mxu0 0.0
    %370 = vmatprep.subr.mxu0 0.0
    %371 = vmatpush2.msra.mxu0 0.0
    %372 = vmatprep.subr.mxu0 0.0
    %373 = vmatpush2.msra.mxu0 0.0
    %374 = vmatprep.mubr.f32.mxu0 0.0
    %375 = vmatmul.mubr.f32.gmra.mxu0 %v243
    %v376 = vpop.f32.mrf.mxu0
    %v377 = vadd.f32 %v298, %v376
    %v378 = vpop.f32.mrf.mxu0
    %v379 = vadd.f32 %v302, %v378
    %380 = vmatprep.mubr.f32.mxu0 0.0
    %381 = vmatmul.mubr.f32.gmra.mxu0 %v244
    %v382 = vpop.f32.mrf.mxu0
    %v383 = vadd.f32 %v298, %v382
    %v384 = vpop.f32.mrf.mxu0
    %v385 = vadd.f32 %v302, %v384
    %386 = vdwg.mxu0
    %387 = vmatprep.subr.mxu0 0.0
    %388 = vmatpush1.msra.mxu0 %v292
    %389 = vmatprep.subr.mxu0 0.0
    %390 = vmatpush1.msra.mxu0 %v289
    %391 = vmatprep.subr.mxu0 0.0
    %392 = vmatpush1.msra.mxu0 %v286
    %393 = vmatprep.subr.mxu0 0.0
    %394 = vmatpush1.msra.mxu0 %v283
    %395 = vmatprep.subr.mxu0 0.0
    %396 = vmatpush1.msra.mxu0 %v280
    %397 = vmatprep.subr.mxu0 0.0
    %398 = vmatpush1.msra.mxu0 %v277
    %399 = vmatprep.subr.mxu0 0.0
    %400 = vmatpush1.msra.mxu0 %v274
    %401 = vmatprep.subr.mxu0 0.0
    %402 = vmatpush1.msra.mxu0 %v271
    %403 = vmatprep.subr.mxu0 0.0
    %404 = vmatpush1.msra.mxu0 %v268
    %405 = vmatprep.subr.mxu0 0.0
    %406 = vmatpush1.msra.mxu0 %v265
    %407 = vmatprep.subr.mxu0 0.0
    %408 = vmatpush1.msra.mxu0 %v262
    %409 = vmatprep.subr.mxu0 0.0
    %410 = vmatpush1.msra.mxu0 %v259
    %411 = vmatprep.subr.mxu0 0.0
    %412 = vmatpush1.msra.mxu0 %v256
    %413 = vmatprep.subr.mxu0 0.0
    %414 = vmatpush1.msra.mxu0 %v253
    %415 = vmatprep.subr.mxu0 0.0
    %416 = vmatpush1.msra.mxu0 %v250
    %417 = vmatprep.subr.mxu0 0.0
    %418 = vmatpush1.msra.mxu0 %v247
    %419 = vmatprep.subr.mxu0 0.0
    %420 = vmatpush2.msra.mxu0 0.0
    %421 = vmatprep.subr.mxu0 0.0
    %422 = vmatpush2.msra.mxu0 0.0
    %423 = vmatprep.subr.mxu0 0.0
    %424 = vmatpush2.msra.mxu0 0.0
    %425 = vmatprep.subr.mxu0 0.0
    %426 = vmatpush2.msra.mxu0 0.0
    %427 = vmatprep.subr.mxu0 0.0
    %428 = vmatpush2.msra.mxu0 0.0
    %429 = vmatprep.subr.mxu0 0.0
    %430 = vmatpush2.msra.mxu0 0.0
    %431 = vmatprep.subr.mxu0 0.0
    %432 = vmatpush2.msra.mxu0 0.0
    %433 = vmatprep.subr.mxu0 0.0
    %434 = vmatpush2.msra.mxu0 0.0
    %435 = vmatprep.subr.mxu0 0.0
    %436 = vmatpush2.msra.mxu0 0.0
    %437 = vmatprep.subr.mxu0 0.0
    %438 = vmatpush2.msra.mxu0 0.0
    %439 = vmatprep.subr.mxu0 0.0
    %440 = vmatpush2.msra.mxu0 0.0
    %441 = vmatprep.subr.mxu0 0.0
    %442 = vmatpush2.msra.mxu0 0.0
    %443 = vmatprep.subr.mxu0 0.0
    %444 = vmatpush2.msra.mxu0 0.0
    %445 = vmatprep.subr.mxu0 0.0
    %446 = vmatpush2.msra.mxu0 0.0
    %447 = vmatprep.subr.mxu0 0.0
    %448 = vmatpush2.msra.mxu0 0.0
    %449 = vmatprep.subr.mxu0 0.0
    %450 = vmatpush2.msra.mxu0 0.0
    %451 = vmatprep.mubr.f32.mxu0 0.0
    %452 = vmatmul.mubr.f32.gmra.mxu0 %v243
    %v453 = vpop.f32.mrf.mxu0
    %v454 = vadd.f32 %v306, %v453
    %v455 = vpop.f32.mrf.mxu0
    %456 = vmatprep.mubr.f32.mxu0 0.0
    %457 = vmatmul.mubr.f32.gmra.mxu0 %v244
    %v458 = vpop.f32.mrf.mxu0
    %v459 = vadd.f32 %v306, %v458
    %v460 = vpop.f32.mrf.mxu0
    %461 = vdwg.mxu0
    %v462 = vld [vmem:[#allocation10] sm:$0xff]
    %v463 = vld [vmem:[#allocation10 + $0x8] sm:$0xff]
    %v464 = vld [vmem:[#allocation10 + $0x10] sm:$0xff]
    %v465 = vld [vmem:[#allocation10 + $0x18] sm:$0xff]
    %v466 = vld [vmem:[#allocation10 + $0x20] sm:$0xff]
    %v467 = vld [vmem:[#allocation10 + $0x28] sm:$0xff]
    %v468 = vld [vmem:[#allocation10 + $0x30] sm:$0xff]
    %v469 = vld [vmem:[#allocation10 + $0x38] sm:$0xff]
    %v470 = vld [vmem:[#allocation10 + $0x40] sm:$0xff]
    %v471 = vld [vmem:[#allocation10 + $0x48] sm:$0xff]
    %v472 = vld [vmem:[#allocation10 + $0x50] sm:$0xff]
    %v473 = vld [vmem:[#allocation10 + $0x58] sm:$0xff]
    %v474 = vld [vmem:[#allocation10 + $0x60] sm:$0xff]
    %v475 = vld [vmem:[#allocation10 + $0x68] sm:$0xff]
    %v476 = vld [vmem:[#allocation10 + $0x70] sm:$0xff]
    %v477 = vld [vmem:[#allocation10 + $0x78] sm:$0xff]
    %vm478 = vcmask 261120
    %v480 = vsel %vm478, %v377, 0
    %v483 = vsel %vm478, %v379, 0
    %485 = vmatprep.subr.mxu0 0.0
    %486 = vmatpush1.xpose.msra.mxu0 0.0
    %487 = vmatprep.subr.mxu0 0.0
    %488 = vmatpush1.xpose.msra.mxu0 0.0
    %489 = vmatprep.subr.mxu0 0.0
    %490 = vmatpush1.xpose.msra.mxu0 0.0
    %491 = vmatprep.subr.mxu0 0.0
    %492 = vmatpush1.xpose.msra.mxu0 0.0
    %493 = vmatprep.subr.mxu0 0.0
    %494 = vmatpush1.xpose.msra.mxu0 0.0
    %495 = vmatprep.subr.mxu0 0.0
    %496 = vmatpush1.xpose.msra.mxu0 0.0
    %497 = vmatprep.subr.mxu0 0.0
    %498 = vmatpush1.xpose.msra.mxu0 0.0
    %499 = vmatprep.subr.mxu0 0.0
    %500 = vmatpush1.xpose.msra.mxu0 0.0
    %501 = vmatprep.subr.mxu0 0.0
    %502 = vmatpush1.xpose.msra.mxu0 0.0
    %503 = vmatprep.subr.mxu0 0.0
    %504 = vmatpush1.xpose.msra.mxu0 0.0
    %505 = vmatprep.subr.mxu0 0.0
    %506 = vmatpush1.xpose.msra.mxu0 0.0
    %507 = vmatprep.subr.mxu0 0.0
    %508 = vmatpush1.xpose.msra.mxu0 0.0
    %509 = vmatprep.subr.mxu0 0.0
    %510 = vmatpush1.xpose.msra.mxu0 0.0
    %511 = vmatprep.subr.mxu0 0.0
    %512 = vmatpush1.xpose.msra.mxu0 0.0
    %513 = vmatprep.subr.mxu0 0.0
    %514 = vmatpush1.xpose.msra.mxu0 0.0
    %515 = vmatprep.subr.mxu0 0.0
    %516 = vmatpush1.xpose.msra.mxu0 %v483
    %517 = vmatprep.subr.mxu0 0.0
    %518 = vmatpush2.xpose.msra.mxu0 0.0
    %519 = vmatprep.subr.mxu0 0.0
    %520 = vmatpush2.xpose.msra.mxu0 0.0
    %521 = vmatprep.subr.mxu0 0.0
    %522 = vmatpush2.xpose.msra.mxu0 0.0
    %523 = vmatprep.subr.mxu0 0.0
    %524 = vmatpush2.xpose.msra.mxu0 0.0
    %525 = vmatprep.subr.mxu0 0.0
    %526 = vmatpush2.xpose.msra.mxu0 0.0
    %527 = vmatprep.subr.mxu0 0.0
    %528 = vmatpush2.xpose.msra.mxu0 0.0
    %529 = vmatprep.subr.mxu0 0.0
    %530 = vmatpush2.xpose.msra.mxu0 0.0
    %531 = vmatprep.subr.mxu0 0.0
    %532 = vmatpush2.xpose.msra.mxu0 0.0
    %533 = vmatprep.subr.mxu0 0.0
    %534 = vmatpush2.xpose.msra.mxu0 0.0
    %535 = vmatprep.subr.mxu0 0.0
    %536 = vmatpush2.xpose.msra.mxu0 0.0
    %537 = vmatprep.subr.mxu0 0.0
    %538 = vmatpush2.xpose.msra.mxu0 0.0
    %539 = vmatprep.subr.mxu0 0.0
    %540 = vmatpush2.xpose.msra.mxu0 0.0
    %541 = vmatprep.subr.mxu0 0.0
    %542 = vmatpush2.xpose.msra.mxu0 0.0
    %543 = vmatprep.subr.mxu0 0.0
    %544 = vmatpush2.xpose.msra.mxu0 0.0
    %545 = vmatprep.subr.mxu0 0.0
    %546 = vmatpush2.xpose.msra.mxu0 0.0
    %547 = vmatprep.subr.mxu0 0.0
    %548 = vmatpush2.xpose.msra.mxu0 0.0
    %549 = vmatprep.mubr.f32.mxu0 0.0
    %550 = vmatmul.mubr.f32.gmra.mxu0 %v480
    %v551 = vpop.f32.mrf.mxu0
    %v552 = vadd.f32 0.0, %v551
    %v553 = vpop.f32.mrf.mxu0
    %554 = vdwg.mxu0
    %v556 = vsel %vm478, %v383, 0
    %v559 = vsel %vm478, %v385, 0
    %561 = vmatprep.subr.mxu0 0.0
    %562 = vmatpush1.xpose.msra.mxu0 0.0
    %563 = vmatprep.subr.mxu0 0.0
    %564 = vmatpush1.xpose.msra.mxu0 0.0
    %565 = vmatprep.subr.mxu0 0.0
    %566 = vmatpush1.xpose.msra.mxu0 0.0
    %567 = vmatprep.subr.mxu0 0.0
    %568 = vmatpush1.xpose.msra.mxu0 0.0
    %569 = vmatprep.subr.mxu0 0.0
    %570 = vmatpush1.xpose.msra.mxu0 0.0
    %571 = vmatprep.subr.mxu0 0.0
    %572 = vmatpush1.xpose.msra.mxu0 0.0
    %573 = vmatprep.subr.mxu0 0.0
    %574 = vmatpush1.xpose.msra.mxu0 0.0
    %575 = vmatprep.subr.mxu0 0.0
    %576 = vmatpush1.xpose.msra.mxu0 0.0
    %577 = vmatprep.subr.mxu0 0.0
    %578 = vmatpush1.xpose.msra.mxu0 0.0
    %579 = vmatprep.subr.mxu0 0.0
    %580 = vmatpush1.xpose.msra.mxu0 0.0
    %581 = vmatprep.subr.mxu0 0.0
    %582 = vmatpush1.xpose.msra.mxu0 0.0
    %583 = vmatprep.subr.mxu0 0.0
    %584 = vmatpush1.xpose.msra.mxu0 0.0
    %585 = vmatprep.subr.mxu0 0.0
    %586 = vmatpush1.xpose.msra.mxu0 0.0
    %587 = vmatprep.subr.mxu0 0.0
    %588 = vmatpush1.xpose.msra.mxu0 0.0
    %589 = vmatprep.subr.mxu0 0.0
    %590 = vmatpush1.xpose.msra.mxu0 0.0
    %591 = vmatprep.subr.mxu0 0.0
    %592 = vmatpush1.xpose.msra.mxu0 %v559
    %593 = vmatprep.subr.mxu0 0.0
    %594 = vmatpush2.xpose.msra.mxu0 0.0
    %595 = vmatprep.subr.mxu0 0.0
    %596 = vmatpush2.xpose.msra.mxu0 0.0
    %597 = vmatprep.subr.mxu0 0.0
    %598 = vmatpush2.xpose.msra.mxu0 0.0
    %599 = vmatprep.subr.mxu0 0.0
    %600 = vmatpush2.xpose.msra.mxu0 0.0
    %601 = vmatprep.subr.mxu0 0.0
    %602 = vmatpush2.xpose.msra.mxu0 0.0
    %603 = vmatprep.subr.mxu0 0.0
    %604 = vmatpush2.xpose.msra.mxu0 0.0
    %605 = vmatprep.subr.mxu0 0.0
    %606 = vmatpush2.xpose.msra.mxu0 0.0
    %607 = vmatprep.subr.mxu0 0.0
    %608 = vmatpush2.xpose.msra.mxu0 0.0
    %609 = vmatprep.subr.mxu0 0.0
    %610 = vmatpush2.xpose.msra.mxu0 0.0
    %611 = vmatprep.subr.mxu0 0.0
    %612 = vmatpush2.xpose.msra.mxu0 0.0
    %613 = vmatprep.subr.mxu0 0.0
    %614 = vmatpush2.xpose.msra.mxu0 0.0
    %615 = vmatprep.subr.mxu0 0.0
    %616 = vmatpush2.xpose.msra.mxu0 0.0
    %617 = vmatprep.subr.mxu0 0.0
    %618 = vmatpush2.xpose.msra.mxu0 0.0
    %619 = vmatprep.subr.mxu0 0.0
    %620 = vmatpush2.xpose.msra.mxu0 0.0
    %621 = vmatprep.subr.mxu0 0.0
    %622 = vmatpush2.xpose.msra.mxu0 0.0
    %623 = vmatprep.subr.mxu0 0.0
    %624 = vmatpush2.xpose.msra.mxu0 0.0
    %625 = vmatprep.mubr.f32.mxu0 0.0
    %626 = vmatmul.mubr.f32.gmra.mxu0 %v556
    %v627 = vpop.f32.mrf.mxu0
    %v628 = vadd.f32 0.0, %v627
    %v629 = vpop.f32.mrf.mxu0
    %630 = vdwg.mxu0
    %v631 = vmul.f32 %v552, 0.17677669
    %v632 = vmul.f32 %v628, 0.17677669
    %v633 = vadd.f32 %v631, %v203
    %v634 = vadd.f32 %v632, %v203
    %vm635 = vcmask 64512
    %v636 = vsel %vm635, %v633, -inf
    %637 = vmax.xlane.f32.xlu0 %v636
    %v638 = vpop.xlane.xlu0 %637
    %v639 = vsel %vm635, %v634, -inf
    %640 = vmax.xlane.f32.xlu0 %v639
    %v641 = vpop.xlane.xlu0 %640
    %v642 = vsub.f32 %v633, %v638
    %v643 = vsub.f32 %v634, %v641
    %v644 = vmul.f32 %v642, 1.442695
    %v645 = vpow.pop %v644
    %v646 = vmul.f32 %v643, 1.442695
    %v647 = vpow.pop %v646
    %v648 = vsel %vm635, %v645, 0.0
    %649 = vadd.xlane.f32.xlu0 %v648
    %v650 = vpop.xlane.xlu0 %649
    %v651 = vsel %vm635, %v647, 0.0
    %652 = vadd.xlane.f32.xlu0 %v651
    %v653 = vpop.xlane.xlu0 %652
    %v654 = vrcp.pop %v650
    %v655 = vrcp.pop %v653
    %v656 = vmul.f32 %v645, %v654
    %v657 = vmul.f32 %v647, %v655
    %v659 = vsel %vm635, %v656, 0
    %661 = vmatprep.subr.mxu0 0.0
    %662 = vmatpush1.msra.mxu0 0.0
    %663 = vmatprep.subr.mxu0 0.0
    %664 = vmatpush1.msra.mxu0 0.0
    %665 = vmatprep.subr.mxu0 0.0
    %666 = vmatpush1.msra.mxu0 0.0
    %667 = vmatprep.subr.mxu0 0.0
    %668 = vmatpush1.msra.mxu0 0.0
    %669 = vmatprep.subr.mxu0 0.0
    %670 = vmatpush1.msra.mxu0 0.0
    %671 = vmatprep.subr.mxu0 0.0
    %672 = vmatpush1.msra.mxu0 0.0
    %673 = vmatprep.subr.mxu0 0.0
    %674 = vmatpush1.msra.mxu0 0.0
    %675 = vmatprep.subr.mxu0 0.0
    %676 = vmatpush1.msra.mxu0 0.0
    %677 = vmatprep.subr.mxu0 0.0
    %678 = vmatpush1.msra.mxu0 0.0
    %679 = vmatprep.subr.mxu0 0.0
    %680 = vmatpush1.msra.mxu0 0.0
    %681 = vmatprep.subr.mxu0 0.0
    %682 = vmatpush1.msra.mxu0 0.0
    %683 = vmatprep.subr.mxu0 0.0
    %684 = vmatpush1.msra.mxu0 0.0
    %685 = vmatprep.subr.mxu0 0.0
    %686 = vmatpush1.msra.mxu0 0.0
    %687 = vmatprep.subr.mxu0 0.0
    %688 = vmatpush1.msra.mxu0 0.0
    %689 = vmatprep.subr.mxu0 0.0
    %690 = vmatpush1.msra.mxu0 0.0
    %691 = vmatprep.subr.mxu0 0.0
    %692 = vmatpush1.msra.mxu0 %v454
    %693 = vmatprep.subr.mxu0 0.0
    %694 = vmatpush2.msra.mxu0 0.0
    %695 = vmatprep.subr.mxu0 0.0
    %696 = vmatpush2.msra.mxu0 0.0
    %697 = vmatprep.subr.mxu0 0.0
    %698 = vmatpush2.msra.mxu0 0.0
    %699 = vmatprep.subr.mxu0 0.0
    %700 = vmatpush2.msra.mxu0 0.0
    %701 = vmatprep.subr.mxu0 0.0
    %702 = vmatpush2.msra.mxu0 0.0
    %703 = vmatprep.subr.mxu0 0.0
    %704 = vmatpush2.msra.mxu0 0.0
    %705 = vmatprep.subr.mxu0 0.0
    %706 = vmatpush2.msra.mxu0 0.0
    %707 = vmatprep.subr.mxu0 0.0
    %708 = vmatpush2.msra.mxu0 0.0
    %709 = vmatprep.subr.mxu0 0.0
    %710 = vmatpush2.msra.mxu0 0.0
    %711 = vmatprep.subr.mxu0 0.0
    %712 = vmatpush2.msra.mxu0 0.0
    %713 = vmatprep.subr.mxu0 0.0
    %714 = vmatpush2.msra.mxu0 0.0
    %715 = vmatprep.subr.mxu0 0.0
    %716 = vmatpush2.msra.mxu0 0.0
    %717 = vmatprep.subr.mxu0 0.0
    %718 = vmatpush2.msra.mxu0 0.0
    %719 = vmatprep.subr.mxu0 0.0
    %720 = vmatpush2.msra.mxu0 0.0
    %721 = vmatprep.subr.mxu0 0.0
    %722 = vmatpush2.msra.mxu0 0.0
    %723 = vmatprep.subr.mxu0 0.0
    %724 = vmatpush2.msra.mxu0 0.0
    %725 = vmatprep.mubr.f32.mxu0 0.0
    %726 = vmatmul.mubr.f32.gmra.mxu0 %v659
    %v727 = vpop.f32.mrf.mxu0
    %v728 = vadd.f32 0.0, %v727
    %v729 = vpop.f32.mrf.mxu0
    %730 = vdwg.mxu0
    %v732 = vsel %vm635, %v657, 0
    %734 = vmatprep.subr.mxu0 0.0
    %735 = vmatpush1.msra.mxu0 0.0
    %736 = vmatprep.subr.mxu0 0.0
    %737 = vmatpush1.msra.mxu0 0.0
    %738 = vmatprep.subr.mxu0 0.0
    %739 = vmatpush1.msra.mxu0 0.0
    %740 = vmatprep.subr.mxu0 0.0
    %741 = vmatpush1.msra.mxu0 0.0
    %742 = vmatprep.subr.mxu0 0.0
    %743 = vmatpush1.msra.mxu0 0.0
    %744 = vmatprep.subr.mxu0 0.0
    %745 = vmatpush1.msra.mxu0 0.0
    %746 = vmatprep.subr.mxu0 0.0
    %747 = vmatpush1.msra.mxu0 0.0
    %748 = vmatprep.subr.mxu0 0.0
    %749 = vmatpush1.msra.mxu0 0.0
    %750 = vmatprep.subr.mxu0 0.0
    %751 = vmatpush1.msra.mxu0 0.0
    %752 = vmatprep.subr.mxu0 0.0
    %753 = vmatpush1.msra.mxu0 0.0
    %754 = vmatprep.subr.mxu0 0.0
    %755 = vmatpush1.msra.mxu0 0.0
    %756 = vmatprep.subr.mxu0 0.0
    %757 = vmatpush1.msra.mxu0 0.0
    %758 = vmatprep.subr.mxu0 0.0
    %759 = vmatpush1.msra.mxu0 0.0
    %760 = vmatprep.subr.mxu0 0.0
    %761 = vmatpush1.msra.mxu0 0.0
    %762 = vmatprep.subr.mxu0 0.0
    %763 = vmatpush1.msra.mxu0 0.0
    %764 = vmatprep.subr.mxu0 0.0
    %765 = vmatpush1.msra.mxu0 %v459
    %766 = vmatprep.subr.mxu0 0.0
    %767 = vmatpush2.msra.mxu0 0.0
    %768 = vmatprep.subr.mxu0 0.0
    %769 = vmatpush2.msra.mxu0 0.0
    %770 = vmatprep.subr.mxu0 0.0
    %771 = vmatpush2.msra.mxu0 0.0
    %772 = vmatprep.subr.mxu0 0.0
    %773 = vmatpush2.msra.mxu0 0.0
    %774 = vmatprep.subr.mxu0 0.0
    %775 = vmatpush2.msra.mxu0 0.0
    %776 = vmatprep.subr.mxu0 0.0
    %777 = vmatpush2.msra.mxu0 0.0
    %778 = vmatprep.subr.mxu0 0.0
    %779 = vmatpush2.msra.mxu0 0.0
    %780 = vmatprep.subr.mxu0 0.0
    %781 = vmatpush2.msra.mxu0 0.0
    %782 = vmatprep.subr.mxu0 0.0
    %783 = vmatpush2.msra.mxu0 0.0
    %784 = vmatprep.subr.mxu0 0.0
    %785 = vmatpush2.msra.mxu0 0.0
    %786 = vmatprep.subr.mxu0 0.0
    %787 = vmatpush2.msra.mxu0 0.0
    %788 = vmatprep.subr.mxu0 0.0
    %789 = vmatpush2.msra.mxu0 0.0
    %790 = vmatprep.subr.mxu0 0.0
    %791 = vmatpush2.msra.mxu0 0.0
    %792 = vmatprep.subr.mxu0 0.0
    %793 = vmatpush2.msra.mxu0 0.0
    %794 = vmatprep.subr.mxu0 0.0
    %795 = vmatpush2.msra.mxu0 0.0
    %796 = vmatprep.subr.mxu0 0.0
    %797 = vmatpush2.msra.mxu0 0.0
    %798 = vmatprep.mubr.f32.mxu0 0.0
    %799 = vmatmul.mubr.f32.gmra.mxu0 %v732
    %v800 = vpop.f32.mrf.mxu0
    %v801 = vadd.f32 0.0, %v800
    %v802 = vpop.f32.mrf.mxu0
    %803 = vdwg.mxu0
    %804 = vrot.lane.b32.xlu0 %v377, 96
    %v805 = vpop.permute.xlu0 %804
    %806 = vrot.lane.b32.xlu0 %v379, 96
    %v807 = vpop.permute.xlu0 %806
    %v808 = vsel %vm478, %v805, 0
    %v810 = vsel %vm478, %v807, 0
    %812 = vmatprep.subr.mxu0 0.0
    %813 = vmatpush1.xpose.msra.mxu0 0.0
    %814 = vmatprep.subr.mxu0 0.0
    %815 = vmatpush1.xpose.msra.mxu0 0.0
    %816 = vmatprep.subr.mxu0 0.0
    %817 = vmatpush1.xpose.msra.mxu0 0.0
    %818 = vmatprep.subr.mxu0 0.0
    %819 = vmatpush1.xpose.msra.mxu0 0.0
    %820 = vmatprep.subr.mxu0 0.0
    %821 = vmatpush1.xpose.msra.mxu0 0.0
    %822 = vmatprep.subr.mxu0 0.0
    %823 = vmatpush1.xpose.msra.mxu0 0.0
    %824 = vmatprep.subr.mxu0 0.0
    %825 = vmatpush1.xpose.msra.mxu0 0.0
    %826 = vmatprep.subr.mxu0 0.0
    %827 = vmatpush1.xpose.msra.mxu0 0.0
    %828 = vmatprep.subr.mxu0 0.0
    %829 = vmatpush1.xpose.msra.mxu0 0.0
    %830 = vmatprep.subr.mxu0 0.0
    %831 = vmatpush1.xpose.msra.mxu0 0.0
    %832 = vmatprep.subr.mxu0 0.0
    %833 = vmatpush1.xpose.msra.mxu0 0.0
    %834 = vmatprep.subr.mxu0 0.0
    %835 = vmatpush1.xpose.msra.mxu0 0.0
    %836 = vmatprep.subr.mxu0 0.0
    %837 = vmatpush1.xpose.msra.mxu0 0.0
    %838 = vmatprep.subr.mxu0 0.0
    %839 = vmatpush1.xpose.msra.mxu0 0.0
    %840 = vmatprep.subr.mxu0 0.0
    %841 = vmatpush1.xpose.msra.mxu0 0.0
    %842 = vmatprep.subr.mxu0 0.0
    %843 = vmatpush1.xpose.msra.mxu0 %v810
    %844 = vmatprep.subr.mxu0 0.0
    %845 = vmatpush2.xpose.msra.mxu0 0.0
    %846 = vmatprep.subr.mxu0 0.0
    %847 = vmatpush2.xpose.msra.mxu0 0.0
    %848 = vmatprep.subr.mxu0 0.0
    %849 = vmatpush2.xpose.msra.mxu0 0.0
    %850 = vmatprep.subr.mxu0 0.0
    %851 = vmatpush2.xpose.msra.mxu0 0.0
    %852 = vmatprep.subr.mxu0 0.0
    %853 = vmatpush2.xpose.msra.mxu0 0.0
    %854 = vmatprep.subr.mxu0 0.0
    %855 = vmatpush2.xpose.msra.mxu0 0.0
    %856 = vmatprep.subr.mxu0 0.0
    %857 = vmatpush2.xpose.msra.mxu0 0.0
    %858 = vmatprep.subr.mxu0 0.0
    %859 = vmatpush2.xpose.msra.mxu0 0.0
    %860 = vmatprep.subr.mxu0 0.0
    %861 = vmatpush2.xpose.msra.mxu0 0.0
    %862 = vmatprep.subr.mxu0 0.0
    %863 = vmatpush2.xpose.msra.mxu0 0.0
    %864 = vmatprep.subr.mxu0 0.0
    %865 = vmatpush2.xpose.msra.mxu0 0.0
    %866 = vmatprep.subr.mxu0 0.0
    %867 = vmatpush2.xpose.msra.mxu0 0.0
    %868 = vmatprep.subr.mxu0 0.0
    %869 = vmatpush2.xpose.msra.mxu0 0.0
    %870 = vmatprep.subr.mxu0 0.0
    %871 = vmatpush2.xpose.msra.mxu0 0.0
    %872 = vmatprep.subr.mxu0 0.0
    %873 = vmatpush2.xpose.msra.mxu0 0.0
    %874 = vmatprep.subr.mxu0 0.0
    %875 = vmatpush2.xpose.msra.mxu0 0.0
    %876 = vmatprep.mubr.f32.mxu0 0.0
    %877 = vmatmul.mubr.f32.gmra.mxu0 %v808
    %v878 = vpop.f32.mrf.mxu0
    %v879 = vadd.f32 0.0, %v878
    %v880 = vpop.f32.mrf.mxu0
    %881 = vdwg.mxu0
    %882 = vrot.lane.b32.xlu0 %v383, 96
    %v883 = vpop.permute.xlu0 %882
    %884 = vrot.lane.b32.xlu0 %v385, 96
    %v885 = vpop.permute.xlu0 %884
    %v886 = vsel %vm478, %v883, 0
    %v888 = vsel %vm478, %v885, 0
    %890 = vmatprep.subr.mxu0 0.0
    %891 = vmatpush1.xpose.msra.mxu0 0.0
    %892 = vmatprep.subr.mxu0 0.0
    %893 = vmatpush1.xpose.msra.mxu0 0.0
    %894 = vmatprep.subr.mxu0 0.0
    %895 = vmatpush1.xpose.msra.mxu0 0.0
    %896 = vmatprep.subr.mxu0 0.0
    %897 = vmatpush1.xpose.msra.mxu0 0.0
    %898 = vmatprep.subr.mxu0 0.0
    %899 = vmatpush1.xpose.msra.mxu0 0.0
    %900 = vmatprep.subr.mxu0 0.0
    %901 = vmatpush1.xpose.msra.mxu0 0.0
    %902 = vmatprep.subr.mxu0 0.0
    %903 = vmatpush1.xpose.msra.mxu0 0.0
    %904 = vmatprep.subr.mxu0 0.0
    %905 = vmatpush1.xpose.msra.mxu0 0.0
    %906 = vmatprep.subr.mxu0 0.0
    %907 = vmatpush1.xpose.msra.mxu0 0.0
    %908 = vmatprep.subr.mxu0 0.0
    %909 = vmatpush1.xpose.msra.mxu0 0.0
    %910 = vmatprep.subr.mxu0 0.0
    %911 = vmatpush1.xpose.msra.mxu0 0.0
    %912 = vmatprep.subr.mxu0 0.0
    %913 = vmatpush1.xpose.msra.mxu0 0.0
    %914 = vmatprep.subr.mxu0 0.0
    %915 = vmatpush1.xpose.msra.mxu0 0.0
    %916 = vmatprep.subr.mxu0 0.0
    %917 = vmatpush1.xpose.msra.mxu0 0.0
    %918 = vmatprep.subr.mxu0 0.0
    %919 = vmatpush1.xpose.msra.mxu0 0.0
    %920 = vmatprep.subr.mxu0 0.0
    %921 = vmatpush1.xpose.msra.mxu0 %v888
    %922 = vmatprep.subr.mxu0 0.0
    %923 = vmatpush2.xpose.msra.mxu0 0.0
    %924 = vmatprep.subr.mxu0 0.0
    %925 = vmatpush2.xpose.msra.mxu0 0.0
    %926 = vmatprep.subr.mxu0 0.0
    %927 = vmatpush2.xpose.msra.mxu0 0.0
    %928 = vmatprep.subr.mxu0 0.0
    %929 = vmatpush2.xpose.msra.mxu0 0.0
    %930 = vmatprep.subr.mxu0 0.0
    %931 = vmatpush2.xpose.msra.mxu0 0.0
    %932 = vmatprep.subr.mxu0 0.0
    %933 = vmatpush2.xpose.msra.mxu0 0.0
    %934 = vmatprep.subr.mxu0 0.0
    %935 = vmatpush2.xpose.msra.mxu0 0.0
    %936 = vmatprep.subr.mxu0 0.0
    %937 = vmatpush2.xpose.msra.mxu0 0.0
    %938 = vmatprep.subr.mxu0 0.0
    %939 = vmatpush2.xpose.msra.mxu0 0.0
    %940 = vmatprep.subr.mxu0 0.0
    %941 = vmatpush2.xpose.msra.mxu0 0.0
    %942 = vmatprep.subr.mxu0 0.0
    %943 = vmatpush2.xpose.msra.mxu0 0.0
    %944 = vmatprep.subr.mxu0 0.0
    %945 = vmatpush2.xpose.msra.mxu0 0.0
    %946 = vmatprep.subr.mxu0 0.0
    %947 = vmatpush2.xpose.msra.mxu0 0.0
    %948 = vmatprep.subr.mxu0 0.0
    %949 = vmatpush2.xpose.msra.mxu0 0.0
    %950 = vmatprep.subr.mxu0 0.0
    %951 = vmatpush2.xpose.msra.mxu0 0.0
    %952 = vmatprep.subr.mxu0 0.0
    %953 = vmatpush2.xpose.msra.mxu0 0.0
    %954 = vmatprep.mubr.f32.mxu0 0.0
    %955 = vmatmul.mubr.f32.gmra.mxu0 %v886
    %v956 = vpop.f32.mrf.mxu0
    %v957 = vadd.f32 0.0, %v956
    %v958 = vpop.f32.mrf.mxu0
    %959 = vdwg.mxu0
    %v960 = vmul.f32 %v879, 0.17677669
    %v961 = vmul.f32 %v957, 0.17677669
    %v962 = vadd.f32 %v960, %v203
    %v963 = vadd.f32 %v961, %v203
    %v964 = vsel %vm635, %v962, -inf
    %965 = vmax.xlane.f32.xlu0 %v964
    %v966 = vpop.xlane.xlu0 %965
    %v967 = vsel %vm635, %v963, -inf
    %968 = vmax.xlane.f32.xlu0 %v967
    %v969 = vpop.xlane.xlu0 %968
    %v970 = vsub.f32 %v962, %v966
    %v971 = vsub.f32 %v963, %v969
    %v972 = vmul.f32 %v970, 1.442695
    %v973 = vpow.pop %v972
    %v974 = vmul.f32 %v971, 1.442695
    %v975 = vpow.pop %v974
    %v976 = vsel %vm635, %v973, 0.0
    %977 = vadd.xlane.f32.xlu0 %v976
    %v978 = vpop.xlane.xlu0 %977
    %v979 = vsel %vm635, %v975, 0.0
    %980 = vadd.xlane.f32.xlu0 %v979
    %v981 = vpop.xlane.xlu0 %980
    %v982 = vrcp.pop %v978
    %v983 = vrcp.pop %v981
    %v984 = vmul.f32 %v973, %v982
    %v985 = vmul.f32 %v975, %v983
    %987 = vrot.lane.b32.xlu0 %v454, 96
    %v988 = vpop.permute.xlu0 %987
    %v991 = vsel %vm635, %v984, 0
    %993 = vmatprep.subr.mxu0 0.0
    %994 = vmatpush1.msra.mxu0 0.0
    %995 = vmatprep.subr.mxu0 0.0
    %996 = vmatpush1.msra.mxu0 0.0
    %997 = vmatprep.subr.mxu0 0.0
    %998 = vmatpush1.msra.mxu0 0.0
    %999 = vmatprep.subr.mxu0 0.0
    %1000 = vmatpush1.msra.mxu0 0.0
    %1001 = vmatprep.subr.mxu0 0.0
    %1002 = vmatpush1.msra.mxu0 0.0
    %1003 = vmatprep.subr.mxu0 0.0
    %1004 = vmatpush1.msra.mxu0 0.0
    %1005 = vmatprep.subr.mxu0 0.0
    %1006 = vmatpush1.msra.mxu0 0.0
    %1007 = vmatprep.subr.mxu0 0.0
    %1008 = vmatpush1.msra.mxu0 0.0
    %1009 = vmatprep.subr.mxu0 0.0
    %1010 = vmatpush1.msra.mxu0 0.0
    %1011 = vmatprep.subr.mxu0 0.0
    %1012 = vmatpush1.msra.mxu0 0.0
    %1013 = vmatprep.subr.mxu0 0.0
    %1014 = vmatpush1.msra.mxu0 0.0
    %1015 = vmatprep.subr.mxu0 0.0
    %1016 = vmatpush1.msra.mxu0 0.0
    %1017 = vmatprep.subr.mxu0 0.0
    %1018 = vmatpush1.msra.mxu0 0.0
    %1019 = vmatprep.subr.mxu0 0.0
    %1020 = vmatpush1.msra.mxu0 0.0
    %1021 = vmatprep.subr.mxu0 0.0
    %1022 = vmatpush1.msra.mxu0 0.0
    %1023 = vmatprep.subr.mxu0 0.0
    %1024 = vmatpush1.msra.mxu0 %v988
    %1025 = vmatprep.subr.mxu0 0.0
    %1026 = vmatpush2.msra.mxu0 0.0
    %1027 = vmatprep.subr.mxu0 0.0
    %1028 = vmatpush2.msra.mxu0 0.0
    %1029 = vmatprep.subr.mxu0 0.0
    %1030 = vmatpush2.msra.mxu0 0.0
    %1031 = vmatprep.subr.mxu0 0.0
    %1032 = vmatpush2.msra.mxu0 0.0
    %1033 = vmatprep.subr.mxu0 0.0
    %1034 = vmatpush2.msra.mxu0 0.0
    %1035 = vmatprep.subr.mxu0 0.0
    %1036 = vmatpush2.msra.mxu0 0.0
    %1037 = vmatprep.subr.mxu0 0.0
    %1038 = vmatpush2.msra.mxu0 0.0
    %1039 = vmatprep.subr.mxu0 0.0
    %1040 = vmatpush2.msra.mxu0 0.0
    %1041 = vmatprep.subr.mxu0 0.0
    %1042 = vmatpush2.msra.mxu0 0.0
    %1043 = vmatprep.subr.mxu0 0.0
    %1044 = vmatpush2.msra.mxu0 0.0
    %1045 = vmatprep.subr.mxu0 0.0
    %1046 = vmatpush2.msra.mxu0 0.0
    %1047 = vmatprep.subr.mxu0 0.0
    %1048 = vmatpush2.msra.mxu0 0.0
    %1049 = vmatprep.subr.mxu0 0.0
    %1050 = vmatpush2.msra.mxu0 0.0
    %1051 = vmatprep.subr.mxu0 0.0
    %1052 = vmatpush2.msra.mxu0 0.0
    %1053 = vmatprep.subr.mxu0 0.0
    %1054 = vmatpush2.msra.mxu0 0.0
    %1055 = vmatprep.subr.mxu0 0.0
    %1056 = vmatpush2.msra.mxu0 0.0
    %1057 = vmatprep.mubr.f32.mxu0 0.0
    %1058 = vmatmul.mubr.f32.gmra.mxu0 %v991
    %v1059 = vpop.f32.mrf.mxu0
    %v1060 = vadd.f32 0.0, %v1059
    %v1061 = vpop.f32.mrf.mxu0
    %1062 = vdwg.mxu0
    %1064 = vrot.lane.b32.xlu0 %v459, 96
    %v1065 = vpop.permute.xlu0 %1064
    %v1068 = vsel %vm635, %v985, 0
    %1070 = vmatprep.subr.mxu0 0.0
    %1071 = vmatpush1.msra.mxu0 0.0
    %1072 = vmatprep.subr.mxu0 0.0
    %1073 = vmatpush1.msra.mxu0 0.0
    %1074 = vmatprep.subr.mxu0 0.0
    %1075 = vmatpush1.msra.mxu0 0.0
    %1076 = vmatprep.subr.mxu0 0.0
    %1077 = vmatpush1.msra.mxu0 0.0
    %1078 = vmatprep.subr.mxu0 0.0
    %1079 = vmatpush1.msra.mxu0 0.0
    %1080 = vmatprep.subr.mxu0 0.0
    %1081 = vmatpush1.msra.mxu0 0.0
    %1082 = vmatprep.subr.mxu0 0.0
    %1083 = vmatpush1.msra.mxu0 0.0
    %1084 = vmatprep.subr.mxu0 0.0
    %1085 = vmatpush1.msra.mxu0 0.0
    %1086 = vmatprep.subr.mxu0 0.0
    %1087 = vmatpush1.msra.mxu0 0.0
    %1088 = vmatprep.subr.mxu0 0.0
    %1089 = vmatpush1.msra.mxu0 0.0
    %1090 = vmatprep.subr.mxu0 0.0
    %1091 = vmatpush1.msra.mxu0 0.0
    %1092 = vmatprep.subr.mxu0 0.0
    %1093 = vmatpush1.msra.mxu0 0.0
    %1094 = vmatprep.subr.mxu0 0.0
    %1095 = vmatpush1.msra.mxu0 0.0
    %1096 = vmatprep.subr.mxu0 0.0
    %1097 = vmatpush1.msra.mxu0 0.0
    %1098 = vmatprep.subr.mxu0 0.0
    %1099 = vmatpush1.msra.mxu0 0.0
    %1100 = vmatprep.subr.mxu0 0.0
    %1101 = vmatpush1.msra.mxu0 %v1065
    %1102 = vmatprep.subr.mxu0 0.0
    %1103 = vmatpush2.msra.mxu0 0.0
    %1104 = vmatprep.subr.mxu0 0.0
    %1105 = vmatpush2.msra.mxu0 0.0
    %1106 = vmatprep.subr.mxu0 0.0
    %1107 = vmatpush2.msra.mxu0 0.0
    %1108 = vmatprep.subr.mxu0 0.0
    %1109 = vmatpush2.msra.mxu0 0.0
    %1110 = vmatprep.subr.mxu0 0.0
    %1111 = vmatpush2.msra.mxu0 0.0
    %1112 = vmatprep.subr.mxu0 0.0
    %1113 = vmatpush2.msra.mxu0 0.0
    %1114 = vmatprep.subr.mxu0 0.0
    %1115 = vmatpush2.msra.mxu0 0.0
    %1116 = vmatprep.subr.mxu0 0.0
    %1117 = vmatpush2.msra.mxu0 0.0
    %1118 = vmatprep.subr.mxu0 0.0
    %1119 = vmatpush2.msra.mxu0 0.0
    %1120 = vmatprep.subr.mxu0 0.0
    %1121 = vmatpush2.msra.mxu0 0.0
    %1122 = vmatprep.subr.mxu0 0.0
    %1123 = vmatpush2.msra.mxu0 0.0
    %1124 = vmatprep.subr.mxu0 0.0
    %1125 = vmatpush2.msra.mxu0 0.0
    %1126 = vmatprep.subr.mxu0 0.0
    %1127 = vmatpush2.msra.mxu0 0.0
    %1128 = vmatprep.subr.mxu0 0.0
    %1129 = vmatpush2.msra.mxu0 0.0
    %1130 = vmatprep.subr.mxu0 0.0
    %1131 = vmatpush2.msra.mxu0 0.0
    %1132 = vmatprep.subr.mxu0 0.0
    %1133 = vmatpush2.msra.mxu0 0.0
    %1134 = vmatprep.mubr.f32.mxu0 0.0
    %1135 = vmatmul.mubr.f32.gmra.mxu0 %v1068
    %v1136 = vpop.f32.mrf.mxu0
    %v1137 = vadd.f32 0.0, %v1136
    %v1138 = vpop.f32.mrf.mxu0
    %1139 = vdwg.mxu0
    %v1141 = vsel %vm478, %v1060, 0
    %v1144 = vsel %vm478, %v1137, 0
    %1146 = vmatprep.subr.mxu0 0.0
    %1147 = vmatpush1.msra.mxu0 0.0
    %1148 = vmatprep.subr.mxu0 0.0
    %1149 = vmatpush1.msra.mxu0 0.0
    %1150 = vmatprep.subr.mxu0 0.0
    %1151 = vmatpush1.msra.mxu0 0.0
    %1152 = vmatprep.subr.mxu0 0.0
    %1153 = vmatpush1.msra.mxu0 0.0
    %1154 = vmatprep.subr.mxu0 0.0
    %1155 = vmatpush1.msra.mxu0 0.0
    %1156 = vmatprep.subr.mxu0 0.0
    %1157 = vmatpush1.msra.mxu0 0.0
    %1158 = vmatprep.subr.mxu0 0.0
    %1159 = vmatpush1.msra.mxu0 0.0
    %1160 = vmatprep.subr.mxu0 0.0
    %1161 = vmatpush1.msra.mxu0 0.0
    %1162 = vmatprep.subr.mxu0 0.0
    %1163 = vmatpush1.msra.mxu0 0.0
    %1164 = vmatprep.subr.mxu0 0.0
    %1165 = vmatpush1.msra.mxu0 0.0
    %1166 = vmatprep.subr.mxu0 0.0
    %1167 = vmatpush1.msra.mxu0 0.0
    %1168 = vmatprep.subr.mxu0 0.0
    %1169 = vmatpush1.msra.mxu0 0.0
    %1170 = vmatprep.subr.mxu0 0.0
    %1171 = vmatpush1.msra.mxu0 %v469
    %1172 = vmatprep.subr.mxu0 0.0
    %1173 = vmatpush1.msra.mxu0 %v468
    %1174 = vmatprep.subr.mxu0 0.0
    %1175 = vmatpush1.msra.mxu0 %v467
    %1176 = vmatprep.subr.mxu0 0.0
    %1177 = vmatpush1.msra.mxu0 %v466
    %1178 = vmatprep.subr.mxu0 0.0
    %1179 = vmatpush2.msra.mxu0 0.0
    %1180 = vmatprep.subr.mxu0 0.0
    %1181 = vmatpush2.msra.mxu0 0.0
    %1182 = vmatprep.subr.mxu0 0.0
    %1183 = vmatpush2.msra.mxu0 0.0
    %1184 = vmatprep.subr.mxu0 0.0
    %1185 = vmatpush2.msra.mxu0 0.0
    %1186 = vmatprep.subr.mxu0 0.0
    %1187 = vmatpush2.msra.mxu0 0.0
    %1188 = vmatprep.subr.mxu0 0.0
    %1189 = vmatpush2.msra.mxu0 0.0
    %1190 = vmatprep.subr.mxu0 0.0
    %1191 = vmatpush2.msra.mxu0 0.0
    %1192 = vmatprep.subr.mxu0 0.0
    %1193 = vmatpush2.msra.mxu0 0.0
    %1194 = vmatprep.subr.mxu0 0.0
    %1195 = vmatpush2.msra.mxu0 0.0
    %1196 = vmatprep.subr.mxu0 0.0
    %1197 = vmatpush2.msra.mxu0 0.0
    %1198 = vmatprep.subr.mxu0 0.0
    %1199 = vmatpush2.msra.mxu0 0.0
    %1200 = vmatprep.subr.mxu0 0.0
    %1201 = vmatpush2.msra.mxu0 0.0
    %1202 = vmatprep.subr.mxu0 0.0
    %1203 = vmatpush2.msra.mxu0 0.0
    %1204 = vmatprep.subr.mxu0 0.0
    %1205 = vmatpush2.msra.mxu0 0.0
    %1206 = vmatprep.subr.mxu0 0.0
    %1207 = vmatpush2.msra.mxu0 0.0
    %1208 = vmatprep.subr.mxu0 0.0
    %1209 = vmatpush2.msra.mxu0 0.0
    %1210 = vmatprep.mubr.f32.mxu0 0.0
    %1211 = vmatmul.mubr.f32.gmra.mxu0 %v1141
    %v1212 = vpop.f32.mrf.mxu0
    %v1213 = vadd.f32 0.0, %v1212
    %v1214 = vpop.f32.mrf.mxu0
    %1215 = vmatprep.mubr.f32.mxu0 0.0
    %1216 = vmatmul.mubr.f32.gmra.mxu0 %v1144
    %v1217 = vpop.f32.mrf.mxu0
    %v1218 = vadd.f32 0.0, %v1217
    %v1219 = vpop.f32.mrf.mxu0
    %1220 = vdwg.mxu0
    %v1222 = vsel %vm478, %v728, 0
    %v1225 = vsel %vm478, %v801, 0
    %1227 = vmatprep.subr.mxu0 0.0
    %1228 = vmatpush1.msra.mxu0 0.0
    %1229 = vmatprep.subr.mxu0 0.0
    %1230 = vmatpush1.msra.mxu0 0.0
    %1231 = vmatprep.subr.mxu0 0.0
    %1232 = vmatpush1.msra.mxu0 0.0
    %1233 = vmatprep.subr.mxu0 0.0
    %1234 = vmatpush1.msra.mxu0 0.0
    %1235 = vmatprep.subr.mxu0 0.0
    %1236 = vmatpush1.msra.mxu0 0.0
    %1237 = vmatprep.subr.mxu0 0.0
    %1238 = vmatpush1.msra.mxu0 0.0
    %1239 = vmatprep.subr.mxu0 0.0
    %1240 = vmatpush1.msra.mxu0 0.0
    %1241 = vmatprep.subr.mxu0 0.0
    %1242 = vmatpush1.msra.mxu0 0.0
    %1243 = vmatprep.subr.mxu0 0.0
    %1244 = vmatpush1.msra.mxu0 0.0
    %1245 = vmatprep.subr.mxu0 0.0
    %1246 = vmatpush1.msra.mxu0 0.0
    %1247 = vmatprep.subr.mxu0 0.0
    %1248 = vmatpush1.msra.mxu0 0.0
    %1249 = vmatprep.subr.mxu0 0.0
    %1250 = vmatpush1.msra.mxu0 0.0
    %1251 = vmatprep.subr.mxu0 0.0
    %1252 = vmatpush1.msra.mxu0 %v465
    %1253 = vmatprep.subr.mxu0 0.0
    %1254 = vmatpush1.msra.mxu0 %v464
    %1255 = vmatprep.subr.mxu0 0.0
    %1256 = vmatpush1.msra.mxu0 %v463
    %1257 = vmatprep.subr.mxu0 0.0
    %1258 = vmatpush1.msra.mxu0 %v462
    %1259 = vmatprep.subr.mxu0 0.0
    %1260 = vmatpush2.msra.mxu0 0.0
    %1261 = vmatprep.subr.mxu0 0.0
    %1262 = vmatpush2.msra.mxu0 0.0
    %1263 = vmatprep.subr.mxu0 0.0
    %1264 = vmatpush2.msra.mxu0 0.0
    %1265 = vmatprep.subr.mxu0 0.0
    %1266 = vmatpush2.msra.mxu0 0.0
    %1267 = vmatprep.subr.mxu0 0.0
    %1268 = vmatpush2.msra.mxu0 0.0
    %1269 = vmatprep.subr.mxu0 0.0
    %1270 = vmatpush2.msra.mxu0 0.0
    %1271 = vmatprep.subr.mxu0 0.0
    %1272 = vmatpush2.msra.mxu0 0.0
    %1273 = vmatprep.subr.mxu0 0.0
    %1274 = vmatpush2.msra.mxu0 0.0
    %1275 = vmatprep.subr.mxu0 0.0
    %1276 = vmatpush2.msra.mxu0 0.0
    %1277 = vmatprep.subr.mxu0 0.0
    %1278 = vmatpush2.msra.mxu0 0.0
    %1279 = vmatprep.subr.mxu0 0.0
    %1280 = vmatpush2.msra.mxu0 0.0
    %1281 = vmatprep.subr.mxu0 0.0
    %1282 = vmatpush2.msra.mxu0 0.0
    %1283 = vmatprep.subr.mxu0 0.0
    %1284 = vmatpush2.msra.mxu0 0.0
    %1285 = vmatprep.subr.mxu0 0.0
    %1286 = vmatpush2.msra.mxu0 0.0
    %1287 = vmatprep.subr.mxu0 0.0
    %1288 = vmatpush2.msra.mxu0 0.0
    %1289 = vmatprep.subr.mxu0 0.0
    %1290 = vmatpush2.msra.mxu0 0.0
    %1291 = vmatprep.mubr.f32.mxu0 0.0
    %1292 = vmatmul.mubr.f32.gmra.mxu0 %v1222
    %v1293 = vpop.f32.mrf.mxu0
    %v1294 = vadd.f32 %v1213, %v1293
    %v1295 = vpop.f32.mrf.mxu0
    %1296 = vmatprep.mubr.f32.mxu0 0.0
    %1297 = vmatmul.mubr.f32.gmra.mxu0 %v1225
    %v1298 = vpop.f32.mrf.mxu0
    %v1299 = vadd.f32 %v1218, %v1298
    %v1300 = vpop.f32.mrf.mxu0
    %1301 = vdwg.mxu0
    %1302 = vrot.lane.b32.xlu0 %v377, 64
    %v1303 = vpop.permute.xlu0 %1302
    %1304 = vrot.lane.b32.xlu0 %v379, 64
    %v1305 = vpop.permute.xlu0 %1304
    %v1306 = vsel %vm478, %v1303, 0
    %v1308 = vsel %vm478, %v1305, 0
    %1310 = vmatprep.subr.mxu0 0.0
    %1311 = vmatpush1.xpose.msra.mxu0 0.0
    %1312 = vmatprep.subr.mxu0 0.0
    %1313 = vmatpush1.xpose.msra.mxu0 0.0
    %1314 = vmatprep.subr.mxu0 0.0
    %1315 = vmatpush1.xpose.msra.mxu0 0.0
    %1316 = vmatprep.subr.mxu0 0.0
    %1317 = vmatpush1.xpose.msra.mxu0 0.0
    %1318 = vmatprep.subr.mxu0 0.0
    %1319 = vmatpush1.xpose.msra.mxu0 0.0
    %1320 = vmatprep.subr.mxu0 0.0
    %1321 = vmatpush1.xpose.msra.mxu0 0.0
    %1322 = vmatprep.subr.mxu0 0.0
    %1323 = vmatpush1.xpose.msra.mxu0 0.0
    %1324 = vmatprep.subr.mxu0 0.0
    %1325 = vmatpush1.xpose.msra.mxu0 0.0
    %1326 = vmatprep.subr.mxu0 0.0
    %1327 = vmatpush1.xpose.msra.mxu0 0.0
    %1328 = vmatprep.subr.mxu0 0.0
    %1329 = vmatpush1.xpose.msra.mxu0 0.0
    %1330 = vmatprep.subr.mxu0 0.0
    %1331 = vmatpush1.xpose.msra.mxu0 0.0
    %1332 = vmatprep.subr.mxu0 0.0
    %1333 = vmatpush1.xpose.msra.mxu0 0.0
    %1334 = vmatprep.subr.mxu0 0.0
    %1335 = vmatpush1.xpose.msra.mxu0 0.0
    %1336 = vmatprep.subr.mxu0 0.0
    %1337 = vmatpush1.xpose.msra.mxu0 0.0
    %1338 = vmatprep.subr.mxu0 0.0
    %1339 = vmatpush1.xpose.msra.mxu0 0.0
    %1340 = vmatprep.subr.mxu0 0.0
    %1341 = vmatpush1.xpose.msra.mxu0 %v1308
    %1342 = vmatprep.subr.mxu0 0.0
    %1343 = vmatpush2.xpose.msra.mxu0 0.0
    %1344 = vmatprep.subr.mxu0 0.0
    %1345 = vmatpush2.xpose.msra.mxu0 0.0
    %1346 = vmatprep.subr.mxu0 0.0
    %1347 = vmatpush2.xpose.msra.mxu0 0.0
    %1348 = vmatprep.subr.mxu0 0.0
    %1349 = vmatpush2.xpose.msra.mxu0 0.0
    %1350 = vmatprep.subr.mxu0 0.0
    %1351 = vmatpush2.xpose.msra.mxu0 0.0
    %1352 = vmatprep.subr.mxu0 0.0
    %1353 = vmatpush2.xpose.msra.mxu0 0.0
    %1354 = vmatprep.subr.mxu0 0.0
    %1355 = vmatpush2.xpose.msra.mxu0 0.0
    %1356 = vmatprep.subr.mxu0 0.0
    %1357 = vmatpush2.xpose.msra.mxu0 0.0
    %1358 = vmatprep.subr.mxu0 0.0
    %1359 = vmatpush2.xpose.msra.mxu0 0.0
    %1360 = vmatprep.subr.mxu0 0.0
    %1361 = vmatpush2.xpose.msra.mxu0 0.0
    %1362 = vmatprep.subr.mxu0 0.0
    %1363 = vmatpush2.xpose.msra.mxu0 0.0
    %1364 = vmatprep.subr.mxu0 0.0
    %1365 = vmatpush2.xpose.msra.mxu0 0.0
    %1366 = vmatprep.subr.mxu0 0.0
    %1367 = vmatpush2.xpose.msra.mxu0 0.0
    %1368 = vmatprep.subr.mxu0 0.0
    %1369 = vmatpush2.xpose.msra.mxu0 0.0
    %1370 = vmatprep.subr.mxu0 0.0
    %1371 = vmatpush2.xpose.msra.mxu0 0.0
    %1372 = vmatprep.subr.mxu0 0.0
    %1373 = vmatpush2.xpose.msra.mxu0 0.0
    %1374 = vmatprep.mubr.f32.mxu0 0.0
    %1375 = vmatmul.mubr.f32.gmra.mxu0 %v1306
    %v1376 = vpop.f32.mrf.mxu0
    %v1377 = vadd.f32 0.0, %v1376
    %v1378 = vpop.f32.mrf.mxu0
    %1379 = vdwg.mxu0
    %1380 = vrot.lane.b32.xlu0 %v383, 64
    %v1381 = vpop.permute.xlu0 %1380
    %1382 = vrot.lane.b32.xlu0 %v385, 64
    %v1383 = vpop.permute.xlu0 %1382
    %v1384 = vsel %vm478, %v1381, 0
    %v1386 = vsel %vm478, %v1383, 0
    %1388 = vmatprep.subr.mxu0 0.0
    %1389 = vmatpush1.xpose.msra.mxu0 0.0
    %1390 = vmatprep.subr.mxu0 0.0
    %1391 = vmatpush1.xpose.msra.mxu0 0.0
    %1392 = vmatprep.subr.mxu0 0.0
    %1393 = vmatpush1.xpose.msra.mxu0 0.0
    %1394 = vmatprep.subr.mxu0 0.0
    %1395 = vmatpush1.xpose.msra.mxu0 0.0
    %1396 = vmatprep.subr.mxu0 0.0
    %1397 = vmatpush1.xpose.msra.mxu0 0.0
    %1398 = vmatprep.subr.mxu0 0.0
    %1399 = vmatpush1.xpose.msra.mxu0 0.0
    %1400 = vmatprep.subr.mxu0 0.0
    %1401 = vmatpush1.xpose.msra.mxu0 0.0
    %1402 = vmatprep.subr.mxu0 0.0
    %1403 = vmatpush1.xpose.msra.mxu0 0.0
    %1404 = vmatprep.subr.mxu0 0.0
    %1405 = vmatpush1.xpose.msra.mxu0 0.0
    %1406 = vmatprep.subr.mxu0 0.0
    %1407 = vmatpush1.xpose.msra.mxu0 0.0
    %1408 = vmatprep.subr.mxu0 0.0
    %1409 = vmatpush1.xpose.msra.mxu0 0.0
    %1410 = vmatprep.subr.mxu0 0.0
    %1411 = vmatpush1.xpose.msra.mxu0 0.0
    %1412 = vmatprep.subr.mxu0 0.0
    %1413 = vmatpush1.xpose.msra.mxu0 0.0
    %1414 = vmatprep.subr.mxu0 0.0
    %1415 = vmatpush1.xpose.msra.mxu0 0.0
    %1416 = vmatprep.subr.mxu0 0.0
    %1417 = vmatpush1.xpose.msra.mxu0 0.0
    %1418 = vmatprep.subr.mxu0 0.0
    %1419 = vmatpush1.xpose.msra.mxu0 %v1386
    %1420 = vmatprep.subr.mxu0 0.0
    %1421 = vmatpush2.xpose.msra.mxu0 0.0
    %1422 = vmatprep.subr.mxu0 0.0
    %1423 = vmatpush2.xpose.msra.mxu0 0.0
    %1424 = vmatprep.subr.mxu0 0.0
    %1425 = vmatpush2.xpose.msra.mxu0 0.0
    %1426 = vmatprep.subr.mxu0 0.0
    %1427 = vmatpush2.xpose.msra.mxu0 0.0
    %1428 = vmatprep.subr.mxu0 0.0
    %1429 = vmatpush2.xpose.msra.mxu0 0.0
    %1430 = vmatprep.subr.mxu0 0.0
    %1431 = vmatpush2.xpose.msra.mxu0 0.0
    %1432 = vmatprep.subr.mxu0 0.0
    %1433 = vmatpush2.xpose.msra.mxu0 0.0
    %1434 = vmatprep.subr.mxu0 0.0
    %1435 = vmatpush2.xpose.msra.mxu0 0.0
    %1436 = vmatprep.subr.mxu0 0.0
    %1437 = vmatpush2.xpose.msra.mxu0 0.0
    %1438 = vmatprep.subr.mxu0 0.0
    %1439 = vmatpush2.xpose.msra.mxu0 0.0
    %1440 = vmatprep.subr.mxu0 0.0
    %1441 = vmatpush2.xpose.msra.mxu0 0.0
    %1442 = vmatprep.subr.mxu0 0.0
    %1443 = vmatpush2.xpose.msra.mxu0 0.0
    %1444 = vmatprep.subr.mxu0 0.0
    %1445 = vmatpush2.xpose.msra.mxu0 0.0
    %1446 = vmatprep.subr.mxu0 0.0
    %1447 = vmatpush2.xpose.msra.mxu0 0.0
    %1448 = vmatprep.subr.mxu0 0.0
    %1449 = vmatpush2.xpose.msra.mxu0 0.0
    %1450 = vmatprep.subr.mxu0 0.0
    %1451 = vmatpush2.xpose.msra.mxu0 0.0
    %1452 = vmatprep.mubr.f32.mxu0 0.0
    %1453 = vmatmul.mubr.f32.gmra.mxu0 %v1384
    %v1454 = vpop.f32.mrf.mxu0
    %v1455 = vadd.f32 0.0, %v1454
    %v1456 = vpop.f32.mrf.mxu0
    %1457 = vdwg.mxu0
    %v1458 = vmul.f32 %v1377, 0.17677669
    %v1459 = vmul.f32 %v1455, 0.17677669
    %v1460 = vadd.f32 %v1458, %v203
    %v1461 = vadd.f32 %v1459, %v203
    %v1462 = vsel %vm635, %v1460, -inf
    %1463 = vmax.xlane.f32.xlu0 %v1462
    %v1464 = vpop.xlane.xlu0 %1463
    %v1465 = vsel %vm635, %v1461, -inf
    %1466 = vmax.xlane.f32.xlu0 %v1465
    %v1467 = vpop.xlane.xlu0 %1466
    %v1468 = vsub.f32 %v1460, %v1464
    %v1469 = vsub.f32 %v1461, %v1467
    %v1470 = vmul.f32 %v1468, 1.442695
    %v1471 = vpow.pop %v1470
    %v1472 = vmul.f32 %v1469, 1.442695
    %v1473 = vpow.pop %v1472
    %v1474 = vsel %vm635, %v1471, 0.0
    %1475 = vadd.xlane.f32.xlu0 %v1474
    %v1476 = vpop.xlane.xlu0 %1475
    %v1477 = vsel %vm635, %v1473, 0.0
    %1478 = vadd.xlane.f32.xlu0 %v1477
    %v1479 = vpop.xlane.xlu0 %1478
    %v1480 = vrcp.pop %v1476
    %v1481 = vrcp.pop %v1479
    %v1482 = vmul.f32 %v1471, %v1480
    %v1483 = vmul.f32 %v1473, %v1481
    %1484 = vrot.lane.b32.xlu0 %v454, 64
    %v1485 = vpop.permute.xlu0 %1484
    %v1488 = vsel %vm635, %v1482, 0
    %1490 = vmatprep.subr.mxu0 0.0
    %1491 = vmatpush1.msra.mxu0 0.0
    %1492 = vmatprep.subr.mxu0 0.0
    %1493 = vmatpush1.msra.mxu0 0.0
    %1494 = vmatprep.subr.mxu0 0.0
    %1495 = vmatpush1.msra.mxu0 0.0
    %1496 = vmatprep.subr.mxu0 0.0
    %1497 = vmatpush1.msra.mxu0 0.0
    %1498 = vmatprep.subr.mxu0 0.0
    %1499 = vmatpush1.msra.mxu0 0.0
    %1500 = vmatprep.subr.mxu0 0.0
    %1501 = vmatpush1.msra.mxu0 0.0
    %1502 = vmatprep.subr.mxu0 0.0
    %1503 = vmatpush1.msra.mxu0 0.0
    %1504 = vmatprep.subr.mxu0 0.0
    %1505 = vmatpush1.msra.mxu0 0.0
    %1506 = vmatprep.subr.mxu0 0.0
    %1507 = vmatpush1.msra.mxu0 0.0
    %1508 = vmatprep.subr.mxu0 0.0
    %1509 = vmatpush1.msra.mxu0 0.0
    %1510 = vmatprep.subr.mxu0 0.0
    %1511 = vmatpush1.msra.mxu0 0.0
    %1512 = vmatprep.subr.mxu0 0.0
    %1513 = vmatpush1.msra.mxu0 0.0
    %1514 = vmatprep.subr.mxu0 0.0
    %1515 = vmatpush1.msra.mxu0 0.0
    %1516 = vmatprep.subr.mxu0 0.0
    %1517 = vmatpush1.msra.mxu0 0.0
    %1518 = vmatprep.subr.mxu0 0.0
    %1519 = vmatpush1.msra.mxu0 0.0
    %1520 = vmatprep.subr.mxu0 0.0
    %1521 = vmatpush1.msra.mxu0 %v1485
    %1522 = vmatprep.subr.mxu0 0.0
    %1523 = vmatpush2.msra.mxu0 0.0
    %1524 = vmatprep.subr.mxu0 0.0
    %1525 = vmatpush2.msra.mxu0 0.0
    %1526 = vmatprep.subr.mxu0 0.0
    %1527 = vmatpush2.msra.mxu0 0.0
    %1528 = vmatprep.subr.mxu0 0.0
    %1529 = vmatpush2.msra.mxu0 0.0
    %1530 = vmatprep.subr.mxu0 0.0
    %1531 = vmatpush2.msra.mxu0 0.0
    %1532 = vmatprep.subr.mxu0 0.0
    %1533 = vmatpush2.msra.mxu0 0.0
    %1534 = vmatprep.subr.mxu0 0.0
    %1535 = vmatpush2.msra.mxu0 0.0
    %1536 = vmatprep.subr.mxu0 0.0
    %1537 = vmatpush2.msra.mxu0 0.0
    %1538 = vmatprep.subr.mxu0 0.0
    %1539 = vmatpush2.msra.mxu0 0.0
    %1540 = vmatprep.subr.mxu0 0.0
    %1541 = vmatpush2.msra.mxu0 0.0
    %1542 = vmatprep.subr.mxu0 0.0
    %1543 = vmatpush2.msra.mxu0 0.0
    %1544 = vmatprep.subr.mxu0 0.0
    %1545 = vmatpush2.msra.mxu0 0.0
    %1546 = vmatprep.subr.mxu0 0.0
    %1547 = vmatpush2.msra.mxu0 0.0
    %1548 = vmatprep.subr.mxu0 0.0
    %1549 = vmatpush2.msra.mxu0 0.0
    %1550 = vmatprep.subr.mxu0 0.0
    %1551 = vmatpush2.msra.mxu0 0.0
    %1552 = vmatprep.subr.mxu0 0.0
    %1553 = vmatpush2.msra.mxu0 0.0
    %1554 = vmatprep.mubr.f32.mxu0 0.0
    %1555 = vmatmul.mubr.f32.gmra.mxu0 %v1488
    %v1556 = vpop.f32.mrf.mxu0
    %v1557 = vadd.f32 0.0, %v1556
    %v1558 = vpop.f32.mrf.mxu0
    %1559 = vdwg.mxu0
    %1560 = vrot.lane.b32.xlu0 %v459, 64
    %v1561 = vpop.permute.xlu0 %1560
    %v1564 = vsel %vm635, %v1483, 0
    %1566 = vmatprep.subr.mxu0 0.0
    %1567 = vmatpush1.msra.mxu0 0.0
    %1568 = vmatprep.subr.mxu0 0.0
    %1569 = vmatpush1.msra.mxu0 0.0
    %1570 = vmatprep.subr.mxu0 0.0
    %1571 = vmatpush1.msra.mxu0 0.0
    %1572 = vmatprep.subr.mxu0 0.0
    %1573 = vmatpush1.msra.mxu0 0.0
    %1574 = vmatprep.subr.mxu0 0.0
    %1575 = vmatpush1.msra.mxu0 0.0
    %1576 = vmatprep.subr.mxu0 0.0
    %1577 = vmatpush1.msra.mxu0 0.0
    %1578 = vmatprep.subr.mxu0 0.0
    %1579 = vmatpush1.msra.mxu0 0.0
    %1580 = vmatprep.subr.mxu0 0.0
    %1581 = vmatpush1.msra.mxu0 0.0
    %1582 = vmatprep.subr.mxu0 0.0
    %1583 = vmatpush1.msra.mxu0 0.0
    %1584 = vmatprep.subr.mxu0 0.0
    %1585 = vmatpush1.msra.mxu0 0.0
    %1586 = vmatprep.subr.mxu0 0.0
    %1587 = vmatpush1.msra.mxu0 0.0
    %1588 = vmatprep.subr.mxu0 0.0
    %1589 = vmatpush1.msra.mxu0 0.0
    %1590 = vmatprep.subr.mxu0 0.0
    %1591 = vmatpush1.msra.mxu0 0.0
    %1592 = vmatprep.subr.mxu0 0.0
    %1593 = vmatpush1.msra.mxu0 0.0
    %1594 = vmatprep.subr.mxu0 0.0
    %1595 = vmatpush1.msra.mxu0 0.0
    %1596 = vmatprep.subr.mxu0 0.0
    %1597 = vmatpush1.msra.mxu0 %v1561
    %1598 = vmatprep.subr.mxu0 0.0
    %1599 = vmatpush2.msra.mxu0 0.0
    %1600 = vmatprep.subr.mxu0 0.0
    %1601 = vmatpush2.msra.mxu0 0.0
    %1602 = vmatprep.subr.mxu0 0.0
    %1603 = vmatpush2.msra.mxu0 0.0
    %1604 = vmatprep.subr.mxu0 0.0
    %1605 = vmatpush2.msra.mxu0 0.0
    %1606 = vmatprep.subr.mxu0 0.0
    %1607 = vmatpush2.msra.mxu0 0.0
    %1608 = vmatprep.subr.mxu0 0.0
    %1609 = vmatpush2.msra.mxu0 0.0
    %1610 = vmatprep.subr.mxu0 0.0
    %1611 = vmatpush2.msra.mxu0 0.0
    %1612 = vmatprep.subr.mxu0 0.0
    %1613 = vmatpush2.msra.mxu0 0.0
    %1614 = vmatprep.subr.mxu0 0.0
    %1615 = vmatpush2.msra.mxu0 0.0
    %1616 = vmatprep.subr.mxu0 0.0
    %1617 = vmatpush2.msra.mxu0 0.0
    %1618 = vmatprep.subr.mxu0 0.0
    %1619 = vmatpush2.msra.mxu0 0.0
    %1620 = vmatprep.subr.mxu0 0.0
    %1621 = vmatpush2.msra.mxu0 0.0
    %1622 = vmatprep.subr.mxu0 0.0
    %1623 = vmatpush2.msra.mxu0 0.0
    %1624 = vmatprep.subr.mxu0 0.0
    %1625 = vmatpush2.msra.mxu0 0.0
    %1626 = vmatprep.subr.mxu0 0.0
    %1627 = vmatpush2.msra.mxu0 0.0
    %1628 = vmatprep.subr.mxu0 0.0
    %1629 = vmatpush2.msra.mxu0 0.0
    %1630 = vmatprep.mubr.f32.mxu0 0.0
    %1631 = vmatmul.mubr.f32.gmra.mxu0 %v1564
    %v1632 = vpop.f32.mrf.mxu0
    %v1633 = vadd.f32 0.0, %v1632
    %v1634 = vpop.f32.mrf.mxu0
    %1635 = vdwg.mxu0
    %v1637 = vsel %vm478, %v1557, 0
    %v1640 = vsel %vm478, %v1633, 0
    %1642 = vmatprep.subr.mxu0 0.0
    %1643 = vmatpush1.msra.mxu0 0.0
    %1644 = vmatprep.subr.mxu0 0.0
    %1645 = vmatpush1.msra.mxu0 0.0
    %1646 = vmatprep.subr.mxu0 0.0
    %1647 = vmatpush1.msra.mxu0 0.0
    %1648 = vmatprep.subr.mxu0 0.0
    %1649 = vmatpush1.msra.mxu0 0.0
    %1650 = vmatprep.subr.mxu0 0.0
    %1651 = vmatpush1.msra.mxu0 0.0
    %1652 = vmatprep.subr.mxu0 0.0
    %1653 = vmatpush1.msra.mxu0 0.0
    %1654 = vmatprep.subr.mxu0 0.0
    %1655 = vmatpush1.msra.mxu0 0.0
    %1656 = vmatprep.subr.mxu0 0.0
    %1657 = vmatpush1.msra.mxu0 0.0
    %1658 = vmatprep.subr.mxu0 0.0
    %1659 = vmatpush1.msra.mxu0 0.0
    %1660 = vmatprep.subr.mxu0 0.0
    %1661 = vmatpush1.msra.mxu0 0.0
    %1662 = vmatprep.subr.mxu0 0.0
    %1663 = vmatpush1.msra.mxu0 0.0
    %1664 = vmatprep.subr.mxu0 0.0
    %1665 = vmatpush1.msra.mxu0 0.0
    %1666 = vmatprep.subr.mxu0 0.0
    %1667 = vmatpush1.msra.mxu0 %v473
    %1668 = vmatprep.subr.mxu0 0.0
    %1669 = vmatpush1.msra.mxu0 %v472
    %1670 = vmatprep.subr.mxu0 0.0
    %1671 = vmatpush1.msra.mxu0 %v471
    %1672 = vmatprep.subr.mxu0 0.0
    %1673 = vmatpush1.msra.mxu0 %v470
    %1674 = vmatprep.subr.mxu0 0.0
    %1675 = vmatpush2.msra.mxu0 0.0
    %1676 = vmatprep.subr.mxu0 0.0
    %1677 = vmatpush2.msra.mxu0 0.0
    %1678 = vmatprep.subr.mxu0 0.0
    %1679 = vmatpush2.msra.mxu0 0.0
    %1680 = vmatprep.subr.mxu0 0.0
    %1681 = vmatpush2.msra.mxu0 0.0
    %1682 = vmatprep.subr.mxu0 0.0
    %1683 = vmatpush2.msra.mxu0 0.0
    %1684 = vmatprep.subr.mxu0 0.0
    %1685 = vmatpush2.msra.mxu0 0.0
    %1686 = vmatprep.subr.mxu0 0.0
    %1687 = vmatpush2.msra.mxu0 0.0
    %1688 = vmatprep.subr.mxu0 0.0
    %1689 = vmatpush2.msra.mxu0 0.0
    %1690 = vmatprep.subr.mxu0 0.0
    %1691 = vmatpush2.msra.mxu0 0.0
    %1692 = vmatprep.subr.mxu0 0.0
    %1693 = vmatpush2.msra.mxu0 0.0
    %1694 = vmatprep.subr.mxu0 0.0
    %1695 = vmatpush2.msra.mxu0 0.0
    %1696 = vmatprep.subr.mxu0 0.0
    %1697 = vmatpush2.msra.mxu0 0.0
    %1698 = vmatprep.subr.mxu0 0.0
    %1699 = vmatpush2.msra.mxu0 0.0
    %1700 = vmatprep.subr.mxu0 0.0
    %1701 = vmatpush2.msra.mxu0 0.0
    %1702 = vmatprep.subr.mxu0 0.0
    %1703 = vmatpush2.msra.mxu0 0.0
    %1704 = vmatprep.subr.mxu0 0.0
    %1705 = vmatpush2.msra.mxu0 0.0
    %1706 = vmatprep.mubr.f32.mxu0 0.0
    %1707 = vmatmul.mubr.f32.gmra.mxu0 %v1637
    %v1708 = vpop.f32.mrf.mxu0
    %v1709 = vadd.f32 0.0, %v1708
    %v1710 = vpop.f32.mrf.mxu0
    %1711 = vmatprep.mubr.f32.mxu0 0.0
    %1712 = vmatmul.mubr.f32.gmra.mxu0 %v1640
    %v1713 = vpop.f32.mrf.mxu0
    %v1714 = vadd.f32 0.0, %v1713
    %v1715 = vpop.f32.mrf.mxu0
    %1716 = vdwg.mxu0
    %v1717 = vadd.f32 %v1294, %v1709
    %v1718 = vadd.f32 %v1299, %v1714
    %1719 = vrot.lane.b32.xlu0 %v377, 32
    %v1720 = vpop.permute.xlu0 %1719
    %1721 = vrot.lane.b32.xlu0 %v379, 32
    %v1722 = vpop.permute.xlu0 %1721
    %v1723 = vsel %vm478, %v1720, 0
    %v1725 = vsel %vm478, %v1722, 0
    %1727 = vmatprep.subr.mxu0 0.0
    %1728 = vmatpush1.xpose.msra.mxu0 0.0
    %1729 = vmatprep.subr.mxu0 0.0
    %1730 = vmatpush1.xpose.msra.mxu0 0.0
    %1731 = vmatprep.subr.mxu0 0.0
    %1732 = vmatpush1.xpose.msra.mxu0 0.0
    %1733 = vmatprep.subr.mxu0 0.0
    %1734 = vmatpush1.xpose.msra.mxu0 0.0
    %1735 = vmatprep.subr.mxu0 0.0
    %1736 = vmatpush1.xpose.msra.mxu0 0.0
    %1737 = vmatprep.subr.mxu0 0.0
    %1738 = vmatpush1.xpose.msra.mxu0 0.0
    %1739 = vmatprep.subr.mxu0 0.0
    %1740 = vmatpush1.xpose.msra.mxu0 0.0
    %1741 = vmatprep.subr.mxu0 0.0
    %1742 = vmatpush1.xpose.msra.mxu0 0.0
    %1743 = vmatprep.subr.mxu0 0.0
    %1744 = vmatpush1.xpose.msra.mxu0 0.0
    %1745 = vmatprep.subr.mxu0 0.0
    %1746 = vmatpush1.xpose.msra.mxu0 0.0
    %1747 = vmatprep.subr.mxu0 0.0
    %1748 = vmatpush1.xpose.msra.mxu0 0.0
    %1749 = vmatprep.subr.mxu0 0.0
    %1750 = vmatpush1.xpose.msra.mxu0 0.0
    %1751 = vmatprep.subr.mxu0 0.0
    %1752 = vmatpush1.xpose.msra.mxu0 0.0
    %1753 = vmatprep.subr.mxu0 0.0
    %1754 = vmatpush1.xpose.msra.mxu0 0.0
    %1755 = vmatprep.subr.mxu0 0.0
    %1756 = vmatpush1.xpose.msra.mxu0 0.0
    %1757 = vmatprep.subr.mxu0 0.0
    %1758 = vmatpush1.xpose.msra.mxu0 %v1725
    %1759 = vmatprep.subr.mxu0 0.0
    %1760 = vmatpush2.xpose.msra.mxu0 0.0
    %1761 = vmatprep.subr.mxu0 0.0
    %1762 = vmatpush2.xpose.msra.mxu0 0.0
    %1763 = vmatprep.subr.mxu0 0.0
    %1764 = vmatpush2.xpose.msra.mxu0 0.0
    %1765 = vmatprep.subr.mxu0 0.0
    %1766 = vmatpush2.xpose.msra.mxu0 0.0
    %1767 = vmatprep.subr.mxu0 0.0
    %1768 = vmatpush2.xpose.msra.mxu0 0.0
    %1769 = vmatprep.subr.mxu0 0.0
    %1770 = vmatpush2.xpose.msra.mxu0 0.0
    %1771 = vmatprep.subr.mxu0 0.0
    %1772 = vmatpush2.xpose.msra.mxu0 0.0
    %1773 = vmatprep.subr.mxu0 0.0
    %1774 = vmatpush2.xpose.msra.mxu0 0.0
    %1775 = vmatprep.subr.mxu0 0.0
    %1776 = vmatpush2.xpose.msra.mxu0 0.0
    %1777 = vmatprep.subr.mxu0 0.0
    %1778 = vmatpush2.xpose.msra.mxu0 0.0
    %1779 = vmatprep.subr.mxu0 0.0
    %1780 = vmatpush2.xpose.msra.mxu0 0.0
    %1781 = vmatprep.subr.mxu0 0.0
    %1782 = vmatpush2.xpose.msra.mxu0 0.0
    %1783 = vmatprep.subr.mxu0 0.0
    %1784 = vmatpush2.xpose.msra.mxu0 0.0
    %1785 = vmatprep.subr.mxu0 0.0
    %1786 = vmatpush2.xpose.msra.mxu0 0.0
    %1787 = vmatprep.subr.mxu0 0.0
    %1788 = vmatpush2.xpose.msra.mxu0 0.0
    %1789 = vmatprep.subr.mxu0 0.0
    %1790 = vmatpush2.xpose.msra.mxu0 0.0
    %1791 = vmatprep.mubr.f32.mxu0 0.0
    %1792 = vmatmul.mubr.f32.gmra.mxu0 %v1723
    %v1793 = vpop.f32.mrf.mxu0
    %v1794 = vadd.f32 0.0, %v1793
    %v1795 = vpop.f32.mrf.mxu0
    %1796 = vdwg.mxu0
    %1797 = vrot.lane.b32.xlu0 %v383, 32
    %v1798 = vpop.permute.xlu0 %1797
    %1799 = vrot.lane.b32.xlu0 %v385, 32
    %v1800 = vpop.permute.xlu0 %1799
    %v1801 = vsel %vm478, %v1798, 0
    %v1803 = vsel %vm478, %v1800, 0
    %1805 = vmatprep.subr.mxu0 0.0
    %1806 = vmatpush1.xpose.msra.mxu0 0.0
    %1807 = vmatprep.subr.mxu0 0.0
    %1808 = vmatpush1.xpose.msra.mxu0 0.0
    %1809 = vmatprep.subr.mxu0 0.0
    %1810 = vmatpush1.xpose.msra.mxu0 0.0
    %1811 = vmatprep.subr.mxu0 0.0
    %1812 = vmatpush1.xpose.msra.mxu0 0.0
    %1813 = vmatprep.subr.mxu0 0.0
    %1814 = vmatpush1.xpose.msra.mxu0 0.0
    %1815 = vmatprep.subr.mxu0 0.0
    %1816 = vmatpush1.xpose.msra.mxu0 0.0
    %1817 = vmatprep.subr.mxu0 0.0
    %1818 = vmatpush1.xpose.msra.mxu0 0.0
    %1819 = vmatprep.subr.mxu0 0.0
    %1820 = vmatpush1.xpose.msra.mxu0 0.0
    %1821 = vmatprep.subr.mxu0 0.0
    %1822 = vmatpush1.xpose.msra.mxu0 0.0
    %1823 = vmatprep.subr.mxu0 0.0
    %1824 = vmatpush1.xpose.msra.mxu0 0.0
    %1825 = vmatprep.subr.mxu0 0.0
    %1826 = vmatpush1.xpose.msra.mxu0 0.0
    %1827 = vmatprep.subr.mxu0 0.0
    %1828 = vmatpush1.xpose.msra.mxu0 0.0
    %1829 = vmatprep.subr.mxu0 0.0
    %1830 = vmatpush1.xpose.msra.mxu0 0.0
    %1831 = vmatprep.subr.mxu0 0.0
    %1832 = vmatpush1.xpose.msra.mxu0 0.0
    %1833 = vmatprep.subr.mxu0 0.0
    %1834 = vmatpush1.xpose.msra.mxu0 0.0
    %1835 = vmatprep.subr.mxu0 0.0
    %1836 = vmatpush1.xpose.msra.mxu0 %v1803
    %1837 = vmatprep.subr.mxu0 0.0
    %1838 = vmatpush2.xpose.msra.mxu0 0.0
    %1839 = vmatprep.subr.mxu0 0.0
    %1840 = vmatpush2.xpose.msra.mxu0 0.0
    %1841 = vmatprep.subr.mxu0 0.0
    %1842 = vmatpush2.xpose.msra.mxu0 0.0
    %1843 = vmatprep.subr.mxu0 0.0
    %1844 = vmatpush2.xpose.msra.mxu0 0.0
    %1845 = vmatprep.subr.mxu0 0.0
    %1846 = vmatpush2.xpose.msra.mxu0 0.0
    %1847 = vmatprep.subr.mxu0 0.0
    %1848 = vmatpush2.xpose.msra.mxu0 0.0
    %1849 = vmatprep.subr.mxu0 0.0
    %1850 = vmatpush2.xpose.msra.mxu0 0.0
    %1851 = vmatprep.subr.mxu0 0.0
    %1852 = vmatpush2.xpose.msra.mxu0 0.0
    %1853 = vmatprep.subr.mxu0 0.0
    %1854 = vmatpush2.xpose.msra.mxu0 0.0
    %1855 = vmatprep.subr.mxu0 0.0
    %1856 = vmatpush2.xpose.msra.mxu0 0.0
    %1857 = vmatprep.subr.mxu0 0.0
    %1858 = vmatpush2.xpose.msra.mxu0 0.0
    %1859 = vmatprep.subr.mxu0 0.0
    %1860 = vmatpush2.xpose.msra.mxu0 0.0
    %1861 = vmatprep.subr.mxu0 0.0
    %1862 = vmatpush2.xpose.msra.mxu0 0.0
    %1863 = vmatprep.subr.mxu0 0.0
    %1864 = vmatpush2.xpose.msra.mxu0 0.0
    %1865 = vmatprep.subr.mxu0 0.0
    %1866 = vmatpush2.xpose.msra.mxu0 0.0
    %1867 = vmatprep.subr.mxu0 0.0
    %1868 = vmatpush2.xpose.msra.mxu0 0.0
    %1869 = vmatprep.mubr.f32.mxu0 0.0
    %1870 = vmatmul.mubr.f32.gmra.mxu0 %v1801
    %v1871 = vpop.f32.mrf.mxu0
    %v1872 = vadd.f32 0.0, %v1871
    %v1873 = vpop.f32.mrf.mxu0
    %1874 = vdwg.mxu0
    %v1875 = vmul.f32 %v1794, 0.17677669
    %v1876 = vmul.f32 %v1872, 0.17677669
    %v1877 = vadd.f32 %v1875, %v203
    %v1878 = vadd.f32 %v1876, %v203
    %v1879 = vsel %vm635, %v1877, -inf
    %1880 = vmax.xlane.f32.xlu0 %v1879
    %v1881 = vpop.xlane.xlu0 %1880
    %v1882 = vsel %vm635, %v1878, -inf
    %1883 = vmax.xlane.f32.xlu0 %v1882
    %v1884 = vpop.xlane.xlu0 %1883
    %v1885 = vsub.f32 %v1877, %v1881
    %v1886 = vsub.f32 %v1878, %v1884
    %v1887 = vmul.f32 %v1885, 1.442695
    %v1888 = vpow.pop %v1887
    %v1889 = vmul.f32 %v1886, 1.442695
    %v1890 = vpow.pop %v1889
    %v1891 = vsel %vm635, %v1888, 0.0
    %1892 = vadd.xlane.f32.xlu0 %v1891
    %v1893 = vpop.xlane.xlu0 %1892
    %v1894 = vsel %vm635, %v1890, 0.0
    %1895 = vadd.xlane.f32.xlu0 %v1894
    %v1896 = vpop.xlane.xlu0 %1895
    %v1897 = vrcp.pop %v1893
    %v1898 = vrcp.pop %v1896
    %v1899 = vmul.f32 %v1888, %v1897
    %v1900 = vmul.f32 %v1890, %v1898
    %1901 = vrot.lane.b32.xlu0 %v454, 32
    %v1902 = vpop.permute.xlu0 %1901
    %v1905 = vsel %vm635, %v1899, 0
    %1907 = vmatprep.subr.mxu0 0.0
    %1908 = vmatpush1.msra.mxu0 0.0
    %1909 = vmatprep.subr.mxu0 0.0
    %1910 = vmatpush1.msra.mxu0 0.0
    %1911 = vmatprep.subr.mxu0 0.0
    %1912 = vmatpush1.msra.mxu0 0.0
    %1913 = vmatprep.subr.mxu0 0.0
    %1914 = vmatpush1.msra.mxu0 0.0
    %1915 = vmatprep.subr.mxu0 0.0
    %1916 = vmatpush1.msra.mxu0 0.0
    %1917 = vmatprep.subr.mxu0 0.0
    %1918 = vmatpush1.msra.mxu0 0.0
    %1919 = vmatprep.subr.mxu0 0.0
    %1920 = vmatpush1.msra.mxu0 0.0
    %1921 = vmatprep.subr.mxu0 0.0
    %1922 = vmatpush1.msra.mxu0 0.0
    %1923 = vmatprep.subr.mxu0 0.0
    %1924 = vmatpush1.msra.mxu0 0.0
    %1925 = vmatprep.subr.mxu0 0.0
    %1926 = vmatpush1.msra.mxu0 0.0
    %1927 = vmatprep.subr.mxu0 0.0
    %1928 = vmatpush1.msra.mxu0 0.0
    %1929 = vmatprep.subr.mxu0 0.0
    %1930 = vmatpush1.msra.mxu0 0.0
    %1931 = vmatprep.subr.mxu0 0.0
    %1932 = vmatpush1.msra.mxu0 0.0
    %1933 = vmatprep.subr.mxu0 0.0
    %1934 = vmatpush1.msra.mxu0 0.0
    %1935 = vmatprep.subr.mxu0 0.0
    %1936 = vmatpush1.msra.mxu0 0.0
    %1937 = vmatprep.subr.mxu0 0.0
    %1938 = vmatpush1.msra.mxu0 %v1902
    %1939 = vmatprep.subr.mxu0 0.0
    %1940 = vmatpush2.msra.mxu0 0.0
    %1941 = vmatprep.subr.mxu0 0.0
    %1942 = vmatpush2.msra.mxu0 0.0
    %1943 = vmatprep.subr.mxu0 0.0
    %1944 = vmatpush2.msra.mxu0 0.0
    %1945 = vmatprep.subr.mxu0 0.0
    %1946 = vmatpush2.msra.mxu0 0.0
    %1947 = vmatprep.subr.mxu0 0.0
    %1948 = vmatpush2.msra.mxu0 0.0
    %1949 = vmatprep.subr.mxu0 0.0
    %1950 = vmatpush2.msra.mxu0 0.0
    %1951 = vmatprep.subr.mxu0 0.0
    %1952 = vmatpush2.msra.mxu0 0.0
    %1953 = vmatprep.subr.mxu0 0.0
    %1954 = vmatpush2.msra.mxu0 0.0
    %1955 = vmatprep.subr.mxu0 0.0
    %1956 = vmatpush2.msra.mxu0 0.0
    %1957 = vmatprep.subr.mxu0 0.0
    %1958 = vmatpush2.msra.mxu0 0.0
    %1959 = vmatprep.subr.mxu0 0.0
    %1960 = vmatpush2.msra.mxu0 0.0
    %1961 = vmatprep.subr.mxu0 0.0
    %1962 = vmatpush2.msra.mxu0 0.0
    %1963 = vmatprep.subr.mxu0 0.0
    %1964 = vmatpush2.msra.mxu0 0.0
    %1965 = vmatprep.subr.mxu0 0.0
    %1966 = vmatpush2.msra.mxu0 0.0
    %1967 = vmatprep.subr.mxu0 0.0
    %1968 = vmatpush2.msra.mxu0 0.0
    %1969 = vmatprep.subr.mxu0 0.0
    %1970 = vmatpush2.msra.mxu0 0.0
    %1971 = vmatprep.mubr.f32.mxu0 0.0
    %1972 = vmatmul.mubr.f32.gmra.mxu0 %v1905
    %v1973 = vpop.f32.mrf.mxu0
    %v1974 = vadd.f32 0.0, %v1973
    %v1975 = vpop.f32.mrf.mxu0
    %1976 = vdwg.mxu0
    %1977 = vrot.lane.b32.xlu0 %v459, 32
    %v1978 = vpop.permute.xlu0 %1977
    %v1981 = vsel %vm635, %v1900, 0
    %1983 = vmatprep.subr.mxu0 0.0
    %1984 = vmatpush1.msra.mxu0 0.0
    %1985 = vmatprep.subr.mxu0 0.0
    %1986 = vmatpush1.msra.mxu0 0.0
    %1987 = vmatprep.subr.mxu0 0.0
    %1988 = vmatpush1.msra.mxu0 0.0
    %1989 = vmatprep.subr.mxu0 0.0
    %1990 = vmatpush1.msra.mxu0 0.0
    %1991 = vmatprep.subr.mxu0 0.0
    %1992 = vmatpush1.msra.mxu0 0.0
    %1993 = vmatprep.subr.mxu0 0.0
    %1994 = vmatpush1.msra.mxu0 0.0
    %1995 = vmatprep.subr.mxu0 0.0
    %1996 = vmatpush1.msra.mxu0 0.0
    %1997 = vmatprep.subr.mxu0 0.0
    %1998 = vmatpush1.msra.mxu0 0.0
    %1999 = vmatprep.subr.mxu0 0.0
    %2000 = vmatpush1.msra.mxu0 0.0
    %2001 = vmatprep.subr.mxu0 0.0
    %2002 = vmatpush1.msra.mxu0 0.0
    %2003 = vmatprep.subr.mxu0 0.0
    %2004 = vmatpush1.msra.mxu0 0.0
    %2005 = vmatprep.subr.mxu0 0.0
    %2006 = vmatpush1.msra.mxu0 0.0
    %2007 = vmatprep.subr.mxu0 0.0
    %2008 = vmatpush1.msra.mxu0 0.0
    %2009 = vmatprep.subr.mxu0 0.0
    %2010 = vmatpush1.msra.mxu0 0.0
    %2011 = vmatprep.subr.mxu0 0.0
    %2012 = vmatpush1.msra.mxu0 0.0
    %2013 = vmatprep.subr.mxu0 0.0
    %2014 = vmatpush1.msra.mxu0 %v1978
    %2015 = vmatprep.subr.mxu0 0.0
    %2016 = vmatpush2.msra.mxu0 0.0
    %2017 = vmatprep.subr.mxu0 0.0
    %2018 = vmatpush2.msra.mxu0 0.0
    %2019 = vmatprep.subr.mxu0 0.0
    %2020 = vmatpush2.msra.mxu0 0.0
    %2021 = vmatprep.subr.mxu0 0.0
    %2022 = vmatpush2.msra.mxu0 0.0
    %2023 = vmatprep.subr.mxu0 0.0
    %2024 = vmatpush2.msra.mxu0 0.0
    %2025 = vmatprep.subr.mxu0 0.0
    %2026 = vmatpush2.msra.mxu0 0.0
    %2027 = vmatprep.subr.mxu0 0.0
    %2028 = vmatpush2.msra.mxu0 0.0
    %2029 = vmatprep.subr.mxu0 0.0
    %2030 = vmatpush2.msra.mxu0 0.0
    %2031 = vmatprep.subr.mxu0 0.0
    %2032 = vmatpush2.msra.mxu0 0.0
    %2033 = vmatprep.subr.mxu0 0.0
    %2034 = vmatpush2.msra.mxu0 0.0
    %2035 = vmatprep.subr.mxu0 0.0
    %2036 = vmatpush2.msra.mxu0 0.0
    %2037 = vmatprep.subr.mxu0 0.0
    %2038 = vmatpush2.msra.mxu0 0.0
    %2039 = vmatprep.subr.mxu0 0.0
    %2040 = vmatpush2.msra.mxu0 0.0
    %2041 = vmatprep.subr.mxu0 0.0
    %2042 = vmatpush2.msra.mxu0 0.0
    %2043 = vmatprep.subr.mxu0 0.0
    %2044 = vmatpush2.msra.mxu0 0.0
    %2045 = vmatprep.subr.mxu0 0.0
    %2046 = vmatpush2.msra.mxu0 0.0
    %2047 = vmatprep.mubr.f32.mxu0 0.0
    %2048 = vmatmul.mubr.f32.gmra.mxu0 %v1981
    %v2049 = vpop.f32.mrf.mxu0
    %v2050 = vadd.f32 0.0, %v2049
    %v2051 = vpop.f32.mrf.mxu0
    %2052 = vdwg.mxu0
    %v2054 = vsel %vm478, %v1974, 0
    %v2057 = vsel %vm478, %v2050, 0
    %2059 = vmatprep.subr.mxu0 0.0
    %2060 = vmatpush1.msra.mxu0 0.0
    %2061 = vmatprep.subr.mxu0 0.0
    %2062 = vmatpush1.msra.mxu0 0.0
    %2063 = vmatprep.subr.mxu0 0.0
    %2064 = vmatpush1.msra.mxu0 0.0
    %2065 = vmatprep.subr.mxu0 0.0
    %2066 = vmatpush1.msra.mxu0 0.0
    %2067 = vmatprep.subr.mxu0 0.0
    %2068 = vmatpush1.msra.mxu0 0.0
    %2069 = vmatprep.subr.mxu0 0.0
    %2070 = vmatpush1.msra.mxu0 0.0
    %2071 = vmatprep.subr.mxu0 0.0
    %2072 = vmatpush1.msra.mxu0 0.0
    %2073 = vmatprep.subr.mxu0 0.0
    %2074 = vmatpush1.msra.mxu0 0.0
    %2075 = vmatprep.subr.mxu0 0.0
    %2076 = vmatpush1.msra.mxu0 0.0
    %2077 = vmatprep.subr.mxu0 0.0
    %2078 = vmatpush1.msra.mxu0 0.0
    %2079 = vmatprep.subr.mxu0 0.0
    %2080 = vmatpush1.msra.mxu0 0.0
    %2081 = vmatprep.subr.mxu0 0.0
    %2082 = vmatpush1.msra.mxu0 0.0
    %2083 = vmatprep.subr.mxu0 0.0
    %2084 = vmatpush1.msra.mxu0 %v477
    %2085 = vmatprep.subr.mxu0 0.0
    %2086 = vmatpush1.msra.mxu0 %v476
    %2087 = vmatprep.subr.mxu0 0.0
    %2088 = vmatpush1.msra.mxu0 %v475
    %2089 = vmatprep.subr.mxu0 0.0
    %2090 = vmatpush1.msra.mxu0 %v474
    %2091 = vmatprep.subr.mxu0 0.0
    %2092 = vmatpush2.msra.mxu0 0.0
    %2093 = vmatprep.subr.mxu0 0.0
    %2094 = vmatpush2.msra.mxu0 0.0
    %2095 = vmatprep.subr.mxu0 0.0
    %2096 = vmatpush2.msra.mxu0 0.0
    %2097 = vmatprep.subr.mxu0 0.0
    %2098 = vmatpush2.msra.mxu0 0.0
    %2099 = vmatprep.subr.mxu0 0.0
    %2100 = vmatpush2.msra.mxu0 0.0
    %2101 = vmatprep.subr.mxu0 0.0
    %2102 = vmatpush2.msra.mxu0 0.0
    %2103 = vmatprep.subr.mxu0 0.0
    %2104 = vmatpush2.msra.mxu0 0.0
    %2105 = vmatprep.subr.mxu0 0.0
    %2106 = vmatpush2.msra.mxu0 0.0
    %2107 = vmatprep.subr.mxu0 0.0
    %2108 = vmatpush2.msra.mxu0 0.0
    %2109 = vmatprep.subr.mxu0 0.0
    %2110 = vmatpush2.msra.mxu0 0.0
    %2111 = vmatprep.subr.mxu0 0.0
    %2112 = vmatpush2.msra.mxu0 0.0
    %2113 = vmatprep.subr.mxu0 0.0
    %2114 = vmatpush2.msra.mxu0 0.0
    %2115 = vmatprep.subr.mxu0 0.0
    %2116 = vmatpush2.msra.mxu0 0.0
    %2117 = vmatprep.subr.mxu0 0.0
    %2118 = vmatpush2.msra.mxu0 0.0
    %2119 = vmatprep.subr.mxu0 0.0
    %2120 = vmatpush2.msra.mxu0 0.0
    %2121 = vmatprep.subr.mxu0 0.0
    %2122 = vmatpush2.msra.mxu0 0.0
    %2123 = vmatprep.mubr.f32.mxu0 0.0
    %2124 = vmatmul.mubr.f32.gmra.mxu0 %v2054
    %v2125 = vpop.f32.mrf.mxu0
    %v2126 = vadd.f32 0.0, %v2125
    %v2127 = vpop.f32.mrf.mxu0
    %2128 = vmatprep.mubr.f32.mxu0 0.0
    %2129 = vmatmul.mubr.f32.gmra.mxu0 %v2057
    %v2130 = vpop.f32.mrf.mxu0
    %v2131 = vadd.f32 0.0, %v2130
    %v2132 = vpop.f32.mrf.mxu0
    %2133 = vdwg.mxu0
    %v2134 = vadd.f32 %v1717, %v2126
    %v2135 = vadd.f32 %v1718, %v2131
    %v2136 = vadd.f32 %v196, %v2134
    %v2137 = vadd.f32 %v197, %v2135
    %v2138 = vld [vmem:[%s6] sm:$0x1]
    %v2140 = vlaneseq
    %v2141 = vshrl.u32 %v2140, 7
    %v2142 = vsub.s32 0, %v2141
    %v2143 = vrot.slane %v2138, %v2142
    %v2145 = vadd.f32 %v2136, %v2143
    %v2146 = vadd.f32 %v2137, %v2143
    %v2147 = vld [vmem:[#allocation11] sm:$0x1]
    %v2148 = vld [vmem:[#allocation13] sm:$0x1]
    %2149 = vadd.xlane.f32.xlu0 %v2145
    %v2150 = vpop.xlane.xlu0 %2149
    %2151 = vadd.xlane.f32.xlu0 %v2146
    %v2152 = vpop.xlane.xlu0 %2151
    %v2153 = vmul.f32 %v2150, %v210
    %v2154 = vmul.f32 %v2152, %v210
    %v2155 = vsub.f32 %v2145, %v2153
    %v2156 = vsub.f32 %v2146, %v2154
    %v2157 = vmul.f32 %v2155, %v2155
    %v2158 = vmul.f32 %v2156, %v2156
    %2159 = vadd.xlane.f32.xlu0 %v2157
    %v2160 = vpop.xlane.xlu0 %2159
    %2161 = vadd.xlane.f32.xlu0 %v2158
    %v2162 = vpop.xlane.xlu0 %2161
    %v2163 = vmul.f32 %v2160, %v210
    %v2164 = vmul.f32 %v2162, %v210
    %v2165 = vadd.f32 %v2163, 1e-05
    %v2166 = vadd.f32 %v2164, 1e-05
    %v2167 = vrsqrt.pop %v2165
    %v2168 = vrsqrt.pop %v2166
    %v2169 = vmul.f32 %v2155, %v2167
    %v2170 = vmul.f32 %v2156, %v2168
    %v2172 = vlaneseq
    %v2173 = vshrl.u32 %v2172, 7
    %v2174 = vsub.s32 0, %v2173
    %v2175 = vrot.slane %v2147, %v2174
    %v2177 = vmul.f32 %v2169, %v2175
    %v2178 = vmul.f32 %v2170, %v2175
    %v2180 = vlaneseq
    %v2181 = vshrl.u32 %v2180, 7
    %v2182 = vsub.s32 0, %v2181
    %v2183 = vrot.slane %v2148, %v2182
    %v2185 = vadd.f32 %v2177, %v2183
    %v2186 = vadd.f32 %v2178, %v2183
    %v2187 = vld [vmem:[#allocation14] sm:$0xff]
    %v2188 = vld [vmem:[#allocation14 + $0x8] sm:$0xff]
    %v2189 = vld [vmem:[#allocation14 + $0x10] sm:$0xff]
    %v2190 = vld [vmem:[#allocation14 + $0x18] sm:$0xff]
    %v2191 = vld [vmem:[#allocation14 + $0x20] sm:$0xff]
    %v2192 = vld [vmem:[#allocation14 + $0x28] sm:$0xff]
    %v2193 = vld [vmem:[#allocation14 + $0x30] sm:$0xff]
    %v2194 = vld [vmem:[#allocation14 + $0x38] sm:$0xff]
    %v2195 = vld [vmem:[#allocation14 + $0x40] sm:$0xff]
    %v2196 = vld [vmem:[#allocation14 + $0x48] sm:$0xff]
    %v2197 = vld [vmem:[#allocation14 + $0x50] sm:$0xff]
    %v2198 = vld [vmem:[#allocation14 + $0x58] sm:$0xff]
    %v2199 = vld [vmem:[#allocation14 + $0x60] sm:$0xff]
    %v2200 = vld [vmem:[#allocation14 + $0x68] sm:$0xff]
    %v2201 = vld [vmem:[#allocation14 + $0x70] sm:$0xff]
    %v2202 = vld [vmem:[#allocation14 + $0x78] sm:$0xff]
    %v2203 = vld [vmem:[#allocation14 + $0x80] sm:$0xff]
    %v2204 = vld [vmem:[#allocation14 + $0x88] sm:$0xff]
    %v2205 = vld [vmem:[#allocation14 + $0x90] sm:$0xff]
    %v2206 = vld [vmem:[#allocation14 + $0x98] sm:$0xff]
    %v2207 = vld [vmem:[#allocation14 + $0xa0] sm:$0xff]
    %v2208 = vld [vmem:[#allocation14 + $0xa8] sm:$0xff]
    %v2209 = vld [vmem:[#allocation14 + $0xb0] sm:$0xff]
    %v2210 = vld [vmem:[#allocation14 + $0xb8] sm:$0xff]
    %v2211 = vld [vmem:[#allocation14 + $0xc0] sm:$0xff]
    %v2212 = vld [vmem:[#allocation14 + $0xc8] sm:$0xff]
    %v2213 = vld [vmem:[#allocation14 + $0xd0] sm:$0xff]
    %v2214 = vld [vmem:[#allocation14 + $0xd8] sm:$0xff]
    %v2215 = vld [vmem:[#allocation14 + $0xe0] sm:$0xff]
    %v2216 = vld [vmem:[#allocation14 + $0xe8] sm:$0xff]
    %v2217 = vld [vmem:[#allocation14 + $0xf0] sm:$0xff]
    %v2218 = vld [vmem:[#allocation14 + $0xf8] sm:$0xff]
    %v2219 = vld [vmem:[#allocation14 + $0x100] sm:$0xff]
    %v2220 = vld [vmem:[#allocation14 + $0x108] sm:$0xff]
    %v2221 = vld [vmem:[#allocation14 + $0x110] sm:$0xff]
    %v2222 = vld [vmem:[#allocation14 + $0x118] sm:$0xff]
    %v2223 = vld [vmem:[#allocation14 + $0x120] sm:$0xff]
    %v2224 = vld [vmem:[#allocation14 + $0x128] sm:$0xff]
    %v2225 = vld [vmem:[#allocation14 + $0x130] sm:$0xff]
    %v2226 = vld [vmem:[#allocation14 + $0x138] sm:$0xff]
    %v2227 = vld [vmem:[#allocation14 + $0x140] sm:$0xff]
    %v2228 = vld [vmem:[#allocation14 + $0x148] sm:$0xff]
    %v2229 = vld [vmem:[#allocation14 + $0x150] sm:$0xff]
    %v2230 = vld [vmem:[#allocation14 + $0x158] sm:$0xff]
    %v2231 = vld [vmem:[#allocation14 + $0x160] sm:$0xff]
    %v2232 = vld [vmem:[#allocation14 + $0x168] sm:$0xff]
    %v2233 = vld [vmem:[#allocation14 + $0x170] sm:$0xff]
    %v2234 = vld [vmem:[#allocation14 + $0x178] sm:$0xff]
    %v2235 = vld [vmem:[#allocation14 + $0x180] sm:$0xff]
    %v2236 = vld [vmem:[#allocation14 + $0x188] sm:$0xff]
    %v2237 = vld [vmem:[#allocation14 + $0x190] sm:$0xff]
    %v2238 = vld [vmem:[#allocation14 + $0x198] sm:$0xff]
    %v2239 = vld [vmem:[#allocation14 + $0x1a0] sm:$0xff]
    %v2240 = vld [vmem:[#allocation14 + $0x1a8] sm:$0xff]
    %v2241 = vld [vmem:[#allocation14 + $0x1b0] sm:$0xff]
    %v2242 = vld [vmem:[#allocation14 + $0x1b8] sm:$0xff]
    %v2243 = vld [vmem:[#allocation14 + $0x1c0] sm:$0xff]
    %v2244 = vld [vmem:[#allocation14 + $0x1c8] sm:$0xff]
    %v2245 = vld [vmem:[#allocation14 + $0x1d0] sm:$0xff]
    %v2246 = vld [vmem:[#allocation14 + $0x1d8] sm:$0xff]
    %v2247 = vld [vmem:[#allocation14 + $0x1e0] sm:$0xff]
    %v2248 = vld [vmem:[#allocation14 + $0x1e8] sm:$0xff]
    %v2249 = vld [vmem:[#allocation14 + $0x1f0] sm:$0xff]
    %v2250 = vld [vmem:[#allocation14 + $0x1f8] sm:$0xff]
    %v2251 = vld [vmem:[%s10] sm:$0xf]
    %v2253 = vlaneseq
    %v2254 = vshrl.u32 %v2253, 7
    %v2255 = vsub.s32 0, %v2254
    %v2256 = vrot.slane %v2251, %v2255
    %v2257 = vlaneseq
    %v2258 = vshrl.u32 %v2257, 7
    %v2259 = vsub.s32 1, %v2258
    %v2260 = vrot.slane %v2251, %v2259
    %v2261 = vlaneseq
    %v2262 = vshrl.u32 %v2261, 7
    %v2263 = vsub.s32 2, %v2262
    %v2264 = vrot.slane %v2251, %v2263
    %v2265 = vlaneseq
    %v2266 = vshrl.u32 %v2265, 7
    %v2267 = vsub.s32 3, %v2266
    %v2268 = vrot.slane %v2251, %v2267
    %2273 = vmatprep.subr.mxu0 %v2248
    %2274 = vmatpush1.msra.mxu0 %v2247
    %2275 = vmatprep.subr.mxu0 %v2244
    %2276 = vmatpush1.msra.mxu0 %v2243
    %2277 = vmatprep.subr.mxu0 %v2240
    %2278 = vmatpush1.msra.mxu0 %v2239
    %2279 = vmatprep.subr.mxu0 %v2236
    %2280 = vmatpush1.msra.mxu0 %v2235
    %2281 = vmatprep.subr.mxu0 %v2232
    %2282 = vmatpush1.msra.mxu0 %v2231
    %2283 = vmatprep.subr.mxu0 %v2228
    %2284 = vmatpush1.msra.mxu0 %v2227
    %2285 = vmatprep.subr.mxu0 %v2224
    %2286 = vmatpush1.msra.mxu0 %v2223
    %2287 = vmatprep.subr.mxu0 %v2220
    %2288 = vmatpush1.msra.mxu0 %v2219
    %2289 = vmatprep.subr.mxu0 %v2216
    %2290 = vmatpush1.msra.mxu0 %v2215
    %2291 = vmatprep.subr.mxu0 %v2212
    %2292 = vmatpush1.msra.mxu0 %v2211
    %2293 = vmatprep.subr.mxu0 %v2208
    %2294 = vmatpush1.msra.mxu0 %v2207
    %2295 = vmatprep.subr.mxu0 %v2204
    %2296 = vmatpush1.msra.mxu0 %v2203
    %2297 = vmatprep.subr.mxu0 %v2200
    %2298 = vmatpush1.msra.mxu0 %v2199
    %2299 = vmatprep.subr.mxu0 %v2196
    %2300 = vmatpush1.msra.mxu0 %v2195
    %2301 = vmatprep.subr.mxu0 %v2192
    %2302 = vmatpush1.msra.mxu0 %v2191
    %2303 = vmatprep.subr.mxu0 %v2188
    %2304 = vmatpush1.msra.mxu0 %v2187
    %2305 = vmatprep.subr.mxu0 0.0
    %2306 = vmatpush2.msra.mxu0 0.0
    %2307 = vmatprep.subr.mxu0 0.0
    %2308 = vmatpush2.msra.mxu0 0.0
    %2309 = vmatprep.subr.mxu0 0.0
    %2310 = vmatpush2.msra.mxu0 0.0
    %2311 = vmatprep.subr.mxu0 0.0
    %2312 = vmatpush2.msra.mxu0 0.0
    %2313 = vmatprep.subr.mxu0 0.0
    %2314 = vmatpush2.msra.mxu0 0.0
    %2315 = vmatprep.subr.mxu0 0.0
    %2316 = vmatpush2.msra.mxu0 0.0
    %2317 = vmatprep.subr.mxu0 0.0
    %2318 = vmatpush2.msra.mxu0 0.0
    %2319 = vmatprep.subr.mxu0 0.0
    %2320 = vmatpush2.msra.mxu0 0.0
    %2321 = vmatprep.subr.mxu0 0.0
    %2322 = vmatpush2.msra.mxu0 0.0
    %2323 = vmatprep.subr.mxu0 0.0
    %2324 = vmatpush2.msra.mxu0 0.0
    %2325 = vmatprep.subr.mxu0 0.0
    %2326 = vmatpush2.msra.mxu0 0.0
    %2327 = vmatprep.subr.mxu0 0.0
    %2328 = vmatpush2.msra.mxu0 0.0
    %2329 = vmatprep.subr.mxu0 0.0
    %2330 = vmatpush2.msra.mxu0 0.0
    %2331 = vmatprep.subr.mxu0 0.0
    %2332 = vmatpush2.msra.mxu0 0.0
    %2333 = vmatprep.subr.mxu0 0.0
    %2334 = vmatpush2.msra.mxu0 0.0
    %2335 = vmatprep.subr.mxu0 0.0
    %2336 = vmatpush2.msra.mxu0 0.0
    %2337 = vmatprep.mubr.f32.mxu0 0.0
    %2338 = vmatmul.mubr.f32.gmra.mxu0 %v2185
    %v2339 = vpop.f32.mrf.mxu0
    %v2340 = vadd.f32 %v2256, %v2339
    %v2341 = vpop.f32.mrf.mxu0
    %v2342 = vadd.f32 %v2260, %v2341
    %2343 = vmatprep.mubr.f32.mxu0 0.0
    %2344 = vmatmul.mubr.f32.gmra.mxu0 %v2186
    %v2345 = vpop.f32.mrf.mxu0
    %v2346 = vadd.f32 %v2256, %v2345
    %v2347 = vpop.f32.mrf.mxu0
    %v2348 = vadd.f32 %v2260, %v2347
    %2349 = vdwg.mxu0
    %2350 = vmatprep.subr.mxu0 %v2250
    %2351 = vmatpush1.msra.mxu0 %v2249
    %2352 = vmatprep.subr.mxu0 %v2246
    %2353 = vmatpush1.msra.mxu0 %v2245
    %2354 = vmatprep.subr.mxu0 %v2242
    %2355 = vmatpush1.msra.mxu0 %v2241
    %2356 = vmatprep.subr.mxu0 %v2238
    %2357 = vmatpush1.msra.mxu0 %v2237
    %2358 = vmatprep.subr.mxu0 %v2234
    %2359 = vmatpush1.msra.mxu0 %v2233
    %2360 = vmatprep.subr.mxu0 %v2230
    %2361 = vmatpush1.msra.mxu0 %v2229
    %2362 = vmatprep.subr.mxu0 %v2226
    %2363 = vmatpush1.msra.mxu0 %v2225
    %2364 = vmatprep.subr.mxu0 %v2222
    %2365 = vmatpush1.msra.mxu0 %v2221
    %2366 = vmatprep.subr.mxu0 %v2218
    %2367 = vmatpush1.msra.mxu0 %v2217
    %2368 = vmatprep.subr.mxu0 %v2214
    %2369 = vmatpush1.msra.mxu0 %v2213
    %2370 = vmatprep.subr.mxu0 %v2210
    %2371 = vmatpush1.msra.mxu0 %v2209
    %2372 = vmatprep.subr.mxu0 %v2206
    %2373 = vmatpush1.msra.mxu0 %v2205
    %2374 = vmatprep.subr.mxu0 %v2202
    %2375 = vmatpush1.msra.mxu0 %v2201
    %2376 = vmatprep.subr.mxu0 %v2198
    %2377 = vmatpush1.msra.mxu0 %v2197
    %2378 = vmatprep.subr.mxu0 %v2194
    %2379 = vmatpush1.msra.mxu0 %v2193
    %2380 = vmatprep.subr.mxu0 %v2190
    %2381 = vmatpush1.msra.mxu0 %v2189
    %2382 = vmatprep.subr.mxu0 0.0
    %2383 = vmatpush2.msra.mxu0 0.0
    %2384 = vmatprep.subr.mxu0 0.0
    %2385 = vmatpush2.msra.mxu0 0.0
    %2386 = vmatprep.subr.mxu0 0.0
    %2387 = vmatpush2.msra.mxu0 0.0
    %2388 = vmatprep.subr.mxu0 0.0
    %2389 = vmatpush2.msra.mxu0 0.0
    %2390 = vmatprep.subr.mxu0 0.0
    %2391 = vmatpush2.msra.mxu0 0.0
    %2392 = vmatprep.subr.mxu0 0.0
    %2393 = vmatpush2.msra.mxu0 0.0
    %2394 = vmatprep.subr.mxu0 0.0
    %2395 = vmatpush2.msra.mxu0 0.0
    %2396 = vmatprep.subr.mxu0 0.0
    %2397 = vmatpush2.msra.mxu0 0.0
    %2398 = vmatprep.subr.mxu0 0.0
    %2399 = vmatpush2.msra.mxu0 0.0
    %2400 = vmatprep.subr.mxu0 0.0
    %2401 = vmatpush2.msra.mxu0 0.0
    %2402 = vmatprep.subr.mxu0 0.0
    %2403 = vmatpush2.msra.mxu0 0.0
    %2404 = vmatprep.subr.mxu0 0.0
    %2405 = vmatpush2.msra.mxu0 0.0
    %2406 = vmatprep.subr.mxu0 0.0
    %2407 = vmatpush2.msra.mxu0 0.0
    %2408 = vmatprep.subr.mxu0 0.0
    %2409 = vmatpush2.msra.mxu0 0.0
    %2410 = vmatprep.subr.mxu0 0.0
    %2411 = vmatpush2.msra.mxu0 0.0
    %2412 = vmatprep.subr.mxu0 0.0
    %2413 = vmatpush2.msra.mxu0 0.0
    %2414 = vmatprep.mubr.f32.mxu0 0.0
    %2415 = vmatmul.mubr.f32.gmra.mxu0 %v2185
    %v2416 = vpop.f32.mrf.mxu0
    %v2417 = vadd.f32 %v2264, %v2416
    %v2418 = vpop.f32.mrf.mxu0
    %v2419 = vadd.f32 %v2268, %v2418
    %2420 = vmatprep.mubr.f32.mxu0 0.0
    %2421 = vmatmul.mubr.f32.gmra.mxu0 %v2186
    %v2422 = vpop.f32.mrf.mxu0
    %v2423 = vadd.f32 %v2264, %v2422
    %v2424 = vpop.f32.mrf.mxu0
    %v2425 = vadd.f32 %v2268, %v2424
    %2426 = vdwg.mxu0
    %v2427 = vmul.f32 %v2340, 1.702
    %v2428 = vmul.f32 %v2342, 1.702
    %v2429 = vmul.f32 %v2417, 1.702
    %v2430 = vmul.f32 %v2419, 1.702
    %v2431 = vmul.f32 %v2346, 1.702
    %v2432 = vmul.f32 %v2348, 1.702
    %v2433 = vmul.f32 %v2423, 1.702
    %v2434 = vmul.f32 %v2425, 1.702
    %v2435 = vxor.u32 %v2427, 2147483648
    %v2436 = vxor.u32 %v2428, 2147483648
    %v2437 = vxor.u32 %v2429, 2147483648
    %v2438 = vxor.u32 %v2430, 2147483648
    %v2439 = vxor.u32 %v2431, 2147483648
    %v2440 = vxor.u32 %v2432, 2147483648
    %v2441 = vxor.u32 %v2433, 2147483648
    %v2442 = vxor.u32 %v2434, 2147483648
    %v2443 = vmul.f32 %v2435, 1.442695
    %v2444 = vpow.pop %v2443
    %v2445 = vmul.f32 %v2436, 1.442695
    %v2446 = vpow.pop %v2445
    %v2447 = vmul.f32 %v2437, 1.442695
    %v2448 = vpow.pop %v2447
    %v2449 = vmul.f32 %v2438, 1.442695
    %v2450 = vpow.pop %v2449
    %v2451 = vmul.f32 %v2439, 1.442695
    %v2452 = vpow.pop %v2451
    %v2453 = vmul.f32 %v2440, 1.442695
    %v2454 = vpow.pop %v2453
    %v2455 = vmul.f32 %v2441, 1.442695
    %v2456 = vpow.pop %v2455
    %v2457 = vmul.f32 %v2442, 1.442695
    %v2458 = vpow.pop %v2457
    %v2459 = vadd.f32 %v2444, 1.0
    %v2460 = vadd.f32 %v2446, 1.0
    %v2461 = vadd.f32 %v2448, 1.0
    %v2462 = vadd.f32 %v2450, 1.0
    %v2463 = vadd.f32 %v2452, 1.0
    %v2464 = vadd.f32 %v2454, 1.0
    %v2465 = vadd.f32 %v2456, 1.0
    %v2466 = vadd.f32 %v2458, 1.0
    %v2467 = vrcp.pop %v2459
    %v2468 = vmul.f32 1.0, %v2467
    %v2469 = vrcp.pop %v2460
    %v2470 = vmul.f32 1.0, %v2469
    %v2471 = vrcp.pop %v2461
    %v2472 = vmul.f32 1.0, %v2471
    %v2473 = vrcp.pop %v2462
    %v2474 = vmul.f32 1.0, %v2473
    %v2475 = vrcp.pop %v2463
    %v2476 = vmul.f32 1.0, %v2475
    %v2477 = vrcp.pop %v2464
    %v2478 = vmul.f32 1.0, %v2477
    %v2479 = vrcp.pop %v2465
    %v2480 = vmul.f32 1.0, %v2479
    %v2481 = vrcp.pop %v2466
    %v2482 = vmul.f32 1.0, %v2481
    %v2483 = vmul.f32 %v2340, %v2468
    %v2484 = vmul.f32 %v2342, %v2470
    %v2485 = vmul.f32 %v2417, %v2472
    %v2486 = vmul.f32 %v2419, %v2474
    %v2487 = vmul.f32 %v2346, %v2476
    %v2488 = vmul.f32 %v2348, %v2478
    %v2489 = vmul.f32 %v2423, %v2480
    %v2490 = vmul.f32 %v2425, %v2482
    %v2491 = vld [vmem:[#allocation16] sm:$0xff]
    %v2492 = vld [vmem:[#allocation16 + $0x8] sm:$0xff]
    %v2493 = vld [vmem:[#allocation16 + $0x10] sm:$0xff]
    %v2494 = vld [vmem:[#allocation16 + $0x18] sm:$0xff]
    %v2495 = vld [vmem:[#allocation16 + $0x20] sm:$0xff]
    %v2496 = vld [vmem:[#allocation16 + $0x28] sm:$0xff]
    %v2497 = vld [vmem:[#allocation16 + $0x30] sm:$0xff]
    %v2498 = vld [vmem:[#allocation16 + $0x38] sm:$0xff]
    %v2499 = vld [vmem:[#allocation16 + $0x40] sm:$0xff]
    %v2500 = vld [vmem:[#allocation16 + $0x48] sm:$0xff]
    %v2501 = vld [vmem:[#allocation16 + $0x50] sm:$0xff]
    %v2502 = vld [vmem:[#allocation16 + $0x58] sm:$0xff]
    %v2503 = vld [vmem:[#allocation16 + $0x60] sm:$0xff]
    %v2504 = vld [vmem:[#allocation16 + $0x68] sm:$0xff]
    %v2505 = vld [vmem:[#allocation16 + $0x70] sm:$0xff]
    %v2506 = vld [vmem:[#allocation16 + $0x78] sm:$0xff]
    %v2507 = vld [vmem:[#allocation16 + $0x80] sm:$0xff]
    %v2508 = vld [vmem:[#allocation16 + $0x88] sm:$0xff]
    %v2509 = vld [vmem:[#allocation16 + $0x90] sm:$0xff]
    %v2510 = vld [vmem:[#allocation16 + $0x98] sm:$0xff]
    %v2511 = vld [vmem:[#allocation16 + $0xa0] sm:$0xff]
    %v2512 = vld [vmem:[#allocation16 + $0xa8] sm:$0xff]
    %v2513 = vld [vmem:[#allocation16 + $0xb0] sm:$0xff]
    %v2514 = vld [vmem:[#allocation16 + $0xb8] sm:$0xff]
    %v2515 = vld [vmem:[#allocation16 + $0xc0] sm:$0xff]
    %v2516 = vld [vmem:[#allocation16 + $0xc8] sm:$0xff]
    %v2517 = vld [vmem:[#allocation16 + $0xd0] sm:$0xff]
    %v2518 = vld [vmem:[#allocation16 + $0xd8] sm:$0xff]
    %v2519 = vld [vmem:[#allocation16 + $0xe0] sm:$0xff]
    %v2520 = vld [vmem:[#allocation16 + $0xe8] sm:$0xff]
    %v2521 = vld [vmem:[#allocation16 + $0xf0] sm:$0xff]
    %v2522 = vld [vmem:[#allocation16 + $0xf8] sm:$0xff]
    %v2523 = vld [vmem:[#allocation16 + $0x100] sm:$0xff]
    %v2524 = vld [vmem:[#allocation16 + $0x108] sm:$0xff]
    %v2525 = vld [vmem:[#allocation16 + $0x110] sm:$0xff]
    %v2526 = vld [vmem:[#allocation16 + $0x118] sm:$0xff]
    %v2527 = vld [vmem:[#allocation16 + $0x120] sm:$0xff]
    %v2528 = vld [vmem:[#allocation16 + $0x128] sm:$0xff]
    %v2529 = vld [vmem:[#allocation16 + $0x130] sm:$0xff]
    %v2530 = vld [vmem:[#allocation16 + $0x138] sm:$0xff]
    %v2531 = vld [vmem:[#allocation16 + $0x140] sm:$0xff]
    %v2532 = vld [vmem:[#allocation16 + $0x148] sm:$0xff]
    %v2533 = vld [vmem:[#allocation16 + $0x150] sm:$0xff]
    %v2534 = vld [vmem:[#allocation16 + $0x158] sm:$0xff]
    %v2535 = vld [vmem:[#allocation16 + $0x160] sm:$0xff]
    %v2536 = vld [vmem:[#allocation16 + $0x168] sm:$0xff]
    %v2537 = vld [vmem:[#allocation16 + $0x170] sm:$0xff]
    %v2538 = vld [vmem:[#allocation16 + $0x178] sm:$0xff]
    %v2539 = vld [vmem:[#allocation16 + $0x180] sm:$0xff]
    %v2540 = vld [vmem:[#allocation16 + $0x188] sm:$0xff]
    %v2541 = vld [vmem:[#allocation16 + $0x190] sm:$0xff]
    %v2542 = vld [vmem:[#allocation16 + $0x198] sm:$0xff]
    %v2543 = vld [vmem:[#allocation16 + $0x1a0] sm:$0xff]
    %v2544 = vld [vmem:[#allocation16 + $0x1a8] sm:$0xff]
    %v2545 = vld [vmem:[#allocation16 + $0x1b0] sm:$0xff]
    %v2546 = vld [vmem:[#allocation16 + $0x1b8] sm:$0xff]
    %v2547 = vld [vmem:[#allocation16 + $0x1c0] sm:$0xff]
    %v2548 = vld [vmem:[#allocation16 + $0x1c8] sm:$0xff]
    %v2549 = vld [vmem:[#allocation16 + $0x1d0] sm:$0xff]
    %v2550 = vld [vmem:[#allocation16 + $0x1d8] sm:$0xff]
    %v2551 = vld [vmem:[#allocation16 + $0x1e0] sm:$0xff]
    %v2552 = vld [vmem:[#allocation16 + $0x1e8] sm:$0xff]
    %v2553 = vld [vmem:[#allocation16 + $0x1f0] sm:$0xff]
    %v2554 = vld [vmem:[#allocation16 + $0x1f8] sm:$0xff]
    %v2555 = vld [vmem:[%s12] sm:$0x1]
    %v2557 = vlaneseq
    %v2558 = vshrl.u32 %v2557, 7
    %v2559 = vsub.s32 0, %v2558
    %v2560 = vrot.slane %v2555, %v2559
    %2562 = vmatprep.subr.mxu0 0.0
    %2563 = vmatpush1.msra.mxu0 %v2506
    %2564 = vmatprep.subr.mxu0 0.0
    %2565 = vmatpush1.msra.mxu0 %v2505
    %2566 = vmatprep.subr.mxu0 0.0
    %2567 = vmatpush1.msra.mxu0 %v2504
    %2568 = vmatprep.subr.mxu0 0.0
    %2569 = vmatpush1.msra.mxu0 %v2503
    %2570 = vmatprep.subr.mxu0 0.0
    %2571 = vmatpush1.msra.mxu0 %v2502
    %2572 = vmatprep.subr.mxu0 0.0
    %2573 = vmatpush1.msra.mxu0 %v2501
    %2574 = vmatprep.subr.mxu0 0.0
    %2575 = vmatpush1.msra.mxu0 %v2500
    %2576 = vmatprep.subr.mxu0 0.0
    %2577 = vmatpush1.msra.mxu0 %v2499
    %2578 = vmatprep.subr.mxu0 0.0
    %2579 = vmatpush1.msra.mxu0 %v2498
    %2580 = vmatprep.subr.mxu0 0.0
    %2581 = vmatpush1.msra.mxu0 %v2497
    %2582 = vmatprep.subr.mxu0 0.0
    %2583 = vmatpush1.msra.mxu0 %v2496
    %2584 = vmatprep.subr.mxu0 0.0
    %2585 = vmatpush1.msra.mxu0 %v2495
    %2586 = vmatprep.subr.mxu0 0.0
    %2587 = vmatpush1.msra.mxu0 %v2494
    %2588 = vmatprep.subr.mxu0 0.0
    %2589 = vmatpush1.msra.mxu0 %v2493
    %2590 = vmatprep.subr.mxu0 0.0
    %2591 = vmatpush1.msra.mxu0 %v2492
    %2592 = vmatprep.subr.mxu0 0.0
    %2593 = vmatpush1.msra.mxu0 %v2491
    %2594 = vmatprep.subr.mxu0 0.0
    %2595 = vmatpush2.msra.mxu0 %v2522
    %2596 = vmatprep.subr.mxu0 0.0
    %2597 = vmatpush2.msra.mxu0 %v2521
    %2598 = vmatprep.subr.mxu0 0.0
    %2599 = vmatpush2.msra.mxu0 %v2520
    %2600 = vmatprep.subr.mxu0 0.0
    %2601 = vmatpush2.msra.mxu0 %v2519
    %2602 = vmatprep.subr.mxu0 0.0
    %2603 = vmatpush2.msra.mxu0 %v2518
    %2604 = vmatprep.subr.mxu0 0.0
    %2605 = vmatpush2.msra.mxu0 %v2517
    %2606 = vmatprep.subr.mxu0 0.0
    %2607 = vmatpush2.msra.mxu0 %v2516
    %2608 = vmatprep.subr.mxu0 0.0
    %2609 = vmatpush2.msra.mxu0 %v2515
    %2610 = vmatprep.subr.mxu0 0.0
    %2611 = vmatpush2.msra.mxu0 %v2514
    %2612 = vmatprep.subr.mxu0 0.0
    %2613 = vmatpush2.msra.mxu0 %v2513
    %2614 = vmatprep.subr.mxu0 0.0
    %2615 = vmatpush2.msra.mxu0 %v2512
    %2616 = vmatprep.subr.mxu0 0.0
    %2617 = vmatpush2.msra.mxu0 %v2511
    %2618 = vmatprep.subr.mxu0 0.0
    %2619 = vmatpush2.msra.mxu0 %v2510
    %2620 = vmatprep.subr.mxu0 0.0
    %2621 = vmatpush2.msra.mxu0 %v2509
    %2622 = vmatprep.subr.mxu0 0.0
    %2623 = vmatpush2.msra.mxu0 %v2508
    %2624 = vmatprep.subr.mxu0 0.0
    %2625 = vmatpush2.msra.mxu0 %v2507
    %2626 = vmatprep.mubr.f32.mxu0 %v2484
    %2627 = vmatmul.mubr.f32.gmra.mxu0 %v2483
    %v2628 = vpop.f32.mrf.mxu0
    %v2629 = vadd.f32 %v2560, %v2628
    %v2630 = vpop.f32.mrf.mxu0
    %2631 = vmatprep.mubr.f32.mxu0 %v2488
    %2632 = vmatmul.mubr.f32.gmra.mxu0 %v2487
    %v2633 = vpop.f32.mrf.mxu0
    %v2634 = vadd.f32 %v2560, %v2633
    %v2635 = vpop.f32.mrf.mxu0
    %2636 = vdwg.mxu0
    %2637 = vmatprep.subr.mxu0 0.0
    %2638 = vmatpush1.msra.mxu0 %v2538
    %2639 = vmatprep.subr.mxu0 0.0
    %2640 = vmatpush1.msra.mxu0 %v2537
    %2641 = vmatprep.subr.mxu0 0.0
    %2642 = vmatpush1.msra.mxu0 %v2536
    %2643 = vmatprep.subr.mxu0 0.0
    %2644 = vmatpush1.msra.mxu0 %v2535
    %2645 = vmatprep.subr.mxu0 0.0
    %2646 = vmatpush1.msra.mxu0 %v2534
    %2647 = vmatprep.subr.mxu0 0.0
    %2648 = vmatpush1.msra.mxu0 %v2533
    %2649 = vmatprep.subr.mxu0 0.0
    %2650 = vmatpush1.msra.mxu0 %v2532
    %2651 = vmatprep.subr.mxu0 0.0
    %2652 = vmatpush1.msra.mxu0 %v2531
    %2653 = vmatprep.subr.mxu0 0.0
    %2654 = vmatpush1.msra.mxu0 %v2530
    %2655 = vmatprep.subr.mxu0 0.0
    %2656 = vmatpush1.msra.mxu0 %v2529
    %2657 = vmatprep.subr.mxu0 0.0
    %2658 = vmatpush1.msra.mxu0 %v2528
    %2659 = vmatprep.subr.mxu0 0.0
    %2660 = vmatpush1.msra.mxu0 %v2527
    %2661 = vmatprep.subr.mxu0 0.0
    %2662 = vmatpush1.msra.mxu0 %v2526
    %2663 = vmatprep.subr.mxu0 0.0
    %2664 = vmatpush1.msra.mxu0 %v2525
    %2665 = vmatprep.subr.mxu0 0.0
    %2666 = vmatpush1.msra.mxu0 %v2524
    %2667 = vmatprep.subr.mxu0 0.0
    %2668 = vmatpush1.msra.mxu0 %v2523
    %2669 = vmatprep.subr.mxu0 0.0
    %2670 = vmatpush2.msra.mxu0 %v2554
    %2671 = vmatprep.subr.mxu0 0.0
    %2672 = vmatpush2.msra.mxu0 %v2553
    %2673 = vmatprep.subr.mxu0 0.0
    %2674 = vmatpush2.msra.mxu0 %v2552
    %2675 = vmatprep.subr.mxu0 0.0
    %2676 = vmatpush2.msra.mxu0 %v2551
    %2677 = vmatprep.subr.mxu0 0.0
    %2678 = vmatpush2.msra.mxu0 %v2550
    %2679 = vmatprep.subr.mxu0 0.0
    %2680 = vmatpush2.msra.mxu0 %v2549
    %2681 = vmatprep.subr.mxu0 0.0
    %2682 = vmatpush2.msra.mxu0 %v2548
    %2683 = vmatprep.subr.mxu0 0.0
    %2684 = vmatpush2.msra.mxu0 %v2547
    %2685 = vmatprep.subr.mxu0 0.0
    %2686 = vmatpush2.msra.mxu0 %v2546
    %2687 = vmatprep.subr.mxu0 0.0
    %2688 = vmatpush2.msra.mxu0 %v2545
    %2689 = vmatprep.subr.mxu0 0.0
    %2690 = vmatpush2.msra.mxu0 %v2544
    %2691 = vmatprep.subr.mxu0 0.0
    %2692 = vmatpush2.msra.mxu0 %v2543
    %2693 = vmatprep.subr.mxu0 0.0
    %2694 = vmatpush2.msra.mxu0 %v2542
    %2695 = vmatprep.subr.mxu0 0.0
    %2696 = vmatpush2.msra.mxu0 %v2541
    %2697 = vmatprep.subr.mxu0 0.0
    %2698 = vmatpush2.msra.mxu0 %v2540
    %2699 = vmatprep.subr.mxu0 0.0
    %2700 = vmatpush2.msra.mxu0 %v2539
    %2701 = vmatprep.mubr.f32.mxu0 %v2486
    %2702 = vmatmul.mubr.f32.gmra.mxu0 %v2485
    %v2703 = vpop.f32.mrf.mxu0
    %v2704 = vadd.f32 %v2629, %v2703
    %v2705 = vpop.f32.mrf.mxu0
    %2706 = vmatprep.mubr.f32.mxu0 %v2490
    %2707 = vmatmul.mubr.f32.gmra.mxu0 %v2489
    %v2708 = vpop.f32.mrf.mxu0
    %v2709 = vadd.f32 %v2634, %v2708
    %v2710 = vpop.f32.mrf.mxu0
    %2711 = vdwg.mxu0
    %v2712 = vadd.f32 %v2145, %v2704
    %v2713 = vadd.f32 %v2146, %v2709
    %s2714 = scalar_lea.vmem [#allocation5], 1
    %v2715 = vld [vmem:[%s2714] sm:$0x1]
    %s2716 = scalar_lea.vmem [#allocation7], 1
    %v2717 = vld [vmem:[%s2716] sm:$0x1]
    %2718 = vadd.xlane.f32.xlu0 %v2712
    %v2719 = vpop.xlane.xlu0 %2718
    %2720 = vadd.xlane.f32.xlu0 %v2713
    %v2721 = vpop.xlane.xlu0 %2720
    %v2722 = vmul.f32 %v2719, %v210
    %v2723 = vmul.f32 %v2721, %v210
    %v2724 = vsub.f32 %v2712, %v2722
    %v2725 = vsub.f32 %v2713, %v2723
    %v2726 = vmul.f32 %v2724, %v2724
    %v2727 = vmul.f32 %v2725, %v2725
    %2728 = vadd.xlane.f32.xlu0 %v2726
    %v2729 = vpop.xlane.xlu0 %2728
    %2730 = vadd.xlane.f32.xlu0 %v2727
    %v2731 = vpop.xlane.xlu0 %2730
    %v2732 = vmul.f32 %v2729, %v210
    %v2733 = vmul.f32 %v2731, %v210
    %v2734 = vadd.f32 %v2732, 1e-05
    %v2735 = vadd.f32 %v2733, 1e-05
    %v2736 = vrsqrt.pop %v2734
    %v2737 = vrsqrt.pop %v2735
    %v2738 = vmul.f32 %v2724, %v2736
    %v2739 = vmul.f32 %v2725, %v2737
    %v2741 = vlaneseq
    %v2742 = vshrl.u32 %v2741, 7
    %v2743 = vsub.s32 0, %v2742
    %v2744 = vrot.slane %v2715, %v2743
    %v2746 = vmul.f32 %v2738, %v2744
    %v2747 = vmul.f32 %v2739, %v2744
    %v2749 = vlaneseq
    %v2750 = vshrl.u32 %v2749, 7
    %v2751 = vsub.s32 0, %v2750
    %v2752 = vrot.slane %v2717, %v2751
    %v2754 = vadd.f32 %v2746, %v2752
    %v2755 = vadd.f32 %v2747, %v2752
    %s2756 = scalar_lea.vmem [#allocation8], 384
    %v2757 = vld [vmem:[%s2756] sm:$0xff]
    %v2758 = vld [vmem:[%s2756 + $0x8] sm:$0xff]
    %v2759 = vld [vmem:[%s2756 + $0x10] sm:$0xff]
    %v2760 = vld [vmem:[%s2756 + $0x18] sm:$0xff]
    %v2761 = vld [vmem:[%s2756 + $0x20] sm:$0xff]
    %v2762 = vld [vmem:[%s2756 + $0x28] sm:$0xff]
    %v2763 = vld [vmem:[%s2756 + $0x30] sm:$0xff]
    %v2764 = vld [vmem:[%s2756 + $0x38] sm:$0xff]
    %v2765 = vld [vmem:[%s2756 + $0x40] sm:$0xff]
    %v2766 = vld [vmem:[%s2756 + $0x48] sm:$0xff]
    %v2767 = vld [vmem:[%s2756 + $0x50] sm:$0xff]
    %v2768 = vld [vmem:[%s2756 + $0x58] sm:$0xff]
    %v2769 = vld [vmem:[%s2756 + $0x60] sm:$0xff]
    %v2770 = vld [vmem:[%s2756 + $0x68] sm:$0xff]
    %v2771 = vld [vmem:[%s2756 + $0x70] sm:$0xff]
    %v2772 = vld [vmem:[%s2756 + $0x78] sm:$0xff]
    %v2773 = vld [vmem:[%s2756 + $0x80] sm:$0xff]
    %v2774 = vld [vmem:[%s2756 + $0x88] sm:$0xff]
    %v2775 = vld [vmem:[%s2756 + $0x90] sm:$0xff]
    %v2776 = vld [vmem:[%s2756 + $0x98] sm:$0xff]
    %v2777 = vld [vmem:[%s2756 + $0xa0] sm:$0xff]
    %v2778 = vld [vmem:[%s2756 + $0xa8] sm:$0xff]
    %v2779 = vld [vmem:[%s2756 + $0xb0] sm:$0xff]
    %v2780 = vld [vmem:[%s2756 + $0xb8] sm:$0xff]
    %v2781 = vld [vmem:[%s2756 + $0xc0] sm:$0xff]
    %v2782 = vld [vmem:[%s2756 + $0xc8] sm:$0xff]
    %v2783 = vld [vmem:[%s2756 + $0xd0] sm:$0xff]
    %v2784 = vld [vmem:[%s2756 + $0xd8] sm:$0xff]
    %v2785 = vld [vmem:[%s2756 + $0xe0] sm:$0xff]
    %v2786 = vld [vmem:[%s2756 + $0xe8] sm:$0xff]
    %v2787 = vld [vmem:[%s2756 + $0xf0] sm:$0xff]
    %v2788 = vld [vmem:[%s2756 + $0xf8] sm:$0xff]
    %v2789 = vld [vmem:[%s2756 + $0x100] sm:$0xff]
    %v2790 = vld [vmem:[%s2756 + $0x108] sm:$0xff]
    %v2791 = vld [vmem:[%s2756 + $0x110] sm:$0xff]
    %v2792 = vld [vmem:[%s2756 + $0x118] sm:$0xff]
    %v2793 = vld [vmem:[%s2756 + $0x120] sm:$0xff]
    %v2794 = vld [vmem:[%s2756 + $0x128] sm:$0xff]
    %v2795 = vld [vmem:[%s2756 + $0x130] sm:$0xff]
    %v2796 = vld [vmem:[%s2756 + $0x138] sm:$0xff]
    %v2797 = vld [vmem:[%s2756 + $0x140] sm:$0xff]
    %v2798 = vld [vmem:[%s2756 + $0x148] sm:$0xff]
    %v2799 = vld [vmem:[%s2756 + $0x150] sm:$0xff]
    %v2800 = vld [vmem:[%s2756 + $0x158] sm:$0xff]
    %v2801 = vld [vmem:[%s2756 + $0x160] sm:$0xff]
    %v2802 = vld [vmem:[%s2756 + $0x168] sm:$0xff]
    %v2803 = vld [vmem:[%s2756 + $0x170] sm:$0xff]
    %v2804 = vld [vmem:[%s2756 + $0x178] sm:$0xff]
    %s2805 = scalar_lea.vmem %s4, 3
    %v2806 = vld [vmem:[%s2805] sm:$0x7]
    %v2808 = vlaneseq
    %v2809 = vshrl.u32 %v2808, 7
    %v2810 = vsub.s32 0, %v2809
    %v2811 = vrot.slane %v2806, %v2810
    %v2812 = vlaneseq
    %v2813 = vshrl.u32 %v2812, 7
    %v2814 = vsub.s32 1, %v2813
    %v2815 = vrot.slane %v2806, %v2814
    %v2816 = vlaneseq
    %v2817 = vshrl.u32 %v2816, 7
    %v2818 = vsub.s32 2, %v2817
    %v2819 = vrot.slane %v2806, %v2818
    %2823 = vmatprep.subr.mxu0 %v2803
    %2824 = vmatpush1.msra.mxu0 %v2802
    %2825 = vmatprep.subr.mxu0 %v2800
    %2826 = vmatpush1.msra.mxu0 %v2799
    %2827 = vmatprep.subr.mxu0 %v2797
    %2828 = vmatpush1.msra.mxu0 %v2796
    %2829 = vmatprep.subr.mxu0 %v2794
    %2830 = vmatpush1.msra.mxu0 %v2793
    %2831 = vmatprep.subr.mxu0 %v2791
    %2832 = vmatpush1.msra.mxu0 %v2790
    %2833 = vmatprep.subr.mxu0 %v2788
    %2834 = vmatpush1.msra.mxu0 %v2787
    %2835 = vmatprep.subr.mxu0 %v2785
    %2836 = vmatpush1.msra.mxu0 %v2784
    %2837 = vmatprep.subr.mxu0 %v2782
    %2838 = vmatpush1.msra.mxu0 %v2781
    %2839 = vmatprep.subr.mxu0 %v2779
    %2840 = vmatpush1.msra.mxu0 %v2778
    %2841 = vmatprep.subr.mxu0 %v2776
    %2842 = vmatpush1.msra.mxu0 %v2775
    %2843 = vmatprep.subr.mxu0 %v2773
    %2844 = vmatpush1.msra.mxu0 %v2772
    %2845 = vmatprep.subr.mxu0 %v2770
    %2846 = vmatpush1.msra.mxu0 %v2769
    %2847 = vmatprep.subr.mxu0 %v2767
    %2848 = vmatpush1.msra.mxu0 %v2766
    %2849 = vmatprep.subr.mxu0 %v2764
    %2850 = vmatpush1.msra.mxu0 %v2763
    %2851 = vmatprep.subr.mxu0 %v2761
    %2852 = vmatpush1.msra.mxu0 %v2760
    %2853 = vmatprep.subr.mxu0 %v2758
    %2854 = vmatpush1.msra.mxu0 %v2757
    %2855 = vmatprep.subr.mxu0 0.0
    %2856 = vmatpush2.msra.mxu0 0.0
    %2857 = vmatprep.subr.mxu0 0.0
    %2858 = vmatpush2.msra.mxu0 0.0
    %2859 = vmatprep.subr.mxu0 0.0
    %2860 = vmatpush2.msra.mxu0 0.0
    %2861 = vmatprep.subr.mxu0 0.0
    %2862 = vmatpush2.msra.mxu0 0.0
    %2863 = vmatprep.subr.mxu0 0.0
    %2864 = vmatpush2.msra.mxu0 0.0
    %2865 = vmatprep.subr.mxu0 0.0
    %2866 = vmatpush2.msra.mxu0 0.0
    %2867 = vmatprep.subr.mxu0 0.0
    %2868 = vmatpush2.msra.mxu0 0.0
    %2869 = vmatprep.subr.mxu0 0.0
    %2870 = vmatpush2.msra.mxu0 0.0
    %2871 = vmatprep.subr.mxu0 0.0
    %2872 = vmatpush2.msra.mxu0 0.0
    %2873 = vmatprep.subr.mxu0 0.0
    %2874 = vmatpush2.msra.mxu0 0.0
    %2875 = vmatprep.subr.mxu0 0.0
    %2876 = vmatpush2.msra.mxu0 0.0
    %2877 = vmatprep.subr.mxu0 0.0
    %2878 = vmatpush2.msra.mxu0 0.0
    %2879 = vmatprep.subr.mxu0 0.0
    %2880 = vmatpush2.msra.mxu0 0.0
    %2881 = vmatprep.subr.mxu0 0.0
    %2882 = vmatpush2.msra.mxu0 0.0
    %2883 = vmatprep.subr.mxu0 0.0
    %2884 = vmatpush2.msra.mxu0 0.0
    %2885 = vmatprep.subr.mxu0 0.0
    %2886 = vmatpush2.msra.mxu0 0.0
    %2887 = vmatprep.mubr.f32.mxu0 0.0
    %2888 = vmatmul.mubr.f32.gmra.mxu0 %v2754
    %v2889 = vpop.f32.mrf.mxu0
    %v2890 = vadd.f32 %v2811, %v2889
    %v2891 = vpop.f32.mrf.mxu0
    %v2892 = vadd.f32 %v2815, %v2891
    %2893 = vmatprep.mubr.f32.mxu0 0.0
    %2894 = vmatmul.mubr.f32.gmra.mxu0 %v2755
    %v2895 = vpop.f32.mrf.mxu0
    %v2896 = vadd.f32 %v2811, %v2895
    %v2897 = vpop.f32.mrf.mxu0
    %v2898 = vadd.f32 %v2815, %v2897
    %2899 = vdwg.mxu0
    %2900 = vmatprep.subr.mxu0 0.0
    %2901 = vmatpush1.msra.mxu0 %v2804
    %2902 = vmatprep.subr.mxu0 0.0
    %2903 = vmatpush1.msra.mxu0 %v2801
    %2904 = vmatprep.subr.mxu0 0.0
    %2905 = vmatpush1.msra.mxu0 %v2798
    %2906 = vmatprep.subr.mxu0 0.0
    %2907 = vmatpush1.msra.mxu0 %v2795
    %2908 = vmatprep.subr.mxu0 0.0
    %2909 = vmatpush1.msra.mxu0 %v2792
    %2910 = vmatprep.subr.mxu0 0.0
    %2911 = vmatpush1.msra.mxu0 %v2789
    %2912 = vmatprep.subr.mxu0 0.0
    %2913 = vmatpush1.msra.mxu0 %v2786
    %2914 = vmatprep.subr.mxu0 0.0
    %2915 = vmatpush1.msra.mxu0 %v2783
    %2916 = vmatprep.subr.mxu0 0.0
    %2917 = vmatpush1.msra.mxu0 %v2780
    %2918 = vmatprep.subr.mxu0 0.0
    %2919 = vmatpush1.msra.mxu0 %v2777
    %2920 = vmatprep.subr.mxu0 0.0
    %2921 = vmatpush1.msra.mxu0 %v2774
    %2922 = vmatprep.subr.mxu0 0.0
    %2923 = vmatpush1.msra.mxu0 %v2771
    %2924 = vmatprep.subr.mxu0 0.0
    %2925 = vmatpush1.msra.mxu0 %v2768
    %2926 = vmatprep.subr.mxu0 0.0
    %2927 = vmatpush1.msra.mxu0 %v2765
    %2928 = vmatprep.subr.mxu0 0.0
    %2929 = vmatpush1.msra.mxu0 %v2762
    %2930 = vmatprep.subr.mxu0 0.0
    %2931 = vmatpush1.msra.mxu0 %v2759
    %2932 = vmatprep.subr.mxu0 0.0
    %2933 = vmatpush2.msra.mxu0 0.0
    %2934 = vmatprep.subr.mxu0 0.0
    %2935 = vmatpush2.msra.mxu0 0.0
    %2936 = vmatprep.subr.mxu0 0.0
    %2937 = vmatpush2.msra.mxu0 0.0
    %2938 = vmatprep.subr.mxu0 0.0
    %2939 = vmatpush2.msra.mxu0 0.0
    %2940 = vmatprep.subr.mxu0 0.0
    %2941 = vmatpush2.msra.mxu0 0.0
    %2942 = vmatprep.subr.mxu0 0.0
    %2943 = vmatpush2.msra.mxu0 0.0
    %2944 = vmatprep.subr.mxu0 0.0
    %2945 = vmatpush2.msra.mxu0 0.0
    %2946 = vmatprep.subr.mxu0 0.0
    %2947 = vmatpush2.msra.mxu0 0.0
    %2948 = vmatprep.subr.mxu0 0.0
    %2949 = vmatpush2.msra.mxu0 0.0
    %2950 = vmatprep.subr.mxu0 0.0
    %2951 = vmatpush2.msra.mxu0 0.0
    %2952 = vmatprep.subr.mxu0 0.0
    %2953 = vmatpush2.msra.mxu0 0.0
    %2954 = vmatprep.subr.mxu0 0.0
    %2955 = vmatpush2.msra.mxu0 0.0
    %2956 = vmatprep.subr.mxu0 0.0
    %2957 = vmatpush2.msra.mxu0 0.0
    %2958 = vmatprep.subr.mxu0 0.0
    %2959 = vmatpush2.msra.mxu0 0.0
    %2960 = vmatprep.subr.mxu0 0.0
    %2961 = vmatpush2.msra.mxu0 0.0
    %2962 = vmatprep.subr.mxu0 0.0
    %2963 = vmatpush2.msra.mxu0 0.0
    %2964 = vmatprep.mubr.f32.mxu0 0.0
    %2965 = vmatmul.mubr.f32.gmra.mxu0 %v2754
    %v2966 = vpop.f32.mrf.mxu0
    %v2967 = vadd.f32 %v2819, %v2966
    %v2968 = vpop.f32.mrf.mxu0
    %2969 = vmatprep.mubr.f32.mxu0 0.0
    %2970 = vmatmul.mubr.f32.gmra.mxu0 %v2755
    %v2971 = vpop.f32.mrf.mxu0
    %v2972 = vadd.f32 %v2819, %v2971
    %v2973 = vpop.f32.mrf.mxu0
    %2974 = vdwg.mxu0
    %s2975 = scalar_lea.vmem [#allocation10], 128
    %v2976 = vld [vmem:[%s2975] sm:$0xff]
    %v2977 = vld [vmem:[%s2975 + $0x8] sm:$0xff]
    %v2978 = vld [vmem:[%s2975 + $0x10] sm:$0xff]
    %v2979 = vld [vmem:[%s2975 + $0x18] sm:$0xff]
    %v2980 = vld [vmem:[%s2975 + $0x20] sm:$0xff]
    %v2981 = vld [vmem:[%s2975 + $0x28] sm:$0xff]
    %v2982 = vld [vmem:[%s2975 + $0x30] sm:$0xff]
    %v2983 = vld [vmem:[%s2975 + $0x38] sm:$0xff]
    %v2984 = vld [vmem:[%s2975 + $0x40] sm:$0xff]
    %v2985 = vld [vmem:[%s2975 + $0x48] sm:$0xff]
    %v2986 = vld [vmem:[%s2975 + $0x50] sm:$0xff]
    %v2987 = vld [vmem:[%s2975 + $0x58] sm:$0xff]
    %v2988 = vld [vmem:[%s2975 + $0x60] sm:$0xff]
    %v2989 = vld [vmem:[%s2975 + $0x68] sm:$0xff]
    %v2990 = vld [vmem:[%s2975 + $0x70] sm:$0xff]
    %v2991 = vld [vmem:[%s2975 + $0x78] sm:$0xff]
    %v2993 = vsel %vm478, %v2890, 0
    %v2996 = vsel %vm478, %v2892, 0
    %2998 = vmatprep.subr.mxu0 0.0
    %2999 = vmatpush1.xpose.msra.mxu0 0.0
    %3000 = vmatprep.subr.mxu0 0.0
    %3001 = vmatpush1.xpose.msra.mxu0 0.0
    %3002 = vmatprep.subr.mxu0 0.0
    %3003 = vmatpush1.xpose.msra.mxu0 0.0
    %3004 = vmatprep.subr.mxu0 0.0
    %3005 = vmatpush1.xpose.msra.mxu0 0.0
    %3006 = vmatprep.subr.mxu0 0.0
    %3007 = vmatpush1.xpose.msra.mxu0 0.0
    %3008 = vmatprep.subr.mxu0 0.0
    %3009 = vmatpush1.xpose.msra.mxu0 0.0
    %3010 = vmatprep.subr.mxu0 0.0
    %3011 = vmatpush1.xpose.msra.mxu0 0.0
    %3012 = vmatprep.subr.mxu0 0.0
    %3013 = vmatpush1.xpose.msra.mxu0 0.0
    %3014 = vmatprep.subr.mxu0 0.0
    %3015 = vmatpush1.xpose.msra.mxu0 0.0
    %3016 = vmatprep.subr.mxu0 0.0
    %3017 = vmatpush1.xpose.msra.mxu0 0.0
    %3018 = vmatprep.subr.mxu0 0.0
    %3019 = vmatpush1.xpose.msra.mxu0 0.0
    %3020 = vmatprep.subr.mxu0 0.0
    %3021 = vmatpush1.xpose.msra.mxu0 0.0
    %3022 = vmatprep.subr.mxu0 0.0
    %3023 = vmatpush1.xpose.msra.mxu0 0.0
    %3024 = vmatprep.subr.mxu0 0.0
    %3025 = vmatpush1.xpose.msra.mxu0 0.0
    %3026 = vmatprep.subr.mxu0 0.0
    %3027 = vmatpush1.xpose.msra.mxu0 0.0
    %3028 = vmatprep.subr.mxu0 0.0
    %3029 = vmatpush1.xpose.msra.mxu0 %v2996
    %3030 = vmatprep.subr.mxu0 0.0
    %3031 = vmatpush2.xpose.msra.mxu0 0.0
    %3032 = vmatprep.subr.mxu0 0.0
    %3033 = vmatpush2.xpose.msra.mxu0 0.0
    %3034 = vmatprep.subr.mxu0 0.0
    %3035 = vmatpush2.xpose.msra.mxu0 0.0
    %3036 = vmatprep.subr.mxu0 0.0
    %3037 = vmatpush2.xpose.msra.mxu0 0.0
    %3038 = vmatprep.subr.mxu0 0.0
    %3039 = vmatpush2.xpose.msra.mxu0 0.0
    %3040 = vmatprep.subr.mxu0 0.0
    %3041 = vmatpush2.xpose.msra.mxu0 0.0
    %3042 = vmatprep.subr.mxu0 0.0
    %3043 = vmatpush2.xpose.msra.mxu0 0.0
    %3044 = vmatprep.subr.mxu0 0.0
    %3045 = vmatpush2.xpose.msra.mxu0 0.0
    %3046 = vmatprep.subr.mxu0 0.0
    %3047 = vmatpush2.xpose.msra.mxu0 0.0
    %3048 = vmatprep.subr.mxu0 0.0
    %3049 = vmatpush2.xpose.msra.mxu0 0.0
    %3050 = vmatprep.subr.mxu0 0.0
    %3051 = vmatpush2.xpose.msra.mxu0 0.0
    %3052 = vmatprep.subr.mxu0 0.0
    %3053 = vmatpush2.xpose.msra.mxu0 0.0
    %3054 = vmatprep.subr.mxu0 0.0
    %3055 = vmatpush2.xpose.msra.mxu0 0.0
    %3056 = vmatprep.subr.mxu0 0.0
    %3057 = vmatpush2.xpose.msra.mxu0 0.0
    %3058 = vmatprep.subr.mxu0 0.0
    %3059 = vmatpush2.xpose.msra.mxu0 0.0
    %3060 = vmatprep.subr.mxu0 0.0
    %3061 = vmatpush2.xpose.msra.mxu0 0.0
    %3062 = vmatprep.mubr.f32.mxu0 0.0
    %3063 = vmatmul.mubr.f32.gmra.mxu0 %v2993
    %v3064 = vpop.f32.mrf.mxu0
    %v3065 = vadd.f32 0.0, %v3064
    %v3066 = vpop.f32.mrf.mxu0
    %3067 = vdwg.mxu0
    %v3069 = vsel %vm478, %v2896, 0
    %v3072 = vsel %vm478, %v2898, 0
    %3074 = vmatprep.subr.mxu0 0.0
    %3075 = vmatpush1.xpose.msra.mxu0 0.0
    %3076 = vmatprep.subr.mxu0 0.0
    %3077 = vmatpush1.xpose.msra.mxu0 0.0
    %3078 = vmatprep.subr.mxu0 0.0
    %3079 = vmatpush1.xpose.msra.mxu0 0.0
    %3080 = vmatprep.subr.mxu0 0.0
    %3081 = vmatpush1.xpose.msra.mxu0 0.0
    %3082 = vmatprep.subr.mxu0 0.0
    %3083 = vmatpush1.xpose.msra.mxu0 0.0
    %3084 = vmatprep.subr.mxu0 0.0
    %3085 = vmatpush1.xpose.msra.mxu0 0.0
    %3086 = vmatprep.subr.mxu0 0.0
    %3087 = vmatpush1.xpose.msra.mxu0 0.0
    %3088 = vmatprep.subr.mxu0 0.0
    %3089 = vmatpush1.xpose.msra.mxu0 0.0
    %3090 = vmatprep.subr.mxu0 0.0
    %3091 = vmatpush1.xpose.msra.mxu0 0.0
    %3092 = vmatprep.subr.mxu0 0.0
    %3093 = vmatpush1.xpose.msra.mxu0 0.0
    %3094 = vmatprep.subr.mxu0 0.0
    %3095 = vmatpush1.xpose.msra.mxu0 0.0
    %3096 = vmatprep.subr.mxu0 0.0
    %3097 = vmatpush1.xpose.msra.mxu0 0.0
    %3098 = vmatprep.subr.mxu0 0.0
    %3099 = vmatpush1.xpose.msra.mxu0 0.0
    %3100 = vmatprep.subr.mxu0 0.0
    %3101 = vmatpush1.xpose.msra.mxu0 0.0
    %3102 = vmatprep.subr.mxu0 0.0
    %3103 = vmatpush1.xpose.msra.mxu0 0.0
    %3104 = vmatprep.subr.mxu0 0.0
    %3105 = vmatpush1.xpose.msra.mxu0 %v3072
    %3106 = vmatprep.subr.mxu0 0.0
    %3107 = vmatpush2.xpose.msra.mxu0 0.0
    %3108 = vmatprep.subr.mxu0 0.0
    %3109 = vmatpush2.xpose.msra.mxu0 0.0
    %3110 = vmatprep.subr.mxu0 0.0
    %3111 = vmatpush2.xpose.msra.mxu0 0.0
    %3112 = vmatprep.subr.mxu0 0.0
    %3113 = vmatpush2.xpose.msra.mxu0 0.0
    %3114 = vmatprep.subr.mxu0 0.0
    %3115 = vmatpush2.xpose.msra.mxu0 0.0
    %3116 = vmatprep.subr.mxu0 0.0
    %3117 = vmatpush2.xpose.msra.mxu0 0.0
    %3118 = vmatprep.subr.mxu0 0.0
    %3119 = vmatpush2.xpose.msra.mxu0 0.0
    %3120 = vmatprep.subr.mxu0 0.0
    %3121 = vmatpush2.xpose.msra.mxu0 0.0
    %3122 = vmatprep.subr.mxu0 0.0
    %3123 = vmatpush2.xpose.msra.mxu0 0.0
    %3124 = vmatprep.subr.mxu0 0.0
    %3125 = vmatpush2.xpose.msra.mxu0 0.0
    %3126 = vmatprep.subr.mxu0 0.0
    %3127 = vmatpush2.xpose.msra.mxu0 0.0
    %3128 = vmatprep.subr.mxu0 0.0
    %3129 = vmatpush2.xpose.msra.mxu0 0.0
    %3130 = vmatprep.subr.mxu0 0.0
    %3131 = vmatpush2.xpose.msra.mxu0 0.0
    %3132 = vmatprep.subr.mxu0 0.0
    %3133 = vmatpush2.xpose.msra.mxu0 0.0
    %3134 = vmatprep.subr.mxu0 0.0
    %3135 = vmatpush2.xpose.msra.mxu0 0.0
    %3136 = vmatprep.subr.mxu0 0.0
    %3137 = vmatpush2.xpose.msra.mxu0 0.0
    %3138 = vmatprep.mubr.f32.mxu0 0.0
    %3139 = vmatmul.mubr.f32.gmra.mxu0 %v3069
    %v3140 = vpop.f32.mrf.mxu0
    %v3141 = vadd.f32 0.0, %v3140
    %v3142 = vpop.f32.mrf.mxu0
    %3143 = vdwg.mxu0
    %v3144 = vmul.f32 %v3065, 0.17677669
    %v3145 = vmul.f32 %v3141, 0.17677669
    %v3146 = vadd.f32 %v3144, %v203
    %v3147 = vadd.f32 %v3145, %v203
    %v3148 = vsel %vm635, %v3146, -inf
    %3149 = vmax.xlane.f32.xlu0 %v3148
    %v3150 = vpop.xlane.xlu0 %3149
    %v3151 = vsel %vm635, %v3147, -inf
    %3152 = vmax.xlane.f32.xlu0 %v3151
    %v3153 = vpop.xlane.xlu0 %3152
    %v3154 = vsub.f32 %v3146, %v3150
    %v3155 = vsub.f32 %v3147, %v3153
    %v3156 = vmul.f32 %v3154, 1.442695
    %v3157 = vpow.pop %v3156
    %v3158 = vmul.f32 %v3155, 1.442695
    %v3159 = vpow.pop %v3158
    %v3160 = vsel %vm635, %v3157, 0.0
    %3161 = vadd.xlane.f32.xlu0 %v3160
    %v3162 = vpop.xlane.xlu0 %3161
    %v3163 = vsel %vm635, %v3159, 0.0
    %3164 = vadd.xlane.f32.xlu0 %v3163
    %v3165 = vpop.xlane.xlu0 %3164
    %v3166 = vrcp.pop %v3162
    %v3167 = vrcp.pop %v3165
    %v3168 = vmul.f32 %v3157, %v3166
    %v3169 = vmul.f32 %v3159, %v3167
    %v3171 = vsel %vm635, %v3168, 0
    %3173 = vmatprep.subr.mxu0 0.0
    %3174 = vmatpush1.msra.mxu0 0.0
    %3175 = vmatprep.subr.mxu0 0.0
    %3176 = vmatpush1.msra.mxu0 0.0
    %3177 = vmatprep.subr.mxu0 0.0
    %3178 = vmatpush1.msra.mxu0 0.0
    %3179 = vmatprep.subr.mxu0 0.0
    %3180 = vmatpush1.msra.mxu0 0.0
    %3181 = vmatprep.subr.mxu0 0.0
    %3182 = vmatpush1.msra.mxu0 0.0
    %3183 = vmatprep.subr.mxu0 0.0
    %3184 = vmatpush1.msra.mxu0 0.0
    %3185 = vmatprep.subr.mxu0 0.0
    %3186 = vmatpush1.msra.mxu0 0.0
    %3187 = vmatprep.subr.mxu0 0.0
    %3188 = vmatpush1.msra.mxu0 0.0
    %3189 = vmatprep.subr.mxu0 0.0
    %3190 = vmatpush1.msra.mxu0 0.0
    %3191 = vmatprep.subr.mxu0 0.0
    %3192 = vmatpush1.msra.mxu0 0.0
    %3193 = vmatprep.subr.mxu0 0.0
    %3194 = vmatpush1.msra.mxu0 0.0
    %3195 = vmatprep.subr.mxu0 0.0
    %3196 = vmatpush1.msra.mxu0 0.0
    %3197 = vmatprep.subr.mxu0 0.0
    %3198 = vmatpush1.msra.mxu0 0.0
    %3199 = vmatprep.subr.mxu0 0.0
    %3200 = vmatpush1.msra.mxu0 0.0
    %3201 = vmatprep.subr.mxu0 0.0
    %3202 = vmatpush1.msra.mxu0 0.0
    %3203 = vmatprep.subr.mxu0 0.0
    %3204 = vmatpush1.msra.mxu0 %v2967
    %3205 = vmatprep.subr.mxu0 0.0
    %3206 = vmatpush2.msra.mxu0 0.0
    %3207 = vmatprep.subr.mxu0 0.0
    %3208 = vmatpush2.msra.mxu0 0.0
    %3209 = vmatprep.subr.mxu0 0.0
    %3210 = vmatpush2.msra.mxu0 0.0
    %3211 = vmatprep.subr.mxu0 0.0
    %3212 = vmatpush2.msra.mxu0 0.0
    %3213 = vmatprep.subr.mxu0 0.0
    %3214 = vmatpush2.msra.mxu0 0.0
    %3215 = vmatprep.subr.mxu0 0.0
    %3216 = vmatpush2.msra.mxu0 0.0
    %3217 = vmatprep.subr.mxu0 0.0
    %3218 = vmatpush2.msra.mxu0 0.0
    %3219 = vmatprep.subr.mxu0 0.0
    %3220 = vmatpush2.msra.mxu0 0.0
    %3221 = vmatprep.subr.mxu0 0.0
    %3222 = vmatpush2.msra.mxu0 0.0
    %3223 = vmatprep.subr.mxu0 0.0
    %3224 = vmatpush2.msra.mxu0 0.0
    %3225 = vmatprep.subr.mxu0 0.0
    %3226 = vmatpush2.msra.mxu0 0.0
    %3227 = vmatprep.subr.mxu0 0.0
    %3228 = vmatpush2.msra.mxu0 0.0
    %3229 = vmatprep.subr.mxu0 0.0
    %3230 = vmatpush2.msra.mxu0 0.0
    %3231 = vmatprep.subr.mxu0 0.0
    %3232 = vmatpush2.msra.mxu0 0.0
    %3233 = vmatprep.subr.mxu0 0.0
    %3234 = vmatpush2.msra.mxu0 0.0
    %3235 = vmatprep.subr.mxu0 0.0
    %3236 = vmatpush2.msra.mxu0 0.0
    %3237 = vmatprep.mubr.f32.mxu0 0.0
    %3238 = vmatmul.mubr.f32.gmra.mxu0 %v3171
    %v3239 = vpop.f32.mrf.mxu0
    %v3240 = vadd.f32 0.0, %v3239
    %v3241 = vpop.f32.mrf.mxu0
    %3242 = vdwg.mxu0
    %v3244 = vsel %vm635, %v3169, 0
    %3246 = vmatprep.subr.mxu0 0.0
    %3247 = vmatpush1.msra.mxu0 0.0
    %3248 = vmatprep.subr.mxu0 0.0
    %3249 = vmatpush1.msra.mxu0 0.0
    %3250 = vmatprep.subr.mxu0 0.0
    %3251 = vmatpush1.msra.mxu0 0.0
    %3252 = vmatprep.subr.mxu0 0.0
    %3253 = vmatpush1.msra.mxu0 0.0
    %3254 = vmatprep.subr.mxu0 0.0
    %3255 = vmatpush1.msra.mxu0 0.0
    %3256 = vmatprep.subr.mxu0 0.0
    %3257 = vmatpush1.msra.mxu0 0.0
    %3258 = vmatprep.subr.mxu0 0.0
    %3259 = vmatpush1.msra.mxu0 0.0
    %3260 = vmatprep.subr.mxu0 0.0
    %3261 = vmatpush1.msra.mxu0 0.0
    %3262 = vmatprep.subr.mxu0 0.0
    %3263 = vmatpush1.msra.mxu0 0.0
    %3264 = vmatprep.subr.mxu0 0.0
    %3265 = vmatpush1.msra.mxu0 0.0
    %3266 = vmatprep.subr.mxu0 0.0
    %3267 = vmatpush1.msra.mxu0 0.0
    %3268 = vmatprep.subr.mxu0 0.0
    %3269 = vmatpush1.msra.mxu0 0.0
    %3270 = vmatprep.subr.mxu0 0.0
    %3271 = vmatpush1.msra.mxu0 0.0
    %3272 = vmatprep.subr.mxu0 0.0
    %3273 = vmatpush1.msra.mxu0 0.0
    %3274 = vmatprep.subr.mxu0 0.0
    %3275 = vmatpush1.msra.mxu0 0.0
    %3276 = vmatprep.subr.mxu0 0.0
    %3277 = vmatpush1.msra.mxu0 %v2972
    %3278 = vmatprep.subr.mxu0 0.0
    %3279 = vmatpush2.msra.mxu0 0.0
    %3280 = vmatprep.subr.mxu0 0.0
    %3281 = vmatpush2.msra.mxu0 0.0
    %3282 = vmatprep.subr.mxu0 0.0
    %3283 = vmatpush2.msra.mxu0 0.0
    %3284 = vmatprep.subr.mxu0 0.0
    %3285 = vmatpush2.msra.mxu0 0.0
    %3286 = vmatprep.subr.mxu0 0.0
    %3287 = vmatpush2.msra.mxu0 0.0
    %3288 = vmatprep.subr.mxu0 0.0
    %3289 = vmatpush2.msra.mxu0 0.0
    %3290 = vmatprep.subr.mxu0 0.0
    %3291 = vmatpush2.msra.mxu0 0.0
    %3292 = vmatprep.subr.mxu0 0.0
    %3293 = vmatpush2.msra.mxu0 0.0
    %3294 = vmatprep.subr.mxu0 0.0
    %3295 = vmatpush2.msra.mxu0 0.0
    %3296 = vmatprep.subr.mxu0 0.0
    %3297 = vmatpush2.msra.mxu0 0.0
    %3298 = vmatprep.subr.mxu0 0.0
    %3299 = vmatpush2.msra.mxu0 0.0
    %3300 = vmatprep.subr.mxu0 0.0
    %3301 = vmatpush2.msra.mxu0 0.0
    %3302 = vmatprep.subr.mxu0 0.0
    %3303 = vmatpush2.msra.mxu0 0.0
    %3304 = vmatprep.subr.mxu0 0.0
    %3305 = vmatpush2.msra.mxu0 0.0
    %3306 = vmatprep.subr.mxu0 0.0
    %3307 = vmatpush2.msra.mxu0 0.0
    %3308 = vmatprep.subr.mxu0 0.0
    %3309 = vmatpush2.msra.mxu0 0.0
    %3310 = vmatprep.mubr.f32.mxu0 0.0
    %3311 = vmatmul.mubr.f32.gmra.mxu0 %v3244
    %v3312 = vpop.f32.mrf.mxu0
    %v3313 = vadd.f32 0.0, %v3312
    %v3314 = vpop.f32.mrf.mxu0
    %3315 = vdwg.mxu0
    %3316 = vrot.lane.b32.xlu0 %v2890, 96
    %v3317 = vpop.permute.xlu0 %3316
    %3318 = vrot.lane.b32.xlu0 %v2892, 96
    %v3319 = vpop.permute.xlu0 %3318
    %v3320 = vsel %vm478, %v3317, 0
    %v3322 = vsel %vm478, %v3319, 0
    %3324 = vmatprep.subr.mxu0 0.0
    %3325 = vmatpush1.xpose.msra.mxu0 0.0
    %3326 = vmatprep.subr.mxu0 0.0
    %3327 = vmatpush1.xpose.msra.mxu0 0.0
    %3328 = vmatprep.subr.mxu0 0.0
    %3329 = vmatpush1.xpose.msra.mxu0 0.0
    %3330 = vmatprep.subr.mxu0 0.0
    %3331 = vmatpush1.xpose.msra.mxu0 0.0
    %3332 = vmatprep.subr.mxu0 0.0
    %3333 = vmatpush1.xpose.msra.mxu0 0.0
    %3334 = vmatprep.subr.mxu0 0.0
    %3335 = vmatpush1.xpose.msra.mxu0 0.0
    %3336 = vmatprep.subr.mxu0 0.0
    %3337 = vmatpush1.xpose.msra.mxu0 0.0
    %3338 = vmatprep.subr.mxu0 0.0
    %3339 = vmatpush1.xpose.msra.mxu0 0.0
    %3340 = vmatprep.subr.mxu0 0.0
    %3341 = vmatpush1.xpose.msra.mxu0 0.0
    %3342 = vmatprep.subr.mxu0 0.0
    %3343 = vmatpush1.xpose.msra.mxu0 0.0
    %3344 = vmatprep.subr.mxu0 0.0
    %3345 = vmatpush1.xpose.msra.mxu0 0.0
    %3346 = vmatprep.subr.mxu0 0.0
    %3347 = vmatpush1.xpose.msra.mxu0 0.0
    %3348 = vmatprep.subr.mxu0 0.0
    %3349 = vmatpush1.xpose.msra.mxu0 0.0
    %3350 = vmatprep.subr.mxu0 0.0
    %3351 = vmatpush1.xpose.msra.mxu0 0.0
    %3352 = vmatprep.subr.mxu0 0.0
    %3353 = vmatpush1.xpose.msra.mxu0 0.0
    %3354 = vmatprep.subr.mxu0 0.0
    %3355 = vmatpush1.xpose.msra.mxu0 %v3322
    %3356 = vmatprep.subr.mxu0 0.0
    %3357 = vmatpush2.xpose.msra.mxu0 0.0
    %3358 = vmatprep.subr.mxu0 0.0
    %3359 = vmatpush2.xpose.msra.mxu0 0.0
    %3360 = vmatprep.subr.mxu0 0.0
    %3361 = vmatpush2.xpose.msra.mxu0 0.0
    %3362 = vmatprep.subr.mxu0 0.0
    %3363 = vmatpush2.xpose.msra.mxu0 0.0
    %3364 = vmatprep.subr.mxu0 0.0
    %3365 = vmatpush2.xpose.msra.mxu0 0.0
    %3366 = vmatprep.subr.mxu0 0.0
    %3367 = vmatpush2.xpose.msra.mxu0 0.0
    %3368 = vmatprep.subr.mxu0 0.0
    %3369 = vmatpush2.xpose.msra.mxu0 0.0
    %3370 = vmatprep.subr.mxu0 0.0
    %3371 = vmatpush2.xpose.msra.mxu0 0.0
    %3372 = vmatprep.subr.mxu0 0.0
    %3373 = vmatpush2.xpose.msra.mxu0 0.0
    %3374 = vmatprep.subr.mxu0 0.0
    %3375 = vmatpush2.xpose.msra.mxu0 0.0
    %3376 = vmatprep.subr.mxu0 0.0
    %3377 = vmatpush2.xpose.msra.mxu0 0.0
    %3378 = vmatprep.subr.mxu0 0.0
    %3379 = vmatpush2.xpose.msra.mxu0 0.0
    %3380 = vmatprep.subr.mxu0 0.0
    %3381 = vmatpush2.xpose.msra.mxu0 0.0
    %3382 = vmatprep.subr.mxu0 0.0
    %3383 = vmatpush2.xpose.msra.mxu0 0.0
    %3384 = vmatprep.subr.mxu0 0.0
    %3385 = vmatpush2.xpose.msra.mxu0 0.0
    %3386 = vmatprep.subr.mxu0 0.0
    %3387 = vmatpush2.xpose.msra.mxu0 0.0
    %3388 = vmatprep.mubr.f32.mxu0 0.0
    %3389 = vmatmul.mubr.f32.gmra.mxu0 %v3320
    %v3390 = vpop.f32.mrf.mxu0
    %v3391 = vadd.f32 0.0, %v3390
    %v3392 = vpop.f32.mrf.mxu0
    %3393 = vdwg.mxu0
    %3394 = vrot.lane.b32.xlu0 %v2896, 96
    %v3395 = vpop.permute.xlu0 %3394
    %3396 = vrot.lane.b32.xlu0 %v2898, 96
    %v3397 = vpop.permute.xlu0 %3396
    %v3398 = vsel %vm478, %v3395, 0
    %v3400 = vsel %vm478, %v3397, 0
    %3402 = vmatprep.subr.mxu0 0.0
    %3403 = vmatpush1.xpose.msra.mxu0 0.0
    %3404 = vmatprep.subr.mxu0 0.0
    %3405 = vmatpush1.xpose.msra.mxu0 0.0
    %3406 = vmatprep.subr.mxu0 0.0
    %3407 = vmatpush1.xpose.msra.mxu0 0.0
    %3408 = vmatprep.subr.mxu0 0.0
    %3409 = vmatpush1.xpose.msra.mxu0 0.0
    %3410 = vmatprep.subr.mxu0 0.0
    %3411 = vmatpush1.xpose.msra.mxu0 0.0
    %3412 = vmatprep.subr.mxu0 0.0
    %3413 = vmatpush1.xpose.msra.mxu0 0.0
    %3414 = vmatprep.subr.mxu0 0.0
    %3415 = vmatpush1.xpose.msra.mxu0 0.0
    %3416 = vmatprep.subr.mxu0 0.0
    %3417 = vmatpush1.xpose.msra.mxu0 0.0
    %3418 = vmatprep.subr.mxu0 0.0
    %3419 = vmatpush1.xpose.msra.mxu0 0.0
    %3420 = vmatprep.subr.mxu0 0.0
    %3421 = vmatpush1.xpose.msra.mxu0 0.0
    %3422 = vmatprep.subr.mxu0 0.0
    %3423 = vmatpush1.xpose.msra.mxu0 0.0
    %3424 = vmatprep.subr.mxu0 0.0
    %3425 = vmatpush1.xpose.msra.mxu0 0.0
    %3426 = vmatprep.subr.mxu0 0.0
    %3427 = vmatpush1.xpose.msra.mxu0 0.0
    %3428 = vmatprep.subr.mxu0 0.0
    %3429 = vmatpush1.xpose.msra.mxu0 0.0
    %3430 = vmatprep.subr.mxu0 0.0
    %3431 = vmatpush1.xpose.msra.mxu0 0.0
    %3432 = vmatprep.subr.mxu0 0.0
    %3433 = vmatpush1.xpose.msra.mxu0 %v3400
    %3434 = vmatprep.subr.mxu0 0.0
    %3435 = vmatpush2.xpose.msra.mxu0 0.0
    %3436 = vmatprep.subr.mxu0 0.0
    %3437 = vmatpush2.xpose.msra.mxu0 0.0
    %3438 = vmatprep.subr.mxu0 0.0
    %3439 = vmatpush2.xpose.msra.mxu0 0.0
    %3440 = vmatprep.subr.mxu0 0.0
    %3441 = vmatpush2.xpose.msra.mxu0 0.0
    %3442 = vmatprep.subr.mxu0 0.0
    %3443 = vmatpush2.xpose.msra.mxu0 0.0
    %3444 = vmatprep.subr.mxu0 0.0
    %3445 = vmatpush2.xpose.msra.mxu0 0.0
    %3446 = vmatprep.subr.mxu0 0.0
    %3447 = vmatpush2.xpose.msra.mxu0 0.0
    %3448 = vmatprep.subr.mxu0 0.0
    %3449 = vmatpush2.xpose.msra.mxu0 0.0
    %3450 = vmatprep.subr.mxu0 0.0
    %3451 = vmatpush2.xpose.msra.mxu0 0.0
    %3452 = vmatprep.subr.mxu0 0.0
    %3453 = vmatpush2.xpose.msra.mxu0 0.0
    %3454 = vmatprep.subr.mxu0 0.0
    %3455 = vmatpush2.xpose.msra.mxu0 0.0
    %3456 = vmatprep.subr.mxu0 0.0
    %3457 = vmatpush2.xpose.msra.mxu0 0.0
    %3458 = vmatprep.subr.mxu0 0.0
    %3459 = vmatpush2.xpose.msra.mxu0 0.0
    %3460 = vmatprep.subr.mxu0 0.0
    %3461 = vmatpush2.xpose.msra.mxu0 0.0
    %3462 = vmatprep.subr.mxu0 0.0
    %3463 = vmatpush2.xpose.msra.mxu0 0.0
    %3464 = vmatprep.subr.mxu0 0.0
    %3465 = vmatpush2.xpose.msra.mxu0 0.0
    %3466 = vmatprep.mubr.f32.mxu0 0.0
    %3467 = vmatmul.mubr.f32.gmra.mxu0 %v3398
    %v3468 = vpop.f32.mrf.mxu0
    %v3469 = vadd.f32 0.0, %v3468
    %v3470 = vpop.f32.mrf.mxu0
    %3471 = vdwg.mxu0
    %v3472 = vmul.f32 %v3391, 0.17677669
    %v3473 = vmul.f32 %v3469, 0.17677669
    %v3474 = vadd.f32 %v3472, %v203
    %v3475 = vadd.f32 %v3473, %v203
    %v3476 = vsel %vm635, %v3474, -inf
    %3477 = vmax.xlane.f32.xlu0 %v3476
    %v3478 = vpop.xlane.xlu0 %3477
    %v3479 = vsel %vm635, %v3475, -inf
    %3480 = vmax.xlane.f32.xlu0 %v3479
    %v3481 = vpop.xlane.xlu0 %3480
    %v3482 = vsub.f32 %v3474, %v3478
    %v3483 = vsub.f32 %v3475, %v3481
    %v3484 = vmul.f32 %v3482, 1.442695
    %v3485 = vpow.pop %v3484
    %v3486 = vmul.f32 %v3483, 1.442695
    %v3487 = vpow.pop %v3486
    %v3488 = vsel %vm635, %v3485, 0.0
    %3489 = vadd.xlane.f32.xlu0 %v3488
    %v3490 = vpop.xlane.xlu0 %3489
    %v3491 = vsel %vm635, %v3487, 0.0
    %3492 = vadd.xlane.f32.xlu0 %v3491
    %v3493 = vpop.xlane.xlu0 %3492
    %v3494 = vrcp.pop %v3490
    %v3495 = vrcp.pop %v3493
    %v3496 = vmul.f32 %v3485, %v3494
    %v3497 = vmul.f32 %v3487, %v3495
    %3499 = vrot.lane.b32.xlu0 %v2967, 96
    %v3500 = vpop.permute.xlu0 %3499
    %v3503 = vsel %vm635, %v3496, 0
    %3505 = vmatprep.subr.mxu0 0.0
    %3506 = vmatpush1.msra.mxu0 0.0
    %3507 = vmatprep.subr.mxu0 0.0
    %3508 = vmatpush1.msra.mxu0 0.0
    %3509 = vmatprep.subr.mxu0 0.0
    %3510 = vmatpush1.msra.mxu0 0.0
    %3511 = vmatprep.subr.mxu0 0.0
    %3512 = vmatpush1.msra.mxu0 0.0
    %3513 = vmatprep.subr.mxu0 0.0
    %3514 = vmatpush1.msra.mxu0 0.0
    %3515 = vmatprep.subr.mxu0 0.0
    %3516 = vmatpush1.msra.mxu0 0.0
    %3517 = vmatprep.subr.mxu0 0.0
    %3518 = vmatpush1.msra.mxu0 0.0
    %3519 = vmatprep.subr.mxu0 0.0
    %3520 = vmatpush1.msra.mxu0 0.0
    %3521 = vmatprep.subr.mxu0 0.0
    %3522 = vmatpush1.msra.mxu0 0.0
    %3523 = vmatprep.subr.mxu0 0.0
    %3524 = vmatpush1.msra.mxu0 0.0
    %3525 = vmatprep.subr.mxu0 0.0
    %3526 = vmatpush1.msra.mxu0 0.0
    %3527 = vmatprep.subr.mxu0 0.0
    %3528 = vmatpush1.msra.mxu0 0.0
    %3529 = vmatprep.subr.mxu0 0.0
    %3530 = vmatpush1.msra.mxu0 0.0
    %3531 = vmatprep.subr.mxu0 0.0
    %3532 = vmatpush1.msra.mxu0 0.0
    %3533 = vmatprep.subr.mxu0 0.0
    %3534 = vmatpush1.msra.mxu0 0.0
    %3535 = vmatprep.subr.mxu0 0.0
    %3536 = vmatpush1.msra.mxu0 %v3500
    %3537 = vmatprep.subr.mxu0 0.0
    %3538 = vmatpush2.msra.mxu0 0.0
    %3539 = vmatprep.subr.mxu0 0.0
    %3540 = vmatpush2.msra.mxu0 0.0
    %3541 = vmatprep.subr.mxu0 0.0
    %3542 = vmatpush2.msra.mxu0 0.0
    %3543 = vmatprep.subr.mxu0 0.0
    %3544 = vmatpush2.msra.mxu0 0.0
    %3545 = vmatprep.subr.mxu0 0.0
    %3546 = vmatpush2.msra.mxu0 0.0
    %3547 = vmatprep.subr.mxu0 0.0
    %3548 = vmatpush2.msra.mxu0 0.0
    %3549 = vmatprep.subr.mxu0 0.0
    %3550 = vmatpush2.msra.mxu0 0.0
    %3551 = vmatprep.subr.mxu0 0.0
    %3552 = vmatpush2.msra.mxu0 0.0
    %3553 = vmatprep.subr.mxu0 0.0
    %3554 = vmatpush2.msra.mxu0 0.0
    %3555 = vmatprep.subr.mxu0 0.0
    %3556 = vmatpush2.msra.mxu0 0.0
    %3557 = vmatprep.subr.mxu0 0.0
    %3558 = vmatpush2.msra.mxu0 0.0
    %3559 = vmatprep.subr.mxu0 0.0
    %3560 = vmatpush2.msra.mxu0 0.0
    %3561 = vmatprep.subr.mxu0 0.0
    %3562 = vmatpush2.msra.mxu0 0.0
    %3563 = vmatprep.subr.mxu0 0.0
    %3564 = vmatpush2.msra.mxu0 0.0
    %3565 = vmatprep.subr.mxu0 0.0
    %3566 = vmatpush2.msra.mxu0 0.0
    %3567 = vmatprep.subr.mxu0 0.0
    %3568 = vmatpush2.msra.mxu0 0.0
    %3569 = vmatprep.mubr.f32.mxu0 0.0
    %3570 = vmatmul.mubr.f32.gmra.mxu0 %v3503
    %v3571 = vpop.f32.mrf.mxu0
    %v3572 = vadd.f32 0.0, %v3571
    %v3573 = vpop.f32.mrf.mxu0
    %3574 = vdwg.mxu0
    %3576 = vrot.lane.b32.xlu0 %v2972, 96
    %v3577 = vpop.permute.xlu0 %3576
    %v3580 = vsel %vm635, %v3497, 0
    %3582 = vmatprep.subr.mxu0 0.0
    %3583 = vmatpush1.msra.mxu0 0.0
    %3584 = vmatprep.subr.mxu0 0.0
    %3585 = vmatpush1.msra.mxu0 0.0
    %3586 = vmatprep.subr.mxu0 0.0
    %3587 = vmatpush1.msra.mxu0 0.0
    %3588 = vmatprep.subr.mxu0 0.0
    %3589 = vmatpush1.msra.mxu0 0.0
    %3590 = vmatprep.subr.mxu0 0.0
    %3591 = vmatpush1.msra.mxu0 0.0
    %3592 = vmatprep.subr.mxu0 0.0
    %3593 = vmatpush1.msra.mxu0 0.0
    %3594 = vmatprep.subr.mxu0 0.0
    %3595 = vmatpush1.msra.mxu0 0.0
    %3596 = vmatprep.subr.mxu0 0.0
    %3597 = vmatpush1.msra.mxu0 0.0
    %3598 = vmatprep.subr.mxu0 0.0
    %3599 = vmatpush1.msra.mxu0 0.0
    %3600 = vmatprep.subr.mxu0 0.0
    %3601 = vmatpush1.msra.mxu0 0.0
    %3602 = vmatprep.subr.mxu0 0.0
    %3603 = vmatpush1.msra.mxu0 0.0
    %3604 = vmatprep.subr.mxu0 0.0
    %3605 = vmatpush1.msra.mxu0 0.0
    %3606 = vmatprep.subr.mxu0 0.0
    %3607 = vmatpush1.msra.mxu0 0.0
    %3608 = vmatprep.subr.mxu0 0.0
    %3609 = vmatpush1.msra.mxu0 0.0
    %3610 = vmatprep.subr.mxu0 0.0
    %3611 = vmatpush1.msra.mxu0 0.0
    %3612 = vmatprep.subr.mxu0 0.0
    %3613 = vmatpush1.msra.mxu0 %v3577
    %3614 = vmatprep.subr.mxu0 0.0
    %3615 = vmatpush2.msra.mxu0 0.0
    %3616 = vmatprep.subr.mxu0 0.0
    %3617 = vmatpush2.msra.mxu0 0.0
    %3618 = vmatprep.subr.mxu0 0.0
    %3619 = vmatpush2.msra.mxu0 0.0
    %3620 = vmatprep.subr.mxu0 0.0
    %3621 = vmatpush2.msra.mxu0 0.0
    %3622 = vmatprep.subr.mxu0 0.0
    %3623 = vmatpush2.msra.mxu0 0.0
    %3624 = vmatprep.subr.mxu0 0.0
    %3625 = vmatpush2.msra.mxu0 0.0
    %3626 = vmatprep.subr.mxu0 0.0
    %3627 = vmatpush2.msra.mxu0 0.0
    %3628 = vmatprep.subr.mxu0 0.0
    %3629 = vmatpush2.msra.mxu0 0.0
    %3630 = vmatprep.subr.mxu0 0.0
    %3631 = vmatpush2.msra.mxu0 0.0
    %3632 = vmatprep.subr.mxu0 0.0
    %3633 = vmatpush2.msra.mxu0 0.0
    %3634 = vmatprep.subr.mxu0 0.0
    %3635 = vmatpush2.msra.mxu0 0.0
    %3636 = vmatprep.subr.mxu0 0.0
    %3637 = vmatpush2.msra.mxu0 0.0
    %3638 = vmatprep.subr.mxu0 0.0
    %3639 = vmatpush2.msra.mxu0 0.0
    %3640 = vmatprep.subr.mxu0 0.0
    %3641 = vmatpush2.msra.mxu0 0.0
    %3642 = vmatprep.subr.mxu0 0.0
    %3643 = vmatpush2.msra.mxu0 0.0
    %3644 = vmatprep.subr.mxu0 0.0
    %3645 = vmatpush2.msra.mxu0 0.0
    %3646 = vmatprep.mubr.f32.mxu0 0.0
    %3647 = vmatmul.mubr.f32.gmra.mxu0 %v3580
    %v3648 = vpop.f32.mrf.mxu0
    %v3649 = vadd.f32 0.0, %v3648
    %v3650 = vpop.f32.mrf.mxu0
    %3651 = vdwg.mxu0
    %v3653 = vsel %vm478, %v3572, 0
    %v3656 = vsel %vm478, %v3649, 0
    %3658 = vmatprep.subr.mxu0 0.0
    %3659 = vmatpush1.msra.mxu0 0.0
    %3660 = vmatprep.subr.mxu0 0.0
    %3661 = vmatpush1.msra.mxu0 0.0
    %3662 = vmatprep.subr.mxu0 0.0
    %3663 = vmatpush1.msra.mxu0 0.0
    %3664 = vmatprep.subr.mxu0 0.0
    %3665 = vmatpush1.msra.mxu0 0.0
    %3666 = vmatprep.subr.mxu0 0.0
    %3667 = vmatpush1.msra.mxu0 0.0
    %3668 = vmatprep.subr.mxu0 0.0
    %3669 = vmatpush1.msra.mxu0 0.0
    %3670 = vmatprep.subr.mxu0 0.0
    %3671 = vmatpush1.msra.mxu0 0.0
    %3672 = vmatprep.subr.mxu0 0.0
    %3673 = vmatpush1.msra.mxu0 0.0
    %3674 = vmatprep.subr.mxu0 0.0
    %3675 = vmatpush1.msra.mxu0 0.0
    %3676 = vmatprep.subr.mxu0 0.0
    %3677 = vmatpush1.msra.mxu0 0.0
    %3678 = vmatprep.subr.mxu0 0.0
    %3679 = vmatpush1.msra.mxu0 0.0
    %3680 = vmatprep.subr.mxu0 0.0
    %3681 = vmatpush1.msra.mxu0 0.0
    %3682 = vmatprep.subr.mxu0 0.0
    %3683 = vmatpush1.msra.mxu0 %v2983
    %3684 = vmatprep.subr.mxu0 0.0
    %3685 = vmatpush1.msra.mxu0 %v2982
    %3686 = vmatprep.subr.mxu0 0.0
    %3687 = vmatpush1.msra.mxu0 %v2981
    %3688 = vmatprep.subr.mxu0 0.0
    %3689 = vmatpush1.msra.mxu0 %v2980
    %3690 = vmatprep.subr.mxu0 0.0
    %3691 = vmatpush2.msra.mxu0 0.0
    %3692 = vmatprep.subr.mxu0 0.0
    %3693 = vmatpush2.msra.mxu0 0.0
    %3694 = vmatprep.subr.mxu0 0.0
    %3695 = vmatpush2.msra.mxu0 0.0
    %3696 = vmatprep.subr.mxu0 0.0
    %3697 = vmatpush2.msra.mxu0 0.0
    %3698 = vmatprep.subr.mxu0 0.0
    %3699 = vmatpush2.msra.mxu0 0.0
    %3700 = vmatprep.subr.mxu0 0.0
    %3701 = vmatpush2.msra.mxu0 0.0
    %3702 = vmatprep.subr.mxu0 0.0
    %3703 = vmatpush2.msra.mxu0 0.0
    %3704 = vmatprep.subr.mxu0 0.0
    %3705 = vmatpush2.msra.mxu0 0.0
    %3706 = vmatprep.subr.mxu0 0.0
    %3707 = vmatpush2.msra.mxu0 0.0
    %3708 = vmatprep.subr.mxu0 0.0
    %3709 = vmatpush2.msra.mxu0 0.0
    %3710 = vmatprep.subr.mxu0 0.0
    %3711 = vmatpush2.msra.mxu0 0.0
    %3712 = vmatprep.subr.mxu0 0.0
    %3713 = vmatpush2.msra.mxu0 0.0
    %3714 = vmatprep.subr.mxu0 0.0
    %3715 = vmatpush2.msra.mxu0 0.0
    %3716 = vmatprep.subr.mxu0 0.0
    %3717 = vmatpush2.msra.mxu0 0.0
    %3718 = vmatprep.subr.mxu0 0.0
    %3719 = vmatpush2.msra.mxu0 0.0
    %3720 = vmatprep.subr.mxu0 0.0
    %3721 = vmatpush2.msra.mxu0 0.0
    %3722 = vmatprep.mubr.f32.mxu0 0.0
    %3723 = vmatmul.mubr.f32.gmra.mxu0 %v3653
    %v3724 = vpop.f32.mrf.mxu0
    %v3725 = vadd.f32 0.0, %v3724
    %v3726 = vpop.f32.mrf.mxu0
    %3727 = vmatprep.mubr.f32.mxu0 0.0
    %3728 = vmatmul.mubr.f32.gmra.mxu0 %v3656
    %v3729 = vpop.f32.mrf.mxu0
    %v3730 = vadd.f32 0.0, %v3729
    %v3731 = vpop.f32.mrf.mxu0
    %3732 = vdwg.mxu0
    %v3734 = vsel %vm478, %v3240, 0
    %v3737 = vsel %vm478, %v3313, 0
    %3739 = vmatprep.subr.mxu0 0.0
    %3740 = vmatpush1.msra.mxu0 0.0
    %3741 = vmatprep.subr.mxu0 0.0
    %3742 = vmatpush1.msra.mxu0 0.0
    %3743 = vmatprep.subr.mxu0 0.0
    %3744 = vmatpush1.msra.mxu0 0.0
    %3745 = vmatprep.subr.mxu0 0.0
    %3746 = vmatpush1.msra.mxu0 0.0
    %3747 = vmatprep.subr.mxu0 0.0
    %3748 = vmatpush1.msra.mxu0 0.0
    %3749 = vmatprep.subr.mxu0 0.0
    %3750 = vmatpush1.msra.mxu0 0.0
    %3751 = vmatprep.subr.mxu0 0.0
    %3752 = vmatpush1.msra.mxu0 0.0
    %3753 = vmatprep.subr.mxu0 0.0
    %3754 = vmatpush1.msra.mxu0 0.0
    %3755 = vmatprep.subr.mxu0 0.0
    %3756 = vmatpush1.msra.mxu0 0.0
    %3757 = vmatprep.subr.mxu0 0.0
    %3758 = vmatpush1.msra.mxu0 0.0
    %3759 = vmatprep.subr.mxu0 0.0
    %3760 = vmatpush1.msra.mxu0 0.0
    %3761 = vmatprep.subr.mxu0 0.0
    %3762 = vmatpush1.msra.mxu0 0.0
    %3763 = vmatprep.subr.mxu0 0.0
    %3764 = vmatpush1.msra.mxu0 %v2979
    %3765 = vmatprep.subr.mxu0 0.0
    %3766 = vmatpush1.msra.mxu0 %v2978
    %3767 = vmatprep.subr.mxu0 0.0
    %3768 = vmatpush1.msra.mxu0 %v2977
    %3769 = vmatprep.subr.mxu0 0.0
    %3770 = vmatpush1.msra.mxu0 %v2976
    %3771 = vmatprep.subr.mxu0 0.0
    %3772 = vmatpush2.msra.mxu0 0.0
    %3773 = vmatprep.subr.mxu0 0.0
    %3774 = vmatpush2.msra.mxu0 0.0
    %3775 = vmatprep.subr.mxu0 0.0
    %3776 = vmatpush2.msra.mxu0 0.0
    %3777 = vmatprep.subr.mxu0 0.0
    %3778 = vmatpush2.msra.mxu0 0.0
    %3779 = vmatprep.subr.mxu0 0.0
    %3780 = vmatpush2.msra.mxu0 0.0
    %3781 = vmatprep.subr.mxu0 0.0
    %3782 = vmatpush2.msra.mxu0 0.0
    %3783 = vmatprep.subr.mxu0 0.0
    %3784 = vmatpush2.msra.mxu0 0.0
    %3785 = vmatprep.subr.mxu0 0.0
    %3786 = vmatpush2.msra.mxu0 0.0
    %3787 = vmatprep.subr.mxu0 0.0
    %3788 = vmatpush2.msra.mxu0 0.0
    %3789 = vmatprep.subr.mxu0 0.0
    %3790 = vmatpush2.msra.mxu0 0.0
    %3791 = vmatprep.subr.mxu0 0.0
    %3792 = vmatpush2.msra.mxu0 0.0
    %3793 = vmatprep.subr.mxu0 0.0
    %3794 = vmatpush2.msra.mxu0 0.0
    %3795 = vmatprep.subr.mxu0 0.0
    %3796 = vmatpush2.msra.mxu0 0.0
    %3797 = vmatprep.subr.mxu0 0.0
    %3798 = vmatpush2.msra.mxu0 0.0
    %3799 = vmatprep.subr.mxu0 0.0
    %3800 = vmatpush2.msra.mxu0 0.0
    %3801 = vmatprep.subr.mxu0 0.0
    %3802 = vmatpush2.msra.mxu0 0.0
    %3803 = vmatprep.mubr.f32.mxu0 0.0
    %3804 = vmatmul.mubr.f32.gmra.mxu0 %v3734
    %v3805 = vpop.f32.mrf.mxu0
    %v3806 = vadd.f32 %v3725, %v3805
    %v3807 = vpop.f32.mrf.mxu0
    %3808 = vmatprep.mubr.f32.mxu0 0.0
    %3809 = vmatmul.mubr.f32.gmra.mxu0 %v3737
    %v3810 = vpop.f32.mrf.mxu0
    %v3811 = vadd.f32 %v3730, %v3810
    %v3812 = vpop.f32.mrf.mxu0
    %3813 = vdwg.mxu0
    %3814 = vrot.lane.b32.xlu0 %v2890, 64
    %v3815 = vpop.permute.xlu0 %3814
    %3816 = vrot.lane.b32.xlu0 %v2892, 64
    %v3817 = vpop.permute.xlu0 %3816
    %v3818 = vsel %vm478, %v3815, 0
    %v3820 = vsel %vm478, %v3817, 0
    %3822 = vmatprep.subr.mxu0 0.0
    %3823 = vmatpush1.xpose.msra.mxu0 0.0
    %3824 = vmatprep.subr.mxu0 0.0
    %3825 = vmatpush1.xpose.msra.mxu0 0.0
    %3826 = vmatprep.subr.mxu0 0.0
    %3827 = vmatpush1.xpose.msra.mxu0 0.0
    %3828 = vmatprep.subr.mxu0 0.0
    %3829 = vmatpush1.xpose.msra.mxu0 0.0
    %3830 = vmatprep.subr.mxu0 0.0
    %3831 = vmatpush1.xpose.msra.mxu0 0.0
    %3832 = vmatprep.subr.mxu0 0.0
    %3833 = vmatpush1.xpose.msra.mxu0 0.0
    %3834 = vmatprep.subr.mxu0 0.0
    %3835 = vmatpush1.xpose.msra.mxu0 0.0
    %3836 = vmatprep.subr.mxu0 0.0
    %3837 = vmatpush1.xpose.msra.mxu0 0.0
    %3838 = vmatprep.subr.mxu0 0.0
    %3839 = vmatpush1.xpose.msra.mxu0 0.0
    %3840 = vmatprep.subr.mxu0 0.0
    %3841 = vmatpush1.xpose.msra.mxu0 0.0
    %3842 = vmatprep.subr.mxu0 0.0
    %3843 = vmatpush1.xpose.msra.mxu0 0.0
    %3844 = vmatprep.subr.mxu0 0.0
    %3845 = vmatpush1.xpose.msra.mxu0 0.0
    %3846 = vmatprep.subr.mxu0 0.0
    %3847 = vmatpush1.xpose.msra.mxu0 0.0
    %3848 = vmatprep.subr.mxu0 0.0
    %3849 = vmatpush1.xpose.msra.mxu0 0.0
    %3850 = vmatprep.subr.mxu0 0.0
    %3851 = vmatpush1.xpose.msra.mxu0 0.0
    %3852 = vmatprep.subr.mxu0 0.0
    %3853 = vmatpush1.xpose.msra.mxu0 %v3820
    %3854 = vmatprep.subr.mxu0 0.0
    %3855 = vmatpush2.xpose.msra.mxu0 0.0
    %3856 = vmatprep.subr.mxu0 0.0
    %3857 = vmatpush2.xpose.msra.mxu0 0.0
    %3858 = vmatprep.subr.mxu0 0.0
    %3859 = vmatpush2.xpose.msra.mxu0 0.0
    %3860 = vmatprep.subr.mxu0 0.0
    %3861 = vmatpush2.xpose.msra.mxu0 0.0
    %3862 = vmatprep.subr.mxu0 0.0
    %3863 = vmatpush2.xpose.msra.mxu0 0.0
    %3864 = vmatprep.subr.mxu0 0.0
    %3865 = vmatpush2.xpose.msra.mxu0 0.0
    %3866 = vmatprep.subr.mxu0 0.0
    %3867 = vmatpush2.xpose.msra.mxu0 0.0
    %3868 = vmatprep.subr.mxu0 0.0
    %3869 = vmatpush2.xpose.msra.mxu0 0.0
    %3870 = vmatprep.subr.mxu0 0.0
    %3871 = vmatpush2.xpose.msra.mxu0 0.0
    %3872 = vmatprep.subr.mxu0 0.0
    %3873 = vmatpush2.xpose.msra.mxu0 0.0
    %3874 = vmatprep.subr.mxu0 0.0
    %3875 = vmatpush2.xpose.msra.mxu0 0.0
    %3876 = vmatprep.subr.mxu0 0.0
    %3877 = vmatpush2.xpose.msra.mxu0 0.0
    %3878 = vmatprep.subr.mxu0 0.0
    %3879 = vmatpush2.xpose.msra.mxu0 0.0
    %3880 = vmatprep.subr.mxu0 0.0
    %3881 = vmatpush2.xpose.msra.mxu0 0.0
    %3882 = vmatprep.subr.mxu0 0.0
    %3883 = vmatpush2.xpose.msra.mxu0 0.0
    %3884 = vmatprep.subr.mxu0 0.0
    %3885 = vmatpush2.xpose.msra.mxu0 0.0
    %3886 = vmatprep.mubr.f32.mxu0 0.0
    %3887 = vmatmul.mubr.f32.gmra.mxu0 %v3818
    %v3888 = vpop.f32.mrf.mxu0
    %v3889 = vadd.f32 0.0, %v3888
    %v3890 = vpop.f32.mrf.mxu0
    %3891 = vdwg.mxu0
    %3892 = vrot.lane.b32.xlu0 %v2896, 64
    %v3893 = vpop.permute.xlu0 %3892
    %3894 = vrot.lane.b32.xlu0 %v2898, 64
    %v3895 = vpop.permute.xlu0 %3894
    %v3896 = vsel %vm478, %v3893, 0
    %v3898 = vsel %vm478, %v3895, 0
    %3900 = vmatprep.subr.mxu0 0.0
    %3901 = vmatpush1.xpose.msra.mxu0 0.0
    %3902 = vmatprep.subr.mxu0 0.0
    %3903 = vmatpush1.xpose.msra.mxu0 0.0
    %3904 = vmatprep.subr.mxu0 0.0
    %3905 = vmatpush1.xpose.msra.mxu0 0.0
    %3906 = vmatprep.subr.mxu0 0.0
    %3907 = vmatpush1.xpose.msra.mxu0 0.0
    %3908 = vmatprep.subr.mxu0 0.0
    %3909 = vmatpush1.xpose.msra.mxu0 0.0
    %3910 = vmatprep.subr.mxu0 0.0
    %3911 = vmatpush1.xpose.msra.mxu0 0.0
    %3912 = vmatprep.subr.mxu0 0.0
    %3913 = vmatpush1.xpose.msra.mxu0 0.0
    %3914 = vmatprep.subr.mxu0 0.0
    %3915 = vmatpush1.xpose.msra.mxu0 0.0
    %3916 = vmatprep.subr.mxu0 0.0
    %3917 = vmatpush1.xpose.msra.mxu0 0.0
    %3918 = vmatprep.subr.mxu0 0.0
    %3919 = vmatpush1.xpose.msra.mxu0 0.0
    %3920 = vmatprep.subr.mxu0 0.0
    %3921 = vmatpush1.xpose.msra.mxu0 0.0
    %3922 = vmatprep.subr.mxu0 0.0
    %3923 = vmatpush1.xpose.msra.mxu0 0.0
    %3924 = vmatprep.subr.mxu0 0.0
    %3925 = vmatpush1.xpose.msra.mxu0 0.0
    %3926 = vmatprep.subr.mxu0 0.0
    %3927 = vmatpush1.xpose.msra.mxu0 0.0
    %3928 = vmatprep.subr.mxu0 0.0
    %3929 = vmatpush1.xpose.msra.mxu0 0.0
    %3930 = vmatprep.subr.mxu0 0.0
    %3931 = vmatpush1.xpose.msra.mxu0 %v3898
    %3932 = vmatprep.subr.mxu0 0.0
    %3933 = vmatpush2.xpose.msra.mxu0 0.0
    %3934 = vmatprep.subr.mxu0 0.0
    %3935 = vmatpush2.xpose.msra.mxu0 0.0
    %3936 = vmatprep.subr.mxu0 0.0
    %3937 = vmatpush2.xpose.msra.mxu0 0.0
    %3938 = vmatprep.subr.mxu0 0.0
    %3939 = vmatpush2.xpose.msra.mxu0 0.0
    %3940 = vmatprep.subr.mxu0 0.0
    %3941 = vmatpush2.xpose.msra.mxu0 0.0
    %3942 = vmatprep.subr.mxu0 0.0
    %3943 = vmatpush2.xpose.msra.mxu0 0.0
    %3944 = vmatprep.subr.mxu0 0.0
    %3945 = vmatpush2.xpose.msra.mxu0 0.0
    %3946 = vmatprep.subr.mxu0 0.0
    %3947 = vmatpush2.xpose.msra.mxu0 0.0
    %3948 = vmatprep.subr.mxu0 0.0
    %3949 = vmatpush2.xpose.msra.mxu0 0.0
    %3950 = vmatprep.subr.mxu0 0.0
    %3951 = vmatpush2.xpose.msra.mxu0 0.0
    %3952 = vmatprep.subr.mxu0 0.0
    %3953 = vmatpush2.xpose.msra.mxu0 0.0
    %3954 = vmatprep.subr.mxu0 0.0
    %3955 = vmatpush2.xpose.msra.mxu0 0.0
    %3956 = vmatprep.subr.mxu0 0.0
    %3957 = vmatpush2.xpose.msra.mxu0 0.0
    %3958 = vmatprep.subr.mxu0 0.0
    %3959 = vmatpush2.xpose.msra.mxu0 0.0
    %3960 = vmatprep.subr.mxu0 0.0
    %3961 = vmatpush2.xpose.msra.mxu0 0.0
    %3962 = vmatprep.subr.mxu0 0.0
    %3963 = vmatpush2.xpose.msra.mxu0 0.0
    %3964 = vmatprep.mubr.f32.mxu0 0.0
    %3965 = vmatmul.mubr.f32.gmra.mxu0 %v3896
    %v3966 = vpop.f32.mrf.mxu0
    %v3967 = vadd.f32 0.0, %v3966
    %v3968 = vpop.f32.mrf.mxu0
    %3969 = vdwg.mxu0
    %v3970 = vmul.f32 %v3889, 0.17677669
    %v3971 = vmul.f32 %v3967, 0.17677669
    %v3972 = vadd.f32 %v3970, %v203
    %v3973 = vadd.f32 %v3971, %v203
    %v3974 = vsel %vm635, %v3972, -inf
    %3975 = vmax.xlane.f32.xlu0 %v3974
    %v3976 = vpop.xlane.xlu0 %3975
    %v3977 = vsel %vm635, %v3973, -inf
    %3978 = vmax.xlane.f32.xlu0 %v3977
    %v3979 = vpop.xlane.xlu0 %3978
    %v3980 = vsub.f32 %v3972, %v3976
    %v3981 = vsub.f32 %v3973, %v3979
    %v3982 = vmul.f32 %v3980, 1.442695
    %v3983 = vpow.pop %v3982
    %v3984 = vmul.f32 %v3981, 1.442695
    %v3985 = vpow.pop %v3984
    %v3986 = vsel %vm635, %v3983, 0.0
    %3987 = vadd.xlane.f32.xlu0 %v3986
    %v3988 = vpop.xlane.xlu0 %3987
    %v3989 = vsel %vm635, %v3985, 0.0
    %3990 = vadd.xlane.f32.xlu0 %v3989
    %v3991 = vpop.xlane.xlu0 %3990
    %v3992 = vrcp.pop %v3988
    %v3993 = vrcp.pop %v3991
    %v3994 = vmul.f32 %v3983, %v3992
    %v3995 = vmul.f32 %v3985, %v3993
    %3996 = vrot.lane.b32.xlu0 %v2967, 64
    %v3997 = vpop.permute.xlu0 %3996
    %v4000 = vsel %vm635, %v3994, 0
    %4002 = vmatprep.subr.mxu0 0.0
    %4003 = vmatpush1.msra.mxu0 0.0
    %4004 = vmatprep.subr.mxu0 0.0
    %4005 = vmatpush1.msra.mxu0 0.0
    %4006 = vmatprep.subr.mxu0 0.0
    %4007 = vmatpush1.msra.mxu0 0.0
    %4008 = vmatprep.subr.mxu0 0.0
    %4009 = vmatpush1.msra.mxu0 0.0
    %4010 = vmatprep.subr.mxu0 0.0
    %4011 = vmatpush1.msra.mxu0 0.0
    %4012 = vmatprep.subr.mxu0 0.0
    %4013 = vmatpush1.msra.mxu0 0.0
    %4014 = vmatprep.subr.mxu0 0.0
    %4015 = vmatpush1.msra.mxu0 0.0
    %4016 = vmatprep.subr.mxu0 0.0
    %4017 = vmatpush1.msra.mxu0 0.0
    %4018 = vmatprep.subr.mxu0 0.0
    %4019 = vmatpush1.msra.mxu0 0.0
    %4020 = vmatprep.subr.mxu0 0.0
    %4021 = vmatpush1.msra.mxu0 0.0
    %4022 = vmatprep.subr.mxu0 0.0
    %4023 = vmatpush1.msra.mxu0 0.0
    %4024 = vmatprep.subr.mxu0 0.0
    %4025 = vmatpush1.msra.mxu0 0.0
    %4026 = vmatprep.subr.mxu0 0.0
    %4027 = vmatpush1.msra.mxu0 0.0
    %4028 = vmatprep.subr.mxu0 0.0
    %4029 = vmatpush1.msra.mxu0 0.0
    %4030 = vmatprep.subr.mxu0 0.0
    %4031 = vmatpush1.msra.mxu0 0.0
    %4032 = vmatprep.subr.mxu0 0.0
    %4033 = vmatpush1.msra.mxu0 %v3997
    %4034 = vmatprep.subr.mxu0 0.0
    %4035 = vmatpush2.msra.mxu0 0.0
    %4036 = vmatprep.subr.mxu0 0.0
    %4037 = vmatpush2.msra.mxu0 0.0
    %4038 = vmatprep.subr.mxu0 0.0
    %4039 = vmatpush2.msra.mxu0 0.0
    %4040 = vmatprep.subr.mxu0 0.0
    %4041 = vmatpush2.msra.mxu0 0.0
    %4042 = vmatprep.subr.mxu0 0.0
    %4043 = vmatpush2.msra.mxu0 0.0
    %4044 = vmatprep.subr.mxu0 0.0
    %4045 = vmatpush2.msra.mxu0 0.0
    %4046 = vmatprep.subr.mxu0 0.0
    %4047 = vmatpush2.msra.mxu0 0.0
    %4048 = vmatprep.subr.mxu0 0.0
    %4049 = vmatpush2.msra.mxu0 0.0
    %4050 = vmatprep.subr.mxu0 0.0
    %4051 = vmatpush2.msra.mxu0 0.0
    %4052 = vmatprep.subr.mxu0 0.0
    %4053 = vmatpush2.msra.mxu0 0.0
    %4054 = vmatprep.subr.mxu0 0.0
    %4055 = vmatpush2.msra.mxu0 0.0
    %4056 = vmatprep.subr.mxu0 0.0
    %4057 = vmatpush2.msra.mxu0 0.0
    %4058 = vmatprep.subr.mxu0 0.0
    %4059 = vmatpush2.msra.mxu0 0.0
    %4060 = vmatprep.subr.mxu0 0.0
    %4061 = vmatpush2.msra.mxu0 0.0
    %4062 = vmatprep.subr.mxu0 0.0
    %4063 = vmatpush2.msra.mxu0 0.0
    %4064 = vmatprep.subr.mxu0 0.0
    %4065 = vmatpush2.msra.mxu0 0.0
    %4066 = vmatprep.mubr.f32.mxu0 0.0
    %4067 = vmatmul.mubr.f32.gmra.mxu0 %v4000
    %v4068 = vpop.f32.mrf.mxu0
    %v4069 = vadd.f32 0.0, %v4068
    %v4070 = vpop.f32.mrf.mxu0
    %4071 = vdwg.mxu0
    %4072 = vrot.lane.b32.xlu0 %v2972, 64
    %v4073 = vpop.permute.xlu0 %4072
    %v4076 = vsel %vm635, %v3995, 0
    %4078 = vmatprep.subr.mxu0 0.0
    %4079 = vmatpush1.msra.mxu0 0.0
    %4080 = vmatprep.subr.mxu0 0.0
    %4081 = vmatpush1.msra.mxu0 0.0
    %4082 = vmatprep.subr.mxu0 0.0
    %4083 = vmatpush1.msra.mxu0 0.0
    %4084 = vmatprep.subr.mxu0 0.0
    %4085 = vmatpush1.msra.mxu0 0.0
    %4086 = vmatprep.subr.mxu0 0.0
    %4087 = vmatpush1.msra.mxu0 0.0
    %4088 = vmatprep.subr.mxu0 0.0
    %4089 = vmatpush1.msra.mxu0 0.0
    %4090 = vmatprep.subr.mxu0 0.0
    %4091 = vmatpush1.msra.mxu0 0.0
    %4092 = vmatprep.subr.mxu0 0.0
    %4093 = vmatpush1.msra.mxu0 0.0
    %4094 = vmatprep.subr.mxu0 0.0
    %4095 = vmatpush1.msra.mxu0 0.0
    %4096 = vmatprep.subr.mxu0 0.0
    %4097 = vmatpush1.msra.mxu0 0.0
    %4098 = vmatprep.subr.mxu0 0.0
    %4099 = vmatpush1.msra.mxu0 0.0
    %4100 = vmatprep.subr.mxu0 0.0
    %4101 = vmatpush1.msra.mxu0 0.0
    %4102 = vmatprep.subr.mxu0 0.0
    %4103 = vmatpush1.msra.mxu0 0.0
    %4104 = vmatprep.subr.mxu0 0.0
    %4105 = vmatpush1.msra.mxu0 0.0
    %4106 = vmatprep.subr.mxu0 0.0
    %4107 = vmatpush1.msra.mxu0 0.0
    %4108 = vmatprep.subr.mxu0 0.0
    %4109 = vmatpush1.msra.mxu0 %v4073
    %4110 = vmatprep.subr.mxu0 0.0
    %4111 = vmatpush2.msra.mxu0 0.0
    %4112 = vmatprep.subr.mxu0 0.0
    %4113 = vmatpush2.msra.mxu0 0.0
    %4114 = vmatprep.subr.mxu0 0.0
    %4115 = vmatpush2.msra.mxu0 0.0
    %4116 = vmatprep.subr.mxu0 0.0
    %4117 = vmatpush2.msra.mxu0 0.0
    %4118 = vmatprep.subr.mxu0 0.0
    %4119 = vmatpush2.msra.mxu0 0.0
    %4120 = vmatprep.subr.mxu0 0.0
    %4121 = vmatpush2.msra.mxu0 0.0
    %4122 = vmatprep.subr.mxu0 0.0
    %4123 = vmatpush2.msra.mxu0 0.0
    %4124 = vmatprep.subr.mxu0 0.0
    %4125 = vmatpush2.msra.mxu0 0.0
    %4126 = vmatprep.subr.mxu0 0.0
    %4127 = vmatpush2.msra.mxu0 0.0
    %4128 = vmatprep.subr.mxu0 0.0
    %4129 = vmatpush2.msra.mxu0 0.0
    %4130 = vmatprep.subr.mxu0 0.0
    %4131 = vmatpush2.msra.mxu0 0.0
    %4132 = vmatprep.subr.mxu0 0.0
    %4133 = vmatpush2.msra.mxu0 0.0
    %4134 = vmatprep.subr.mxu0 0.0
    %4135 = vmatpush2.msra.mxu0 0.0
    %4136 = vmatprep.subr.mxu0 0.0
    %4137 = vmatpush2.msra.mxu0 0.0
    %4138 = vmatprep.subr.mxu0 0.0
    %4139 = vmatpush2.msra.mxu0 0.0
    %4140 = vmatprep.subr.mxu0 0.0
    %4141 = vmatpush2.msra.mxu0 0.0
    %4142 = vmatprep.mubr.f32.mxu0 0.0
    %4143 = vmatmul.mubr.f32.gmra.mxu0 %v4076
    %v4144 = vpop.f32.mrf.mxu0
    %v4145 = vadd.f32 0.0, %v4144
    %v4146 = vpop.f32.mrf.mxu0
    %4147 = vdwg.mxu0
    %v4149 = vsel %vm478, %v4069, 0
    %v4152 = vsel %vm478, %v4145, 0
    %4154 = vmatprep.subr.mxu0 0.0
    %4155 = vmatpush1.msra.mxu0 0.0
    %4156 = vmatprep.subr.mxu0 0.0
    %4157 = vmatpush1.msra.mxu0 0.0
    %4158 = vmatprep.subr.mxu0 0.0
    %4159 = vmatpush1.msra.mxu0 0.0
    %4160 = vmatprep.subr.mxu0 0.0
    %4161 = vmatpush1.msra.mxu0 0.0
    %4162 = vmatprep.subr.mxu0 0.0
    %4163 = vmatpush1.msra.mxu0 0.0
    %4164 = vmatprep.subr.mxu0 0.0
    %4165 = vmatpush1.msra.mxu0 0.0
    %4166 = vmatprep.subr.mxu0 0.0
    %4167 = vmatpush1.msra.mxu0 0.0
    %4168 = vmatprep.subr.mxu0 0.0
    %4169 = vmatpush1.msra.mxu0 0.0
    %4170 = vmatprep.subr.mxu0 0.0
    %4171 = vmatpush1.msra.mxu0 0.0
    %4172 = vmatprep.subr.mxu0 0.0
    %4173 = vmatpush1.msra.mxu0 0.0
    %4174 = vmatprep.subr.mxu0 0.0
    %4175 = vmatpush1.msra.mxu0 0.0
    %4176 = vmatprep.subr.mxu0 0.0
    %4177 = vmatpush1.msra.mxu0 0.0
    %4178 = vmatprep.subr.mxu0 0.0
    %4179 = vmatpush1.msra.mxu0 %v2987
    %4180 = vmatprep.subr.mxu0 0.0
    %4181 = vmatpush1.msra.mxu0 %v2986
    %4182 = vmatprep.subr.mxu0 0.0
    %4183 = vmatpush1.msra.mxu0 %v2985
    %4184 = vmatprep.subr.mxu0 0.0
    %4185 = vmatpush1.msra.mxu0 %v2984
    %4186 = vmatprep.subr.mxu0 0.0
    %4187 = vmatpush2.msra.mxu0 0.0
    %4188 = vmatprep.subr.mxu0 0.0
    %4189 = vmatpush2.msra.mxu0 0.0
    %4190 = vmatprep.subr.mxu0 0.0
    %4191 = vmatpush2.msra.mxu0 0.0
    %4192 = vmatprep.subr.mxu0 0.0
    %4193 = vmatpush2.msra.mxu0 0.0
    %4194 = vmatprep.subr.mxu0 0.0
    %4195 = vmatpush2.msra.mxu0 0.0
    %4196 = vmatprep.subr.mxu0 0.0
    %4197 = vmatpush2.msra.mxu0 0.0
    %4198 = vmatprep.subr.mxu0 0.0
    %4199 = vmatpush2.msra.mxu0 0.0
    %4200 = vmatprep.subr.mxu0 0.0
    %4201 = vmatpush2.msra.mxu0 0.0
    %4202 = vmatprep.subr.mxu0 0.0
    %4203 = vmatpush2.msra.mxu0 0.0
    %4204 = vmatprep.subr.mxu0 0.0
    %4205 = vmatpush2.msra.mxu0 0.0
    %4206 = vmatprep.subr.mxu0 0.0
    %4207 = vmatpush2.msra.mxu0 0.0
    %4208 = vmatprep.subr.mxu0 0.0
    %4209 = vmatpush2.msra.mxu0 0.0
    %4210 = vmatprep.subr.mxu0 0.0
    %4211 = vmatpush2.msra.mxu0 0.0
    %4212 = vmatprep.subr.mxu0 0.0
    %4213 = vmatpush2.msra.mxu0 0.0
    %4214 = vmatprep.subr.mxu0 0.0
    %4215 = vmatpush2.msra.mxu0 0.0
    %4216 = vmatprep.subr.mxu0 0.0
    %4217 = vmatpush2.msra.mxu0 0.0
    %4218 = vmatprep.mubr.f32.mxu0 0.0
    %4219 = vmatmul.mubr.f32.gmra.mxu0 %v4149
    %v4220 = vpop.f32.mrf.mxu0
    %v4221 = vadd.f32 0.0, %v4220
    %v4222 = vpop.f32.mrf.mxu0
    %4223 = vmatprep.mubr.f32.mxu0 0.0
    %4224 = vmatmul.mubr.f32.gmra.mxu0 %v4152
    %v4225 = vpop.f32.mrf.mxu0
    %v4226 = vadd.f32 0.0, %v4225
    %v4227 = vpop.f32.mrf.mxu0
    %4228 = vdwg.mxu0
    %v4229 = vadd.f32 %v3806, %v4221
    %v4230 = vadd.f32 %v3811, %v4226
    %4231 = vrot.lane.b32.xlu0 %v2890, 32
    %v4232 = vpop.permute.xlu0 %4231
    %4233 = vrot.lane.b32.xlu0 %v2892, 32
    %v4234 = vpop.permute.xlu0 %4233
    %v4235 = vsel %vm478, %v4232, 0
    %v4237 = vsel %vm478, %v4234, 0
    %4239 = vmatprep.subr.mxu0 0.0
    %4240 = vmatpush1.xpose.msra.mxu0 0.0
    %4241 = vmatprep.subr.mxu0 0.0
    %4242 = vmatpush1.xpose.msra.mxu0 0.0
    %4243 = vmatprep.subr.mxu0 0.0
    %4244 = vmatpush1.xpose.msra.mxu0 0.0
    %4245 = vmatprep.subr.mxu0 0.0
    %4246 = vmatpush1.xpose.msra.mxu0 0.0
    %4247 = vmatprep.subr.mxu0 0.0
    %4248 = vmatpush1.xpose.msra.mxu0 0.0
    %4249 = vmatprep.subr.mxu0 0.0
    %4250 = vmatpush1.xpose.msra.mxu0 0.0
    %4251 = vmatprep.subr.mxu0 0.0
    %4252 = vmatpush1.xpose.msra.mxu0 0.0
    %4253 = vmatprep.subr.mxu0 0.0
    %4254 = vmatpush1.xpose.msra.mxu0 0.0
    %4255 = vmatprep.subr.mxu0 0.0
    %4256 = vmatpush1.xpose.msra.mxu0 0.0
    %4257 = vmatprep.subr.mxu0 0.0
    %4258 = vmatpush1.xpose.msra.mxu0 0.0
    %4259 = vmatprep.subr.mxu0 0.0
    %4260 = vmatpush1.xpose.msra.mxu0 0.0
    %4261 = vmatprep.subr.mxu0 0.0
    %4262 = vmatpush1.xpose.msra.mxu0 0.0
    %4263 = vmatprep.subr.mxu0 0.0
    %4264 = vmatpush1.xpose.msra.mxu0 0.0
    %4265 = vmatprep.subr.mxu0 0.0
    %4266 = vmatpush1.xpose.msra.mxu0 0.0
    %4267 = vmatprep.subr.mxu0 0.0
    %4268 = vmatpush1.xpose.msra.mxu0 0.0
    %4269 = vmatprep.subr.mxu0 0.0
    %4270 = vmatpush1.xpose.msra.mxu0 %v4237
    %4271 = vmatprep.subr.mxu0 0.0
    %4272 = vmatpush2.xpose.msra.mxu0 0.0
    %4273 = vmatprep.subr.mxu0 0.0
    %4274 = vmatpush2.xpose.msra.mxu0 0.0
    %4275 = vmatprep.subr.mxu0 0.0
    %4276 = vmatpush2.xpose.msra.mxu0 0.0
    %4277 = vmatprep.subr.mxu0 0.0
    %4278 = vmatpush2.xpose.msra.mxu0 0.0
    %4279 = vmatprep.subr.mxu0 0.0
    %4280 = vmatpush2.xpose.msra.mxu0 0.0
    %4281 = vmatprep.subr.mxu0 0.0
    %4282 = vmatpush2.xpose.msra.mxu0 0.0
    %4283 = vmatprep.subr.mxu0 0.0
    %4284 = vmatpush2.xpose.msra.mxu0 0.0
    %4285 = vmatprep.subr.mxu0 0.0
    %4286 = vmatpush2.xpose.msra.mxu0 0.0
    %4287 = vmatprep.subr.mxu0 0.0
    %4288 = vmatpush2.xpose.msra.mxu0 0.0
    %4289 = vmatprep.subr.mxu0 0.0
    %4290 = vmatpush2.xpose.msra.mxu0 0.0
    %4291 = vmatprep.subr.mxu0 0.0
    %4292 = vmatpush2.xpose.msra.mxu0 0.0
    %4293 = vmatprep.subr.mxu0 0.0
    %4294 = vmatpush2.xpose.msra.mxu0 0.0
    %4295 = vmatprep.subr.mxu0 0.0
    %4296 = vmatpush2.xpose.msra.mxu0 0.0
    %4297 = vmatprep.subr.mxu0 0.0
    %4298 = vmatpush2.xpose.msra.mxu0 0.0
    %4299 = vmatprep.subr.mxu0 0.0
    %4300 = vmatpush2.xpose.msra.mxu0 0.0
    %4301 = vmatprep.subr.mxu0 0.0
    %4302 = vmatpush2.xpose.msra.mxu0 0.0
    %4303 = vmatprep.mubr.f32.mxu0 0.0
    %4304 = vmatmul.mubr.f32.gmra.mxu0 %v4235
    %v4305 = vpop.f32.mrf.mxu0
    %v4306 = vadd.f32 0.0, %v4305
    %v4307 = vpop.f32.mrf.mxu0
    %4308 = vdwg.mxu0
    %4309 = vrot.lane.b32.xlu0 %v2896, 32
    %v4310 = vpop.permute.xlu0 %4309
    %4311 = vrot.lane.b32.xlu0 %v2898, 32
    %v4312 = vpop.permute.xlu0 %4311
    %v4313 = vsel %vm478, %v4310, 0
    %v4315 = vsel %vm478, %v4312, 0
    %4317 = vmatprep.subr.mxu0 0.0
    %4318 = vmatpush1.xpose.msra.mxu0 0.0
    %4319 = vmatprep.subr.mxu0 0.0
    %4320 = vmatpush1.xpose.msra.mxu0 0.0
    %4321 = vmatprep.subr.mxu0 0.0
    %4322 = vmatpush1.xpose.msra.mxu0 0.0
    %4323 = vmatprep.subr.mxu0 0.0
    %4324 = vmatpush1.xpose.msra.mxu0 0.0
    %4325 = vmatprep.subr.mxu0 0.0
    %4326 = vmatpush1.xpose.msra.mxu0 0.0
    %4327 = vmatprep.subr.mxu0 0.0
    %4328 = vmatpush1.xpose.msra.mxu0 0.0
    %4329 = vmatprep.subr.mxu0 0.0
    %4330 = vmatpush1.xpose.msra.mxu0 0.0
    %4331 = vmatprep.subr.mxu0 0.0
    %4332 = vmatpush1.xpose.msra.mxu0 0.0
    %4333 = vmatprep.subr.mxu0 0.0
    %4334 = vmatpush1.xpose.msra.mxu0 0.0
    %4335 = vmatprep.subr.mxu0 0.0
    %4336 = vmatpush1.xpose.msra.mxu0 0.0
    %4337 = vmatprep.subr.mxu0 0.0
    %4338 = vmatpush1.xpose.msra.mxu0 0.0
    %4339 = vmatprep.subr.mxu0 0.0
    %4340 = vmatpush1.xpose.msra.mxu0 0.0
    %4341 = vmatprep.subr.mxu0 0.0
    %4342 = vmatpush1.xpose.msra.mxu0 0.0
    %4343 = vmatprep.subr.mxu0 0.0
    %4344 = vmatpush1.xpose.msra.mxu0 0.0
    %4345 = vmatprep.subr.mxu0 0.0
    %4346 = vmatpush1.xpose.msra.mxu0 0.0
    %4347 = vmatprep.subr.mxu0 0.0
    %4348 = vmatpush1.xpose.msra.mxu0 %v4315
    %4349 = vmatprep.subr.mxu0 0.0
    %4350 = vmatpush2.xpose.msra.mxu0 0.0
    %4351 = vmatprep.subr.mxu0 0.0
    %4352 = vmatpush2.xpose.msra.mxu0 0.0
    %4353 = vmatprep.subr.mxu0 0.0
    %4354 = vmatpush2.xpose.msra.mxu0 0.0
    %4355 = vmatprep.subr.mxu0 0.0
    %4356 = vmatpush2.xpose.msra.mxu0 0.0
    %4357 = vmatprep.subr.mxu0 0.0
    %4358 = vmatpush2.xpose.msra.mxu0 0.0
    %4359 = vmatprep.subr.mxu0 0.0
    %4360 = vmatpush2.xpose.msra.mxu0 0.0
    %4361 = vmatprep.subr.mxu0 0.0
    %4362 = vmatpush2.xpose.msra.mxu0 0.0
    %4363 = vmatprep.subr.mxu0 0.0
    %4364 = vmatpush2.xpose.msra.mxu0 0.0
    %4365 = vmatprep.subr.mxu0 0.0
    %4366 = vmatpush2.xpose.msra.mxu0 0.0
    %4367 = vmatprep.subr.mxu0 0.0
    %4368 = vmatpush2.xpose.msra.mxu0 0.0
    %4369 = vmatprep.subr.mxu0 0.0
    %4370 = vmatpush2.xpose.msra.mxu0 0.0
    %4371 = vmatprep.subr.mxu0 0.0
    %4372 = vmatpush2.xpose.msra.mxu0 0.0
    %4373 = vmatprep.subr.mxu0 0.0
    %4374 = vmatpush2.xpose.msra.mxu0 0.0
    %4375 = vmatprep.subr.mxu0 0.0
    %4376 = vmatpush2.xpose.msra.mxu0 0.0
    %4377 = vmatprep.subr.mxu0 0.0
    %4378 = vmatpush2.xpose.msra.mxu0 0.0
    %4379 = vmatprep.subr.mxu0 0.0
    %4380 = vmatpush2.xpose.msra.mxu0 0.0
    %4381 = vmatprep.mubr.f32.mxu0 0.0
    %4382 = vmatmul.mubr.f32.gmra.mxu0 %v4313
    %v4383 = vpop.f32.mrf.mxu0
    %v4384 = vadd.f32 0.0, %v4383
    %v4385 = vpop.f32.mrf.mxu0
    %4386 = vdwg.mxu0
    %v4387 = vmul.f32 %v4306, 0.17677669
    %v4388 = vmul.f32 %v4384, 0.17677669
    %v4389 = vadd.f32 %v4387, %v203
    %v4390 = vadd.f32 %v4388, %v203
    %v4391 = vsel %vm635, %v4389, -inf
    %4392 = vmax.xlane.f32.xlu0 %v4391
    %v4393 = vpop.xlane.xlu0 %4392
    %v4394 = vsel %vm635, %v4390, -inf
    %4395 = vmax.xlane.f32.xlu0 %v4394
    %v4396 = vpop.xlane.xlu0 %4395
    %v4397 = vsub.f32 %v4389, %v4393
    %v4398 = vsub.f32 %v4390, %v4396
    %v4399 = vmul.f32 %v4397, 1.442695
    %v4400 = vpow.pop %v4399
    %v4401 = vmul.f32 %v4398, 1.442695
    %v4402 = vpow.pop %v4401
    %v4403 = vsel %vm635, %v4400, 0.0
    %4404 = vadd.xlane.f32.xlu0 %v4403
    %v4405 = vpop.xlane.xlu0 %4404
    %v4406 = vsel %vm635, %v4402, 0.0
    %4407 = vadd.xlane.f32.xlu0 %v4406
    %v4408 = vpop.xlane.xlu0 %4407
    %v4409 = vrcp.pop %v4405
    %v4410 = vrcp.pop %v4408
    %v4411 = vmul.f32 %v4400, %v4409
    %v4412 = vmul.f32 %v4402, %v4410
    %4413 = vrot.lane.b32.xlu0 %v2967, 32
    %v4414 = vpop.permute.xlu0 %4413
    %v4417 = vsel %vm635, %v4411, 0
    %4419 = vmatprep.subr.mxu0 0.0
    %4420 = vmatpush1.msra.mxu0 0.0
    %4421 = vmatprep.subr.mxu0 0.0
    %4422 = vmatpush1.msra.mxu0 0.0
    %4423 = vmatprep.subr.mxu0 0.0
    %4424 = vmatpush1.msra.mxu0 0.0
    %4425 = vmatprep.subr.mxu0 0.0
    %4426 = vmatpush1.msra.mxu0 0.0
    %4427 = vmatprep.subr.mxu0 0.0
    %4428 = vmatpush1.msra.mxu0 0.0
    %4429 = vmatprep.subr.mxu0 0.0
    %4430 = vmatpush1.msra.mxu0 0.0
    %4431 = vmatprep.subr.mxu0 0.0
    %4432 = vmatpush1.msra.mxu0 0.0
    %4433 = vmatprep.subr.mxu0 0.0
    %4434 = vmatpush1.msra.mxu0 0.0
    %4435 = vmatprep.subr.mxu0 0.0
    %4436 = vmatpush1.msra.mxu0 0.0
    %4437 = vmatprep.subr.mxu0 0.0
    %4438 = vmatpush1.msra.mxu0 0.0
    %4439 = vmatprep.subr.mxu0 0.0
    %4440 = vmatpush1.msra.mxu0 0.0
    %4441 = vmatprep.subr.mxu0 0.0
    %4442 = vmatpush1.msra.mxu0 0.0
    %4443 = vmatprep.subr.mxu0 0.0
    %4444 = vmatpush1.msra.mxu0 0.0
    %4445 = vmatprep.subr.mxu0 0.0
    %4446 = vmatpush1.msra.mxu0 0.0
    %4447 = vmatprep.subr.mxu0 0.0
    %4448 = vmatpush1.msra.mxu0 0.0
    %4449 = vmatprep.subr.mxu0 0.0
    %4450 = vmatpush1.msra.mxu0 %v4414
    %4451 = vmatprep.subr.mxu0 0.0
    %4452 = vmatpush2.msra.mxu0 0.0
    %4453 = vmatprep.subr.mxu0 0.0
    %4454 = vmatpush2.msra.mxu0 0.0
    %4455 = vmatprep.subr.mxu0 0.0
    %4456 = vmatpush2.msra.mxu0 0.0
    %4457 = vmatprep.subr.mxu0 0.0
    %4458 = vmatpush2.msra.mxu0 0.0
    %4459 = vmatprep.subr.mxu0 0.0
    %4460 = vmatpush2.msra.mxu0 0.0
    %4461 = vmatprep.subr.mxu0 0.0
    %4462 = vmatpush2.msra.mxu0 0.0
    %4463 = vmatprep.subr.mxu0 0.0
    %4464 = vmatpush2.msra.mxu0 0.0
    %4465 = vmatprep.subr.mxu0 0.0
    %4466 = vmatpush2.msra.mxu0 0.0
    %4467 = vmatprep.subr.mxu0 0.0
    %4468 = vmatpush2.msra.mxu0 0.0
    %4469 = vmatprep.subr.mxu0 0.0
    %4470 = vmatpush2.msra.mxu0 0.0
    %4471 = vmatprep.subr.mxu0 0.0
    %4472 = vmatpush2.msra.mxu0 0.0
    %4473 = vmatprep.subr.mxu0 0.0
    %4474 = vmatpush2.msra.mxu0 0.0
    %4475 = vmatprep.subr.mxu0 0.0
    %4476 = vmatpush2.msra.mxu0 0.0
    %4477 = vmatprep.subr.mxu0 0.0
    %4478 = vmatpush2.msra.mxu0 0.0
    %4479 = vmatprep.subr.mxu0 0.0
    %4480 = vmatpush2.msra.mxu0 0.0
    %4481 = vmatprep.subr.mxu0 0.0
    %4482 = vmatpush2.msra.mxu0 0.0
    %4483 = vmatprep.mubr.f32.mxu0 0.0
    %4484 = vmatmul.mubr.f32.gmra.mxu0 %v4417
    %v4485 = vpop.f32.mrf.mxu0
    %v4486 = vadd.f32 0.0, %v4485
    %v4487 = vpop.f32.mrf.mxu0
    %4488 = vdwg.mxu0
    %4489 = vrot.lane.b32.xlu0 %v2972, 32
    %v4490 = vpop.permute.xlu0 %4489
    %v4493 = vsel %vm635, %v4412, 0
    %4495 = vmatprep.subr.mxu0 0.0
    %4496 = vmatpush1.msra.mxu0 0.0
    %4497 = vmatprep.subr.mxu0 0.0
    %4498 = vmatpush1.msra.mxu0 0.0
    %4499 = vmatprep.subr.mxu0 0.0
    %4500 = vmatpush1.msra.mxu0 0.0
    %4501 = vmatprep.subr.mxu0 0.0
    %4502 = vmatpush1.msra.mxu0 0.0
    %4503 = vmatprep.subr.mxu0 0.0
    %4504 = vmatpush1.msra.mxu0 0.0
    %4505 = vmatprep.subr.mxu0 0.0
    %4506 = vmatpush1.msra.mxu0 0.0
    %4507 = vmatprep.subr.mxu0 0.0
    %4508 = vmatpush1.msra.mxu0 0.0
    %4509 = vmatprep.subr.mxu0 0.0
    %4510 = vmatpush1.msra.mxu0 0.0
    %4511 = vmatprep.subr.mxu0 0.0
    %4512 = vmatpush1.msra.mxu0 0.0
    %4513 = vmatprep.subr.mxu0 0.0
    %4514 = vmatpush1.msra.mxu0 0.0
    %4515 = vmatprep.subr.mxu0 0.0
    %4516 = vmatpush1.msra.mxu0 0.0
    %4517 = vmatprep.subr.mxu0 0.0
    %4518 = vmatpush1.msra.mxu0 0.0
    %4519 = vmatprep.subr.mxu0 0.0
    %4520 = vmatpush1.msra.mxu0 0.0
    %4521 = vmatprep.subr.mxu0 0.0
    %4522 = vmatpush1.msra.mxu0 0.0
    %4523 = vmatprep.subr.mxu0 0.0
    %4524 = vmatpush1.msra.mxu0 0.0
    %4525 = vmatprep.subr.mxu0 0.0
    %4526 = vmatpush1.msra.mxu0 %v4490
    %4527 = vmatprep.subr.mxu0 0.0
    %4528 = vmatpush2.msra.mxu0 0.0
    %4529 = vmatprep.subr.mxu0 0.0
    %4530 = vmatpush2.msra.mxu0 0.0
    %4531 = vmatprep.subr.mxu0 0.0
    %4532 = vmatpush2.msra.mxu0 0.0
    %4533 = vmatprep.subr.mxu0 0.0
    %4534 = vmatpush2.msra.mxu0 0.0
    %4535 = vmatprep.subr.mxu0 0.0
    %4536 = vmatpush2.msra.mxu0 0.0
    %4537 = vmatprep.subr.mxu0 0.0
    %4538 = vmatpush2.msra.mxu0 0.0
    %4539 = vmatprep.subr.mxu0 0.0
    %4540 = vmatpush2.msra.mxu0 0.0
    %4541 = vmatprep.subr.mxu0 0.0
    %4542 = vmatpush2.msra.mxu0 0.0
    %4543 = vmatprep.subr.mxu0 0.0
    %4544 = vmatpush2.msra.mxu0 0.0
    %4545 = vmatprep.subr.mxu0 0.0
    %4546 = vmatpush2.msra.mxu0 0.0
    %4547 = vmatprep.subr.mxu0 0.0
    %4548 = vmatpush2.msra.mxu0 0.0
    %4549 = vmatprep.subr.mxu0 0.0
    %4550 = vmatpush2.msra.mxu0 0.0
    %4551 = vmatprep.subr.mxu0 0.0
    %4552 = vmatpush2.msra.mxu0 0.0
    %4553 = vmatprep.subr.mxu0 0.0
    %4554 = vmatpush2.msra.mxu0 0.0
    %4555 = vmatprep.subr.mxu0 0.0
    %4556 = vmatpush2.msra.mxu0 0.0
    %4557 = vmatprep.subr.mxu0 0.0
    %4558 = vmatpush2.msra.mxu0 0.0
    %4559 = vmatprep.mubr.f32.mxu0 0.0
    %4560 = vmatmul.mubr.f32.gmra.mxu0 %v4493
    %v4561 = vpop.f32.mrf.mxu0
    %v4562 = vadd.f32 0.0, %v4561
    %v4563 = vpop.f32.mrf.mxu0
    %4564 = vdwg.mxu0
    %v4566 = vsel %vm478, %v4486, 0
    %v4569 = vsel %vm478, %v4562, 0
    %4571 = vmatprep.subr.mxu0 0.0
    %4572 = vmatpush1.msra.mxu0 0.0
    %4573 = vmatprep.subr.mxu0 0.0
    %4574 = vmatpush1.msra.mxu0 0.0
    %4575 = vmatprep.subr.mxu0 0.0
    %4576 = vmatpush1.msra.mxu0 0.0
    %4577 = vmatprep.subr.mxu0 0.0
    %4578 = vmatpush1.msra.mxu0 0.0
    %4579 = vmatprep.subr.mxu0 0.0
    %4580 = vmatpush1.msra.mxu0 0.0
    %4581 = vmatprep.subr.mxu0 0.0
    %4582 = vmatpush1.msra.mxu0 0.0
    %4583 = vmatprep.subr.mxu0 0.0
    %4584 = vmatpush1.msra.mxu0 0.0
    %4585 = vmatprep.subr.mxu0 0.0
    %4586 = vmatpush1.msra.mxu0 0.0
    %4587 = vmatprep.subr.mxu0 0.0
    %4588 = vmatpush1.msra.mxu0 0.0
    %4589 = vmatprep.subr.mxu0 0.0
    %4590 = vmatpush1.msra.mxu0 0.0
    %4591 = vmatprep.subr.mxu0 0.0
    %4592 = vmatpush1.msra.mxu0 0.0
    %4593 = vmatprep.subr.mxu0 0.0
    %4594 = vmatpush1.msra.mxu0 0.0
    %4595 = vmatprep.subr.mxu0 0.0
    %4596 = vmatpush1.msra.mxu0 %v2991
    %4597 = vmatprep.subr.mxu0 0.0
    %4598 = vmatpush1.msra.mxu0 %v2990
    %4599 = vmatprep.subr.mxu0 0.0
    %4600 = vmatpush1.msra.mxu0 %v2989
    %4601 = vmatprep.subr.mxu0 0.0
    %4602 = vmatpush1.msra.mxu0 %v2988
    %4603 = vmatprep.subr.mxu0 0.0
    %4604 = vmatpush2.msra.mxu0 0.0
    %4605 = vmatprep.subr.mxu0 0.0
    %4606 = vmatpush2.msra.mxu0 0.0
    %4607 = vmatprep.subr.mxu0 0.0
    %4608 = vmatpush2.msra.mxu0 0.0
    %4609 = vmatprep.subr.mxu0 0.0
    %4610 = vmatpush2.msra.mxu0 0.0
    %4611 = vmatprep.subr.mxu0 0.0
    %4612 = vmatpush2.msra.mxu0 0.0
    %4613 = vmatprep.subr.mxu0 0.0
    %4614 = vmatpush2.msra.mxu0 0.0
    %4615 = vmatprep.subr.mxu0 0.0
    %4616 = vmatpush2.msra.mxu0 0.0
    %4617 = vmatprep.subr.mxu0 0.0
    %4618 = vmatpush2.msra.mxu0 0.0
    %4619 = vmatprep.subr.mxu0 0.0
    %4620 = vmatpush2.msra.mxu0 0.0
    %4621 = vmatprep.subr.mxu0 0.0
    %4622 = vmatpush2.msra.mxu0 0.0
    %4623 = vmatprep.subr.mxu0 0.0
    %4624 = vmatpush2.msra.mxu0 0.0
    %4625 = vmatprep.subr.mxu0 0.0
    %4626 = vmatpush2.msra.mxu0 0.0
    %4627 = vmatprep.subr.mxu0 0.0
    %4628 = vmatpush2.msra.mxu0 0.0
    %4629 = vmatprep.subr.mxu0 0.0
    %4630 = vmatpush2.msra.mxu0 0.0
    %4631 = vmatprep.subr.mxu0 0.0
    %4632 = vmatpush2.msra.mxu0 0.0
    %4633 = vmatprep.subr.mxu0 0.0
    %4634 = vmatpush2.msra.mxu0 0.0
    %4635 = vmatprep.mubr.f32.mxu0 0.0
    %4636 = vmatmul.mubr.f32.gmra.mxu0 %v4566
    %v4637 = vpop.f32.mrf.mxu0
    %v4638 = vadd.f32 0.0, %v4637
    %v4639 = vpop.f32.mrf.mxu0
    %4640 = vmatprep.mubr.f32.mxu0 0.0
    %4641 = vmatmul.mubr.f32.gmra.mxu0 %v4569
    %v4642 = vpop.f32.mrf.mxu0
    %v4643 = vadd.f32 0.0, %v4642
    %v4644 = vpop.f32.mrf.mxu0
    %4645 = vdwg.mxu0
    %v4646 = vadd.f32 %v4229, %v4638
    %v4647 = vadd.f32 %v4230, %v4643
    %v4648 = vadd.f32 %v2712, %v4646
    %v4649 = vadd.f32 %v2713, %v4647
    %s4650 = scalar_lea.vmem %s6, 1
    %v4651 = vld [vmem:[%s4650] sm:$0x1]
    %v4653 = vlaneseq
    %v4654 = vshrl.u32 %v4653, 7
    %v4655 = vsub.s32 0, %v4654
    %v4656 = vrot.slane %v4651, %v4655
    %v4658 = vadd.f32 %v4648, %v4656
    %v4659 = vadd.f32 %v4649, %v4656
    %s4660 = scalar_lea.vmem [#allocation11], 1
    %v4661 = vld [vmem:[%s4660] sm:$0x1]
    %s4662 = scalar_lea.vmem [#allocation13], 1
    %v4663 = vld [vmem:[%s4662] sm:$0x1]
    %4664 = vadd.xlane.f32.xlu0 %v4658
    %v4665 = vpop.xlane.xlu0 %4664
    %4666 = vadd.xlane.f32.xlu0 %v4659
    %v4667 = vpop.xlane.xlu0 %4666
    %v4668 = vmul.f32 %v4665, %v210
    %v4669 = vmul.f32 %v4667, %v210
    %v4670 = vsub.f32 %v4658, %v4668
    %v4671 = vsub.f32 %v4659, %v4669
    %v4672 = vmul.f32 %v4670, %v4670
    %v4673 = vmul.f32 %v4671, %v4671
    %4674 = vadd.xlane.f32.xlu0 %v4672
    %v4675 = vpop.xlane.xlu0 %4674
    %4676 = vadd.xlane.f32.xlu0 %v4673
    %v4677 = vpop.xlane.xlu0 %4676
    %v4678 = vmul.f32 %v4675, %v210
    %v4679 = vmul.f32 %v4677, %v210
    %v4680 = vadd.f32 %v4678, 1e-05
    %v4681 = vadd.f32 %v4679, 1e-05
    %v4682 = vrsqrt.pop %v4680
    %v4683 = vrsqrt.pop %v4681
    %v4684 = vmul.f32 %v4670, %v4682
    %v4685 = vmul.f32 %v4671, %v4683
    %v4687 = vlaneseq
    %v4688 = vshrl.u32 %v4687, 7
    %v4689 = vsub.s32 0, %v4688
    %v4690 = vrot.slane %v4661, %v4689
    %v4692 = vmul.f32 %v4684, %v4690
    %v4693 = vmul.f32 %v4685, %v4690
    %v4695 = vlaneseq
    %v4696 = vshrl.u32 %v4695, 7
    %v4697 = vsub.s32 0, %v4696
    %v4698 = vrot.slane %v4663, %v4697
    %v4700 = vadd.f32 %v4692, %v4698
    %v4701 = vadd.f32 %v4693, %v4698
    %s4702 = scalar_lea.vmem [#allocation14], 512
    %v4703 = vld [vmem:[%s4702] sm:$0xff]
    %v4704 = vld [vmem:[%s4702 + $0x8] sm:$0xff]
    %v4705 = vld [vmem:[%s4702 + $0x10] sm:$0xff]
    %v4706 = vld [vmem:[%s4702 + $0x18] sm:$0xff]
    %v4707 = vld [vmem:[%s4702 + $0x20] sm:$0xff]
    %v4708 = vld [vmem:[%s4702 + $0x28] sm:$0xff]
    %v4709 = vld [vmem:[%s4702 + $0x30] sm:$0xff]
    %v4710 = vld [vmem:[%s4702 + $0x38] sm:$0xff]
    %v4711 = vld [vmem:[%s4702 + $0x40] sm:$0xff]
    %v4712 = vld [vmem:[%s4702 + $0x48] sm:$0xff]
    %v4713 = vld [vmem:[%s4702 + $0x50] sm:$0xff]
    %v4714 = vld [vmem:[%s4702 + $0x58] sm:$0xff]
    %v4715 = vld [vmem:[%s4702 + $0x60] sm:$0xff]
    %v4716 = vld [vmem:[%s4702 + $0x68] sm:$0xff]
    %v4717 = vld [vmem:[%s4702 + $0x70] sm:$0xff]
    %v4718 = vld [vmem:[%s4702 + $0x78] sm:$0xff]
    %v4719 = vld [vmem:[%s4702 + $0x80] sm:$0xff]
    %v4720 = vld [vmem:[%s4702 + $0x88] sm:$0xff]
    %v4721 = vld [vmem:[%s4702 + $0x90] sm:$0xff]
    %v4722 = vld [vmem:[%s4702 + $0x98] sm:$0xff]
    %v4723 = vld [vmem:[%s4702 + $0xa0] sm:$0xff]
    %v4724 = vld [vmem:[%s4702 + $0xa8] sm:$0xff]
    %v4725 = vld [vmem:[%s4702 + $0xb0] sm:$0xff]
    %v4726 = vld [vmem:[%s4702 + $0xb8] sm:$0xff]
    %v4727 = vld [vmem:[%s4702 + $0xc0] sm:$0xff]
    %v4728 = vld [vmem:[%s4702 + $0xc8] sm:$0xff]
    %v4729 = vld [vmem:[%s4702 + $0xd0] sm:$0xff]
    %v4730 = vld [vmem:[%s4702 + $0xd8] sm:$0xff]
    %v4731 = vld [vmem:[%s4702 + $0xe0] sm:$0xff]
    %v4732 = vld [vmem:[%s4702 + $0xe8] sm:$0xff]
    %v4733 = vld [vmem:[%s4702 + $0xf0] sm:$0xff]
    %v4734 = vld [vmem:[%s4702 + $0xf8] sm:$0xff]
    %v4735 = vld [vmem:[%s4702 + $0x100] sm:$0xff]
    %v4736 = vld [vmem:[%s4702 + $0x108] sm:$0xff]
    %v4737 = vld [vmem:[%s4702 + $0x110] sm:$0xff]
    %v4738 = vld [vmem:[%s4702 + $0x118] sm:$0xff]
    %v4739 = vld [vmem:[%s4702 + $0x120] sm:$0xff]
    %v4740 = vld [vmem:[%s4702 + $0x128] sm:$0xff]
    %v4741 = vld [vmem:[%s4702 + $0x130] sm:$0xff]
    %v4742 = vld [vmem:[%s4702 + $0x138] sm:$0xff]
    %v4743 = vld [vmem:[%s4702 + $0x140] sm:$0xff]
    %v4744 = vld [vmem:[%s4702 + $0x148] sm:$0xff]
    %v4745 = vld [vmem:[%s4702 + $0x150] sm:$0xff]
    %v4746 = vld [vmem:[%s4702 + $0x158] sm:$0xff]
    %v4747 = vld [vmem:[%s4702 + $0x160] sm:$0xff]
    %v4748 = vld [vmem:[%s4702 + $0x168] sm:$0xff]
    %v4749 = vld [vmem:[%s4702 + $0x170] sm:$0xff]
    %v4750 = vld [vmem:[%s4702 + $0x178] sm:$0xff]
    %v4751 = vld [vmem:[%s4702 + $0x180] sm:$0xff]
    %v4752 = vld [vmem:[%s4702 + $0x188] sm:$0xff]
    %v4753 = vld [vmem:[%s4702 + $0x190] sm:$0xff]
    %v4754 = vld [vmem:[%s4702 + $0x198] sm:$0xff]
    %v4755 = vld [vmem:[%s4702 + $0x1a0] sm:$0xff]
    %v4756 = vld [vmem:[%s4702 + $0x1a8] sm:$0xff]
    %v4757 = vld [vmem:[%s4702 + $0x1b0] sm:$0xff]
    %v4758 = vld [vmem:[%s4702 + $0x1b8] sm:$0xff]
    %v4759 = vld [vmem:[%s4702 + $0x1c0] sm:$0xff]
    %v4760 = vld [vmem:[%s4702 + $0x1c8] sm:$0xff]
    %v4761 = vld [vmem:[%s4702 + $0x1d0] sm:$0xff]
    %v4762 = vld [vmem:[%s4702 + $0x1d8] sm:$0xff]
    %v4763 = vld [vmem:[%s4702 + $0x1e0] sm:$0xff]
    %v4764 = vld [vmem:[%s4702 + $0x1e8] sm:$0xff]
    %v4765 = vld [vmem:[%s4702 + $0x1f0] sm:$0xff]
    %v4766 = vld [vmem:[%s4702 + $0x1f8] sm:$0xff]
    %s4767 = scalar_lea.vmem %s10, 4
    %v4768 = vld [vmem:[%s4767] sm:$0xf]
    %v4770 = vlaneseq
    %v4771 = vshrl.u32 %v4770, 7
    %v4772 = vsub.s32 0, %v4771
    %v4773 = vrot.slane %v4768, %v4772
    %v4774 = vlaneseq
    %v4775 = vshrl.u32 %v4774, 7
    %v4776 = vsub.s32 1, %v4775
    %v4777 = vrot.slane %v4768, %v4776
    %v4778 = vlaneseq
    %v4779 = vshrl.u32 %v4778, 7
    %v4780 = vsub.s32 2, %v4779
    %v4781 = vrot.slane %v4768, %v4780
    %v4782 = vlaneseq
    %v4783 = vshrl.u32 %v4782, 7
    %v4784 = vsub.s32 3, %v4783
    %v4785 = vrot.slane %v4768, %v4784
    %4790 = vmatprep.subr.mxu0 %v4764
    %4791 = vmatpush1.msra.mxu0 %v4763
    %4792 = vmatprep.subr.mxu0 %v4760
    %4793 = vmatpush1.msra.mxu0 %v4759
    %4794 = vmatprep.subr.mxu0 %v4756
    %4795 = vmatpush1.msra.mxu0 %v4755
    %4796 = vmatprep.subr.mxu0 %v4752
    %4797 = vmatpush1.msra.mxu0 %v4751
    %4798 = vmatprep.subr.mxu0 %v4748
    %4799 = vmatpush1.msra.mxu0 %v4747
    %4800 = vmatprep.subr.mxu0 %v4744
    %4801 = vmatpush1.msra.mxu0 %v4743
    %4802 = vmatprep.subr.mxu0 %v4740
    %4803 = vmatpush1.msra.mxu0 %v4739
    %4804 = vmatprep.subr.mxu0 %v4736
    %4805 = vmatpush1.msra.mxu0 %v4735
    %4806 = vmatprep.subr.mxu0 %v4732
    %4807 = vmatpush1.msra.mxu0 %v4731
    %4808 = vmatprep.subr.mxu0 %v4728
    %4809 = vmatpush1.msra.mxu0 %v4727
    %4810 = vmatprep.subr.mxu0 %v4724
    %4811 = vmatpush1.msra.mxu0 %v4723
    %4812 = vmatprep.subr.mxu0 %v4720
    %4813 = vmatpush1.msra.mxu0 %v4719
    %4814 = vmatprep.subr.mxu0 %v4716
    %4815 = vmatpush1.msra.mxu0 %v4715
    %4816 = vmatprep.subr.mxu0 %v4712
    %4817 = vmatpush1.msra.mxu0 %v4711
    %4818 = vmatprep.subr.mxu0 %v4708
    %4819 = vmatpush1.msra.mxu0 %v4707
    %4820 = vmatprep.subr.mxu0 %v4704
    %4821 = vmatpush1.msra.mxu0 %v4703
    %4822 = vmatprep.subr.mxu0 0.0
    %4823 = vmatpush2.msra.mxu0 0.0
    %4824 = vmatprep.subr.mxu0 0.0
    %4825 = vmatpush2.msra.mxu0 0.0
    %4826 = vmatprep.subr.mxu0 0.0
    %4827 = vmatpush2.msra.mxu0 0.0
    %4828 = vmatprep.subr.mxu0 0.0
    %4829 = vmatpush2.msra.mxu0 0.0
    %4830 = vmatprep.subr.mxu0 0.0
    %4831 = vmatpush2.msra.mxu0 0.0
    %4832 = vmatprep.subr.mxu0 0.0
    %4833 = vmatpush2.msra.mxu0 0.0
    %4834 = vmatprep.subr.mxu0 0.0
    %4835 = vmatpush2.msra.mxu0 0.0
    %4836 = vmatprep.subr.mxu0 0.0
    %4837 = vmatpush2.msra.mxu0 0.0
    %4838 = vmatprep.subr.mxu0 0.0
    %4839 = vmatpush2.msra.mxu0 0.0
    %4840 = vmatprep.subr.mxu0 0.0
    %4841 = vmatpush2.msra.mxu0 0.0
    %4842 = vmatprep.subr.mxu0 0.0
    %4843 = vmatpush2.msra.mxu0 0.0
    %4844 = vmatprep.subr.mxu0 0.0
    %4845 = vmatpush2.msra.mxu0 0.0
    %4846 = vmatprep.subr.mxu0 0.0
    %4847 = vmatpush2.msra.mxu0 0.0
    %4848 = vmatprep.subr.mxu0 0.0
    %4849 = vmatpush2.msra.mxu0 0.0
    %4850 = vmatprep.subr.mxu0 0.0
    %4851 = vmatpush2.msra.mxu0 0.0
    %4852 = vmatprep.subr.mxu0 0.0
    %4853 = vmatpush2.msra.mxu0 0.0
    %4854 = vmatprep.mubr.f32.mxu0 0.0
    %4855 = vmatmul.mubr.f32.gmra.mxu0 %v4700
    %v4856 = vpop.f32.mrf.mxu0
    %v4857 = vadd.f32 %v4773, %v4856
    %v4858 = vpop.f32.mrf.mxu0
    %v4859 = vadd.f32 %v4777, %v4858
    %4860 = vmatprep.mubr.f32.mxu0 0.0
    %4861 = vmatmul.mubr.f32.gmra.mxu0 %v4701
    %v4862 = vpop.f32.mrf.mxu0
    %v4863 = vadd.f32 %v4773, %v4862
    %v4864 = vpop.f32.mrf.mxu0
    %v4865 = vadd.f32 %v4777, %v4864
    %4866 = vdwg.mxu0
    %4867 = vmatprep.subr.mxu0 %v4766
    %4868 = vmatpush1.msra.mxu0 %v4765
    %4869 = vmatprep.subr.mxu0 %v4762
    %4870 = vmatpush1.msra.mxu0 %v4761
    %4871 = vmatprep.subr.mxu0 %v4758
    %4872 = vmatpush1.msra.mxu0 %v4757
    %4873 = vmatprep.subr.mxu0 %v4754
    %4874 = vmatpush1.msra.mxu0 %v4753
    %4875 = vmatprep.subr.mxu0 %v4750
    %4876 = vmatpush1.msra.mxu0 %v4749
    %4877 = vmatprep.subr.mxu0 %v4746
    %4878 = vmatpush1.msra.mxu0 %v4745
    %4879 = vmatprep.subr.mxu0 %v4742
    %4880 = vmatpush1.msra.mxu0 %v4741
    %4881 = vmatprep.subr.mxu0 %v4738
    %4882 = vmatpush1.msra.mxu0 %v4737
    %4883 = vmatprep.subr.mxu0 %v4734
    %4884 = vmatpush1.msra.mxu0 %v4733
    %4885 = vmatprep.subr.mxu0 %v4730
    %4886 = vmatpush1.msra.mxu0 %v4729
    %4887 = vmatprep.subr.mxu0 %v4726
    %4888 = vmatpush1.msra.mxu0 %v4725
    %4889 = vmatprep.subr.mxu0 %v4722
    %4890 = vmatpush1.msra.mxu0 %v4721
    %4891 = vmatprep.subr.mxu0 %v4718
    %4892 = vmatpush1.msra.mxu0 %v4717
    %4893 = vmatprep.subr.mxu0 %v4714
    %4894 = vmatpush1.msra.mxu0 %v4713
    %4895 = vmatprep.subr.mxu0 %v4710
    %4896 = vmatpush1.msra.mxu0 %v4709
    %4897 = vmatprep.subr.mxu0 %v4706
    %4898 = vmatpush1.msra.mxu0 %v4705
    %4899 = vmatprep.subr.mxu0 0.0
    %4900 = vmatpush2.msra.mxu0 0.0
    %4901 = vmatprep.subr.mxu0 0.0
    %4902 = vmatpush2.msra.mxu0 0.0
    %4903 = vmatprep.subr.mxu0 0.0
    %4904 = vmatpush2.msra.mxu0 0.0
    %4905 = vmatprep.subr.mxu0 0.0
    %4906 = vmatpush2.msra.mxu0 0.0
    %4907 = vmatprep.subr.mxu0 0.0
    %4908 = vmatpush2.msra.mxu0 0.0
    %4909 = vmatprep.subr.mxu0 0.0
    %4910 = vmatpush2.msra.mxu0 0.0
    %4911 = vmatprep.subr.mxu0 0.0
    %4912 = vmatpush2.msra.mxu0 0.0
    %4913 = vmatprep.subr.mxu0 0.0
    %4914 = vmatpush2.msra.mxu0 0.0
    %4915 = vmatprep.subr.mxu0 0.0
    %4916 = vmatpush2.msra.mxu0 0.0
    %4917 = vmatprep.subr.mxu0 0.0
    %4918 = vmatpush2.msra.mxu0 0.0
    %4919 = vmatprep.subr.mxu0 0.0
    %4920 = vmatpush2.msra.mxu0 0.0
    %4921 = vmatprep.subr.mxu0 0.0
    %4922 = vmatpush2.msra.mxu0 0.0
    %4923 = vmatprep.subr.mxu0 0.0
    %4924 = vmatpush2.msra.mxu0 0.0
    %4925 = vmatprep.subr.mxu0 0.0
    %4926 = vmatpush2.msra.mxu0 0.0
    %4927 = vmatprep.subr.mxu0 0.0
    %4928 = vmatpush2.msra.mxu0 0.0
    %4929 = vmatprep.subr.mxu0 0.0
    %4930 = vmatpush2.msra.mxu0 0.0
    %4931 = vmatprep.mubr.f32.mxu0 0.0
    %4932 = vmatmul.mubr.f32.gmra.mxu0 %v4700
    %v4933 = vpop.f32.mrf.mxu0
    %v4934 = vadd.f32 %v4781, %v4933
    %v4935 = vpop.f32.mrf.mxu0
    %v4936 = vadd.f32 %v4785, %v4935
    %4937 = vmatprep.mubr.f32.mxu0 0.0
    %4938 = vmatmul.mubr.f32.gmra.mxu0 %v4701
    %v4939 = vpop.f32.mrf.mxu0
    %v4940 = vadd.f32 %v4781, %v4939
    %v4941 = vpop.f32.mrf.mxu0
    %v4942 = vadd.f32 %v4785, %v4941
    %4943 = vdwg.mxu0
    %v4944 = vmul.f32 %v4857, 1.702
    %v4945 = vmul.f32 %v4859, 1.702
    %v4946 = vmul.f32 %v4934, 1.702
    %v4947 = vmul.f32 %v4936, 1.702
    %v4948 = vmul.f32 %v4863, 1.702
    %v4949 = vmul.f32 %v4865, 1.702
    %v4950 = vmul.f32 %v4940, 1.702
    %v4951 = vmul.f32 %v4942, 1.702
    %v4952 = vxor.u32 %v4944, 2147483648
    %v4953 = vxor.u32 %v4945, 2147483648
    %v4954 = vxor.u32 %v4946, 2147483648
    %v4955 = vxor.u32 %v4947, 2147483648
    %v4956 = vxor.u32 %v4948, 2147483648
    %v4957 = vxor.u32 %v4949, 2147483648
    %v4958 = vxor.u32 %v4950, 2147483648
    %v4959 = vxor.u32 %v4951, 2147483648
    %v4960 = vmul.f32 %v4952, 1.442695
    %v4961 = vpow.pop %v4960
    %v4962 = vmul.f32 %v4953, 1.442695
    %v4963 = vpow.pop %v4962
    %v4964 = vmul.f32 %v4954, 1.442695
    %v4965 = vpow.pop %v4964
    %v4966 = vmul.f32 %v4955, 1.442695
    %v4967 = vpow.pop %v4966
    %v4968 = vmul.f32 %v4956, 1.442695
    %v4969 = vpow.pop %v4968
    %v4970 = vmul.f32 %v4957, 1.442695
    %v4971 = vpow.pop %v4970
    %v4972 = vmul.f32 %v4958, 1.442695
    %v4973 = vpow.pop %v4972
    %v4974 = vmul.f32 %v4959, 1.442695
    %v4975 = vpow.pop %v4974
    %v4976 = vadd.f32 %v4961, 1.0
    %v4977 = vadd.f32 %v4963, 1.0
    %v4978 = vadd.f32 %v4965, 1.0
    %v4979 = vadd.f32 %v4967, 1.0
    %v4980 = vadd.f32 %v4969, 1.0
    %v4981 = vadd.f32 %v4971, 1.0
    %v4982 = vadd.f32 %v4973, 1.0
    %v4983 = vadd.f32 %v4975, 1.0
    %v4984 = vrcp.pop %v4976
    %v4985 = vmul.f32 1.0, %v4984
    %v4986 = vrcp.pop %v4977
    %v4987 = vmul.f32 1.0, %v4986
    %v4988 = vrcp.pop %v4978
    %v4989 = vmul.f32 1.0, %v4988
    %v4990 = vrcp.pop %v4979
    %v4991 = vmul.f32 1.0, %v4990
    %v4992 = vrcp.pop %v4980
    %v4993 = vmul.f32 1.0, %v4992
    %v4994 = vrcp.pop %v4981
    %v4995 = vmul.f32 1.0, %v4994
    %v4996 = vrcp.pop %v4982
    %v4997 = vmul.f32 1.0, %v4996
    %v4998 = vrcp.pop %v4983
    %v4999 = vmul.f32 1.0, %v4998
    %v5000 = vmul.f32 %v4857, %v4985
    %v5001 = vmul.f32 %v4859, %v4987
    %v5002 = vmul.f32 %v4934, %v4989
    %v5003 = vmul.f32 %v4936, %v4991
    %v5004 = vmul.f32 %v4863, %v4993
    %v5005 = vmul.f32 %v4865, %v4995
    %v5006 = vmul.f32 %v4940, %v4997
    %v5007 = vmul.f32 %v4942, %v4999
    %s5008 = scalar_lea.vmem [#allocation16], 512
    %v5009 = vld [vmem:[%s5008] sm:$0xff]
    %v5010 = vld [vmem:[%s5008 + $0x8] sm:$0xff]
    %v5011 = vld [vmem:[%s5008 + $0x10] sm:$0xff]
    %v5012 = vld [vmem:[%s5008 + $0x18] sm:$0xff]
    %v5013 = vld [vmem:[%s5008 + $0x20] sm:$0xff]
    %v5014 = vld [vmem:[%s5008 + $0x28] sm:$0xff]
    %v5015 = vld [vmem:[%s5008 + $0x30] sm:$0xff]
    %v5016 = vld [vmem:[%s5008 + $0x38] sm:$0xff]
    %v5017 = vld [vmem:[%s5008 + $0x40] sm:$0xff]
    %v5018 = vld [vmem:[%s5008 + $0x48] sm:$0xff]
    %v5019 = vld [vmem:[%s5008 + $0x50] sm:$0xff]
    %v5020 = vld [vmem:[%s5008 + $0x58] sm:$0xff]
    %v5021 = vld [vmem:[%s5008 + $0x60] sm:$0xff]
    %v5022 = vld [vmem:[%s5008 + $0x68] sm:$0xff]
    %v5023 = vld [vmem:[%s5008 + $0x70] sm:$0xff]
    %v5024 = vld [vmem:[%s5008 + $0x78] sm:$0xff]
    %v5025 = vld [vmem:[%s5008 + $0x80] sm:$0xff]
    %v5026 = vld [vmem:[%s5008 + $0x88] sm:$0xff]
    %v5027 = vld [vmem:[%s5008 + $0x90] sm:$0xff]
    %v5028 = vld [vmem:[%s5008 + $0x98] sm:$0xff]
    %v5029 = vld [vmem:[%s5008 + $0xa0] sm:$0xff]
    %v5030 = vld [vmem:[%s5008 + $0xa8] sm:$0xff]
    %v5031 = vld [vmem:[%s5008 + $0xb0] sm:$0xff]
    %v5032 = vld [vmem:[%s5008 + $0xb8] sm:$0xff]
    %v5033 = vld [vmem:[%s5008 + $0xc0] sm:$0xff]
    %v5034 = vld [vmem:[%s5008 + $0xc8] sm:$0xff]
    %v5035 = vld [vmem:[%s5008 + $0xd0] sm:$0xff]
    %v5036 = vld [vmem:[%s5008 + $0xd8] sm:$0xff]
    %v5037 = vld [vmem:[%s5008 + $0xe0] sm:$0xff]
    %v5038 = vld [vmem:[%s5008 + $0xe8] sm:$0xff]
    %v5039 = vld [vmem:[%s5008 + $0xf0] sm:$0xff]
    %v5040 = vld [vmem:[%s5008 + $0xf8] sm:$0xff]
    %v5041 = vld [vmem:[%s5008 + $0x100] sm:$0xff]
    %v5042 = vld [vmem:[%s5008 + $0x108] sm:$0xff]
    %v5043 = vld [vmem:[%s5008 + $0x110] sm:$0xff]
    %v5044 = vld [vmem:[%s5008 + $0x118] sm:$0xff]
    %v5045 = vld [vmem:[%s5008 + $0x120] sm:$0xff]
    %v5046 = vld [vmem:[%s5008 + $0x128] sm:$0xff]
    %v5047 = vld [vmem:[%s5008 + $0x130] sm:$0xff]
    %v5048 = vld [vmem:[%s5008 + $0x138] sm:$0xff]
    %v5049 = vld [vmem:[%s5008 + $0x140] sm:$0xff]
    %v5050 = vld [vmem:[%s5008 + $0x148] sm:$0xff]
    %v5051 = vld [vmem:[%s5008 + $0x150] sm:$0xff]
    %v5052 = vld [vmem:[%s5008 + $0x158] sm:$0xff]
    %v5053 = vld [vmem:[%s5008 + $0x160] sm:$0xff]
    %v5054 = vld [vmem:[%s5008 + $0x168] sm:$0xff]
    %v5055 = vld [vmem:[%s5008 + $0x170] sm:$0xff]
    %v5056 = vld [vmem:[%s5008 + $0x178] sm:$0xff]
    %v5057 = vld [vmem:[%s5008 + $0x180] sm:$0xff]
    %v5058 = vld [vmem:[%s5008 + $0x188] sm:$0xff]
    %v5059 = vld [vmem:[%s5008 + $0x190] sm:$0xff]
    %v5060 = vld [vmem:[%s5008 + $0x198] sm:$0xff]
    %v5061 = vld [vmem:[%s5008 + $0x1a0] sm:$0xff]
    %v5062 = vld [vmem:[%s5008 + $0x1a8] sm:$0xff]
    %v5063 = vld [vmem:[%s5008 + $0x1b0] sm:$0xff]
    %v5064 = vld [vmem:[%s5008 + $0x1b8] sm:$0xff]
    %v5065 = vld [vmem:[%s5008 + $0x1c0] sm:$0xff]
    %v5066 = vld [vmem:[%s5008 + $0x1c8] sm:$0xff]
    %v5067 = vld [vmem:[%s5008 + $0x1d0] sm:$0xff]
    %v5068 = vld [vmem:[%s5008 + $0x1d8] sm:$0xff]
    %v5069 = vld [vmem:[%s5008 + $0x1e0] sm:$0xff]
    %v5070 = vld [vmem:[%s5008 + $0x1e8] sm:$0xff]
    %v5071 = vld [vmem:[%s5008 + $0x1f0] sm:$0xff]
    %v5072 = vld [vmem:[%s5008 + $0x1f8] sm:$0xff]
    %s5073 = scalar_lea.vmem %s12, 1
    %v5074 = vld [vmem:[%s5073] sm:$0x1]
    %v5076 = vlaneseq
    %v5077 = vshrl.u32 %v5076, 7
    %v5078 = vsub.s32 0, %v5077
    %v5079 = vrot.slane %v5074, %v5078
    %5081 = vmatprep.subr.mxu0 0.0
    %5082 = vmatpush1.msra.mxu0 %v5024
    %5083 = vmatprep.subr.mxu0 0.0
    %5084 = vmatpush1.msra.mxu0 %v5023
    %5085 = vmatprep.subr.mxu0 0.0
    %5086 = vmatpush1.msra.mxu0 %v5022
    %5087 = vmatprep.subr.mxu0 0.0
    %5088 = vmatpush1.msra.mxu0 %v5021
    %5089 = vmatprep.subr.mxu0 0.0
    %5090 = vmatpush1.msra.mxu0 %v5020
    %5091 = vmatprep.subr.mxu0 0.0
    %5092 = vmatpush1.msra.mxu0 %v5019
    %5093 = vmatprep.subr.mxu0 0.0
    %5094 = vmatpush1.msra.mxu0 %v5018
    %5095 = vmatprep.subr.mxu0 0.0
    %5096 = vmatpush1.msra.mxu0 %v5017
    %5097 = vmatprep.subr.mxu0 0.0
    %5098 = vmatpush1.msra.mxu0 %v5016
    %5099 = vmatprep.subr.mxu0 0.0
    %5100 = vmatpush1.msra.mxu0 %v5015
    %5101 = vmatprep.subr.mxu0 0.0
    %5102 = vmatpush1.msra.mxu0 %v5014
    %5103 = vmatprep.subr.mxu0 0.0
    %5104 = vmatpush1.msra.mxu0 %v5013
    %5105 = vmatprep.subr.mxu0 0.0
    %5106 = vmatpush1.msra.mxu0 %v5012
    %5107 = vmatprep.subr.mxu0 0.0
    %5108 = vmatpush1.msra.mxu0 %v5011
    %5109 = vmatprep.subr.mxu0 0.0
    %5110 = vmatpush1.msra.mxu0 %v5010
    %5111 = vmatprep.subr.mxu0 0.0
    %5112 = vmatpush1.msra.mxu0 %v5009
    %5113 = vmatprep.subr.mxu0 0.0
    %5114 = vmatpush2.msra.mxu0 %v5040
    %5115 = vmatprep.subr.mxu0 0.0
    %5116 = vmatpush2.msra.mxu0 %v5039
    %5117 = vmatprep.subr.mxu0 0.0
    %5118 = vmatpush2.msra.mxu0 %v5038
    %5119 = vmatprep.subr.mxu0 0.0
    %5120 = vmatpush2.msra.mxu0 %v5037
    %5121 = vmatprep.subr.mxu0 0.0
    %5122 = vmatpush2.msra.mxu0 %v5036
    %5123 = vmatprep.subr.mxu0 0.0
    %5124 = vmatpush2.msra.mxu0 %v5035
    %5125 = vmatprep.subr.mxu0 0.0
    %5126 = vmatpush2.msra.mxu0 %v5034
    %5127 = vmatprep.subr.mxu0 0.0
    %5128 = vmatpush2.msra.mxu0 %v5033
    %5129 = vmatprep.subr.mxu0 0.0
    %5130 = vmatpush2.msra.mxu0 %v5032
    %5131 = vmatprep.subr.mxu0 0.0
    %5132 = vmatpush2.msra.mxu0 %v5031
    %5133 = vmatprep.subr.mxu0 0.0
    %5134 = vmatpush2.msra.mxu0 %v5030
    %5135 = vmatprep.subr.mxu0 0.0
    %5136 = vmatpush2.msra.mxu0 %v5029
    %5137 = vmatprep.subr.mxu0 0.0
    %5138 = vmatpush2.msra.mxu0 %v5028
    %5139 = vmatprep.subr.mxu0 0.0
    %5140 = vmatpush2.msra.mxu0 %v5027
    %5141 = vmatprep.subr.mxu0 0.0
    %5142 = vmatpush2.msra.mxu0 %v5026
    %5143 = vmatprep.subr.mxu0 0.0
    %5144 = vmatpush2.msra.mxu0 %v5025
    %5145 = vmatprep.mubr.f32.mxu0 %v5001
    %5146 = vmatmul.mubr.f32.gmra.mxu0 %v5000
    %v5147 = vpop.f32.mrf.mxu0
    %v5148 = vadd.f32 %v5079, %v5147
    %v5149 = vpop.f32.mrf.mxu0
    %5150 = vmatprep.mubr.f32.mxu0 %v5005
    %5151 = vmatmul.mubr.f32.gmra.mxu0 %v5004
    %v5152 = vpop.f32.mrf.mxu0
    %v5153 = vadd.f32 %v5079, %v5152
    %v5154 = vpop.f32.mrf.mxu0
    %5155 = vdwg.mxu0
    %5156 = vmatprep.subr.mxu0 0.0
    %5157 = vmatpush1.msra.mxu0 %v5056
    %5158 = vmatprep.subr.mxu0 0.0
    %5159 = vmatpush1.msra.mxu0 %v5055
    %5160 = vmatprep.subr.mxu0 0.0
    %5161 = vmatpush1.msra.mxu0 %v5054
    %5162 = vmatprep.subr.mxu0 0.0
    %5163 = vmatpush1.msra.mxu0 %v5053
    %5164 = vmatprep.subr.mxu0 0.0
    %5165 = vmatpush1.msra.mxu0 %v5052
    %5166 = vmatprep.subr.mxu0 0.0
    %5167 = vmatpush1.msra.mxu0 %v5051
    %5168 = vmatprep.subr.mxu0 0.0
    %5169 = vmatpush1.msra.mxu0 %v5050
    %5170 = vmatprep.subr.mxu0 0.0
    %5171 = vmatpush1.msra.mxu0 %v5049
    %5172 = vmatprep.subr.mxu0 0.0
    %5173 = vmatpush1.msra.mxu0 %v5048
    %5174 = vmatprep.subr.mxu0 0.0
    %5175 = vmatpush1.msra.mxu0 %v5047
    %5176 = vmatprep.subr.mxu0 0.0
    %5177 = vmatpush1.msra.mxu0 %v5046
    %5178 = vmatprep.subr.mxu0 0.0
    %5179 = vmatpush1.msra.mxu0 %v5045
    %5180 = vmatprep.subr.mxu0 0.0
    %5181 = vmatpush1.msra.mxu0 %v5044
    %5182 = vmatprep.subr.mxu0 0.0
    %5183 = vmatpush1.msra.mxu0 %v5043
    %5184 = vmatprep.subr.mxu0 0.0
    %5185 = vmatpush1.msra.mxu0 %v5042
    %5186 = vmatprep.subr.mxu0 0.0
    %5187 = vmatpush1.msra.mxu0 %v5041
    %5188 = vmatprep.subr.mxu0 0.0
    %5189 = vmatpush2.msra.mxu0 %v5072
    %5190 = vmatprep.subr.mxu0 0.0
    %5191 = vmatpush2.msra.mxu0 %v5071
    %5192 = vmatprep.subr.mxu0 0.0
    %5193 = vmatpush2.msra.mxu0 %v5070
    %5194 = vmatprep.subr.mxu0 0.0
    %5195 = vmatpush2.msra.mxu0 %v5069
    %5196 = vmatprep.subr.mxu0 0.0
    %5197 = vmatpush2.msra.mxu0 %v5068
    %5198 = vmatprep.subr.mxu0 0.0
    %5199 = vmatpush2.msra.mxu0 %v5067
    %5200 = vmatprep.subr.mxu0 0.0
    %5201 = vmatpush2.msra.mxu0 %v5066
    %5202 = vmatprep.subr.mxu0 0.0
    %5203 = vmatpush2.msra.mxu0 %v5065
    %5204 = vmatprep.subr.mxu0 0.0
    %5205 = vmatpush2.msra.mxu0 %v5064
    %5206 = vmatprep.subr.mxu0 0.0
    %5207 = vmatpush2.msra.mxu0 %v5063
    %5208 = vmatprep.subr.mxu0 0.0
    %5209 = vmatpush2.msra.mxu0 %v5062
    %5210 = vmatprep.subr.mxu0 0.0
    %5211 = vmatpush2.msra.mxu0 %v5061
    %5212 = vmatprep.subr.mxu0 0.0
    %5213 = vmatpush2.msra.mxu0 %v5060
    %5214 = vmatprep.subr.mxu0 0.0
    %5215 = vmatpush2.msra.mxu0 %v5059
    %5216 = vmatprep.subr.mxu0 0.0
    %5217 = vmatpush2.msra.mxu0 %v5058
    %5218 = vmatprep.subr.mxu0 0.0
    %5219 = vmatpush2.msra.mxu0 %v5057
    %5220 = vmatprep.mubr.f32.mxu0 %v5003
    %5221 = vmatmul.mubr.f32.gmra.mxu0 %v5002
    %v5222 = vpop.f32.mrf.mxu0
    %v5223 = vadd.f32 %v5148, %v5222
    %v5224 = vpop.f32.mrf.mxu0
    %5225 = vmatprep.mubr.f32.mxu0 %v5007
    %5226 = vmatmul.mubr.f32.gmra.mxu0 %v5006
    %v5227 = vpop.f32.mrf.mxu0
    %v5228 = vadd.f32 %v5153, %v5227
    %v5229 = vpop.f32.mrf.mxu0
    %5230 = vdwg.mxu0
    %v5231 = vadd.f32 %v4658, %v5223
    %v5232 = vadd.f32 %v4659, %v5228
    %v5233 = vld [vmem:[%s13] sm:$0x1]
    %v5234 = vld [vmem:[%s14] sm:$0x1]
    %5235 = vadd.xlane.f32.xlu0 %v5231
    %v5236 = vpop.xlane.xlu0 %5235
    %5237 = vadd.xlane.f32.xlu0 %v5232
    %v5238 = vpop.xlane.xlu0 %5237
    %v5239 = vmul.f32 %v5236, %v210
    %v5240 = vmul.f32 %v5238, %v210
    %v5241 = vsub.f32 %v5231, %v5239
    %v5242 = vsub.f32 %v5232, %v5240
    %v5243 = vmul.f32 %v5241, %v5241
    %v5244 = vmul.f32 %v5242, %v5242
    %5245 = vadd.xlane.f32.xlu0 %v5243
    %v5246 = vpop.xlane.xlu0 %5245
    %5247 = vadd.xlane.f32.xlu0 %v5244
    %v5248 = vpop.xlane.xlu0 %5247
    %v5249 = vmul.f32 %v5246, %v210
    %v5250 = vmul.f32 %v5248, %v210
    %v5251 = vadd.f32 %v5249, 1e-05
    %v5252 = vadd.f32 %v5250, 1e-05
    %v5253 = vrsqrt.pop %v5251
    %v5254 = vrsqrt.pop %v5252
    %v5255 = vmul.f32 %v5241, %v5253
    %v5256 = vmul.f32 %v5242, %v5254
    %v5258 = vlaneseq
    %v5259 = vshrl.u32 %v5258, 7
    %v5260 = vsub.s32 0, %v5259
    %v5261 = vrot.slane %v5233, %v5260
    %v5263 = vmul.f32 %v5255, %v5261
    %v5264 = vmul.f32 %v5256, %v5261
    %v5266 = vlaneseq
    %v5267 = vshrl.u32 %v5266, 7
    %v5268 = vsub.s32 0, %v5267
    %v5269 = vrot.slane %v5234, %v5268
    %v5271 = vadd.f32 %v5263, %v5269
    %v5272 = vadd.f32 %v5264, %v5269
    %5273 = vst [vmem:[#allocation19] sm:$0xff] %v5271
    %5274 = vst [vmem:[#allocation19 + $0x8] sm:$0xff] %v5272
    %v5275 = vld [vmem:[%s15] sm:$0x3]
    %vm5276 = vcmask 130048
    %v5278 = vsel %vm5276, %v5275, 0
    %5280 = vmatprep.subr.mxu0 0.0
    %5281 = vmatpush1.msra.mxu0 0.0
    %5282 = vmatprep.subr.mxu0 0.0
    %5283 = vmatpush1.msra.mxu0 0.0
    %5284 = vmatprep.subr.mxu0 0.0
    %5285 = vmatpush1.msra.mxu0 0.0
    %5286 = vmatprep.subr.mxu0 0.0
    %5287 = vmatpush1.msra.mxu0 0.0
    %5288 = vmatprep.subr.mxu0 0.0
    %5289 = vmatpush1.msra.mxu0 0.0
    %5290 = vmatprep.subr.mxu0 0.0
    %5291 = vmatpush1.msra.mxu0 0.0
    %5292 = vmatprep.subr.mxu0 0.0
    %5293 = vmatpush1.msra.mxu0 0.0
    %5294 = vmatprep.subr.mxu0 0.0
    %5295 = vmatpush1.msra.mxu0 0.0
    %5296 = vmatprep.subr.mxu0 0.0
    %5297 = vmatpush1.msra.mxu0 0.0
    %5298 = vmatprep.subr.mxu0 0.0
    %5299 = vmatpush1.msra.mxu0 0.0
    %5300 = vmatprep.subr.mxu0 0.0
    %5301 = vmatpush1.msra.mxu0 0.0
    %5302 = vmatprep.subr.mxu0 0.0
    %5303 = vmatpush1.msra.mxu0 0.0
    %5304 = vmatprep.subr.mxu0 0.0
    %5305 = vmatpush1.msra.mxu0 0.0
    %5306 = vmatprep.subr.mxu0 0.0
    %5307 = vmatpush1.msra.mxu0 0.0
    %5308 = vmatprep.subr.mxu0 0.0
    %5309 = vmatpush1.msra.mxu0 %v5272
    %5310 = vmatprep.subr.mxu0 0.0
    %5311 = vmatpush1.msra.mxu0 %v5271
    %5312 = vmatprep.subr.mxu0 0.0
    %5313 = vmatpush2.msra.mxu0 0.0
    %5314 = vmatprep.subr.mxu0 0.0
    %5315 = vmatpush2.msra.mxu0 0.0
    %5316 = vmatprep.subr.mxu0 0.0
    %5317 = vmatpush2.msra.mxu0 0.0
    %5318 = vmatprep.subr.mxu0 0.0
    %5319 = vmatpush2.msra.mxu0 0.0
    %5320 = vmatprep.subr.mxu0 0.0
    %5321 = vmatpush2.msra.mxu0 0.0
    %5322 = vmatprep.subr.mxu0 0.0
    %5323 = vmatpush2.msra.mxu0 0.0
    %5324 = vmatprep.subr.mxu0 0.0
    %5325 = vmatpush2.msra.mxu0 0.0
    %5326 = vmatprep.subr.mxu0 0.0
    %5327 = vmatpush2.msra.mxu0 0.0
    %5328 = vmatprep.subr.mxu0 0.0
    %5329 = vmatpush2.msra.mxu0 0.0
    %5330 = vmatprep.subr.mxu0 0.0
    %5331 = vmatpush2.msra.mxu0 0.0
    %5332 = vmatprep.subr.mxu0 0.0
    %5333 = vmatpush2.msra.mxu0 0.0
    %5334 = vmatprep.subr.mxu0 0.0
    %5335 = vmatpush2.msra.mxu0 0.0
    %5336 = vmatprep.subr.mxu0 0.0
    %5337 = vmatpush2.msra.mxu0 0.0
    %5338 = vmatprep.subr.mxu0 0.0
    %5339 = vmatpush2.msra.mxu0 0.0
    %5340 = vmatprep.subr.mxu0 0.0
    %5341 = vmatpush2.msra.mxu0 0.0
    %5342 = vmatprep.subr.mxu0 0.0
    %5343 = vmatpush2.msra.mxu0 0.0
    %5344 = vmatprep.mubr.f32.mxu0 0.0
    %5345 = vmatmul.mubr.f32.gmra.mxu0 %v5278
    %v5346 = vpop.f32.mrf.mxu0
    %v5347 = vadd.f32 0.0, %v5346
    %v5348 = vpop.f32.mrf.mxu0
    %5349 = vdwg.mxu0
    %v5350 = vld [vmem:[#allocation17] sm:$0xff]
    %v5351 = vld [vmem:[#allocation17 + $0x8] sm:$0xff]
    %v5352 = vld [vmem:[#allocation17 + $0x10] sm:$0xff]
    %v5353 = vld [vmem:[#allocation17 + $0x18] sm:$0xff]
    %v5354 = vld [vmem:[#allocation17 + $0x20] sm:$0xff]
    %v5355 = vld [vmem:[#allocation17 + $0x28] sm:$0xff]
    %v5356 = vld [vmem:[#allocation17 + $0x30] sm:$0xff]
    %v5357 = vld [vmem:[#allocation17 + $0x38] sm:$0xff]
    %v5358 = vld [vmem:[#allocation17 + $0x40] sm:$0xff]
    %v5359 = vld [vmem:[#allocation17 + $0x48] sm:$0xff]
    %v5360 = vld [vmem:[#allocation17 + $0x50] sm:$0xff]
    %v5361 = vld [vmem:[#allocation17 + $0x58] sm:$0xff]
    %v5362 = vld [vmem:[#allocation17 + $0x60] sm:$0xff]
    %v5363 = vld [vmem:[#allocation17 + $0x68] sm:$0xff]
    %v5364 = vld [vmem:[#allocation17 + $0x70] sm:$0xff]
    %v5365 = vld [vmem:[#allocation17 + $0x78] sm:$0xff]
    %5366 = vmatprep.subr.mxu0 0.0
    %5367 = vmatpush1.msra.mxu0 %v5365
    %5368 = vmatprep.subr.mxu0 0.0
    %5369 = vmatpush1.msra.mxu0 %v5364
    %5370 = vmatprep.subr.mxu0 0.0
    %5371 = vmatpush1.msra.mxu0 %v5363
    %5372 = vmatprep.subr.mxu0 0.0
    %5373 = vmatpush1.msra.mxu0 %v5362
    %5374 = vmatprep.subr.mxu0 0.0
    %5375 = vmatpush1.msra.mxu0 %v5361
    %5376 = vmatprep.subr.mxu0 0.0
    %5377 = vmatpush1.msra.mxu0 %v5360
    %5378 = vmatprep.subr.mxu0 0.0
    %5379 = vmatpush1.msra.mxu0 %v5359
    %5380 = vmatprep.subr.mxu0 0.0
    %5381 = vmatpush1.msra.mxu0 %v5358
    %5382 = vmatprep.subr.mxu0 0.0
    %5383 = vmatpush1.msra.mxu0 %v5357
    %5384 = vmatprep.subr.mxu0 0.0
    %5385 = vmatpush1.msra.mxu0 %v5356
    %5386 = vmatprep.subr.mxu0 0.0
    %5387 = vmatpush1.msra.mxu0 %v5355
    %5388 = vmatprep.subr.mxu0 0.0
    %5389 = vmatpush1.msra.mxu0 %v5354
    %5390 = vmatprep.subr.mxu0 0.0
    %5391 = vmatpush1.msra.mxu0 %v5353
    %5392 = vmatprep.subr.mxu0 0.0
    %5393 = vmatpush1.msra.mxu0 %v5352
    %5394 = vmatprep.subr.mxu0 0.0
    %5395 = vmatpush1.msra.mxu0 %v5351
    %5396 = vmatprep.subr.mxu0 0.0
    %5397 = vmatpush1.msra.mxu0 %v5350
    %5398 = vmatprep.subr.mxu0 0.0
    %5399 = vmatpush2.msra.mxu0 0.0
    %5400 = vmatprep.subr.mxu0 0.0
    %5401 = vmatpush2.msra.mxu0 0.0
    %5402 = vmatprep.subr.mxu0 0.0
    %5403 = vmatpush2.msra.mxu0 0.0
    %5404 = vmatprep.subr.mxu0 0.0
    %5405 = vmatpush2.msra.mxu0 0.0
    %5406 = vmatprep.subr.mxu0 0.0
    %5407 = vmatpush2.msra.mxu0 0.0
    %5408 = vmatprep.subr.mxu0 0.0
    %5409 = vmatpush2.msra.mxu0 0.0
    %5410 = vmatprep.subr.mxu0 0.0
    %5411 = vmatpush2.msra.mxu0 0.0
    %5412 = vmatprep.subr.mxu0 0.0
    %5413 = vmatpush2.msra.mxu0 0.0
    %5414 = vmatprep.subr.mxu0 0.0
    %5415 = vmatpush2.msra.mxu0 0.0
    %5416 = vmatprep.subr.mxu0 0.0
    %5417 = vmatpush2.msra.mxu0 0.0
    %5418 = vmatprep.subr.mxu0 0.0
    %5419 = vmatpush2.msra.mxu0 0.0
    %5420 = vmatprep.subr.mxu0 0.0
    %5421 = vmatpush2.msra.mxu0 0.0
    %5422 = vmatprep.subr.mxu0 0.0
    %5423 = vmatpush2.msra.mxu0 0.0
    %5424 = vmatprep.subr.mxu0 0.0
    %5425 = vmatpush2.msra.mxu0 0.0
    %5426 = vmatprep.subr.mxu0 0.0
    %5427 = vmatpush2.msra.mxu0 0.0
    %5428 = vmatprep.subr.mxu0 0.0
    %5429 = vmatpush2.msra.mxu0 0.0
    %5430 = vmatprep.mubr.f32.mxu0 0.0
    %5431 = vmatmul.mubr.f32.gmra.mxu0 %v5347
    %v5432 = vpop.f32.mrf.mxu0
    %v5433 = vadd.f32 0.0, %v5432
    %v5434 = vpop.f32.mrf.mxu0
    %5435 = vdwg.mxu0
    %5436 = vst [vmem:[#allocation20] sm:$0x3] %v5433
    // Predicated region
    $region110: #{tpu_custom_call.1} parent=1 // pred_check
      _
    $region111: #{tpu_custom_call.1} parent=1 // pred_check_branch
      %5438 = sbr.rel (0) target = $region113
    $region112: #{tpu_custom_call.1} parent=1 // pred_region
      %s5440 = ssub.s32 256, 256
      %5441 = vsyncadd [#allocation4], %s5440
      %s5442 = sshll.u32 [#allocation19], 4
      %s5443 = int_to_ptr.vmem [resolvable:$true] %s5442
      %5448 = dma.vmem_to_hbm [thread:$0]  %s5443, 256, %s17, [#allocation4], 128, 128, 8
    $region113: #{tpu_custom_call.1} parent=1 // pred_fallthru
      _
    // Predicated region
    $region114: #{tpu_custom_call.1} parent=1 // pred_check
      _
    $region115: #{tpu_custom_call.1} parent=1 // pred_check_branch
      %5450 = sbr.rel (0) target = $region117
    $region116: #{tpu_custom_call.1} parent=1 // pred_region
      %s5452 = ssub.s32 32, 32
      %5453 = vsyncadd [#allocation21], %s5452
      %s5455 = sshll.u32 [#allocation20], 4
      %s5456 = int_to_ptr.vmem [resolvable:$true] %s5455
      %5458 = dma.vmem_to_hbm [thread:$0]  %s5456, 32, %s18, [#allocation21]
    $region117: #{tpu_custom_call.1} parent=1 // pred_fallthru
      _
    // Predicated region
    $region118: #{tpu_custom_call.1} parent=1 // pred_check
      _
    $region119: #{tpu_custom_call.1} parent=1 // pred_check_branch
      %5460 = sbr.rel (0) target = $region121
    $region120: #{tpu_custom_call.1} parent=1 // pred_region
      %5461 = dma.done [#allocation4], 256
    $region121: #{tpu_custom_call.1} parent=1 // pred_fallthru
      _
    // Predicated region
    $region122: #{tpu_custom_call.1} parent=1 // pred_check
      _
    $region123: #{tpu_custom_call.1} parent=1 // pred_check_branch
      %5463 = sbr.rel (0) target = $region125
    $region124: #{tpu_custom_call.1} parent=1 // pred_region
      %5464 = dma.done [#allocation21], 32
    $region125: #{tpu_custom_call.1} parent=1 // pred_fallthru
      _
    %5465 = vsyncpa [#allocation3], 1
    %5466 = vsyncpa [#allocation6], 1
    %5467 = vsyncpa [#allocation9], 1
    %5468 = vsyncpa [#allocation12], 1
    %5469 = vsyncpa [#allocation15], 1
    %5470 = vsyncpa [#allocation18], 1
    %5471 = vsyncpa [#allocation4], 1
    %5472 = vsyncpa [#allocation21], 1

</llo_original>
